<compile_context>
chip_gen: v6e
topology: v6e:2x2x1
jax: 0.10.0
libtpu: 0.0.40
codegen_flags: <defaults>
</compile_context>

<pallas_src>
import functools

import jax
import jax.numpy as jnp
from jax.experimental import pallas as pl
from jax.experimental.pallas import tpu as pltpu


def _attention_kernel(x_ref, y_ref, wq_ref, wk_ref, wv_ref, wp_ref, bp_ref,
                      o_ref, k_scr, v_scr, q_scr, attn_scr, *,
                      num_heads, approx, kv_chunk):
    """One grid step = (batch b, query tile qi).

    qi == 0: project K/V for the whole sequence of this batch element into VMEM
    scratch (K pre-transposed per head); K/V stay resident across query tiles.
    Every step: project the query tile, run per-head softmax attention against
    the resident K/V (ref slices only), then the output projection + bias.
    """
    C = x_ref.shape[2]
    N = y_ref.shape[1]
    D = C // num_heads
    cdtype = wq_ref.dtype            # MXU compute dtype (weights pre-cast in wrapper)

    # ---- K/V projection: once per batch element (first query tile) ----------
    # Two separate dots (no (N, 2C) f32 intermediate), row-chunked so each
    # chunk's f32 result is stored before the next matmul keeps streaming.
    @pl.when(pl.program_id(1) == 0)
    def _():
        for c0 in range(0, N, kv_chunk):
            rows = slice(c0, c0 + kv_chunk)
            y_c = y_ref[0, rows, :].astype(cdtype)                  # (chunk, C)
            vc = jnp.dot(y_c, wv_ref[...],
                         preferred_element_type=jnp.float32)        # (chunk, C)
            v_scr[rows, :] = vc.astype(cdtype)
            kc = jnp.dot(y_c, wk_ref[...],
                         preferred_element_type=jnp.float32)        # (chunk, C)
            kc_t = kc.astype(cdtype).T                              # one XLU pass per chunk
            for h in range(num_heads):                              # static unroll
                k_scr[h, :, rows] = kc_t[h * D:(h + 1) * D, :]      # (D, chunk)

    # ---- Q projection for this tile (softmax scale folded into Wq) ----------
    q_scr[...] = jnp.dot(x_ref[0].astype(cdtype), wq_ref[...],
                         preferred_element_type=jnp.float32).astype(cdtype)

    # ---- Per-head attention; outputs stored straight into the (Tq, C) slab ---
    # TODO(synk): with head_dim << MXU width this loop is likely EUP(exp)-bound
    # on v6e/v7x rather than MXU-bound; profile the binding slot before tuning.
    for h in range(num_heads):                                      # static unroll
        sl = slice(h * D, (h + 1) * D)
        qh = q_scr[:, sl]                                           # (Tq, D) ref slice
        s = jnp.dot(qh, k_scr[h],
                    preferred_element_type=jnp.float32)             # (Tq, N) lane-dense
        s = s - jnp.max(s, axis=-1, keepdims=True)
        p = jnp.exp(s)
        inv_l = pl.reciprocal(jnp.sum(p, axis=-1, keepdims=True),
                              approx=approx)                        # (Tq, 1)
        oh = jnp.dot(p.astype(cdtype), v_scr[:, sl],
                     preferred_element_type=jnp.float32)            # (Tq, D)
        attn_scr[:, sl] = (oh * inv_l).astype(cdtype)

    # ---- Output projection + bias --------------------------------------------
    out = jnp.dot(attn_scr[...], wp_ref[...],
                  preferred_element_type=jnp.float32)               # (Tq, C) f32
    o_ref[0] = (out + bp_ref[...]).astype(o_ref.dtype)


def _divisors_multiple_of(n, step, target):
    return [t for t in range(step, min(target, n) + 1, step) if n % t == 0]


def _q_block_candidates(n, target=512):
    cands = _divisors_multiple_of(n, 8, target)
    if not cands:
        return [n]
    # Prefer MXU-friendly multiples of 256 / 128, then the largest.
    cands.sort(key=lambda t: (t % 256 == 0, t % 128 == 0, t), reverse=True)
    return cands


def _choose_kv_chunk(n, target=512):
    cands = _divisors_multiple_of(n, 8, target)
    return max(cands) if cands else n


def _vmem_capacity_bytes():
    try:
        cap = getattr(pltpu.get_tpu_info(), "vmem_capacity_bytes", None)
        if cap:
            return int(cap)
    except Exception:
        pass
    return 64 * 1024 * 1024          # conservative fallback (v7x per-TC VMEM)


def _vmem_bytes_estimate(n, c, q_block, cd_bytes, in_bytes, out_bytes):
    scratch = 2 * n * c * cd_bytes + 2 * q_block * c * cd_bytes       # K,V + q,attn slabs
    pipeline = (2 * q_block * c * in_bytes                            # x tile (x2 buffers)
                + 2 * n * c * in_bytes                                # y full sequence (x2)
                + 2 * q_block * c * out_bytes)                        # output tile (x2)
    weights = 4 * c * c * cd_bytes + 4 * c                            # single-buffered weights
    return scratch + pipeline + weights


def attention_forward(x, y, wq, wkv, wproj, bproj, *, num_heads, qk_scale=None,
                      q_block=None, compute_dtype=jnp.bfloat16,
                      approx_softmax=True):
    """x, y: (B, N, C); weights stored (in, out); bproj: (C,)."""
    B, N, C = x.shape
    assert x.shape == y.shape
    assert C % num_heads == 0
    head_dim = C // num_heads
    scale = float(qk_scale) if qk_scale is not None else head_dim ** (-0.5)

    out_dtype = x.dtype
    cd = compute_dtype
    cd_bytes = jnp.dtype(cd).itemsize
    in_bytes = jnp.dtype(x.dtype).itemsize
    out_bytes = jnp.dtype(out_dtype).itemsize

    # Per-generation VMEM cap: leave headroom under v7x's 64 MiB physical VMEM,
    # allow more on v5e/v6e (128 MiB).
    phys = _vmem_capacity_bytes()
    vmem_cap = 48 * 1024 * 1024 if phys <= 64 * 1024 * 1024 else 96 * 1024 * 1024

    if q_block is None:
        cands = _q_block_candidates(N)
        q_block = cands[-1]
        for qb in cands:
            if _vmem_bytes_estimate(N, C, qb, cd_bytes, in_bytes, out_bytes) <= vmem_cap:
                q_block = qb
                break
    assert N % q_block == 0, f"q_block {q_block} must divide N {N}"

    required = _vmem_bytes_estimate(N, C, q_block, cd_bytes, in_bytes, out_bytes)
    vmem_limit = int(min(vmem_cap, max(required + 8 * 1024 * 1024, 32 * 1024 * 1024)))

    kv_chunk = _choose_kv_chunk(N)

    # Weights pre-cast to the compute dtype (tiny, reused every step); the
    # softmax scale is folded into Wq for free.  Activations keep their input
    # dtype and are cast after load inside the kernel.
    wqc = (wq * scale).astype(cd)
    wkc = wkv[:, :C].astype(cd)
    wvc = wkv[:, C:].astype(cd)
    wpc = wproj.astype(cd)
    bproj2d = bproj.reshape(1, C).astype(jnp.float32)   # bias added in f32

    kernel = functools.partial(_attention_kernel, num_heads=num_heads,
                               approx=approx_softmax, kv_chunk=kv_chunk)

    grid = (B, N // q_block)
    return pl.pallas_call(
        kernel,
        out_shape=jax.ShapeDtypeStruct((B, N, C), out_dtype),
        grid_spec=pltpu.PrefetchScalarGridSpec(
            num_scalar_prefetch=0,
            grid=grid,
            in_specs=[
                # x: query tile
                pl.BlockSpec((1, q_block, C), lambda b, qi: (b, qi, 0)),
                # y: full sequence; block index constant within a batch element,
                # so it is only re-DMA'd when b changes.
                pl.BlockSpec((1, N, C), lambda b, qi: (b, 0, 0)),
                # Grid-invariant weights: single-buffered (DMA'd once).
                pl.BlockSpec((C, C), lambda b, qi: (0, 0),
                             pipeline_mode=pl.Buffered(1)),            # Wq (scale folded)
                pl.BlockSpec((C, C), lambda b, qi: (0, 0),
                             pipeline_mode=pl.Buffered(1)),            # Wk
                pl.BlockSpec((C, C), lambda b, qi: (0, 0),
                             pipeline_mode=pl.Buffered(1)),            # Wv
                pl.BlockSpec((C, C), lambda b, qi: (0, 0),
                             pipeline_mode=pl.Buffered(1)),            # Wproj
                pl.BlockSpec((1, C), lambda b, qi: (0, 0),
                             pipeline_mode=pl.Buffered(1)),            # bproj
            ],
            out_specs=pl.BlockSpec((1, q_block, C), lambda b, qi: (b, qi, 0)),
            scratch_shapes=[
                pltpu.VMEM((num_heads, head_dim, N), cd),  # K, pre-transposed per head
                pltpu.VMEM((N, C), cd),                    # V
                pltpu.VMEM((q_block, C), cd),              # Q (this tile)
                pltpu.VMEM((q_block, C), cd),              # assembled per-head outputs
            ],
        ),
        compiler_params=pltpu.CompilerParams(
            dimension_semantics=("parallel", "arbitrary"),
            vmem_limit_bytes=vmem_limit,
        ),
    )(x, y, wqc, wkc, wvc, wpc, bproj2d)


def attention_reference(x, y, wq, wkv, wproj, bproj, *, num_heads, qk_scale=None):
    """Pure-JAX reference mirroring the PyTorch forward (sr_ratio=1, dropout=0)."""
    B, N, C = x.shape
    D = C // num_heads
    scale = qk_scale if qk_scale is not None else D ** (-0.5)
    q = (x @ wq).reshape(B, N, num_heads, D).transpose(0, 2, 1, 3)
    kv = (y @ wkv).reshape(B, N, 2, num_heads, D).transpose(2, 0, 3, 1, 4)
    k, v = kv[0], kv[1]
    attn = jnp.einsum("bhqd,bhkd->bhqk", q, k) * scale
    attn = jax.nn.softmax(attn, axis=-1)
    out = jnp.einsum("bhqk,bhkd->bhqd", attn, v)
    out = out.transpose(0, 2, 1, 3).reshape(B, N, C)
    return out @ wproj + bproj


if __name__ == "__main__":
    # Small but lane-dense shapes (C multiple of 128).
    B, N, C = 2, 128, 128
    num_heads = 8

    key = jax.random.PRNGKey(0)
    kx, ky, kq, kkv, kp, kb = jax.random.split(key, 6)

    x = jax.random.normal(kx, (B, N, C), dtype=jnp.float32)
    y = jax.random.normal(ky, (B, N, C), dtype=jnp.float32)

    # Deterministic synthetic parameters (stored as (in, out)).
    wq = jax.random.normal(kq, (C, C), dtype=jnp.float32) * 0.05
    wkv = jax.random.normal(kkv, (C, 2 * C), dtype=jnp.float32) * 0.05
    wproj = jax.random.normal(kp, (C, C), dtype=jnp.float32) * 0.05
    bproj = jax.random.normal(kb, (C,), dtype=jnp.float32) * 0.01

    ref = attention_reference(x, y, wq, wkv, wproj, bproj, num_heads=num_heads)

    # 1) Exact-precision config: f32 MXU operands, exact reciprocal (tight check).
    out_f32 = attention_forward(x, y, wq, wkv, wproj, bproj, num_heads=num_heads,
                                compute_dtype=jnp.float32, approx_softmax=False)
    out_f32 = jax.block_until_ready(out_f32)
    assert out_f32.shape == (B, N, C)
    assert jnp.allclose(out_f32, ref, atol=1e-4, rtol=1e-4), "f32 mismatch vs reference"

    # 2) Fast config: bf16 MXU operands + f32 accumulation, approx reciprocal.
    out_fast = attention_forward(x, y, wq, wkv, wproj, bproj, num_heads=num_heads)
    out_fast = jax.block_until_ready(out_fast)
    assert out_fast.shape == (B, N, C)
    assert jnp.allclose(out_fast, ref, atol=5e-2, rtol=5e-2), "bf16 mismatch vs reference"

    print("KERNEL_OK")
</pallas_src>

<mosaic_0001>
module attributes {stable_mosaic.version = 11 : i64} {
  func.func @_attention_kernel(%arg0: i32, %arg1: i32, %arg2: memref<1x128x128xf32, #tpu.memory_space<vmem>>, %arg3: memref<1x128x128xf32, #tpu.memory_space<vmem>>, %arg4: memref<128x128xf32, #tpu.memory_space<vmem>>, %arg5: memref<128x128xf32, #tpu.memory_space<vmem>>, %arg6: memref<128x128xf32, #tpu.memory_space<vmem>>, %arg7: memref<128x128xf32, #tpu.memory_space<vmem>>, %arg8: memref<1x128xf32, #tpu.memory_space<vmem>>, %arg9: memref<1x128x128xf32, #tpu.memory_space<vmem>>, %arg10: memref<8x16x128xf32, #tpu.memory_space<vmem>>, %arg11: memref<128x128xf32, #tpu.memory_space<vmem>>, %arg12: memref<128x128xf32, #tpu.memory_space<vmem>>, %arg13: memref<128x128xf32, #tpu.memory_space<vmem>>) attributes {dimension_semantics = [#tpu.dimension_semantics<parallel>, #tpu.dimension_semantics<arbitrary>], iteration_bounds = array<i64: 2, 1>, scalar_prefetch = 0 : i64, scratch_operands = 4 : i64, tpu.core_type = #tpu.core_type<tc>, window_params = [{transform_indices = @transform_0, window_bounds = array<i64: 1, 128, 128>}, {transform_indices = @transform_1, window_bounds = array<i64: 1, 128, 128>}, {pipeline_mode = #tpu.pipeline_mode<synchronous>, transform_indices = @transform_2, window_bounds = array<i64: 128, 128>}, {pipeline_mode = #tpu.pipeline_mode<synchronous>, transform_indices = @transform_3, window_bounds = array<i64: 128, 128>}, {pipeline_mode = #tpu.pipeline_mode<synchronous>, transform_indices = @transform_4, window_bounds = array<i64: 128, 128>}, {pipeline_mode = #tpu.pipeline_mode<synchronous>, transform_indices = @transform_5, window_bounds = array<i64: 128, 128>}, {pipeline_mode = #tpu.pipeline_mode<synchronous>, transform_indices = @transform_6, window_bounds = array<i64: 1, 128>}, {transform_indices = @transform_7, window_bounds = array<i64: 1, 128, 128>}]} {
    %c0_i32 = arith.constant 0 : i32
    %0 = arith.cmpi eq, %arg1, %c0_i32 : i32
    %1 = arith.extui %0 : i1 to i32
    %c0_i32_0 = arith.constant 0 : i32
    %2 = arith.cmpi ne, %1, %c0_i32_0 : i32
    scf.if %2 {
      %c0_107 = arith.constant 0 : index
      %c0_108 = arith.constant 0 : index
      %c0_109 = arith.constant 0 : index
      %153 = vector.load %arg3[%c0_107, %c0_108, %c0_109] : memref<1x128x128xf32, #tpu.memory_space<vmem>>, vector<1x128x128xf32>
      %154 = vector.shape_cast %153 : vector<1x128x128xf32> to vector<128x128xf32>
      %c0_110 = arith.constant 0 : index
      %c0_111 = arith.constant 0 : index
      %155 = vector.load %arg6[%c0_110, %c0_111] : memref<128x128xf32, #tpu.memory_space<vmem>>, vector<128x128xf32>
      %cst_112 = arith.constant dense<0.000000e+00> : vector<128x128xf32>
      %156 = tpu.matmul %154, %155, %cst_112 {dimension_numbers = #tpu.dot_dimension_numbers<[1], [0], [0], [1], [0, 0, 1, 1], [], []>} : vector<128x128xf32>, vector<128x128xf32>, vector<128x128xf32> -> vector<128x128xf32>
      %c0_113 = arith.constant 0 : index
      %c0_114 = arith.constant 0 : index
      %157 = vector.load %arg11[%c0_113, %c0_114] : memref<128x128xf32, #tpu.memory_space<vmem>>, vector<128x128xf32>
      tpu.vector_store %arg11[%c0_113, %c0_114], %156 {strides = array<i32>} : memref<128x128xf32, #tpu.memory_space<vmem>>, vector<128x128xf32>,
      %c0_115 = arith.constant 0 : index
      %c0_116 = arith.constant 0 : index
      %158 = vector.load %arg5[%c0_115, %c0_116] : memref<128x128xf32, #tpu.memory_space<vmem>>, vector<128x128xf32>
      %cst_117 = arith.constant dense<0.000000e+00> : vector<128x128xf32>
      %159 = tpu.matmul %154, %158, %cst_117 {dimension_numbers = #tpu.dot_dimension_numbers<[1], [0], [0], [1], [0, 0, 1, 1], [], []>} : vector<128x128xf32>, vector<128x128xf32>, vector<128x128xf32> -> vector<128x128xf32>
      %160 = tpu.transpose %159, [1, 0] : vector<128x128xf32> -> vector<128x128xf32>
      %161 = vector.extract_strided_slice %160 {offsets = [0, 0], sizes = [16, 128], strides = [1, 1]} : vector<128x128xf32> to vector<16x128xf32>
      %c0_118 = arith.constant 0 : index
      %c0_119 = arith.constant 0 : index
      %c0_120 = arith.constant 0 : index
      %162 = vector.load %arg10[%c0_118, %c0_119, %c0_120] : memref<8x16x128xf32, #tpu.memory_space<vmem>>, vector<1x16x128xf32>
      %163 = vector.shape_cast %162 : vector<1x16x128xf32> to vector<16x128xf32>
      %164 = vector.shape_cast %161 : vector<16x128xf32> to vector<1x16x128xf32>
      tpu.vector_store %arg10[%c0_118, %c0_119, %c0_120], %164 {strides = array<i32>} : memref<8x16x128xf32, #tpu.memory_space<vmem>>, vector<1x16x128xf32>,
      %165 = vector.extract_strided_slice %160 {offsets = [16, 0], sizes = [16, 128], strides = [1, 1]} : vector<128x128xf32> to vector<16x128xf32>
      %c1_121 = arith.constant 1 : index
      %c0_122 = arith.constant 0 : index
      %c0_123 = arith.constant 0 : index
      %166 = vector.load %arg10[%c1_121, %c0_122, %c0_123] : memref<8x16x128xf32, #tpu.memory_space<vmem>>, vector<1x16x128xf32>
      %167 = vector.shape_cast %166 : vector<1x16x128xf32> to vector<16x128xf32>
      %168 = vector.shape_cast %165 : vector<16x128xf32> to vector<1x16x128xf32>
      tpu.vector_store %arg10[%c1_121, %c0_122, %c0_123], %168 {strides = array<i32>} : memref<8x16x128xf32, #tpu.memory_space<vmem>>, vector<1x16x128xf32>,
      %169 = vector.extract_strided_slice %160 {offsets = [32, 0], sizes = [16, 128], strides = [1, 1]} : vector<128x128xf32> to vector<16x128xf32>
      %c2_124 = arith.constant 2 : index
      %c0_125 = arith.constant 0 : index
      %c0_126 = arith.constant 0 : index
      %170 = vector.load %arg10[%c2_124, %c0_125, %c0_126] : memref<8x16x128xf32, #tpu.memory_space<vmem>>, vector<1x16x128xf32>
      %171 = vector.shape_cast %170 : vector<1x16x128xf32> to vector<16x128xf32>
      %172 = vector.shape_cast %169 : vector<16x128xf32> to vector<1x16x128xf32>
      tpu.vector_store %arg10[%c2_124, %c0_125, %c0_126], %172 {strides = array<i32>} : memref<8x16x128xf32, #tpu.memory_space<vmem>>, vector<1x16x128xf32>,
      %173 = vector.extract_strided_slice %160 {offsets = [48, 0], sizes = [16, 128], strides = [1, 1]} : vector<128x128xf32> to vector<16x128xf32>
      %c3_127 = arith.constant 3 : index
      %c0_128 = arith.constant 0 : index
      %c0_129 = arith.constant 0 : index
      %174 = vector.load %arg10[%c3_127, %c0_128, %c0_129] : memref<8x16x128xf32, #tpu.memory_space<vmem>>, vector<1x16x128xf32>
      %175 = vector.shape_cast %174 : vector<1x16x128xf32> to vector<16x128xf32>
      %176 = vector.shape_cast %173 : vector<16x128xf32> to vector<1x16x128xf32>
      tpu.vector_store %arg10[%c3_127, %c0_128, %c0_129], %176 {strides = array<i32>} : memref<8x16x128xf32, #tpu.memory_space<vmem>>, vector<1x16x128xf32>,
      %177 = vector.extract_strided_slice %160 {offsets = [64, 0], sizes = [16, 128], strides = [1, 1]} : vector<128x128xf32> to vector<16x128xf32>
      %c4_130 = arith.constant 4 : index
      %c0_131 = arith.constant 0 : index
      %c0_132 = arith.constant 0 : index
      %178 = vector.load %arg10[%c4_130, %c0_131, %c0_132] : memref<8x16x128xf32, #tpu.memory_space<vmem>>, vector<1x16x128xf32>
      %179 = vector.shape_cast %178 : vector<1x16x128xf32> to vector<16x128xf32>
      %180 = vector.shape_cast %177 : vector<16x128xf32> to vector<1x16x128xf32>
      tpu.vector_store %arg10[%c4_130, %c0_131, %c0_132], %180 {strides = array<i32>} : memref<8x16x128xf32, #tpu.memory_space<vmem>>, vector<1x16x128xf32>,
      %181 = vector.extract_strided_slice %160 {offsets = [80, 0], sizes = [16, 128], strides = [1, 1]} : vector<128x128xf32> to vector<16x128xf32>
      %c5_133 = arith.constant 5 : index
      %c0_134 = arith.constant 0 : index
      %c0_135 = arith.constant 0 : index
      %182 = vector.load %arg10[%c5_133, %c0_134, %c0_135] : memref<8x16x128xf32, #tpu.memory_space<vmem>>, vector<1x16x128xf32>
      %183 = vector.shape_cast %182 : vector<1x16x128xf32> to vector<16x128xf32>
      %184 = vector.shape_cast %181 : vector<16x128xf32> to vector<1x16x128xf32>
      tpu.vector_store %arg10[%c5_133, %c0_134, %c0_135], %184 {strides = array<i32>} : memref<8x16x128xf32, #tpu.memory_space<vmem>>, vector<1x16x128xf32>,
      %185 = vector.extract_strided_slice %160 {offsets = [96, 0], sizes = [16, 128], strides = [1, 1]} : vector<128x128xf32> to vector<16x128xf32>
      %c6_136 = arith.constant 6 : index
      %c0_137 = arith.constant 0 : index
      %c0_138 = arith.constant 0 : index
      %186 = vector.load %arg10[%c6_136, %c0_137, %c0_138] : memref<8x16x128xf32, #tpu.memory_space<vmem>>, vector<1x16x128xf32>
      %187 = vector.shape_cast %186 : vector<1x16x128xf32> to vector<16x128xf32>
      %188 = vector.shape_cast %185 : vector<16x128xf32> to vector<1x16x128xf32>
      tpu.vector_store %arg10[%c6_136, %c0_137, %c0_138], %188 {strides = array<i32>} : memref<8x16x128xf32, #tpu.memory_space<vmem>>, vector<1x16x128xf32>,
      %189 = vector.extract_strided_slice %160 {offsets = [112, 0], sizes = [16, 128], strides = [1, 1]} : vector<128x128xf32> to vector<16x128xf32>
      %c7_139 = arith.constant 7 : index
      %c0_140 = arith.constant 0 : index
      %c0_141 = arith.constant 0 : index
      %190 = vector.load %arg10[%c7_139, %c0_140, %c0_141] : memref<8x16x128xf32, #tpu.memory_space<vmem>>, vector<1x16x128xf32>
      %191 = vector.shape_cast %190 : vector<1x16x128xf32> to vector<16x128xf32>
      %192 = vector.shape_cast %189 : vector<16x128xf32> to vector<1x16x128xf32>
      tpu.vector_store %arg10[%c7_139, %c0_140, %c0_141], %192 {strides = array<i32>} : memref<8x16x128xf32, #tpu.memory_space<vmem>>, vector<1x16x128xf32>,
    } else {
    }
    %c0 = arith.constant 0 : index
    %c0_1 = arith.constant 0 : index
    %c0_2 = arith.constant 0 : index
    %3 = vector.load %arg2[%c0, %c0_1, %c0_2] : memref<1x128x128xf32, #tpu.memory_space<vmem>>, vector<1x128x128xf32>
    %4 = vector.shape_cast %3 : vector<1x128x128xf32> to vector<128x128xf32>
    %c0_3 = arith.constant 0 : index
    %c0_4 = arith.constant 0 : index
    %5 = vector.load %arg4[%c0_3, %c0_4] : memref<128x128xf32, #tpu.memory_space<vmem>>, vector<128x128xf32>
    %cst = arith.constant dense<0.000000e+00> : vector<128x128xf32>
    %6 = tpu.matmul %4, %5, %cst {dimension_numbers = #tpu.dot_dimension_numbers<[1], [0], [0], [1], [0, 0, 1, 1], [], []>} : vector<128x128xf32>, vector<128x128xf32>, vector<128x128xf32> -> vector<128x128xf32>
    %c0_5 = arith.constant 0 : index
    %c0_6 = arith.constant 0 : index
    %7 = vector.load %arg12[%c0_5, %c0_6] : memref<128x128xf32, #tpu.memory_space<vmem>>, vector<128x128xf32>
    tpu.vector_store %arg12[%c0_5, %c0_6], %6 {strides = array<i32>} : memref<128x128xf32, #tpu.memory_space<vmem>>, vector<128x128xf32>,
    %c0_7 = arith.constant 0 : index
    %c0_8 = arith.constant 0 : index
    %8 = vector.load %arg12[%c0_7, %c0_8] : memref<128x128xf32, #tpu.memory_space<vmem>>, vector<128x16xf32>
    %c0_9 = arith.constant 0 : index
    %c0_10 = arith.constant 0 : index
    %c0_11 = arith.constant 0 : index
    %9 = vector.load %arg10[%c0_9, %c0_10, %c0_11] : memref<8x16x128xf32, #tpu.memory_space<vmem>>, vector<1x16x128xf32>
    %10 = vector.shape_cast %9 : vector<1x16x128xf32> to vector<16x128xf32>
    %cst_12 = arith.constant dense<0.000000e+00> : vector<128x128xf32>
    %11 = tpu.matmul %8, %10, %cst_12 {dimension_numbers = #tpu.dot_dimension_numbers<[1], [0], [0], [1], [0, 0, 1, 1], [], []>} : vector<128x16xf32>, vector<16x128xf32>, vector<128x128xf32> -> vector<128x128xf32>
    %cst_13 = arith.constant dense<0xFF800000> : vector<128xf32>
    %12 = vector.multi_reduction <maximumf>, %11, %cst_13 [1] : vector<128x128xf32> to vector<128xf32>
    %13 = vector.shape_cast %12 : vector<128xf32> to vector<128x1xf32>
    %14 = vector.broadcast %13 : vector<128x1xf32> to vector<128x128xf32>
    %15 = arith.subf %11, %14 : vector<128x128xf32>
    %16 = math.exp %15 : vector<128x128xf32>
    %cst_14 = arith.constant dense<0.000000e+00> : vector<128xf32>
    %17 = vector.multi_reduction <add>, %16, %cst_14 [1] : vector<128x128xf32> to vector<128xf32>
    %18 = vector.shape_cast %17 : vector<128xf32> to vector<128x1xf32>
    %19 = tpu.reciprocal %18 : vector<128x1xf32> -> vector<128x1xf32>
    %c0_15 = arith.constant 0 : index
    %c0_16 = arith.constant 0 : index
    %20 = vector.load %arg11[%c0_15, %c0_16] : memref<128x128xf32, #tpu.memory_space<vmem>>, vector<128x16xf32>
    %cst_17 = arith.constant dense<0.000000e+00> : vector<128x16xf32>
    %21 = tpu.matmul %16, %20, %cst_17 {dimension_numbers = #tpu.dot_dimension_numbers<[1], [0], [0], [1], [0, 0, 1, 1], [], []>} : vector<128x128xf32>, vector<128x16xf32>, vector<128x16xf32> -> vector<128x16xf32>
    %22 = vector.broadcast %19 : vector<128x1xf32> to vector<128x16xf32>
    %23 = arith.mulf %21, %22 : vector<128x16xf32>
    %c0_18 = arith.constant 0 : index
    %c0_19 = arith.constant 0 : index
    %24 = vector.load %arg13[%c0_18, %c0_19] : memref<128x128xf32, #tpu.memory_space<vmem>>, vector<128x16xf32>
    tpu.vector_store %arg13[%c0_18, %c0_19], %23 {strides = array<i32>} : memref<128x128xf32, #tpu.memory_space<vmem>>, vector<128x16xf32>,
    %c0_20 = arith.constant 0 : index
    %c16 = arith.constant 16 : index
    %25 = vector.load %arg12[%c0_20, %c16] : memref<128x128xf32, #tpu.memory_space<vmem>>, vector<128x16xf32>
    %c1 = arith.constant 1 : index
    %c0_21 = arith.constant 0 : index
    %c0_22 = arith.constant 0 : index
    %26 = vector.load %arg10[%c1, %c0_21, %c0_22] : memref<8x16x128xf32, #tpu.memory_space<vmem>>, vector<1x16x128xf32>
    %27 = vector.shape_cast %26 : vector<1x16x128xf32> to vector<16x128xf32>
    %cst_23 = arith.constant dense<0.000000e+00> : vector<128x128xf32>
    %28 = tpu.matmul %25, %27, %cst_23 {dimension_numbers = #tpu.dot_dimension_numbers<[1], [0], [0], [1], [0, 0, 1, 1], [], []>} : vector<128x16xf32>, vector<16x128xf32>, vector<128x128xf32> -> vector<128x128xf32>
    %cst_24 = arith.constant dense<0xFF800000> : vector<128xf32>
    %29 = vector.multi_reduction <maximumf>, %28, %cst_24 [1] : vector<128x128xf32> to vector<128xf32>
    %30 = vector.shape_cast %29 : vector<128xf32> to vector<128x1xf32>
    %31 = vector.broadcast %30 : vector<128x1xf32> to vector<128x128xf32>
    %32 = arith.subf %28, %31 : vector<128x128xf32>
    %33 = math.exp %32 : vector<128x128xf32>
    %cst_25 = arith.constant dense<0.000000e+00> : vector<128xf32>
    %34 = vector.multi_reduction <add>, %33, %cst_25 [1] : vector<128x128xf32> to vector<128xf32>
    %35 = vector.shape_cast %34 : vector<128xf32> to vector<128x1xf32>
    %36 = tpu.reciprocal %35 : vector<128x1xf32> -> vector<128x1xf32>
    %c0_26 = arith.constant 0 : index
    %c16_27 = arith.constant 16 : index
    %37 = vector.load %arg11[%c0_26, %c16_27] : memref<128x128xf32, #tpu.memory_space<vmem>>, vector<128x16xf32>
    %cst_28 = arith.constant dense<0.000000e+00> : vector<128x16xf32>
    %38 = tpu.matmul %33, %37, %cst_28 {dimension_numbers = #tpu.dot_dimension_numbers<[1], [0], [0], [1], [0, 0, 1, 1], [], []>} : vector<128x128xf32>, vector<128x16xf32>, vector<128x16xf32> -> vector<128x16xf32>
    %39 = vector.broadcast %36 : vector<128x1xf32> to vector<128x16xf32>
    %40 = arith.mulf %38, %39 : vector<128x16xf32>
    %c0_29 = arith.constant 0 : index
    %c16_30 = arith.constant 16 : index
    %41 = vector.load %arg13[%c0_29, %c16_30] : memref<128x128xf32, #tpu.memory_space<vmem>>, vector<128x16xf32>
    tpu.vector_store %arg13[%c0_29, %c16_30], %40 {strides = array<i32>} : memref<128x128xf32, #tpu.memory_space<vmem>>, vector<128x16xf32>,
    %c0_31 = arith.constant 0 : index
    %c32 = arith.constant 32 : index
    %42 = vector.load %arg12[%c0_31, %c32] : memref<128x128xf32, #tpu.memory_space<vmem>>, vector<128x16xf32>
    %c2 = arith.constant 2 : index
    %c0_32 = arith.constant 0 : index
    %c0_33 = arith.constant 0 : index
    %43 = vector.load %arg10[%c2, %c0_32, %c0_33] : memref<8x16x128xf32, #tpu.memory_space<vmem>>, vector<1x16x128xf32>
    %44 = vector.shape_cast %43 : vector<1x16x128xf32> to vector<16x128xf32>
    %cst_34 = arith.constant dense<0.000000e+00> : vector<128x128xf32>
    %45 = tpu.matmul %42, %44, %cst_34 {dimension_numbers = #tpu.dot_dimension_numbers<[1], [0], [0], [1], [0, 0, 1, 1], [], []>} : vector<128x16xf32>, vector<16x128xf32>, vector<128x128xf32> -> vector<128x128xf32>
    %cst_35 = arith.constant dense<0xFF800000> : vector<128xf32>
    %46 = vector.multi_reduction <maximumf>, %45, %cst_35 [1] : vector<128x128xf32> to vector<128xf32>
    %47 = vector.shape_cast %46 : vector<128xf32> to vector<128x1xf32>
    %48 = vector.broadcast %47 : vector<128x1xf32> to vector<128x128xf32>
    %49 = arith.subf %45, %48 : vector<128x128xf32>
    %50 = math.exp %49 : vector<128x128xf32>
    %cst_36 = arith.constant dense<0.000000e+00> : vector<128xf32>
    %51 = vector.multi_reduction <add>, %50, %cst_36 [1] : vector<128x128xf32> to vector<128xf32>
    %52 = vector.shape_cast %51 : vector<128xf32> to vector<128x1xf32>
    %53 = tpu.reciprocal %52 : vector<128x1xf32> -> vector<128x1xf32>
    %c0_37 = arith.constant 0 : index
    %c32_38 = arith.constant 32 : index
    %54 = vector.load %arg11[%c0_37, %c32_38] : memref<128x128xf32, #tpu.memory_space<vmem>>, vector<128x16xf32>
    %cst_39 = arith.constant dense<0.000000e+00> : vector<128x16xf32>
    %55 = tpu.matmul %50, %54, %cst_39 {dimension_numbers = #tpu.dot_dimension_numbers<[1], [0], [0], [1], [0, 0, 1, 1], [], []>} : vector<128x128xf32>, vector<128x16xf32>, vector<128x16xf32> -> vector<128x16xf32>
    %56 = vector.broadcast %53 : vector<128x1xf32> to vector<128x16xf32>
    %57 = arith.mulf %55, %56 : vector<128x16xf32>
    %c0_40 = arith.constant 0 : index
    %c32_41 = arith.constant 32 : index
    %58 = vector.load %arg13[%c0_40, %c32_41] : memref<128x128xf32, #tpu.memory_space<vmem>>, vector<128x16xf32>
    tpu.vector_store %arg13[%c0_40, %c32_41], %57 {strides = array<i32>} : memref<128x128xf32, #tpu.memory_space<vmem>>, vector<128x16xf32>,
    %c0_42 = arith.constant 0 : index
    %c48 = arith.constant 48 : index
    %59 = vector.load %arg12[%c0_42, %c48] : memref<128x128xf32, #tpu.memory_space<vmem>>, vector<128x16xf32>
    %c3 = arith.constant 3 : index
    %c0_43 = arith.constant 0 : index
    %c0_44 = arith.constant 0 : index
    %60 = vector.load %arg10[%c3, %c0_43, %c0_44] : memref<8x16x128xf32, #tpu.memory_space<vmem>>, vector<1x16x128xf32>
    %61 = vector.shape_cast %60 : vector<1x16x128xf32> to vector<16x128xf32>
    %cst_45 = arith.constant dense<0.000000e+00> : vector<128x128xf32>
    %62 = tpu.matmul %59, %61, %cst_45 {dimension_numbers = #tpu.dot_dimension_numbers<[1], [0], [0], [1], [0, 0, 1, 1], [], []>} : vector<128x16xf32>, vector<16x128xf32>, vector<128x128xf32> -> vector<128x128xf32>
    %cst_46 = arith.constant dense<0xFF800000> : vector<128xf32>
    %63 = vector.multi_reduction <maximumf>, %62, %cst_46 [1] : vector<128x128xf32> to vector<128xf32>
    %64 = vector.shape_cast %63 : vector<128xf32> to vector<128x1xf32>
    %65 = vector.broadcast %64 : vector<128x1xf32> to vector<128x128xf32>
    %66 = arith.subf %62, %65 : vector<128x128xf32>
    %67 = math.exp %66 : vector<128x128xf32>
    %cst_47 = arith.constant dense<0.000000e+00> : vector<128xf32>
    %68 = vector.multi_reduction <add>, %67, %cst_47 [1] : vector<128x128xf32> to vector<128xf32>
    %69 = vector.shape_cast %68 : vector<128xf32> to vector<128x1xf32>
    %70 = tpu.reciprocal %69 : vector<128x1xf32> -> vector<128x1xf32>
    %c0_48 = arith.constant 0 : index
    %c48_49 = arith.constant 48 : index
    %71 = vector.load %arg11[%c0_48, %c48_49] : memref<128x128xf32, #tpu.memory_space<vmem>>, vector<128x16xf32>
    %cst_50 = arith.constant dense<0.000000e+00> : vector<128x16xf32>
    %72 = tpu.matmul %67, %71, %cst_50 {dimension_numbers = #tpu.dot_dimension_numbers<[1], [0], [0], [1], [0, 0, 1, 1], [], []>} : vector<128x128xf32>, vector<128x16xf32>, vector<128x16xf32> -> vector<128x16xf32>
    %73 = vector.broadcast %70 : vector<128x1xf32> to vector<128x16xf32>
    %74 = arith.mulf %72, %73 : vector<128x16xf32>
    %c0_51 = arith.constant 0 : index
    %c48_52 = arith.constant 48 : index
    %75 = vector.load %arg13[%c0_51, %c48_52] : memref<128x128xf32, #tpu.memory_space<vmem>>, vector<128x16xf32>
    tpu.vector_store %arg13[%c0_51, %c48_52], %74 {strides = array<i32>} : memref<128x128xf32, #tpu.memory_space<vmem>>, vector<128x16xf32>,
    %c0_53 = arith.constant 0 : index
    %c64 = arith.constant 64 : index
    %76 = vector.load %arg12[%c0_53, %c64] : memref<128x128xf32, #tpu.memory_space<vmem>>, vector<128x16xf32>
    %c4 = arith.constant 4 : index
    %c0_54 = arith.constant 0 : index
    %c0_55 = arith.constant 0 : index
    %77 = vector.load %arg10[%c4, %c0_54, %c0_55] : memref<8x16x128xf32, #tpu.memory_space<vmem>>, vector<1x16x128xf32>
    %78 = vector.shape_cast %77 : vector<1x16x128xf32> to vector<16x128xf32>
    %cst_56 = arith.constant dense<0.000000e+00> : vector<128x128xf32>
    %79 = tpu.matmul %76, %78, %cst_56 {dimension_numbers = #tpu.dot_dimension_numbers<[1], [0], [0], [1], [0, 0, 1, 1], [], []>} : vector<128x16xf32>, vector<16x128xf32>, vector<128x128xf32> -> vector<128x128xf32>
    %cst_57 = arith.constant dense<0xFF800000> : vector<128xf32>
    %80 = vector.multi_reduction <maximumf>, %79, %cst_57 [1] : vector<128x128xf32> to vector<128xf32>
    %81 = vector.shape_cast %80 : vector<128xf32> to vector<128x1xf32>
    %82 = vector.broadcast %81 : vector<128x1xf32> to vector<128x128xf32>
    %83 = arith.subf %79, %82 : vector<128x128xf32>
    %84 = math.exp %83 : vector<128x128xf32>
    %cst_58 = arith.constant dense<0.000000e+00> : vector<128xf32>
    %85 = vector.multi_reduction <add>, %84, %cst_58 [1] : vector<128x128xf32> to vector<128xf32>
    %86 = vector.shape_cast %85 : vector<128xf32> to vector<128x1xf32>
    %87 = tpu.reciprocal %86 : vector<128x1xf32> -> vector<128x1xf32>
    %c0_59 = arith.constant 0 : index
    %c64_60 = arith.constant 64 : index
    %88 = vector.load %arg11[%c0_59, %c64_60] : memref<128x128xf32, #tpu.memory_space<vmem>>, vector<128x16xf32>
    %cst_61 = arith.constant dense<0.000000e+00> : vector<128x16xf32>
    %89 = tpu.matmul %84, %88, %cst_61 {dimension_numbers = #tpu.dot_dimension_numbers<[1], [0], [0], [1], [0, 0, 1, 1], [], []>} : vector<128x128xf32>, vector<128x16xf32>, vector<128x16xf32> -> vector<128x16xf32>
    %90 = vector.broadcast %87 : vector<128x1xf32> to vector<128x16xf32>
    %91 = arith.mulf %89, %90 : vector<128x16xf32>
    %c0_62 = arith.constant 0 : index
    %c64_63 = arith.constant 64 : index
    %92 = vector.load %arg13[%c0_62, %c64_63] : memref<128x128xf32, #tpu.memory_space<vmem>>, vector<128x16xf32>
    tpu.vector_store %arg13[%c0_62, %c64_63], %91 {strides = array<i32>} : memref<128x128xf32, #tpu.memory_space<vmem>>, vector<128x16xf32>,
    %c0_64 = arith.constant 0 : index
    %c80 = arith.constant 80 : index
    %93 = vector.load %arg12[%c0_64, %c80] : memref<128x128xf32, #tpu.memory_space<vmem>>, vector<128x16xf32>
    %c5 = arith.constant 5 : index
    %c0_65 = arith.constant 0 : index
    %c0_66 = arith.constant 0 : index
    %94 = vector.load %arg10[%c5, %c0_65, %c0_66] : memref<8x16x128xf32, #tpu.memory_space<vmem>>, vector<1x16x128xf32>
    %95 = vector.shape_cast %94 : vector<1x16x128xf32> to vector<16x128xf32>
    %cst_67 = arith.constant dense<0.000000e+00> : vector<128x128xf32>
    %96 = tpu.matmul %93, %95, %cst_67 {dimension_numbers = #tpu.dot_dimension_numbers<[1], [0], [0], [1], [0, 0, 1, 1], [], []>} : vector<128x16xf32>, vector<16x128xf32>, vector<128x128xf32> -> vector<128x128xf32>
    %cst_68 = arith.constant dense<0xFF800000> : vector<128xf32>
    %97 = vector.multi_reduction <maximumf>, %96, %cst_68 [1] : vector<128x128xf32> to vector<128xf32>
    %98 = vector.shape_cast %97 : vector<128xf32> to vector<128x1xf32>
    %99 = vector.broadcast %98 : vector<128x1xf32> to vector<128x128xf32>
    %100 = arith.subf %96, %99 : vector<128x128xf32>
    %101 = math.exp %100 : vector<128x128xf32>
    %cst_69 = arith.constant dense<0.000000e+00> : vector<128xf32>
    %102 = vector.multi_reduction <add>, %101, %cst_69 [1] : vector<128x128xf32> to vector<128xf32>
    %103 = vector.shape_cast %102 : vector<128xf32> to vector<128x1xf32>
    %104 = tpu.reciprocal %103 : vector<128x1xf32> -> vector<128x1xf32>
    %c0_70 = arith.constant 0 : index
    %c80_71 = arith.constant 80 : index
    %105 = vector.load %arg11[%c0_70, %c80_71] : memref<128x128xf32, #tpu.memory_space<vmem>>, vector<128x16xf32>
    %cst_72 = arith.constant dense<0.000000e+00> : vector<128x16xf32>
    %106 = tpu.matmul %101, %105, %cst_72 {dimension_numbers = #tpu.dot_dimension_numbers<[1], [0], [0], [1], [0, 0, 1, 1], [], []>} : vector<128x128xf32>, vector<128x16xf32>, vector<128x16xf32> -> vector<128x16xf32>
    %107 = vector.broadcast %104 : vector<128x1xf32> to vector<128x16xf32>
    %108 = arith.mulf %106, %107 : vector<128x16xf32>
    %c0_73 = arith.constant 0 : index
    %c80_74 = arith.constant 80 : index
    %109 = vector.load %arg13[%c0_73, %c80_74] : memref<128x128xf32, #tpu.memory_space<vmem>>, vector<128x16xf32>
    tpu.vector_store %arg13[%c0_73, %c80_74], %108 {strides = array<i32>} : memref<128x128xf32, #tpu.memory_space<vmem>>, vector<128x16xf32>,
    %c0_75 = arith.constant 0 : index
    %c96 = arith.constant 96 : index
    %110 = vector.load %arg12[%c0_75, %c96] : memref<128x128xf32, #tpu.memory_space<vmem>>, vector<128x16xf32>
    %c6 = arith.constant 6 : index
    %c0_76 = arith.constant 0 : index
    %c0_77 = arith.constant 0 : index
    %111 = vector.load %arg10[%c6, %c0_76, %c0_77] : memref<8x16x128xf32, #tpu.memory_space<vmem>>, vector<1x16x128xf32>
    %112 = vector.shape_cast %111 : vector<1x16x128xf32> to vector<16x128xf32>
    %cst_78 = arith.constant dense<0.000000e+00> : vector<128x128xf32>
    %113 = tpu.matmul %110, %112, %cst_78 {dimension_numbers = #tpu.dot_dimension_numbers<[1], [0], [0], [1], [0, 0, 1, 1], [], []>} : vector<128x16xf32>, vector<16x128xf32>, vector<128x128xf32> -> vector<128x128xf32>
    %cst_79 = arith.constant dense<0xFF800000> : vector<128xf32>
    %114 = vector.multi_reduction <maximumf>, %113, %cst_79 [1] : vector<128x128xf32> to vector<128xf32>
    %115 = vector.shape_cast %114 : vector<128xf32> to vector<128x1xf32>
    %116 = vector.broadcast %115 : vector<128x1xf32> to vector<128x128xf32>
    %117 = arith.subf %113, %116 : vector<128x128xf32>
    %118 = math.exp %117 : vector<128x128xf32>
    %cst_80 = arith.constant dense<0.000000e+00> : vector<128xf32>
    %119 = vector.multi_reduction <add>, %118, %cst_80 [1] : vector<128x128xf32> to vector<128xf32>
    %120 = vector.shape_cast %119 : vector<128xf32> to vector<128x1xf32>
    %121 = tpu.reciprocal %120 : vector<128x1xf32> -> vector<128x1xf32>
    %c0_81 = arith.constant 0 : index
    %c96_82 = arith.constant 96 : index
    %122 = vector.load %arg11[%c0_81, %c96_82] : memref<128x128xf32, #tpu.memory_space<vmem>>, vector<128x16xf32>
    %cst_83 = arith.constant dense<0.000000e+00> : vector<128x16xf32>
    %123 = tpu.matmul %118, %122, %cst_83 {dimension_numbers = #tpu.dot_dimension_numbers<[1], [0], [0], [1], [0, 0, 1, 1], [], []>} : vector<128x128xf32>, vector<128x16xf32>, vector<128x16xf32> -> vector<128x16xf32>
    %124 = vector.broadcast %121 : vector<128x1xf32> to vector<128x16xf32>
    %125 = arith.mulf %123, %124 : vector<128x16xf32>
    %c0_84 = arith.constant 0 : index
    %c96_85 = arith.constant 96 : index
    %126 = vector.load %arg13[%c0_84, %c96_85] : memref<128x128xf32, #tpu.memory_space<vmem>>, vector<128x16xf32>
    tpu.vector_store %arg13[%c0_84, %c96_85], %125 {strides = array<i32>} : memref<128x128xf32, #tpu.memory_space<vmem>>, vector<128x16xf32>,
    %c0_86 = arith.constant 0 : index
    %c112 = arith.constant 112 : index
    %127 = vector.load %arg12[%c0_86, %c112] : memref<128x128xf32, #tpu.memory_space<vmem>>, vector<128x16xf32>
    %c7 = arith.constant 7 : index
    %c0_87 = arith.constant 0 : index
    %c0_88 = arith.constant 0 : index
    %128 = vector.load %arg10[%c7, %c0_87, %c0_88] : memref<8x16x128xf32, #tpu.memory_space<vmem>>, vector<1x16x128xf32>
    %129 = vector.shape_cast %128 : vector<1x16x128xf32> to vector<16x128xf32>
    %cst_89 = arith.constant dense<0.000000e+00> : vector<128x128xf32>
    %130 = tpu.matmul %127, %129, %cst_89 {dimension_numbers = #tpu.dot_dimension_numbers<[1], [0], [0], [1], [0, 0, 1, 1], [], []>} : vector<128x16xf32>, vector<16x128xf32>, vector<128x128xf32> -> vector<128x128xf32>
    %cst_90 = arith.constant dense<0xFF800000> : vector<128xf32>
    %131 = vector.multi_reduction <maximumf>, %130, %cst_90 [1] : vector<128x128xf32> to vector<128xf32>
    %132 = vector.shape_cast %131 : vector<128xf32> to vector<128x1xf32>
    %133 = vector.broadcast %132 : vector<128x1xf32> to vector<128x128xf32>
    %134 = arith.subf %130, %133 : vector<128x128xf32>
    %135 = math.exp %134 : vector<128x128xf32>
    %cst_91 = arith.constant dense<0.000000e+00> : vector<128xf32>
    %136 = vector.multi_reduction <add>, %135, %cst_91 [1] : vector<128x128xf32> to vector<128xf32>
    %137 = vector.shape_cast %136 : vector<128xf32> to vector<128x1xf32>
    %138 = tpu.reciprocal %137 : vector<128x1xf32> -> vector<128x1xf32>
    %c0_92 = arith.constant 0 : index
    %c112_93 = arith.constant 112 : index
    %139 = vector.load %arg11[%c0_92, %c112_93] : memref<128x128xf32, #tpu.memory_space<vmem>>, vector<128x16xf32>
    %cst_94 = arith.constant dense<0.000000e+00> : vector<128x16xf32>
    %140 = tpu.matmul %135, %139, %cst_94 {dimension_numbers = #tpu.dot_dimension_numbers<[1], [0], [0], [1], [0, 0, 1, 1], [], []>} : vector<128x128xf32>, vector<128x16xf32>, vector<128x16xf32> -> vector<128x16xf32>
    %141 = vector.broadcast %138 : vector<128x1xf32> to vector<128x16xf32>
    %142 = arith.mulf %140, %141 : vector<128x16xf32>
    %c0_95 = arith.constant 0 : index
    %c112_96 = arith.constant 112 : index
    %143 = vector.load %arg13[%c0_95, %c112_96] : memref<128x128xf32, #tpu.memory_space<vmem>>, vector<128x16xf32>
    tpu.vector_store %arg13[%c0_95, %c112_96], %142 {strides = array<i32>} : memref<128x128xf32, #tpu.memory_space<vmem>>, vector<128x16xf32>,
    %c0_97 = arith.constant 0 : index
    %c0_98 = arith.constant 0 : index
    %144 = vector.load %arg13[%c0_97, %c0_98] : memref<128x128xf32, #tpu.memory_space<vmem>>, vector<128x128xf32>
    %c0_99 = arith.constant 0 : index
    %c0_100 = arith.constant 0 : index
    %145 = vector.load %arg7[%c0_99, %c0_100] : memref<128x128xf32, #tpu.memory_space<vmem>>, vector<128x128xf32>
    %cst_101 = arith.constant dense<0.000000e+00> : vector<128x128xf32>
    %146 = tpu.matmul %144, %145, %cst_101 {dimension_numbers = #tpu.dot_dimension_numbers<[1], [0], [0], [1], [0, 0, 1, 1], [], []>} : vector<128x128xf32>, vector<128x128xf32>, vector<128x128xf32> -> vector<128x128xf32>
    %c0_102 = arith.constant 0 : index
    %c0_103 = arith.constant 0 : index
    %147 = vector.load %arg8[%c0_102, %c0_103] : memref<1x128xf32, #tpu.memory_space<vmem>>, vector<1x128xf32>
    %148 = vector.broadcast %147 : vector<1x128xf32> to vector<128x128xf32>
    %149 = arith.addf %146, %148 : vector<128x128xf32>
    %c0_104 = arith.constant 0 : index
    %c0_105 = arith.constant 0 : index
    %c0_106 = arith.constant 0 : index
    %150 = vector.load %arg9[%c0_104, %c0_105, %c0_106] : memref<1x128x128xf32, #tpu.memory_space<vmem>>, vector<1x128x128xf32>
    %151 = vector.shape_cast %150 : vector<1x128x128xf32> to vector<128x128xf32>
    %152 = vector.shape_cast %149 : vector<128x128xf32> to vector<1x128x128xf32>
    tpu.vector_store %arg9[%c0_104, %c0_105, %c0_106], %152 {strides = array<i32>} : memref<1x128x128xf32, #tpu.memory_space<vmem>>, vector<1x128x128xf32>,
    return
  }
  func.func @transform_0(%arg0: i32, %arg1: i32) -> (i32, i32, i32) {
    %c0_i32 = arith.constant 0 : i32
    %c0_i32_0 = arith.constant 0 : i32
    return %arg0, %arg1, %c0_i32 : i32, i32, i32
  }
  func.func @transform_1(%arg0: i32, %arg1: i32) -> (i32, i32, i32) {
    %c0_i32 = arith.constant 0 : i32
    %c0_i32_0 = arith.constant 0 : i32
    %c0_i32_1 = arith.constant 0 : i32
    return %arg0, %c0_i32, %c0_i32_0 : i32, i32, i32
  }
  func.func @transform_2(%arg0: i32, %arg1: i32) -> (i32, i32) {
    %c0_i32 = arith.constant 0 : i32
    %c0_i32_0 = arith.constant 0 : i32
    %c0_i32_1 = arith.constant 0 : i32
    return %c0_i32, %c0_i32_0 : i32, i32
  }
  func.func @transform_3(%arg0: i32, %arg1: i32) -> (i32, i32) {
    %c0_i32 = arith.constant 0 : i32
    %c0_i32_0 = arith.constant 0 : i32
    %c0_i32_1 = arith.constant 0 : i32
    return %c0_i32, %c0_i32_0 : i32, i32
  }
  func.func @transform_4(%arg0: i32, %arg1: i32) -> (i32, i32) {
    %c0_i32 = arith.constant 0 : i32
    %c0_i32_0 = arith.constant 0 : i32
    %c0_i32_1 = arith.constant 0 : i32
    return %c0_i32, %c0_i32_0 : i32, i32
  }
  func.func @transform_5(%arg0: i32, %arg1: i32) -> (i32, i32) {
    %c0_i32 = arith.constant 0 : i32
    %c0_i32_0 = arith.constant 0 : i32
    %c0_i32_1 = arith.constant 0 : i32
    return %c0_i32, %c0_i32_0 : i32, i32
  }
  func.func @transform_6(%arg0: i32, %arg1: i32) -> (i32, i32) {
    %c0_i32 = arith.constant 0 : i32
    %c0_i32_0 = arith.constant 0 : i32
    %c0_i32_1 = arith.constant 0 : i32
    return %c0_i32, %c0_i32_0 : i32, i32
  }
  func.func @transform_7(%arg0: i32, %arg1: i32) -> (i32, i32, i32) {
    %c0_i32 = arith.constant 0 : i32
    %c0_i32_0 = arith.constant 0 : i32
    return %arg0, %arg1, %c0_i32 : i32, i32, i32
  }
}

</mosaic_0001>

<llo_original>
// kernel: tpu_custom_call.1
$region0: #{tpu_custom_call.1}
  #allocation0 [shape = 'u32[]', space=smem, size = 0x4, offset = 0x4, fixed_abs, tag = 'smem constant byte address 0x4 - core index']
  #allocation1 [shape = 'u32[144,128]{1,0:T(1,128)}', space=vmem, size = 0x12000, scoped, tag = 'internal scratch']
  #allocation2 [shape = 'f32[8,16,128]{2,1,0:T(8,128)}', space=vmem, size = 0x10000, scoped, tag = 'scratch operand']
  #allocation3 [shape = 'f32[128,128]{1,0:T(8,128)}', space=vmem, size = 0x10000, scoped, tag = 'scratch operand']
  #allocation4 [shape = 'f32[128,128]{1,0:T(8,128)}', space=vmem, size = 0x10000, scoped, tag = 'scratch operand']
  #allocation5 [shape = 'f32[128,128]{1,0:T(8,128)}', space=vmem, size = 0x10000, scoped, tag = 'scratch operand']
  %s0 = inlined_call_operand.hbm [shape: f32[2,128,128], index: 0, kind: input, shape index: {}]
  %s1 = inlined_call_operand.hbm [shape: f32[2,128,128], index: 1, kind: input, shape index: {}]
  %s2 = inlined_call_operand.hbm [shape: f32[128,128], index: 2, kind: input, shape index: {}]
  %s3 = inlined_call_operand.hbm [shape: f32[128,128], index: 3, kind: input, shape index: {}]
  %s4 = inlined_call_operand.hbm [shape: f32[128,128], index: 4, kind: input, shape index: {}]
  %s5 = inlined_call_operand.hbm [shape: f32[128,128], index: 5, kind: input, shape index: {}]
  %s6 = inlined_call_operand.vmem [shape: f32[1,128], index: 6, kind: input, shape index: {}]
  %s7 = inlined_call_operand.hbm [shape: f32[2,128,128], index: 7, kind: output, shape index: {}]
  %s8 = sld [smem:[#allocation0]]
  $region89: #{tpu_custom_call.1} parent=0
    _
  %s10 = ssub.s32 1, %s8
  %s11 = scalar_select 0, %s10, %s8
  $region1: #{tpu_custom_call.1} parent=0
    #allocation6 [shape = 'u8[131072]{0}', space=vmem, size = 0x20000, scoped, tag = 'input window, operand 0']
    #allocation7 [shape = 's32[2]{0}', space=sflag, size = 0x8, scoped, tag = 'scoped memory for tpu_custom_call.1']
    #allocation8 [shape = 's32[2]{0}', space=sflag, size = 0x8, scoped, tag = 'scoped memory for tpu_custom_call.1']
    #allocation9 [shape = 'u8[131072]{0}', space=vmem, size = 0x20000, scoped, tag = 'input window, operand 1']
    #allocation10 [shape = 's32[2]{0}', space=sflag, size = 0x8, scoped, tag = 'scoped memory for tpu_custom_call.1']
    #allocation11 [shape = 'u8[65536]{0}', space=vmem, size = 0x10000, scoped, tag = 'input window, operand 2, single buffered']
    #allocation12 [shape = 'u8[65536]{0}', space=vmem, size = 0x10000, scoped, tag = 'input window, operand 3, single buffered']
    #allocation13 [shape = 's32[1]{0}', space=sflag, size = 0x4, scoped, tag = 'scoped memory for tpu_custom_call.1']
    #allocation14 [shape = 'u8[65536]{0}', space=vmem, size = 0x10000, scoped, tag = 'input window, operand 4, single buffered']
    #allocation15 [shape = 'u8[65536]{0}', space=vmem, size = 0x10000, scoped, tag = 'input window, operand 5, single buffered']
    #allocation16 [shape = 's32[1]{0}', space=sflag, size = 0x4, scoped, tag = 'scoped memory for tpu_custom_call.1']
    #allocation17 [shape = 'u8[131072]{0}', space=vmem, size = 0x20000, scoped, tag = 'output window, operand 0']
    %12 = vsyncpa [#allocation7], 0
    %s13 = scalar_lea.sflag [#allocation7], 1
    %14 = vsyncpa %s13, 0
    %15 = vsyncpa [#allocation10], 0
    %s16 = scalar_lea.sflag [#allocation10], 1
    %17 = vsyncpa %s16, 0
    %18 = vsyncpa [#allocation13], 0
    %19 = vsyncpa [#allocation16], 0
    %20 = vsyncpa [#allocation8], 0
    %s21 = scalar_lea.sflag [#allocation8], 1
    %22 = vsyncpa %s21, 0
    loop: start=0, step=1, limit=4
    $region2: #{tpu_custom_call.1} parent=1 // loop_pre_header
      _
    $region3: #{tpu_custom_call.1} parent=1 // loop_header
      %s24 = sphi 0, %s28
      %p25 = scmp.ge.s32.totalorder %s24, 4
      %s31 = sphi 0, %s43
      %s32 = sphi 0, %s39
      %s33 = sphi 0, %s31
      %s34 = sphi 0, %s32
      %s35 = sphi 0, %s33
      %s36 = sphi 0, %s34
      %s48 = sphi 0, %s50
      %s51 = sphi 0, %s48
      %s52 = sphi 0, %s51
      %s68 = sphi 0, %s52
      %s74 = sphi 0, %s76
      %s77 = sphi 0, %s74
      %s78 = sphi 0, %s77
      %s94 = sphi 0, %s78
      %s98 = sphi 0, %s98
      %s100 = sphi 0, %s98
      %s101 = sphi 0, %s100
      %s115 = sphi 0, %s101
      %s119 = sphi 0, %s119
      %s121 = sphi 0, %s119
      %s122 = sphi 0, %s121
      %s136 = sphi 0, %s122
      %s140 = sphi 0, %s140
      %s142 = sphi 0, %s140
      %s143 = sphi 0, %s142
      %s157 = sphi 0, %s143
      %s161 = sphi 0, %s161
      %s163 = sphi 0, %s161
      %s164 = sphi 0, %s163
      %s178 = sphi 0, %s164
      %s182 = sphi 0, %s182
      %s184 = sphi 0, %s182
      %s185 = sphi 0, %s184
      %s199 = sphi 0, %s185
      %s207 = sphi 0, %s209
      %s210 = sphi 0, %s207
      %s211 = sphi 0, %s210
      %s227 = sphi 0, %s211
    $region4: #{tpu_custom_call.1} parent=1 // loop_header_branch
      %27 = sbr.rel (%p25) target = $region8
    $region5: #{tpu_custom_call.1} parent=1 // loop_body
      %s29 = ssub.s32 %s24, 1
      %s30 = ssub.s32 %s24, 2
      %s37 = sadd.s32 1, %s32
      %p38 = scmp.ge.s32.totalorder %s37, 1
      %s39 = scalar_select %p38, 0, %s37
      %s40 = sadd.s32 1, %s31
      %s41 = scalar_select %p38, %s40, %s31
      %p42 = scmp.ge.s32.totalorder %s41, 2
      %s43 = scalar_select %p42, 0, %s41
      %s44 = ssub.s32 %s31, %s43
      %s45 = ssub.s32 %s32, %s39
      %s46 = sor.u32 %s44, %s45
      %p47 = scmp.eq.s32.totalorder %s46, 0
      %s49 = sadd.s32 %s48, 1
      %s50 = scalar_select %p47, %s48, %s49
      %p53 = pneg %p47
      %p54 = scmp.eq.s32.totalorder %s24, 1
      %p55 = por %p53, %p54
      %p56 = scmp.ne.s32.totalorder %s48, %s51
      %p57 = scmp.eq.s32.totalorder %s24, 0
      %p58 = por %p56, %p57
      %p59 = scmp.ne.s32.totalorder %s48, %s51
      %p60 = scmp.eq.s32.totalorder %s29, 1
      %p61 = por %p59, %p60
      %p62 = scmp.ne.s32.totalorder %s51, %s52
      %p63 = scmp.eq.s32.totalorder %s29, 0
      %p64 = por %p62, %p63
      %p65 = scmp.ne.s32.totalorder %s51, %s52
      %p66 = scmp.eq.s32.totalorder %s30, 1
      %p67 = por %p65, %p66
      %p69 = scmp.ne.s32.totalorder %s52, %s68
      %p70 = scmp.eq.s32.totalorder %s30, 0
      %p71 = por %p69, %p70
      %s72 = ssub.s32 %s31, %s43
      %p73 = scmp.eq.s32.totalorder %s72, 0
      %s75 = sadd.s32 %s74, 1
      %s76 = scalar_select %p73, %s74, %s75
      %p79 = pneg %p73
      %p80 = scmp.eq.s32.totalorder %s24, 1
      %p81 = por %p79, %p80
      %p82 = scmp.ne.s32.totalorder %s74, %s77
      %p83 = scmp.eq.s32.totalorder %s24, 0
      %p84 = por %p82, %p83
      %p85 = scmp.ne.s32.totalorder %s74, %s77
      %p86 = scmp.eq.s32.totalorder %s29, 1
      %p87 = por %p85, %p86
      %p88 = scmp.ne.s32.totalorder %s77, %s78
      %p89 = scmp.eq.s32.totalorder %s29, 0
      %p90 = por %p88, %p89
      %p91 = scmp.ne.s32.totalorder %s77, %s78
      %p92 = scmp.eq.s32.totalorder %s30, 1
      %p93 = por %p91, %p92
      %p95 = scmp.ne.s32.totalorder %s78, %s94
      %p96 = scmp.eq.s32.totalorder %s30, 0
      %p97 = por %p95, %p96
      %s99 = sadd.s32 %s98, 1
      %p102 = scmp.eq.s32.totalorder %s24, 1
      %p103 = scmp.ne.s32.totalorder %s98, %s100
      %p104 = scmp.eq.s32.totalorder %s24, 0
      %p105 = por %p103, %p104
      %p106 = scmp.ne.s32.totalorder %s98, %s100
      %p107 = scmp.eq.s32.totalorder %s29, 1
      %p108 = por %p106, %p107
      %p109 = scmp.ne.s32.totalorder %s100, %s101
      %p110 = scmp.eq.s32.totalorder %s29, 0
      %p111 = por %p109, %p110
      %p112 = scmp.ne.s32.totalorder %s100, %s101
      %p113 = scmp.eq.s32.totalorder %s30, 1
      %p114 = por %p112, %p113
      %p116 = scmp.ne.s32.totalorder %s101, %s115
      %p117 = scmp.eq.s32.totalorder %s30, 0
      %p118 = por %p116, %p117
      %s120 = sadd.s32 %s119, 1
      %p123 = scmp.eq.s32.totalorder %s24, 1
      %p124 = scmp.ne.s32.totalorder %s119, %s121
      %p125 = scmp.eq.s32.totalorder %s24, 0
      %p126 = por %p124, %p125
      %p127 = scmp.ne.s32.totalorder %s119, %s121
      %p128 = scmp.eq.s32.totalorder %s29, 1
      %p129 = por %p127, %p128
      %p130 = scmp.ne.s32.totalorder %s121, %s122
      %p131 = scmp.eq.s32.totalorder %s29, 0
      %p132 = por %p130, %p131
      %p133 = scmp.ne.s32.totalorder %s121, %s122
      %p134 = scmp.eq.s32.totalorder %s30, 1
      %p135 = por %p133, %p134
      %p137 = scmp.ne.s32.totalorder %s122, %s136
      %p138 = scmp.eq.s32.totalorder %s30, 0
      %p139 = por %p137, %p138
      %s141 = sadd.s32 %s140, 1
      %p144 = scmp.eq.s32.totalorder %s24, 1
      %p145 = scmp.ne.s32.totalorder %s140, %s142
      %p146 = scmp.eq.s32.totalorder %s24, 0
      %p147 = por %p145, %p146
      %p148 = scmp.ne.s32.totalorder %s140, %s142
      %p149 = scmp.eq.s32.totalorder %s29, 1
      %p150 = por %p148, %p149
      %p151 = scmp.ne.s32.totalorder %s142, %s143
      %p152 = scmp.eq.s32.totalorder %s29, 0
      %p153 = por %p151, %p152
      %p154 = scmp.ne.s32.totalorder %s142, %s143
      %p155 = scmp.eq.s32.totalorder %s30, 1
      %p156 = por %p154, %p155
      %p158 = scmp.ne.s32.totalorder %s143, %s157
      %p159 = scmp.eq.s32.totalorder %s30, 0
      %p160 = por %p158, %p159
      %s162 = sadd.s32 %s161, 1
      %p165 = scmp.eq.s32.totalorder %s24, 1
      %p166 = scmp.ne.s32.totalorder %s161, %s163
      %p167 = scmp.eq.s32.totalorder %s24, 0
      %p168 = por %p166, %p167
      %p169 = scmp.ne.s32.totalorder %s161, %s163
      %p170 = scmp.eq.s32.totalorder %s29, 1
      %p171 = por %p169, %p170
      %p172 = scmp.ne.s32.totalorder %s163, %s164
      %p173 = scmp.eq.s32.totalorder %s29, 0
      %p174 = por %p172, %p173
      %p175 = scmp.ne.s32.totalorder %s163, %s164
      %p176 = scmp.eq.s32.totalorder %s30, 1
      %p177 = por %p175, %p176
      %p179 = scmp.ne.s32.totalorder %s164, %s178
      %p180 = scmp.eq.s32.totalorder %s30, 0
      %p181 = por %p179, %p180
      %s183 = sadd.s32 %s182, 1
      %p186 = scmp.eq.s32.totalorder %s24, 1
      %p187 = scmp.ne.s32.totalorder %s182, %s184
      %p188 = scmp.eq.s32.totalorder %s24, 0
      %p189 = por %p187, %p188
      %p190 = scmp.ne.s32.totalorder %s182, %s184
      %p191 = scmp.eq.s32.totalorder %s29, 1
      %p192 = por %p190, %p191
      %p193 = scmp.ne.s32.totalorder %s184, %s185
      %p194 = scmp.eq.s32.totalorder %s29, 0
      %p195 = por %p193, %p194
      %p196 = scmp.ne.s32.totalorder %s184, %s185
      %p197 = scmp.eq.s32.totalorder %s30, 1
      %p198 = por %p196, %p197
      %p200 = scmp.ne.s32.totalorder %s185, %s199
      %p201 = scmp.eq.s32.totalorder %s30, 0
      %p202 = por %p200, %p201
      %s203 = ssub.s32 %s31, %s43
      %s204 = ssub.s32 %s32, %s39
      %s205 = sor.u32 %s203, %s204
      %p206 = scmp.eq.s32.totalorder %s205, 0
      %s208 = sadd.s32 %s207, 1
      %s209 = scalar_select %p206, %s207, %s208
      %p212 = pneg %p206
      %p213 = scmp.eq.s32.totalorder %s24, 1
      %p214 = por %p212, %p213
      %p215 = scmp.ne.s32.totalorder %s207, %s210
      %p216 = scmp.eq.s32.totalorder %s24, 0
      %p217 = por %p215, %p216
      %p218 = scmp.ne.s32.totalorder %s207, %s210
      %p219 = scmp.eq.s32.totalorder %s29, 1
      %p220 = por %p218, %p219
      %p221 = scmp.ne.s32.totalorder %s210, %s211
      %p222 = scmp.eq.s32.totalorder %s29, 0
      %p223 = por %p221, %p222
      %p224 = scmp.ne.s32.totalorder %s210, %s211
      %p225 = scmp.eq.s32.totalorder %s30, 1
      %p226 = por %p224, %p225
      %p228 = scmp.ne.s32.totalorder %s211, %s227
      %p229 = scmp.eq.s32.totalorder %s30, 0
      %p230 = por %p228, %p229
      %p231 = scmp.le.s32.totalorder 1, %s24
      %p232 = scmp.lt.s32.totalorder %s24, 3
      %p233 = pnand %p231, %p232
      %p234 = pneg %p233
      // Predicated region
      $region9: #{tpu_custom_call.1} parent=5 // pred_check
        _
      $region10: #{tpu_custom_call.1} parent=5 // pred_check_branch
        %236 = sbr.rel (%p233) target = $region12
      $region11: #{tpu_custom_call.1} parent=5 // pred_region
        %s237 = ssub.s32 %s24, 1
        // Predicated region
        $region13: #{tpu_custom_call.1} parent=11 // pred_check
          %p238 = pneg %p111
        $region14: #{tpu_custom_call.1} parent=11 // pred_check_branch
          %240 = sbr.rel (%p238) target = $region16
        $region15: #{tpu_custom_call.1} parent=11 // pred_region
          %s242 = ssub.s32 2048, 2048
          %243 = vsyncadd [#allocation10], %s242
          %s244 = sshll.u32 [#allocation11], 4
          %s245 = int_to_ptr.vmem [resolvable:$true] %s244
          %250 = dma.hbm_to_vmem [thread:$0]  %s2, 2048, %s245, [#allocation10], 128, 128, 8
        $region16: #{tpu_custom_call.1} parent=11 // pred_fallthru
          _
        // Predicated region
        $region17: #{tpu_custom_call.1} parent=11 // pred_check
          %p251 = pneg %p132
        $region18: #{tpu_custom_call.1} parent=11 // pred_check_branch
          %253 = sbr.rel (%p251) target = $region20
        $region19: #{tpu_custom_call.1} parent=11 // pred_region
          %s255 = ssub.s32 2048, 2048
          %256 = vsyncadd [#allocation13], %s255
          %s257 = sshll.u32 [#allocation12], 4
          %s258 = int_to_ptr.vmem [resolvable:$true] %s257
          %263 = dma.hbm_to_vmem [thread:$0]  %s3, 2048, %s258, [#allocation13], 128, 128, 8
        $region20: #{tpu_custom_call.1} parent=11 // pred_fallthru
          _
        // Predicated region
        $region21: #{tpu_custom_call.1} parent=11 // pred_check
          %p264 = pneg %p153
        $region22: #{tpu_custom_call.1} parent=11 // pred_check_branch
          %266 = sbr.rel (%p264) target = $region24
        $region23: #{tpu_custom_call.1} parent=11 // pred_region
          %s268 = ssub.s32 2048, 2048
          %269 = vsyncadd [#allocation13], %s268
          %s270 = sshll.u32 [#allocation14], 4
          %s271 = int_to_ptr.vmem [resolvable:$true] %s270
          %276 = dma.hbm_to_vmem [thread:$0]  %s4, 2048, %s271, [#allocation13], 128, 128, 8
        $region24: #{tpu_custom_call.1} parent=11 // pred_fallthru
          _
        // Predicated region
        $region25: #{tpu_custom_call.1} parent=11 // pred_check
          %p277 = pneg %p174
        $region26: #{tpu_custom_call.1} parent=11 // pred_check_branch
          %279 = sbr.rel (%p277) target = $region28
        $region27: #{tpu_custom_call.1} parent=11 // pred_region
          %s281 = ssub.s32 2048, 2048
          %282 = vsyncadd [#allocation16], %s281
          %s283 = sshll.u32 [#allocation15], 4
          %s284 = int_to_ptr.vmem [resolvable:$true] %s283
          %289 = dma.hbm_to_vmem [thread:$0]  %s5, 2048, %s284, [#allocation16], 128, 128, 8
        $region28: #{tpu_custom_call.1} parent=11 // pred_fallthru
          _
        // Predicated region
        $region29: #{tpu_custom_call.1} parent=11 // pred_check
          %p290 = pneg %p195
        $region30: #{tpu_custom_call.1} parent=11 // pred_check_branch
          %292 = sbr.rel (%p290) target = $region32
        $region31: #{tpu_custom_call.1} parent=11 // pred_region
          _
        $region32: #{tpu_custom_call.1} parent=11 // pred_fallthru
          _
      $region12: #{tpu_custom_call.1} parent=5 // pred_fallthru
        _
      %p293 = scmp.lt.s32.totalorder %s24, 2
      // Predicated region
      $region33: #{tpu_custom_call.1} parent=5 // pred_check
        %p294 = pneg %p293
      $region34: #{tpu_custom_call.1} parent=5 // pred_check_branch
        %296 = sbr.rel (%p294) target = $region36
      $region35: #{tpu_custom_call.1} parent=5 // pred_region
        // Predicated region
        $region37: #{tpu_custom_call.1} parent=35 // pred_check
          %p297 = pneg %p58
        $region38: #{tpu_custom_call.1} parent=35 // pred_check_branch
          %299 = sbr.rel (%p297) target = $region40
        $region39: #{tpu_custom_call.1} parent=35 // pred_region
          %s300 = sand.u32 %s48, 1
          %s301 = scalar_lea.sflag [#allocation7], %s300
          %s302 = sand.u32 %s48, 1
          %s303 = smul.addr %s302, 128
          %s304 = scalar_lea.vmem [#allocation6], %s303
          %s305 = smul.u32 16, %s32
          %s307 = ssub.s32 2048, 2048
          %308 = vsyncadd %s301, %s307
          %s309 = smul.addr %s31, 16
          %s310 = sadd.s32 %s305, %s309
          %s311 = smul.addr %s310, 128
          %s312 = scalar_lea.hbm %s0, %s311
          %s313 = sshll.u32 %s304, 4
          %s314 = int_to_ptr.vmem [resolvable:$true] %s313
          %319 = dma.hbm_to_vmem [thread:$0]  %s312, 2048, %s314, %s301, 128, 128, 8
        $region40: #{tpu_custom_call.1} parent=35 // pred_fallthru
          _
        // Predicated region
        $region41: #{tpu_custom_call.1} parent=35 // pred_check
          %p320 = pneg %p84
        $region42: #{tpu_custom_call.1} parent=35 // pred_check_branch
          %322 = sbr.rel (%p320) target = $region44
        $region43: #{tpu_custom_call.1} parent=35 // pred_region
          %s323 = sand.u32 %s24, 1
          %s324 = scalar_lea.sflag [#allocation10], %s323
          %s325 = sand.u32 %s74, 1
          %s326 = smul.addr %s325, 128
          %s327 = scalar_lea.vmem [#allocation9], %s326
          %s329 = ssub.s32 2048, 2048
          %330 = vsyncadd %s324, %s329
          %s331 = smul.addr %s31, 16
          %s332 = smul.addr %s331, 128
          %s333 = scalar_lea.hbm %s1, %s332
          %s334 = sshll.u32 %s327, 4
          %s335 = int_to_ptr.vmem [resolvable:$true] %s334
          %340 = dma.hbm_to_vmem [thread:$0]  %s333, 2048, %s335, %s324, 128, 128, 8
        $region44: #{tpu_custom_call.1} parent=35 // pred_fallthru
          _
      $region36: #{tpu_custom_call.1} parent=5 // pred_fallthru
        _
      %p341 = scmp.le.s32.totalorder 1, %s24
      %p342 = scmp.lt.s32.totalorder %s24, 3
      %p343 = pnand %p341, %p342
      %p344 = pneg %p343
      // Predicated region
      $region45: #{tpu_custom_call.1} parent=5 // pred_check
        _
      $region46: #{tpu_custom_call.1} parent=5 // pred_check_branch
        %346 = sbr.rel (%p343) target = $region48
      $region47: #{tpu_custom_call.1} parent=5 // pred_region
        %s347 = ssub.s32 %s24, 1
        %s348 = sand.u32 %s51, 1
        %s349 = scalar_lea.sflag [#allocation7], %s348
        %s350 = sand.u32 %s51, 1
        %s351 = smul.addr %s350, 128
        %s352 = scalar_lea.vmem [#allocation6], %s351
        // Predicated region
        $region49: #{tpu_custom_call.1} parent=47 // pred_check
          %p353 = pneg %p64
        $region50: #{tpu_custom_call.1} parent=47 // pred_check_branch
          %355 = sbr.rel (%p353) target = $region52
        $region51: #{tpu_custom_call.1} parent=47 // pred_region
          %356 = dma.done %s349, 2048
        $region52: #{tpu_custom_call.1} parent=47 // pred_fallthru
          _
        %s357 = sand.u32 %s29, 1
        %s358 = scalar_lea.sflag [#allocation10], %s357
        %s359 = sand.u32 %s77, 1
        %s360 = smul.addr %s359, 128
        %s361 = scalar_lea.vmem [#allocation9], %s360
        // Predicated region
        $region53: #{tpu_custom_call.1} parent=47 // pred_check
          %p362 = pneg %p90
        $region54: #{tpu_custom_call.1} parent=47 // pred_check_branch
          %364 = sbr.rel (%p362) target = $region56
        $region55: #{tpu_custom_call.1} parent=47 // pred_region
          %365 = dma.done %s358, 2048
        $region56: #{tpu_custom_call.1} parent=47 // pred_fallthru
          _
        // Predicated region
        $region57: #{tpu_custom_call.1} parent=47 // pred_check
          %p366 = pneg %p111
        $region58: #{tpu_custom_call.1} parent=47 // pred_check_branch
          %368 = sbr.rel (%p366) target = $region60
        $region59: #{tpu_custom_call.1} parent=47 // pred_region
          %369 = dma.done [#allocation10], 2048
        $region60: #{tpu_custom_call.1} parent=47 // pred_fallthru
          _
        // Predicated region
        $region61: #{tpu_custom_call.1} parent=47 // pred_check
          %p370 = pneg %p132
        $region62: #{tpu_custom_call.1} parent=47 // pred_check_branch
          %372 = sbr.rel (%p370) target = $region64
        $region63: #{tpu_custom_call.1} parent=47 // pred_region
          %373 = dma.done [#allocation13], 2048
        $region64: #{tpu_custom_call.1} parent=47 // pred_fallthru
          _
        // Predicated region
        $region65: #{tpu_custom_call.1} parent=47 // pred_check
          %p374 = pneg %p153
        $region66: #{tpu_custom_call.1} parent=47 // pred_check_branch
          %376 = sbr.rel (%p374) target = $region68
        $region67: #{tpu_custom_call.1} parent=47 // pred_region
          %377 = dma.done [#allocation13], 2048
        $region68: #{tpu_custom_call.1} parent=47 // pred_fallthru
          _
        // Predicated region
        $region69: #{tpu_custom_call.1} parent=47 // pred_check
          %p378 = pneg %p174
        $region70: #{tpu_custom_call.1} parent=47 // pred_check_branch
          %380 = sbr.rel (%p378) target = $region72
        $region71: #{tpu_custom_call.1} parent=47 // pred_region
          %381 = dma.done [#allocation16], 2048
        $region72: #{tpu_custom_call.1} parent=47 // pred_fallthru
          _
        %s382 = sand.u32 %s51, 1
        %s383 = scalar_lea.sflag [#allocation7], %s382
        %s384 = sand.u32 %s51, 1
        %s385 = smul.addr %s384, 128
        %s386 = scalar_lea.vmem [#allocation6], %s385
        %p387 = pneg %p64
        %p388 = pneg %p61
        %s389 = sand.u32 %s29, 1
        %s390 = scalar_lea.sflag [#allocation10], %s389
        %s391 = sand.u32 %s77, 1
        %s392 = smul.addr %s391, 128
        %s393 = scalar_lea.vmem [#allocation9], %s392
        %p394 = pneg %p90
        %p395 = pneg %p87
        %p396 = pneg %p111
        %p397 = pneg %p108
        %p398 = pneg %p132
        %p399 = pneg %p129
        %p400 = pneg %p153
        %p401 = pneg %p150
        %p402 = pneg %p174
        %p403 = pneg %p171
        %p404 = pneg %p195
        %p405 = pneg %p192
        %p406 = pneg %p223
        %p407 = pneg %p220
        %s408 = sand.u32 %s210, 1
        %s409 = scalar_lea.sflag [#allocation8], %s408
        %s410 = sand.u32 %s210, 1
        %s411 = smul.addr %s410, 128
        %s412 = scalar_lea.vmem [#allocation17], %s411
        %s413 = smul.u32 16, %s34
        %s414 = smul.u32 16, %s34
        %p415 = scmp.eq.s32.totalorder %s34, 0
        // Predicated region
        $region73: #{tpu_custom_call.1} parent=47 // pred_check
          %p416 = pneg %p415
        $region74: #{tpu_custom_call.1} parent=47 // pred_check_branch
          %418 = sbr.rel (%p416) target = $region76
        $region75: #{tpu_custom_call.1} parent=47 // pred_region
          %v419 = vld [vmem:[%s361] sm:$0xff]
          %v420 = vld [vmem:[%s361 + $0x8] sm:$0xff]
          %v421 = vld [vmem:[%s361 + $0x10] sm:$0xff]
          %v422 = vld [vmem:[%s361 + $0x18] sm:$0xff]
          %v423 = vld [vmem:[%s361 + $0x20] sm:$0xff]
          %v424 = vld [vmem:[%s361 + $0x28] sm:$0xff]
          %v425 = vld [vmem:[%s361 + $0x30] sm:$0xff]
          %v426 = vld [vmem:[%s361 + $0x38] sm:$0xff]
          %v427 = vld [vmem:[%s361 + $0x40] sm:$0xff]
          %v428 = vld [vmem:[%s361 + $0x48] sm:$0xff]
          %v429 = vld [vmem:[%s361 + $0x50] sm:$0xff]
          %v430 = vld [vmem:[%s361 + $0x58] sm:$0xff]
          %v431 = vld [vmem:[%s361 + $0x60] sm:$0xff]
          %v432 = vld [vmem:[%s361 + $0x68] sm:$0xff]
          %v433 = vld [vmem:[%s361 + $0x70] sm:$0xff]
          %v434 = vld [vmem:[%s361 + $0x78] sm:$0xff]
          %v435 = vld [vmem:[#allocation14] sm:$0xff]
          %v436 = vld [vmem:[#allocation14 + $0x8] sm:$0xff]
          %v437 = vld [vmem:[#allocation14 + $0x10] sm:$0xff]
          %v438 = vld [vmem:[#allocation14 + $0x18] sm:$0xff]
          %v439 = vld [vmem:[#allocation14 + $0x20] sm:$0xff]
          %v440 = vld [vmem:[#allocation14 + $0x28] sm:$0xff]
          %v441 = vld [vmem:[#allocation14 + $0x30] sm:$0xff]
          %v442 = vld [vmem:[#allocation14 + $0x38] sm:$0xff]
          %v443 = vld [vmem:[#allocation14 + $0x40] sm:$0xff]
          %v444 = vld [vmem:[#allocation14 + $0x48] sm:$0xff]
          %v445 = vld [vmem:[#allocation14 + $0x50] sm:$0xff]
          %v446 = vld [vmem:[#allocation14 + $0x58] sm:$0xff]
          %v447 = vld [vmem:[#allocation14 + $0x60] sm:$0xff]
          %v448 = vld [vmem:[#allocation14 + $0x68] sm:$0xff]
          %v449 = vld [vmem:[#allocation14 + $0x70] sm:$0xff]
          %v450 = vld [vmem:[#allocation14 + $0x78] sm:$0xff]
          %451 = vmatprep.subr.mxu0 0.0
          %452 = vmatpush1.msra.mxu0 %v450
          %453 = vmatprep.subr.mxu0 0.0
          %454 = vmatpush1.msra.mxu0 %v449
          %455 = vmatprep.subr.mxu0 0.0
          %456 = vmatpush1.msra.mxu0 %v448
          %457 = vmatprep.subr.mxu0 0.0
          %458 = vmatpush1.msra.mxu0 %v447
          %459 = vmatprep.subr.mxu0 0.0
          %460 = vmatpush1.msra.mxu0 %v446
          %461 = vmatprep.subr.mxu0 0.0
          %462 = vmatpush1.msra.mxu0 %v445
          %463 = vmatprep.subr.mxu0 0.0
          %464 = vmatpush1.msra.mxu0 %v444
          %465 = vmatprep.subr.mxu0 0.0
          %466 = vmatpush1.msra.mxu0 %v443
          %467 = vmatprep.subr.mxu0 0.0
          %468 = vmatpush1.msra.mxu0 %v442
          %469 = vmatprep.subr.mxu0 0.0
          %470 = vmatpush1.msra.mxu0 %v441
          %471 = vmatprep.subr.mxu0 0.0
          %472 = vmatpush1.msra.mxu0 %v440
          %473 = vmatprep.subr.mxu0 0.0
          %474 = vmatpush1.msra.mxu0 %v439
          %475 = vmatprep.subr.mxu0 0.0
          %476 = vmatpush1.msra.mxu0 %v438
          %477 = vmatprep.subr.mxu0 0.0
          %478 = vmatpush1.msra.mxu0 %v437
          %479 = vmatprep.subr.mxu0 0.0
          %480 = vmatpush1.msra.mxu0 %v436
          %481 = vmatprep.subr.mxu0 0.0
          %482 = vmatpush1.msra.mxu0 %v435
          %483 = vmatprep.subr.mxu0 0.0
          %484 = vmatpush2.msra.mxu0 0.0
          %485 = vmatprep.subr.mxu0 0.0
          %486 = vmatpush2.msra.mxu0 0.0
          %487 = vmatprep.subr.mxu0 0.0
          %488 = vmatpush2.msra.mxu0 0.0
          %489 = vmatprep.subr.mxu0 0.0
          %490 = vmatpush2.msra.mxu0 0.0
          %491 = vmatprep.subr.mxu0 0.0
          %492 = vmatpush2.msra.mxu0 0.0
          %493 = vmatprep.subr.mxu0 0.0
          %494 = vmatpush2.msra.mxu0 0.0
          %495 = vmatprep.subr.mxu0 0.0
          %496 = vmatpush2.msra.mxu0 0.0
          %497 = vmatprep.subr.mxu0 0.0
          %498 = vmatpush2.msra.mxu0 0.0
          %499 = vmatprep.subr.mxu0 0.0
          %500 = vmatpush2.msra.mxu0 0.0
          %501 = vmatprep.subr.mxu0 0.0
          %502 = vmatpush2.msra.mxu0 0.0
          %503 = vmatprep.subr.mxu0 0.0
          %504 = vmatpush2.msra.mxu0 0.0
          %505 = vmatprep.subr.mxu0 0.0
          %506 = vmatpush2.msra.mxu0 0.0
          %507 = vmatprep.subr.mxu0 0.0
          %508 = vmatpush2.msra.mxu0 0.0
          %509 = vmatprep.subr.mxu0 0.0
          %510 = vmatpush2.msra.mxu0 0.0
          %511 = vmatprep.subr.mxu0 0.0
          %512 = vmatpush2.msra.mxu0 0.0
          %513 = vmatprep.subr.mxu0 0.0
          %514 = vmatpush2.msra.mxu0 0.0
          %515 = vmatprep.mubr.f32.mxu0 0.0
          %516 = vmatmul.mubr.f32.gmra.mxu0 %v419
          %v517 = vpop.f32.mrf.mxu0
          %v518 = vadd.f32 0.0, %v517
          %v519 = vpop.f32.mrf.mxu0
          %520 = vmatprep.mubr.f32.mxu0 0.0
          %521 = vmatmul.mubr.f32.gmra.mxu0 %v420
          %v522 = vpop.f32.mrf.mxu0
          %v523 = vadd.f32 0.0, %v522
          %v524 = vpop.f32.mrf.mxu0
          %525 = vmatprep.mubr.f32.mxu0 0.0
          %526 = vmatmul.mubr.f32.gmra.mxu0 %v421
          %v527 = vpop.f32.mrf.mxu0
          %v528 = vadd.f32 0.0, %v527
          %v529 = vpop.f32.mrf.mxu0
          %530 = vmatprep.mubr.f32.mxu0 0.0
          %531 = vmatmul.mubr.f32.gmra.mxu0 %v422
          %v532 = vpop.f32.mrf.mxu0
          %v533 = vadd.f32 0.0, %v532
          %v534 = vpop.f32.mrf.mxu0
          %535 = vmatprep.mubr.f32.mxu0 0.0
          %536 = vmatmul.mubr.f32.gmra.mxu0 %v423
          %v537 = vpop.f32.mrf.mxu0
          %v538 = vadd.f32 0.0, %v537
          %v539 = vpop.f32.mrf.mxu0
          %540 = vmatprep.mubr.f32.mxu0 0.0
          %541 = vmatmul.mubr.f32.gmra.mxu0 %v424
          %v542 = vpop.f32.mrf.mxu0
          %v543 = vadd.f32 0.0, %v542
          %v544 = vpop.f32.mrf.mxu0
          %545 = vmatprep.mubr.f32.mxu0 0.0
          %546 = vmatmul.mubr.f32.gmra.mxu0 %v425
          %v547 = vpop.f32.mrf.mxu0
          %v548 = vadd.f32 0.0, %v547
          %v549 = vpop.f32.mrf.mxu0
          %550 = vmatprep.mubr.f32.mxu0 0.0
          %551 = vmatmul.mubr.f32.gmra.mxu0 %v426
          %v552 = vpop.f32.mrf.mxu0
          %v553 = vadd.f32 0.0, %v552
          %v554 = vpop.f32.mrf.mxu0
          %555 = vmatprep.mubr.f32.mxu0 0.0
          %556 = vmatmul.mubr.f32.gmra.mxu0 %v427
          %v557 = vpop.f32.mrf.mxu0
          %v558 = vadd.f32 0.0, %v557
          %v559 = vpop.f32.mrf.mxu0
          %560 = vmatprep.mubr.f32.mxu0 0.0
          %561 = vmatmul.mubr.f32.gmra.mxu0 %v428
          %v562 = vpop.f32.mrf.mxu0
          %v563 = vadd.f32 0.0, %v562
          %v564 = vpop.f32.mrf.mxu0
          %565 = vmatprep.mubr.f32.mxu0 0.0
          %566 = vmatmul.mubr.f32.gmra.mxu0 %v429
          %v567 = vpop.f32.mrf.mxu0
          %v568 = vadd.f32 0.0, %v567
          %v569 = vpop.f32.mrf.mxu0
          %570 = vmatprep.mubr.f32.mxu0 0.0
          %571 = vmatmul.mubr.f32.gmra.mxu0 %v430
          %v572 = vpop.f32.mrf.mxu0
          %v573 = vadd.f32 0.0, %v572
          %v574 = vpop.f32.mrf.mxu0
          %575 = vmatprep.mubr.f32.mxu0 0.0
          %576 = vmatmul.mubr.f32.gmra.mxu0 %v431
          %v577 = vpop.f32.mrf.mxu0
          %v578 = vadd.f32 0.0, %v577
          %v579 = vpop.f32.mrf.mxu0
          %580 = vmatprep.mubr.f32.mxu0 0.0
          %581 = vmatmul.mubr.f32.gmra.mxu0 %v432
          %v582 = vpop.f32.mrf.mxu0
          %v583 = vadd.f32 0.0, %v582
          %v584 = vpop.f32.mrf.mxu0
          %585 = vmatprep.mubr.f32.mxu0 0.0
          %586 = vmatmul.mubr.f32.gmra.mxu0 %v433
          %v587 = vpop.f32.mrf.mxu0
          %v588 = vadd.f32 0.0, %v587
          %v589 = vpop.f32.mrf.mxu0
          %590 = vmatprep.mubr.f32.mxu0 0.0
          %591 = vmatmul.mubr.f32.gmra.mxu0 %v434
          %v592 = vpop.f32.mrf.mxu0
          %v593 = vadd.f32 0.0, %v592
          %v594 = vpop.f32.mrf.mxu0
          %595 = vdwg.mxu0
          %596 = vst [vmem:[#allocation3] sm:$0xff] %v518
          %597 = vst [vmem:[#allocation3 + $0x8] sm:$0xff] %v523
          %598 = vst [vmem:[#allocation3 + $0x10] sm:$0xff] %v528
          %599 = vst [vmem:[#allocation3 + $0x18] sm:$0xff] %v533
          %600 = vst [vmem:[#allocation3 + $0x20] sm:$0xff] %v538
          %601 = vst [vmem:[#allocation3 + $0x28] sm:$0xff] %v543
          %602 = vst [vmem:[#allocation3 + $0x30] sm:$0xff] %v548
          %603 = vst [vmem:[#allocation3 + $0x38] sm:$0xff] %v553
          %604 = vst [vmem:[#allocation3 + $0x40] sm:$0xff] %v558
          %605 = vst [vmem:[#allocation3 + $0x48] sm:$0xff] %v563
          %606 = vst [vmem:[#allocation3 + $0x50] sm:$0xff] %v568
          %607 = vst [vmem:[#allocation3 + $0x58] sm:$0xff] %v573
          %608 = vst [vmem:[#allocation3 + $0x60] sm:$0xff] %v578
          %609 = vst [vmem:[#allocation3 + $0x68] sm:$0xff] %v583
          %610 = vst [vmem:[#allocation3 + $0x70] sm:$0xff] %v588
          %611 = vst [vmem:[#allocation3 + $0x78] sm:$0xff] %v593
          %v612 = vld [vmem:[#allocation12] sm:$0xff]
          %v613 = vld [vmem:[#allocation12 + $0x8] sm:$0xff]
          %v614 = vld [vmem:[#allocation12 + $0x10] sm:$0xff]
          %v615 = vld [vmem:[#allocation12 + $0x18] sm:$0xff]
          %v616 = vld [vmem:[#allocation12 + $0x20] sm:$0xff]
          %v617 = vld [vmem:[#allocation12 + $0x28] sm:$0xff]
          %v618 = vld [vmem:[#allocation12 + $0x30] sm:$0xff]
          %v619 = vld [vmem:[#allocation12 + $0x38] sm:$0xff]
          %v620 = vld [vmem:[#allocation12 + $0x40] sm:$0xff]
          %v621 = vld [vmem:[#allocation12 + $0x48] sm:$0xff]
          %v622 = vld [vmem:[#allocation12 + $0x50] sm:$0xff]
          %v623 = vld [vmem:[#allocation12 + $0x58] sm:$0xff]
          %v624 = vld [vmem:[#allocation12 + $0x60] sm:$0xff]
          %v625 = vld [vmem:[#allocation12 + $0x68] sm:$0xff]
          %v626 = vld [vmem:[#allocation12 + $0x70] sm:$0xff]
          %v627 = vld [vmem:[#allocation12 + $0x78] sm:$0xff]
          %628 = vmatprep.subr.mxu0 0.0
          %629 = vmatpush1.msra.mxu0 %v627
          %630 = vmatprep.subr.mxu0 0.0
          %631 = vmatpush1.msra.mxu0 %v626
          %632 = vmatprep.subr.mxu0 0.0
          %633 = vmatpush1.msra.mxu0 %v625
          %634 = vmatprep.subr.mxu0 0.0
          %635 = vmatpush1.msra.mxu0 %v624
          %636 = vmatprep.subr.mxu0 0.0
          %637 = vmatpush1.msra.mxu0 %v623
          %638 = vmatprep.subr.mxu0 0.0
          %639 = vmatpush1.msra.mxu0 %v622
          %640 = vmatprep.subr.mxu0 0.0
          %641 = vmatpush1.msra.mxu0 %v621
          %642 = vmatprep.subr.mxu0 0.0
          %643 = vmatpush1.msra.mxu0 %v620
          %644 = vmatprep.subr.mxu0 0.0
          %645 = vmatpush1.msra.mxu0 %v619
          %646 = vmatprep.subr.mxu0 0.0
          %647 = vmatpush1.msra.mxu0 %v618
          %648 = vmatprep.subr.mxu0 0.0
          %649 = vmatpush1.msra.mxu0 %v617
          %650 = vmatprep.subr.mxu0 0.0
          %651 = vmatpush1.msra.mxu0 %v616
          %652 = vmatprep.subr.mxu0 0.0
          %653 = vmatpush1.msra.mxu0 %v615
          %654 = vmatprep.subr.mxu0 0.0
          %655 = vmatpush1.msra.mxu0 %v614
          %656 = vmatprep.subr.mxu0 0.0
          %657 = vmatpush1.msra.mxu0 %v613
          %658 = vmatprep.subr.mxu0 0.0
          %659 = vmatpush1.msra.mxu0 %v612
          %660 = vmatprep.subr.mxu0 0.0
          %661 = vmatpush2.msra.mxu0 0.0
          %662 = vmatprep.subr.mxu0 0.0
          %663 = vmatpush2.msra.mxu0 0.0
          %664 = vmatprep.subr.mxu0 0.0
          %665 = vmatpush2.msra.mxu0 0.0
          %666 = vmatprep.subr.mxu0 0.0
          %667 = vmatpush2.msra.mxu0 0.0
          %668 = vmatprep.subr.mxu0 0.0
          %669 = vmatpush2.msra.mxu0 0.0
          %670 = vmatprep.subr.mxu0 0.0
          %671 = vmatpush2.msra.mxu0 0.0
          %672 = vmatprep.subr.mxu0 0.0
          %673 = vmatpush2.msra.mxu0 0.0
          %674 = vmatprep.subr.mxu0 0.0
          %675 = vmatpush2.msra.mxu0 0.0
          %676 = vmatprep.subr.mxu0 0.0
          %677 = vmatpush2.msra.mxu0 0.0
          %678 = vmatprep.subr.mxu0 0.0
          %679 = vmatpush2.msra.mxu0 0.0
          %680 = vmatprep.subr.mxu0 0.0
          %681 = vmatpush2.msra.mxu0 0.0
          %682 = vmatprep.subr.mxu0 0.0
          %683 = vmatpush2.msra.mxu0 0.0
          %684 = vmatprep.subr.mxu0 0.0
          %685 = vmatpush2.msra.mxu0 0.0
          %686 = vmatprep.subr.mxu0 0.0
          %687 = vmatpush2.msra.mxu0 0.0
          %688 = vmatprep.subr.mxu0 0.0
          %689 = vmatpush2.msra.mxu0 0.0
          %690 = vmatprep.subr.mxu0 0.0
          %691 = vmatpush2.msra.mxu0 0.0
          %692 = vmatprep.mubr.f32.mxu0 0.0
          %693 = vmatmul.mubr.f32.gmra.mxu0 %v419
          %v694 = vpop.f32.mrf.mxu0
          %v695 = vadd.f32 0.0, %v694
          %v696 = vpop.f32.mrf.mxu0
          %697 = vmatprep.mubr.f32.mxu0 0.0
          %698 = vmatmul.mubr.f32.gmra.mxu0 %v420
          %v699 = vpop.f32.mrf.mxu0
          %v700 = vadd.f32 0.0, %v699
          %v701 = vpop.f32.mrf.mxu0
          %702 = vmatprep.mubr.f32.mxu0 0.0
          %703 = vmatmul.mubr.f32.gmra.mxu0 %v421
          %v704 = vpop.f32.mrf.mxu0
          %v705 = vadd.f32 0.0, %v704
          %v706 = vpop.f32.mrf.mxu0
          %707 = vmatprep.mubr.f32.mxu0 0.0
          %708 = vmatmul.mubr.f32.gmra.mxu0 %v422
          %v709 = vpop.f32.mrf.mxu0
          %v710 = vadd.f32 0.0, %v709
          %v711 = vpop.f32.mrf.mxu0
          %712 = vmatprep.mubr.f32.mxu0 0.0
          %713 = vmatmul.mubr.f32.gmra.mxu0 %v423
          %v714 = vpop.f32.mrf.mxu0
          %v715 = vadd.f32 0.0, %v714
          %v716 = vpop.f32.mrf.mxu0
          %717 = vmatprep.mubr.f32.mxu0 0.0
          %718 = vmatmul.mubr.f32.gmra.mxu0 %v424
          %v719 = vpop.f32.mrf.mxu0
          %v720 = vadd.f32 0.0, %v719
          %v721 = vpop.f32.mrf.mxu0
          %722 = vmatprep.mubr.f32.mxu0 0.0
          %723 = vmatmul.mubr.f32.gmra.mxu0 %v425
          %v724 = vpop.f32.mrf.mxu0
          %v725 = vadd.f32 0.0, %v724
          %v726 = vpop.f32.mrf.mxu0
          %727 = vmatprep.mubr.f32.mxu0 0.0
          %728 = vmatmul.mubr.f32.gmra.mxu0 %v426
          %v729 = vpop.f32.mrf.mxu0
          %v730 = vadd.f32 0.0, %v729
          %v731 = vpop.f32.mrf.mxu0
          %732 = vmatprep.mubr.f32.mxu0 0.0
          %733 = vmatmul.mubr.f32.gmra.mxu0 %v427
          %v734 = vpop.f32.mrf.mxu0
          %v735 = vadd.f32 0.0, %v734
          %v736 = vpop.f32.mrf.mxu0
          %737 = vmatprep.mubr.f32.mxu0 0.0
          %738 = vmatmul.mubr.f32.gmra.mxu0 %v428
          %v739 = vpop.f32.mrf.mxu0
          %v740 = vadd.f32 0.0, %v739
          %v741 = vpop.f32.mrf.mxu0
          %742 = vmatprep.mubr.f32.mxu0 0.0
          %743 = vmatmul.mubr.f32.gmra.mxu0 %v429
          %v744 = vpop.f32.mrf.mxu0
          %v745 = vadd.f32 0.0, %v744
          %v746 = vpop.f32.mrf.mxu0
          %747 = vmatprep.mubr.f32.mxu0 0.0
          %748 = vmatmul.mubr.f32.gmra.mxu0 %v430
          %v749 = vpop.f32.mrf.mxu0
          %v750 = vadd.f32 0.0, %v749
          %v751 = vpop.f32.mrf.mxu0
          %752 = vmatprep.mubr.f32.mxu0 0.0
          %753 = vmatmul.mubr.f32.gmra.mxu0 %v431
          %v754 = vpop.f32.mrf.mxu0
          %v755 = vadd.f32 0.0, %v754
          %v756 = vpop.f32.mrf.mxu0
          %757 = vmatprep.mubr.f32.mxu0 0.0
          %758 = vmatmul.mubr.f32.gmra.mxu0 %v432
          %v759 = vpop.f32.mrf.mxu0
          %v760 = vadd.f32 0.0, %v759
          %v761 = vpop.f32.mrf.mxu0
          %762 = vmatprep.mubr.f32.mxu0 0.0
          %763 = vmatmul.mubr.f32.gmra.mxu0 %v433
          %v764 = vpop.f32.mrf.mxu0
          %v765 = vadd.f32 0.0, %v764
          %v766 = vpop.f32.mrf.mxu0
          %767 = vmatprep.mubr.f32.mxu0 0.0
          %768 = vmatmul.mubr.f32.gmra.mxu0 %v434
          %v769 = vpop.f32.mrf.mxu0
          %v770 = vadd.f32 0.0, %v769
          %v771 = vpop.f32.mrf.mxu0
          %772 = vdwg.mxu0
          %773 = vxpose.xlu0.b32.start [1/16] %v695, 128
          %774 = vxpose.xlu0.b32.cont [2/16] %v700, 128
          %775 = vxpose.xlu0.b32.cont [3/16] %v705, 128
          %776 = vxpose.xlu0.b32.cont [4/16] %v710, 128
          %777 = vxpose.xlu0.b32.cont [5/16] %v715, 128
          %778 = vxpose.xlu0.b32.cont [6/16] %v720, 128
          %779 = vxpose.xlu0.b32.cont [7/16] %v725, 128
          %780 = vxpose.xlu0.b32.cont [8/16] %v730, 128
          %781 = vxpose.xlu0.b32.cont [9/16] %v735, 128
          %782 = vxpose.xlu0.b32.cont [10/16] %v740, 128
          %783 = vxpose.xlu0.b32.cont [11/16] %v745, 128
          %784 = vxpose.xlu0.b32.cont [12/16] %v750, 128
          %785 = vxpose.xlu0.b32.cont [13/16] %v755, 128
          %786 = vxpose.xlu0.b32.cont [14/16] %v760, 128
          %787 = vxpose.xlu0.b32.cont [15/16] %v765, 128
          %788 = vxpose.xlu0.b32.end [16/16] %v770, 128
          %v789 = vpop.trf.xlu0
          %v790 = vpop.trf.xlu0
          %v791 = vpop.trf.xlu0
          %v792 = vpop.trf.xlu0
          %v793 = vpop.trf.xlu0
          %v794 = vpop.trf.xlu0
          %v795 = vpop.trf.xlu0
          %v796 = vpop.trf.xlu0
          %v797 = vpop.trf.xlu0
          %v798 = vpop.trf.xlu0
          %v799 = vpop.trf.xlu0
          %v800 = vpop.trf.xlu0
          %v801 = vpop.trf.xlu0
          %v802 = vpop.trf.xlu0
          %v803 = vpop.trf.xlu0
          %v804 = vpop.trf.xlu0
          %805 = vst [vmem:[#allocation2] sm:$0xff] %v789
          %806 = vst [vmem:[#allocation2 + $0x8] sm:$0xff] %v790
          %s807 = scalar_lea.vmem [#allocation2], 16
          %808 = vst [vmem:[%s807] sm:$0xff] %v791
          %809 = vst [vmem:[%s807 + $0x8] sm:$0xff] %v792
          %s810 = scalar_lea.vmem [#allocation2], 32
          %811 = vst [vmem:[%s810] sm:$0xff] %v793
          %812 = vst [vmem:[%s810 + $0x8] sm:$0xff] %v794
          %s813 = scalar_lea.vmem [#allocation2], 48
          %814 = vst [vmem:[%s813] sm:$0xff] %v795
          %815 = vst [vmem:[%s813 + $0x8] sm:$0xff] %v796
          %s816 = scalar_lea.vmem [#allocation2], 64
          %817 = vst [vmem:[%s816] sm:$0xff] %v797
          %818 = vst [vmem:[%s816 + $0x8] sm:$0xff] %v798
          %s819 = scalar_lea.vmem [#allocation2], 80
          %820 = vst [vmem:[%s819] sm:$0xff] %v799
          %821 = vst [vmem:[%s819 + $0x8] sm:$0xff] %v800
          %s822 = scalar_lea.vmem [#allocation2], 96
          %823 = vst [vmem:[%s822] sm:$0xff] %v801
          %824 = vst [vmem:[%s822 + $0x8] sm:$0xff] %v802
          %s825 = scalar_lea.vmem [#allocation2], 112
          %826 = vst [vmem:[%s825] sm:$0xff] %v803
          %827 = vst [vmem:[%s825 + $0x8] sm:$0xff] %v804
        $region76: #{tpu_custom_call.1} parent=47 // pred_fallthru
          _
        %v828 = vld [vmem:[%s352] sm:$0xff]
        %v829 = vld [vmem:[%s352 + $0x8] sm:$0xff]
        %v830 = vld [vmem:[%s352 + $0x10] sm:$0xff]
        %v831 = vld [vmem:[%s352 + $0x18] sm:$0xff]
        %v832 = vld [vmem:[%s352 + $0x20] sm:$0xff]
        %v833 = vld [vmem:[%s352 + $0x28] sm:$0xff]
        %v834 = vld [vmem:[%s352 + $0x30] sm:$0xff]
        %v835 = vld [vmem:[%s352 + $0x38] sm:$0xff]
        %v836 = vld [vmem:[%s352 + $0x40] sm:$0xff]
        %v837 = vld [vmem:[%s352 + $0x48] sm:$0xff]
        %v838 = vld [vmem:[%s352 + $0x50] sm:$0xff]
        %v839 = vld [vmem:[%s352 + $0x58] sm:$0xff]
        %v840 = vld [vmem:[%s352 + $0x60] sm:$0xff]
        %v841 = vld [vmem:[%s352 + $0x68] sm:$0xff]
        %v842 = vld [vmem:[%s352 + $0x70] sm:$0xff]
        %v843 = vld [vmem:[%s352 + $0x78] sm:$0xff]
        %v844 = vld [vmem:[#allocation11] sm:$0xff]
        %v845 = vld [vmem:[#allocation11 + $0x8] sm:$0xff]
        %v846 = vld [vmem:[#allocation11 + $0x10] sm:$0xff]
        %v847 = vld [vmem:[#allocation11 + $0x18] sm:$0xff]
        %v848 = vld [vmem:[#allocation11 + $0x20] sm:$0xff]
        %v849 = vld [vmem:[#allocation11 + $0x28] sm:$0xff]
        %v850 = vld [vmem:[#allocation11 + $0x30] sm:$0xff]
        %v851 = vld [vmem:[#allocation11 + $0x38] sm:$0xff]
        %v852 = vld [vmem:[#allocation11 + $0x40] sm:$0xff]
        %v853 = vld [vmem:[#allocation11 + $0x48] sm:$0xff]
        %v854 = vld [vmem:[#allocation11 + $0x50] sm:$0xff]
        %v855 = vld [vmem:[#allocation11 + $0x58] sm:$0xff]
        %v856 = vld [vmem:[#allocation11 + $0x60] sm:$0xff]
        %v857 = vld [vmem:[#allocation11 + $0x68] sm:$0xff]
        %v858 = vld [vmem:[#allocation11 + $0x70] sm:$0xff]
        %v859 = vld [vmem:[#allocation11 + $0x78] sm:$0xff]
        %860 = vmatprep.subr.mxu0 0.0
        %861 = vmatpush1.msra.mxu0 %v859
        %862 = vmatprep.subr.mxu0 0.0
        %863 = vmatpush1.msra.mxu0 %v858
        %864 = vmatprep.subr.mxu0 0.0
        %865 = vmatpush1.msra.mxu0 %v857
        %866 = vmatprep.subr.mxu0 0.0
        %867 = vmatpush1.msra.mxu0 %v856
        %868 = vmatprep.subr.mxu0 0.0
        %869 = vmatpush1.msra.mxu0 %v855
        %870 = vmatprep.subr.mxu0 0.0
        %871 = vmatpush1.msra.mxu0 %v854
        %872 = vmatprep.subr.mxu0 0.0
        %873 = vmatpush1.msra.mxu0 %v853
        %874 = vmatprep.subr.mxu0 0.0
        %875 = vmatpush1.msra.mxu0 %v852
        %876 = vmatprep.subr.mxu0 0.0
        %877 = vmatpush1.msra.mxu0 %v851
        %878 = vmatprep.subr.mxu0 0.0
        %879 = vmatpush1.msra.mxu0 %v850
        %880 = vmatprep.subr.mxu0 0.0
        %881 = vmatpush1.msra.mxu0 %v849
        %882 = vmatprep.subr.mxu0 0.0
        %883 = vmatpush1.msra.mxu0 %v848
        %884 = vmatprep.subr.mxu0 0.0
        %885 = vmatpush1.msra.mxu0 %v847
        %886 = vmatprep.subr.mxu0 0.0
        %887 = vmatpush1.msra.mxu0 %v846
        %888 = vmatprep.subr.mxu0 0.0
        %889 = vmatpush1.msra.mxu0 %v845
        %890 = vmatprep.subr.mxu0 0.0
        %891 = vmatpush1.msra.mxu0 %v844
        %892 = vmatprep.subr.mxu0 0.0
        %893 = vmatpush2.msra.mxu0 0.0
        %894 = vmatprep.subr.mxu0 0.0
        %895 = vmatpush2.msra.mxu0 0.0
        %896 = vmatprep.subr.mxu0 0.0
        %897 = vmatpush2.msra.mxu0 0.0
        %898 = vmatprep.subr.mxu0 0.0
        %899 = vmatpush2.msra.mxu0 0.0
        %900 = vmatprep.subr.mxu0 0.0
        %901 = vmatpush2.msra.mxu0 0.0
        %902 = vmatprep.subr.mxu0 0.0
        %903 = vmatpush2.msra.mxu0 0.0
        %904 = vmatprep.subr.mxu0 0.0
        %905 = vmatpush2.msra.mxu0 0.0
        %906 = vmatprep.subr.mxu0 0.0
        %907 = vmatpush2.msra.mxu0 0.0
        %908 = vmatprep.subr.mxu0 0.0
        %909 = vmatpush2.msra.mxu0 0.0
        %910 = vmatprep.subr.mxu0 0.0
        %911 = vmatpush2.msra.mxu0 0.0
        %912 = vmatprep.subr.mxu0 0.0
        %913 = vmatpush2.msra.mxu0 0.0
        %914 = vmatprep.subr.mxu0 0.0
        %915 = vmatpush2.msra.mxu0 0.0
        %916 = vmatprep.subr.mxu0 0.0
        %917 = vmatpush2.msra.mxu0 0.0
        %918 = vmatprep.subr.mxu0 0.0
        %919 = vmatpush2.msra.mxu0 0.0
        %920 = vmatprep.subr.mxu0 0.0
        %921 = vmatpush2.msra.mxu0 0.0
        %922 = vmatprep.subr.mxu0 0.0
        %923 = vmatpush2.msra.mxu0 0.0
        %924 = vmatprep.mubr.f32.mxu0 0.0
        %925 = vmatmul.mubr.f32.gmra.mxu0 %v828
        %v926 = vpop.f32.mrf.mxu0
        %v927 = vadd.f32 0.0, %v926
        %v928 = vpop.f32.mrf.mxu0
        %929 = vmatprep.mubr.f32.mxu0 0.0
        %930 = vmatmul.mubr.f32.gmra.mxu0 %v829
        %v931 = vpop.f32.mrf.mxu0
        %v932 = vadd.f32 0.0, %v931
        %v933 = vpop.f32.mrf.mxu0
        %934 = vmatprep.mubr.f32.mxu0 0.0
        %935 = vmatmul.mubr.f32.gmra.mxu0 %v830
        %v936 = vpop.f32.mrf.mxu0
        %v937 = vadd.f32 0.0, %v936
        %v938 = vpop.f32.mrf.mxu0
        %939 = vmatprep.mubr.f32.mxu0 0.0
        %940 = vmatmul.mubr.f32.gmra.mxu0 %v831
        %v941 = vpop.f32.mrf.mxu0
        %v942 = vadd.f32 0.0, %v941
        %v943 = vpop.f32.mrf.mxu0
        %944 = vmatprep.mubr.f32.mxu0 0.0
        %945 = vmatmul.mubr.f32.gmra.mxu0 %v832
        %v946 = vpop.f32.mrf.mxu0
        %v947 = vadd.f32 0.0, %v946
        %v948 = vpop.f32.mrf.mxu0
        %949 = vmatprep.mubr.f32.mxu0 0.0
        %950 = vmatmul.mubr.f32.gmra.mxu0 %v833
        %v951 = vpop.f32.mrf.mxu0
        %v952 = vadd.f32 0.0, %v951
        %v953 = vpop.f32.mrf.mxu0
        %954 = vmatprep.mubr.f32.mxu0 0.0
        %955 = vmatmul.mubr.f32.gmra.mxu0 %v834
        %v956 = vpop.f32.mrf.mxu0
        %v957 = vadd.f32 0.0, %v956
        %v958 = vpop.f32.mrf.mxu0
        %959 = vmatprep.mubr.f32.mxu0 0.0
        %960 = vmatmul.mubr.f32.gmra.mxu0 %v835
        %v961 = vpop.f32.mrf.mxu0
        %v962 = vadd.f32 0.0, %v961
        %v963 = vpop.f32.mrf.mxu0
        %964 = vmatprep.mubr.f32.mxu0 0.0
        %965 = vmatmul.mubr.f32.gmra.mxu0 %v836
        %v966 = vpop.f32.mrf.mxu0
        %v967 = vadd.f32 0.0, %v966
        %v968 = vpop.f32.mrf.mxu0
        %969 = vmatprep.mubr.f32.mxu0 0.0
        %970 = vmatmul.mubr.f32.gmra.mxu0 %v837
        %v971 = vpop.f32.mrf.mxu0
        %v972 = vadd.f32 0.0, %v971
        %v973 = vpop.f32.mrf.mxu0
        %974 = vmatprep.mubr.f32.mxu0 0.0
        %975 = vmatmul.mubr.f32.gmra.mxu0 %v838
        %v976 = vpop.f32.mrf.mxu0
        %v977 = vadd.f32 0.0, %v976
        %v978 = vpop.f32.mrf.mxu0
        %979 = vmatprep.mubr.f32.mxu0 0.0
        %980 = vmatmul.mubr.f32.gmra.mxu0 %v839
        %v981 = vpop.f32.mrf.mxu0
        %v982 = vadd.f32 0.0, %v981
        %v983 = vpop.f32.mrf.mxu0
        %984 = vmatprep.mubr.f32.mxu0 0.0
        %985 = vmatmul.mubr.f32.gmra.mxu0 %v840
        %v986 = vpop.f32.mrf.mxu0
        %v987 = vadd.f32 0.0, %v986
        %v988 = vpop.f32.mrf.mxu0
        %989 = vmatprep.mubr.f32.mxu0 0.0
        %990 = vmatmul.mubr.f32.gmra.mxu0 %v841
        %v991 = vpop.f32.mrf.mxu0
        %v992 = vadd.f32 0.0, %v991
        %v993 = vpop.f32.mrf.mxu0
        %994 = vmatprep.mubr.f32.mxu0 0.0
        %995 = vmatmul.mubr.f32.gmra.mxu0 %v842
        %v996 = vpop.f32.mrf.mxu0
        %v997 = vadd.f32 0.0, %v996
        %v998 = vpop.f32.mrf.mxu0
        %999 = vmatprep.mubr.f32.mxu0 0.0
        %1000 = vmatmul.mubr.f32.gmra.mxu0 %v843
        %v1001 = vpop.f32.mrf.mxu0
        %v1002 = vadd.f32 0.0, %v1001
        %v1003 = vpop.f32.mrf.mxu0
        %1004 = vdwg.mxu0
        %1005 = vst [vmem:[#allocation4] sm:$0xff] %v927
        %1006 = vst [vmem:[#allocation4 + $0x8] sm:$0xff] %v932
        %1007 = vst [vmem:[#allocation4 + $0x10] sm:$0xff] %v937
        %1008 = vst [vmem:[#allocation4 + $0x18] sm:$0xff] %v942
        %1009 = vst [vmem:[#allocation4 + $0x20] sm:$0xff] %v947
        %1010 = vst [vmem:[#allocation4 + $0x28] sm:$0xff] %v952
        %1011 = vst [vmem:[#allocation4 + $0x30] sm:$0xff] %v957
        %1012 = vst [vmem:[#allocation4 + $0x38] sm:$0xff] %v962
        %1013 = vst [vmem:[#allocation4 + $0x40] sm:$0xff] %v967
        %1014 = vst [vmem:[#allocation4 + $0x48] sm:$0xff] %v972
        %1015 = vst [vmem:[#allocation4 + $0x50] sm:$0xff] %v977
        %1016 = vst [vmem:[#allocation4 + $0x58] sm:$0xff] %v982
        %1017 = vst [vmem:[#allocation4 + $0x60] sm:$0xff] %v987
        %1018 = vst [vmem:[#allocation4 + $0x68] sm:$0xff] %v992
        %1019 = vst [vmem:[#allocation4 + $0x70] sm:$0xff] %v997
        %1020 = vst [vmem:[#allocation4 + $0x78] sm:$0xff] %v1002
        %v1021 = vld [vmem:[#allocation4] sm:$0xff]
        %v1022 = vld [vmem:[#allocation4 + $0x8] sm:$0xff]
        %v1023 = vld [vmem:[#allocation4 + $0x10] sm:$0xff]
        %v1024 = vld [vmem:[#allocation4 + $0x18] sm:$0xff]
        %v1025 = vld [vmem:[#allocation4 + $0x20] sm:$0xff]
        %v1026 = vld [vmem:[#allocation4 + $0x28] sm:$0xff]
        %v1027 = vld [vmem:[#allocation4 + $0x30] sm:$0xff]
        %v1028 = vld [vmem:[#allocation4 + $0x38] sm:$0xff]
        %v1029 = vld [vmem:[#allocation4 + $0x40] sm:$0xff]
        %v1030 = vld [vmem:[#allocation4 + $0x48] sm:$0xff]
        %v1031 = vld [vmem:[#allocation4 + $0x50] sm:$0xff]
        %v1032 = vld [vmem:[#allocation4 + $0x58] sm:$0xff]
        %v1033 = vld [vmem:[#allocation4 + $0x60] sm:$0xff]
        %v1034 = vld [vmem:[#allocation4 + $0x68] sm:$0xff]
        %v1035 = vld [vmem:[#allocation4 + $0x70] sm:$0xff]
        %v1036 = vld [vmem:[#allocation4 + $0x78] sm:$0xff]
        %v1037 = vld [vmem:[#allocation2] sm:$0xff]
        %v1038 = vld [vmem:[#allocation2 + $0x8] sm:$0xff]
        %vm1039 = vcmask 130048
        %v1041 = vsel %vm1039, %v1021, 0
        %v1044 = vsel %vm1039, %v1022, 0
        %v1047 = vsel %vm1039, %v1023, 0
        %v1050 = vsel %vm1039, %v1024, 0
        %v1053 = vsel %vm1039, %v1025, 0
        %v1056 = vsel %vm1039, %v1026, 0
        %v1059 = vsel %vm1039, %v1027, 0
        %v1062 = vsel %vm1039, %v1028, 0
        %v1065 = vsel %vm1039, %v1029, 0
        %v1068 = vsel %vm1039, %v1030, 0
        %v1071 = vsel %vm1039, %v1031, 0
        %v1074 = vsel %vm1039, %v1032, 0
        %v1077 = vsel %vm1039, %v1033, 0
        %v1080 = vsel %vm1039, %v1034, 0
        %v1083 = vsel %vm1039, %v1035, 0
        %v1086 = vsel %vm1039, %v1036, 0
        %1088 = vmatprep.subr.mxu0 0.0
        %1089 = vmatpush1.msra.mxu0 0.0
        %1090 = vmatprep.subr.mxu0 0.0
        %1091 = vmatpush1.msra.mxu0 0.0
        %1092 = vmatprep.subr.mxu0 0.0
        %1093 = vmatpush1.msra.mxu0 0.0
        %1094 = vmatprep.subr.mxu0 0.0
        %1095 = vmatpush1.msra.mxu0 0.0
        %1096 = vmatprep.subr.mxu0 0.0
        %1097 = vmatpush1.msra.mxu0 0.0
        %1098 = vmatprep.subr.mxu0 0.0
        %1099 = vmatpush1.msra.mxu0 0.0
        %1100 = vmatprep.subr.mxu0 0.0
        %1101 = vmatpush1.msra.mxu0 0.0
        %1102 = vmatprep.subr.mxu0 0.0
        %1103 = vmatpush1.msra.mxu0 0.0
        %1104 = vmatprep.subr.mxu0 0.0
        %1105 = vmatpush1.msra.mxu0 0.0
        %1106 = vmatprep.subr.mxu0 0.0
        %1107 = vmatpush1.msra.mxu0 0.0
        %1108 = vmatprep.subr.mxu0 0.0
        %1109 = vmatpush1.msra.mxu0 0.0
        %1110 = vmatprep.subr.mxu0 0.0
        %1111 = vmatpush1.msra.mxu0 0.0
        %1112 = vmatprep.subr.mxu0 0.0
        %1113 = vmatpush1.msra.mxu0 0.0
        %1114 = vmatprep.subr.mxu0 0.0
        %1115 = vmatpush1.msra.mxu0 0.0
        %1116 = vmatprep.subr.mxu0 0.0
        %1117 = vmatpush1.msra.mxu0 %v1038
        %1118 = vmatprep.subr.mxu0 0.0
        %1119 = vmatpush1.msra.mxu0 %v1037
        %1120 = vmatprep.subr.mxu0 0.0
        %1121 = vmatpush2.msra.mxu0 0.0
        %1122 = vmatprep.subr.mxu0 0.0
        %1123 = vmatpush2.msra.mxu0 0.0
        %1124 = vmatprep.subr.mxu0 0.0
        %1125 = vmatpush2.msra.mxu0 0.0
        %1126 = vmatprep.subr.mxu0 0.0
        %1127 = vmatpush2.msra.mxu0 0.0
        %1128 = vmatprep.subr.mxu0 0.0
        %1129 = vmatpush2.msra.mxu0 0.0
        %1130 = vmatprep.subr.mxu0 0.0
        %1131 = vmatpush2.msra.mxu0 0.0
        %1132 = vmatprep.subr.mxu0 0.0
        %1133 = vmatpush2.msra.mxu0 0.0
        %1134 = vmatprep.subr.mxu0 0.0
        %1135 = vmatpush2.msra.mxu0 0.0
        %1136 = vmatprep.subr.mxu0 0.0
        %1137 = vmatpush2.msra.mxu0 0.0
        %1138 = vmatprep.subr.mxu0 0.0
        %1139 = vmatpush2.msra.mxu0 0.0
        %1140 = vmatprep.subr.mxu0 0.0
        %1141 = vmatpush2.msra.mxu0 0.0
        %1142 = vmatprep.subr.mxu0 0.0
        %1143 = vmatpush2.msra.mxu0 0.0
        %1144 = vmatprep.subr.mxu0 0.0
        %1145 = vmatpush2.msra.mxu0 0.0
        %1146 = vmatprep.subr.mxu0 0.0
        %1147 = vmatpush2.msra.mxu0 0.0
        %1148 = vmatprep.subr.mxu0 0.0
        %1149 = vmatpush2.msra.mxu0 0.0
        %1150 = vmatprep.subr.mxu0 0.0
        %1151 = vmatpush2.msra.mxu0 0.0
        %1152 = vmatprep.mubr.f32.mxu0 0.0
        %1153 = vmatmul.mubr.f32.gmra.mxu0 %v1041
        %v1154 = vpop.f32.mrf.mxu0
        %v1155 = vadd.f32 0.0, %v1154
        %v1156 = vpop.f32.mrf.mxu0
        %1157 = vmatprep.mubr.f32.mxu0 0.0
        %1158 = vmatmul.mubr.f32.gmra.mxu0 %v1044
        %v1159 = vpop.f32.mrf.mxu0
        %v1160 = vadd.f32 0.0, %v1159
        %v1161 = vpop.f32.mrf.mxu0
        %1162 = vmatprep.mubr.f32.mxu0 0.0
        %1163 = vmatmul.mubr.f32.gmra.mxu0 %v1047
        %v1164 = vpop.f32.mrf.mxu0
        %v1165 = vadd.f32 0.0, %v1164
        %v1166 = vpop.f32.mrf.mxu0
        %1167 = vmatprep.mubr.f32.mxu0 0.0
        %1168 = vmatmul.mubr.f32.gmra.mxu0 %v1050
        %v1169 = vpop.f32.mrf.mxu0
        %v1170 = vadd.f32 0.0, %v1169
        %v1171 = vpop.f32.mrf.mxu0
        %1172 = vmatprep.mubr.f32.mxu0 0.0
        %1173 = vmatmul.mubr.f32.gmra.mxu0 %v1053
        %v1174 = vpop.f32.mrf.mxu0
        %v1175 = vadd.f32 0.0, %v1174
        %v1176 = vpop.f32.mrf.mxu0
        %1177 = vmatprep.mubr.f32.mxu0 0.0
        %1178 = vmatmul.mubr.f32.gmra.mxu0 %v1056
        %v1179 = vpop.f32.mrf.mxu0
        %v1180 = vadd.f32 0.0, %v1179
        %v1181 = vpop.f32.mrf.mxu0
        %1182 = vmatprep.mubr.f32.mxu0 0.0
        %1183 = vmatmul.mubr.f32.gmra.mxu0 %v1059
        %v1184 = vpop.f32.mrf.mxu0
        %v1185 = vadd.f32 0.0, %v1184
        %v1186 = vpop.f32.mrf.mxu0
        %1187 = vmatprep.mubr.f32.mxu0 0.0
        %1188 = vmatmul.mubr.f32.gmra.mxu0 %v1062
        %v1189 = vpop.f32.mrf.mxu0
        %v1190 = vadd.f32 0.0, %v1189
        %v1191 = vpop.f32.mrf.mxu0
        %1192 = vmatprep.mubr.f32.mxu0 0.0
        %1193 = vmatmul.mubr.f32.gmra.mxu0 %v1065
        %v1194 = vpop.f32.mrf.mxu0
        %v1195 = vadd.f32 0.0, %v1194
        %v1196 = vpop.f32.mrf.mxu0
        %1197 = vmatprep.mubr.f32.mxu0 0.0
        %1198 = vmatmul.mubr.f32.gmra.mxu0 %v1068
        %v1199 = vpop.f32.mrf.mxu0
        %v1200 = vadd.f32 0.0, %v1199
        %v1201 = vpop.f32.mrf.mxu0
        %1202 = vmatprep.mubr.f32.mxu0 0.0
        %1203 = vmatmul.mubr.f32.gmra.mxu0 %v1071
        %v1204 = vpop.f32.mrf.mxu0
        %v1205 = vadd.f32 0.0, %v1204
        %v1206 = vpop.f32.mrf.mxu0
        %1207 = vmatprep.mubr.f32.mxu0 0.0
        %1208 = vmatmul.mubr.f32.gmra.mxu0 %v1074
        %v1209 = vpop.f32.mrf.mxu0
        %v1210 = vadd.f32 0.0, %v1209
        %v1211 = vpop.f32.mrf.mxu0
        %1212 = vmatprep.mubr.f32.mxu0 0.0
        %1213 = vmatmul.mubr.f32.gmra.mxu0 %v1077
        %v1214 = vpop.f32.mrf.mxu0
        %v1215 = vadd.f32 0.0, %v1214
        %v1216 = vpop.f32.mrf.mxu0
        %1217 = vmatprep.mubr.f32.mxu0 0.0
        %1218 = vmatmul.mubr.f32.gmra.mxu0 %v1080
        %v1219 = vpop.f32.mrf.mxu0
        %v1220 = vadd.f32 0.0, %v1219
        %v1221 = vpop.f32.mrf.mxu0
        %1222 = vmatprep.mubr.f32.mxu0 0.0
        %1223 = vmatmul.mubr.f32.gmra.mxu0 %v1083
        %v1224 = vpop.f32.mrf.mxu0
        %v1225 = vadd.f32 0.0, %v1224
        %v1226 = vpop.f32.mrf.mxu0
        %1227 = vmatprep.mubr.f32.mxu0 0.0
        %1228 = vmatmul.mubr.f32.gmra.mxu0 %v1086
        %v1229 = vpop.f32.mrf.mxu0
        %v1230 = vadd.f32 0.0, %v1229
        %v1231 = vpop.f32.mrf.mxu0
        %1232 = vdwg.mxu0
        %1233 = vmax.xlane.f32.xlu0 %v1155
        %v1234 = vpop.xlane.xlu0 %1233
        %1235 = vmax.xlane.f32.xlu0 %v1160
        %v1236 = vpop.xlane.xlu0 %1235
        %1237 = vmax.xlane.f32.xlu0 %v1165
        %v1238 = vpop.xlane.xlu0 %1237
        %1239 = vmax.xlane.f32.xlu0 %v1170
        %v1240 = vpop.xlane.xlu0 %1239
        %1241 = vmax.xlane.f32.xlu0 %v1175
        %v1242 = vpop.xlane.xlu0 %1241
        %1243 = vmax.xlane.f32.xlu0 %v1180
        %v1244 = vpop.xlane.xlu0 %1243
        %1245 = vmax.xlane.f32.xlu0 %v1185
        %v1246 = vpop.xlane.xlu0 %1245
        %1247 = vmax.xlane.f32.xlu0 %v1190
        %v1248 = vpop.xlane.xlu0 %1247
        %1249 = vmax.xlane.f32.xlu0 %v1195
        %v1250 = vpop.xlane.xlu0 %1249
        %1251 = vmax.xlane.f32.xlu0 %v1200
        %v1252 = vpop.xlane.xlu0 %1251
        %1253 = vmax.xlane.f32.xlu0 %v1205
        %v1254 = vpop.xlane.xlu0 %1253
        %1255 = vmax.xlane.f32.xlu0 %v1210
        %v1256 = vpop.xlane.xlu0 %1255
        %1257 = vmax.xlane.f32.xlu0 %v1215
        %v1258 = vpop.xlane.xlu0 %1257
        %1259 = vmax.xlane.f32.xlu0 %v1220
        %v1260 = vpop.xlane.xlu0 %1259
        %1261 = vmax.xlane.f32.xlu0 %v1225
        %v1262 = vpop.xlane.xlu0 %1261
        %1263 = vmax.xlane.f32.xlu0 %v1230
        %v1264 = vpop.xlane.xlu0 %1263
        %v1265 = vsub.f32 %v1155, %v1234
        %v1266 = vsub.f32 %v1160, %v1236
        %v1267 = vsub.f32 %v1165, %v1238
        %v1268 = vsub.f32 %v1170, %v1240
        %v1269 = vsub.f32 %v1175, %v1242
        %v1270 = vsub.f32 %v1180, %v1244
        %v1271 = vsub.f32 %v1185, %v1246
        %v1272 = vsub.f32 %v1190, %v1248
        %v1273 = vsub.f32 %v1195, %v1250
        %v1274 = vsub.f32 %v1200, %v1252
        %v1275 = vsub.f32 %v1205, %v1254
        %v1276 = vsub.f32 %v1210, %v1256
        %v1277 = vsub.f32 %v1215, %v1258
        %v1278 = vsub.f32 %v1220, %v1260
        %v1279 = vsub.f32 %v1225, %v1262
        %v1280 = vsub.f32 %v1230, %v1264
        %v1281 = vmul.f32 %v1265, 1.442695
        %v1282 = vpow.pop %v1281
        %v1283 = vmul.f32 %v1266, 1.442695
        %v1284 = vpow.pop %v1283
        %v1285 = vmul.f32 %v1267, 1.442695
        %v1286 = vpow.pop %v1285
        %v1287 = vmul.f32 %v1268, 1.442695
        %v1288 = vpow.pop %v1287
        %v1289 = vmul.f32 %v1269, 1.442695
        %v1290 = vpow.pop %v1289
        %v1291 = vmul.f32 %v1270, 1.442695
        %v1292 = vpow.pop %v1291
        %v1293 = vmul.f32 %v1271, 1.442695
        %v1294 = vpow.pop %v1293
        %v1295 = vmul.f32 %v1272, 1.442695
        %v1296 = vpow.pop %v1295
        %v1297 = vmul.f32 %v1273, 1.442695
        %v1298 = vpow.pop %v1297
        %v1299 = vmul.f32 %v1274, 1.442695
        %v1300 = vpow.pop %v1299
        %v1301 = vmul.f32 %v1275, 1.442695
        %v1302 = vpow.pop %v1301
        %v1303 = vmul.f32 %v1276, 1.442695
        %v1304 = vpow.pop %v1303
        %v1305 = vmul.f32 %v1277, 1.442695
        %v1306 = vpow.pop %v1305
        %v1307 = vmul.f32 %v1278, 1.442695
        %v1308 = vpow.pop %v1307
        %v1309 = vmul.f32 %v1279, 1.442695
        %v1310 = vpow.pop %v1309
        %v1311 = vmul.f32 %v1280, 1.442695
        %v1312 = vpow.pop %v1311
        %1313 = vadd.xlane.f32.xlu0 %v1282
        %v1314 = vpop.xlane.xlu0 %1313
        %1315 = vadd.xlane.f32.xlu0 %v1284
        %v1316 = vpop.xlane.xlu0 %1315
        %1317 = vadd.xlane.f32.xlu0 %v1286
        %v1318 = vpop.xlane.xlu0 %1317
        %1319 = vadd.xlane.f32.xlu0 %v1288
        %v1320 = vpop.xlane.xlu0 %1319
        %1321 = vadd.xlane.f32.xlu0 %v1290
        %v1322 = vpop.xlane.xlu0 %1321
        %1323 = vadd.xlane.f32.xlu0 %v1292
        %v1324 = vpop.xlane.xlu0 %1323
        %1325 = vadd.xlane.f32.xlu0 %v1294
        %v1326 = vpop.xlane.xlu0 %1325
        %1327 = vadd.xlane.f32.xlu0 %v1296
        %v1328 = vpop.xlane.xlu0 %1327
        %1329 = vadd.xlane.f32.xlu0 %v1298
        %v1330 = vpop.xlane.xlu0 %1329
        %1331 = vadd.xlane.f32.xlu0 %v1300
        %v1332 = vpop.xlane.xlu0 %1331
        %1333 = vadd.xlane.f32.xlu0 %v1302
        %v1334 = vpop.xlane.xlu0 %1333
        %1335 = vadd.xlane.f32.xlu0 %v1304
        %v1336 = vpop.xlane.xlu0 %1335
        %1337 = vadd.xlane.f32.xlu0 %v1306
        %v1338 = vpop.xlane.xlu0 %1337
        %1339 = vadd.xlane.f32.xlu0 %v1308
        %v1340 = vpop.xlane.xlu0 %1339
        %1341 = vadd.xlane.f32.xlu0 %v1310
        %v1342 = vpop.xlane.xlu0 %1341
        %1343 = vadd.xlane.f32.xlu0 %v1312
        %v1344 = vpop.xlane.xlu0 %1343
        %v1345 = vrcp.pop %v1314
        %v1346 = vrcp.pop %v1316
        %v1347 = vrcp.pop %v1318
        %v1348 = vrcp.pop %v1320
        %v1349 = vrcp.pop %v1322
        %v1350 = vrcp.pop %v1324
        %v1351 = vrcp.pop %v1326
        %v1352 = vrcp.pop %v1328
        %v1353 = vrcp.pop %v1330
        %v1354 = vrcp.pop %v1332
        %v1355 = vrcp.pop %v1334
        %v1356 = vrcp.pop %v1336
        %v1357 = vrcp.pop %v1338
        %v1358 = vrcp.pop %v1340
        %v1359 = vrcp.pop %v1342
        %v1360 = vrcp.pop %v1344
        %v1361 = vld [vmem:[#allocation3] sm:$0xff]
        %v1362 = vld [vmem:[#allocation3 + $0x8] sm:$0xff]
        %v1363 = vld [vmem:[#allocation3 + $0x10] sm:$0xff]
        %v1364 = vld [vmem:[#allocation3 + $0x18] sm:$0xff]
        %v1365 = vld [vmem:[#allocation3 + $0x20] sm:$0xff]
        %v1366 = vld [vmem:[#allocation3 + $0x28] sm:$0xff]
        %v1367 = vld [vmem:[#allocation3 + $0x30] sm:$0xff]
        %v1368 = vld [vmem:[#allocation3 + $0x38] sm:$0xff]
        %v1369 = vld [vmem:[#allocation3 + $0x40] sm:$0xff]
        %v1370 = vld [vmem:[#allocation3 + $0x48] sm:$0xff]
        %v1371 = vld [vmem:[#allocation3 + $0x50] sm:$0xff]
        %v1372 = vld [vmem:[#allocation3 + $0x58] sm:$0xff]
        %v1373 = vld [vmem:[#allocation3 + $0x60] sm:$0xff]
        %v1374 = vld [vmem:[#allocation3 + $0x68] sm:$0xff]
        %v1375 = vld [vmem:[#allocation3 + $0x70] sm:$0xff]
        %v1376 = vld [vmem:[#allocation3 + $0x78] sm:$0xff]
        %1377 = vmatprep.subr.mxu0 0.0
        %1378 = vmatpush1.msra.mxu0 %v1376
        %1379 = vmatprep.subr.mxu0 0.0
        %1380 = vmatpush1.msra.mxu0 %v1375
        %1381 = vmatprep.subr.mxu0 0.0
        %1382 = vmatpush1.msra.mxu0 %v1374
        %1383 = vmatprep.subr.mxu0 0.0
        %1384 = vmatpush1.msra.mxu0 %v1373
        %1385 = vmatprep.subr.mxu0 0.0
        %1386 = vmatpush1.msra.mxu0 %v1372
        %1387 = vmatprep.subr.mxu0 0.0
        %1388 = vmatpush1.msra.mxu0 %v1371
        %1389 = vmatprep.subr.mxu0 0.0
        %1390 = vmatpush1.msra.mxu0 %v1370
        %1391 = vmatprep.subr.mxu0 0.0
        %1392 = vmatpush1.msra.mxu0 %v1369
        %1393 = vmatprep.subr.mxu0 0.0
        %1394 = vmatpush1.msra.mxu0 %v1368
        %1395 = vmatprep.subr.mxu0 0.0
        %1396 = vmatpush1.msra.mxu0 %v1367
        %1397 = vmatprep.subr.mxu0 0.0
        %1398 = vmatpush1.msra.mxu0 %v1366
        %1399 = vmatprep.subr.mxu0 0.0
        %1400 = vmatpush1.msra.mxu0 %v1365
        %1401 = vmatprep.subr.mxu0 0.0
        %1402 = vmatpush1.msra.mxu0 %v1364
        %1403 = vmatprep.subr.mxu0 0.0
        %1404 = vmatpush1.msra.mxu0 %v1363
        %1405 = vmatprep.subr.mxu0 0.0
        %1406 = vmatpush1.msra.mxu0 %v1362
        %1407 = vmatprep.subr.mxu0 0.0
        %1408 = vmatpush1.msra.mxu0 %v1361
        %1409 = vmatprep.subr.mxu0 0.0
        %1410 = vmatpush2.msra.mxu0 0.0
        %1411 = vmatprep.subr.mxu0 0.0
        %1412 = vmatpush2.msra.mxu0 0.0
        %1413 = vmatprep.subr.mxu0 0.0
        %1414 = vmatpush2.msra.mxu0 0.0
        %1415 = vmatprep.subr.mxu0 0.0
        %1416 = vmatpush2.msra.mxu0 0.0
        %1417 = vmatprep.subr.mxu0 0.0
        %1418 = vmatpush2.msra.mxu0 0.0
        %1419 = vmatprep.subr.mxu0 0.0
        %1420 = vmatpush2.msra.mxu0 0.0
        %1421 = vmatprep.subr.mxu0 0.0
        %1422 = vmatpush2.msra.mxu0 0.0
        %1423 = vmatprep.subr.mxu0 0.0
        %1424 = vmatpush2.msra.mxu0 0.0
        %1425 = vmatprep.subr.mxu0 0.0
        %1426 = vmatpush2.msra.mxu0 0.0
        %1427 = vmatprep.subr.mxu0 0.0
        %1428 = vmatpush2.msra.mxu0 0.0
        %1429 = vmatprep.subr.mxu0 0.0
        %1430 = vmatpush2.msra.mxu0 0.0
        %1431 = vmatprep.subr.mxu0 0.0
        %1432 = vmatpush2.msra.mxu0 0.0
        %1433 = vmatprep.subr.mxu0 0.0
        %1434 = vmatpush2.msra.mxu0 0.0
        %1435 = vmatprep.subr.mxu0 0.0
        %1436 = vmatpush2.msra.mxu0 0.0
        %1437 = vmatprep.subr.mxu0 0.0
        %1438 = vmatpush2.msra.mxu0 0.0
        %1439 = vmatprep.subr.mxu0 0.0
        %1440 = vmatpush2.msra.mxu0 0.0
        %1441 = vmatprep.mubr.f32.mxu0 0.0
        %1442 = vmatmul.mubr.f32.gmra.mxu0 %v1282
        %v1443 = vpop.f32.mrf.mxu0
        %v1444 = vadd.f32 0.0, %v1443
        %v1445 = vpop.f32.mrf.mxu0
        %1446 = vmatprep.mubr.f32.mxu0 0.0
        %1447 = vmatmul.mubr.f32.gmra.mxu0 %v1284
        %v1448 = vpop.f32.mrf.mxu0
        %v1449 = vadd.f32 0.0, %v1448
        %v1450 = vpop.f32.mrf.mxu0
        %1451 = vmatprep.mubr.f32.mxu0 0.0
        %1452 = vmatmul.mubr.f32.gmra.mxu0 %v1286
        %v1453 = vpop.f32.mrf.mxu0
        %v1454 = vadd.f32 0.0, %v1453
        %v1455 = vpop.f32.mrf.mxu0
        %1456 = vmatprep.mubr.f32.mxu0 0.0
        %1457 = vmatmul.mubr.f32.gmra.mxu0 %v1288
        %v1458 = vpop.f32.mrf.mxu0
        %v1459 = vadd.f32 0.0, %v1458
        %v1460 = vpop.f32.mrf.mxu0
        %1461 = vmatprep.mubr.f32.mxu0 0.0
        %1462 = vmatmul.mubr.f32.gmra.mxu0 %v1290
        %v1463 = vpop.f32.mrf.mxu0
        %v1464 = vadd.f32 0.0, %v1463
        %v1465 = vpop.f32.mrf.mxu0
        %1466 = vmatprep.mubr.f32.mxu0 0.0
        %1467 = vmatmul.mubr.f32.gmra.mxu0 %v1292
        %v1468 = vpop.f32.mrf.mxu0
        %v1469 = vadd.f32 0.0, %v1468
        %v1470 = vpop.f32.mrf.mxu0
        %1471 = vmatprep.mubr.f32.mxu0 0.0
        %1472 = vmatmul.mubr.f32.gmra.mxu0 %v1294
        %v1473 = vpop.f32.mrf.mxu0
        %v1474 = vadd.f32 0.0, %v1473
        %v1475 = vpop.f32.mrf.mxu0
        %1476 = vmatprep.mubr.f32.mxu0 0.0
        %1477 = vmatmul.mubr.f32.gmra.mxu0 %v1296
        %v1478 = vpop.f32.mrf.mxu0
        %v1479 = vadd.f32 0.0, %v1478
        %v1480 = vpop.f32.mrf.mxu0
        %1481 = vmatprep.mubr.f32.mxu0 0.0
        %1482 = vmatmul.mubr.f32.gmra.mxu0 %v1298
        %v1483 = vpop.f32.mrf.mxu0
        %v1484 = vadd.f32 0.0, %v1483
        %v1485 = vpop.f32.mrf.mxu0
        %1486 = vmatprep.mubr.f32.mxu0 0.0
        %1487 = vmatmul.mubr.f32.gmra.mxu0 %v1300
        %v1488 = vpop.f32.mrf.mxu0
        %v1489 = vadd.f32 0.0, %v1488
        %v1490 = vpop.f32.mrf.mxu0
        %1491 = vmatprep.mubr.f32.mxu0 0.0
        %1492 = vmatmul.mubr.f32.gmra.mxu0 %v1302
        %v1493 = vpop.f32.mrf.mxu0
        %v1494 = vadd.f32 0.0, %v1493
        %v1495 = vpop.f32.mrf.mxu0
        %1496 = vmatprep.mubr.f32.mxu0 0.0
        %1497 = vmatmul.mubr.f32.gmra.mxu0 %v1304
        %v1498 = vpop.f32.mrf.mxu0
        %v1499 = vadd.f32 0.0, %v1498
        %v1500 = vpop.f32.mrf.mxu0
        %1501 = vmatprep.mubr.f32.mxu0 0.0
        %1502 = vmatmul.mubr.f32.gmra.mxu0 %v1306
        %v1503 = vpop.f32.mrf.mxu0
        %v1504 = vadd.f32 0.0, %v1503
        %v1505 = vpop.f32.mrf.mxu0
        %1506 = vmatprep.mubr.f32.mxu0 0.0
        %1507 = vmatmul.mubr.f32.gmra.mxu0 %v1308
        %v1508 = vpop.f32.mrf.mxu0
        %v1509 = vadd.f32 0.0, %v1508
        %v1510 = vpop.f32.mrf.mxu0
        %1511 = vmatprep.mubr.f32.mxu0 0.0
        %1512 = vmatmul.mubr.f32.gmra.mxu0 %v1310
        %v1513 = vpop.f32.mrf.mxu0
        %v1514 = vadd.f32 0.0, %v1513
        %v1515 = vpop.f32.mrf.mxu0
        %1516 = vmatprep.mubr.f32.mxu0 0.0
        %1517 = vmatmul.mubr.f32.gmra.mxu0 %v1312
        %v1518 = vpop.f32.mrf.mxu0
        %v1519 = vadd.f32 0.0, %v1518
        %v1520 = vpop.f32.mrf.mxu0
        %1521 = vdwg.mxu0
        %v1522 = vmul.f32 %v1444, %v1345
        %v1523 = vmul.f32 %v1449, %v1346
        %v1524 = vmul.f32 %v1454, %v1347
        %v1525 = vmul.f32 %v1459, %v1348
        %v1526 = vmul.f32 %v1464, %v1349
        %v1527 = vmul.f32 %v1469, %v1350
        %v1528 = vmul.f32 %v1474, %v1351
        %v1529 = vmul.f32 %v1479, %v1352
        %v1530 = vmul.f32 %v1484, %v1353
        %v1531 = vmul.f32 %v1489, %v1354
        %v1532 = vmul.f32 %v1494, %v1355
        %v1533 = vmul.f32 %v1499, %v1356
        %v1534 = vmul.f32 %v1504, %v1357
        %v1535 = vmul.f32 %v1509, %v1358
        %v1536 = vmul.f32 %v1514, %v1359
        %v1537 = vmul.f32 %v1519, %v1360
        %1538 = vst.msk [vmem:[#allocation5] sm:$0xff] %vm1039, %v1522
        %1539 = vst.msk [vmem:[#allocation5 + $0x8] sm:$0xff] %vm1039, %v1523
        %1540 = vst.msk [vmem:[#allocation5 + $0x10] sm:$0xff] %vm1039, %v1524
        %1541 = vst.msk [vmem:[#allocation5 + $0x18] sm:$0xff] %vm1039, %v1525
        %1542 = vst.msk [vmem:[#allocation5 + $0x20] sm:$0xff] %vm1039, %v1526
        %1543 = vst.msk [vmem:[#allocation5 + $0x28] sm:$0xff] %vm1039, %v1527
        %1544 = vst.msk [vmem:[#allocation5 + $0x30] sm:$0xff] %vm1039, %v1528
        %1545 = vst.msk [vmem:[#allocation5 + $0x38] sm:$0xff] %vm1039, %v1529
        %1546 = vst.msk [vmem:[#allocation5 + $0x40] sm:$0xff] %vm1039, %v1530
        %1547 = vst.msk [vmem:[#allocation5 + $0x48] sm:$0xff] %vm1039, %v1531
        %1548 = vst.msk [vmem:[#allocation5 + $0x50] sm:$0xff] %vm1039, %v1532
        %1549 = vst.msk [vmem:[#allocation5 + $0x58] sm:$0xff] %vm1039, %v1533
        %1550 = vst.msk [vmem:[#allocation5 + $0x60] sm:$0xff] %vm1039, %v1534
        %1551 = vst.msk [vmem:[#allocation5 + $0x68] sm:$0xff] %vm1039, %v1535
        %1552 = vst.msk [vmem:[#allocation5 + $0x70] sm:$0xff] %vm1039, %v1536
        %1553 = vst.msk [vmem:[#allocation5 + $0x78] sm:$0xff] %vm1039, %v1537
        %v1554 = vld [vmem:[#allocation4] sm:$0xff]
        %v1555 = vld [vmem:[#allocation4 + $0x8] sm:$0xff]
        %v1556 = vld [vmem:[#allocation4 + $0x10] sm:$0xff]
        %v1557 = vld [vmem:[#allocation4 + $0x18] sm:$0xff]
        %v1558 = vld [vmem:[#allocation4 + $0x20] sm:$0xff]
        %v1559 = vld [vmem:[#allocation4 + $0x28] sm:$0xff]
        %v1560 = vld [vmem:[#allocation4 + $0x30] sm:$0xff]
        %v1561 = vld [vmem:[#allocation4 + $0x38] sm:$0xff]
        %v1562 = vld [vmem:[#allocation4 + $0x40] sm:$0xff]
        %v1563 = vld [vmem:[#allocation4 + $0x48] sm:$0xff]
        %v1564 = vld [vmem:[#allocation4 + $0x50] sm:$0xff]
        %v1565 = vld [vmem:[#allocation4 + $0x58] sm:$0xff]
        %v1566 = vld [vmem:[#allocation4 + $0x60] sm:$0xff]
        %v1567 = vld [vmem:[#allocation4 + $0x68] sm:$0xff]
        %v1568 = vld [vmem:[#allocation4 + $0x70] sm:$0xff]
        %v1569 = vld [vmem:[#allocation4 + $0x78] sm:$0xff]
        %s1570 = scalar_lea.vmem [#allocation2], 16
        %v1571 = vld [vmem:[%s1570] sm:$0xff]
        %v1572 = vld [vmem:[%s1570 + $0x8] sm:$0xff]
        %1589 = vrot.lane.b32.xlu0 %v1554, 112
        %v1590 = vpop.permute.xlu0 %1589
        %1591 = vrot.lane.b32.xlu0 %v1555, 112
        %v1592 = vpop.permute.xlu0 %1591
        %1593 = vrot.lane.b32.xlu0 %v1556, 112
        %v1594 = vpop.permute.xlu0 %1593
        %1595 = vrot.lane.b32.xlu0 %v1557, 112
        %v1596 = vpop.permute.xlu0 %1595
        %1597 = vrot.lane.b32.xlu0 %v1558, 112
        %v1598 = vpop.permute.xlu0 %1597
        %1599 = vrot.lane.b32.xlu0 %v1559, 112
        %v1600 = vpop.permute.xlu0 %1599
        %1601 = vrot.lane.b32.xlu0 %v1560, 112
        %v1602 = vpop.permute.xlu0 %1601
        %1603 = vrot.lane.b32.xlu0 %v1561, 112
        %v1604 = vpop.permute.xlu0 %1603
        %1605 = vrot.lane.b32.xlu0 %v1562, 112
        %v1606 = vpop.permute.xlu0 %1605
        %1607 = vrot.lane.b32.xlu0 %v1563, 112
        %v1608 = vpop.permute.xlu0 %1607
        %1609 = vrot.lane.b32.xlu0 %v1564, 112
        %v1610 = vpop.permute.xlu0 %1609
        %1611 = vrot.lane.b32.xlu0 %v1565, 112
        %v1612 = vpop.permute.xlu0 %1611
        %1613 = vrot.lane.b32.xlu0 %v1566, 112
        %v1614 = vpop.permute.xlu0 %1613
        %1615 = vrot.lane.b32.xlu0 %v1567, 112
        %v1616 = vpop.permute.xlu0 %1615
        %1617 = vrot.lane.b32.xlu0 %v1568, 112
        %v1618 = vpop.permute.xlu0 %1617
        %1619 = vrot.lane.b32.xlu0 %v1569, 112
        %v1620 = vpop.permute.xlu0 %1619
        %v1621 = vsel %vm1039, %v1590, 0
        %v1623 = vsel %vm1039, %v1592, 0
        %v1625 = vsel %vm1039, %v1594, 0
        %v1627 = vsel %vm1039, %v1596, 0
        %v1629 = vsel %vm1039, %v1598, 0
        %v1631 = vsel %vm1039, %v1600, 0
        %v1633 = vsel %vm1039, %v1602, 0
        %v1635 = vsel %vm1039, %v1604, 0
        %v1637 = vsel %vm1039, %v1606, 0
        %v1639 = vsel %vm1039, %v1608, 0
        %v1641 = vsel %vm1039, %v1610, 0
        %v1643 = vsel %vm1039, %v1612, 0
        %v1645 = vsel %vm1039, %v1614, 0
        %v1647 = vsel %vm1039, %v1616, 0
        %v1649 = vsel %vm1039, %v1618, 0
        %v1651 = vsel %vm1039, %v1620, 0
        %1653 = vmatprep.subr.mxu0 0.0
        %1654 = vmatpush1.msra.mxu0 0.0
        %1655 = vmatprep.subr.mxu0 0.0
        %1656 = vmatpush1.msra.mxu0 0.0
        %1657 = vmatprep.subr.mxu0 0.0
        %1658 = vmatpush1.msra.mxu0 0.0
        %1659 = vmatprep.subr.mxu0 0.0
        %1660 = vmatpush1.msra.mxu0 0.0
        %1661 = vmatprep.subr.mxu0 0.0
        %1662 = vmatpush1.msra.mxu0 0.0
        %1663 = vmatprep.subr.mxu0 0.0
        %1664 = vmatpush1.msra.mxu0 0.0
        %1665 = vmatprep.subr.mxu0 0.0
        %1666 = vmatpush1.msra.mxu0 0.0
        %1667 = vmatprep.subr.mxu0 0.0
        %1668 = vmatpush1.msra.mxu0 0.0
        %1669 = vmatprep.subr.mxu0 0.0
        %1670 = vmatpush1.msra.mxu0 0.0
        %1671 = vmatprep.subr.mxu0 0.0
        %1672 = vmatpush1.msra.mxu0 0.0
        %1673 = vmatprep.subr.mxu0 0.0
        %1674 = vmatpush1.msra.mxu0 0.0
        %1675 = vmatprep.subr.mxu0 0.0
        %1676 = vmatpush1.msra.mxu0 0.0
        %1677 = vmatprep.subr.mxu0 0.0
        %1678 = vmatpush1.msra.mxu0 0.0
        %1679 = vmatprep.subr.mxu0 0.0
        %1680 = vmatpush1.msra.mxu0 0.0
        %1681 = vmatprep.subr.mxu0 0.0
        %1682 = vmatpush1.msra.mxu0 %v1572
        %1683 = vmatprep.subr.mxu0 0.0
        %1684 = vmatpush1.msra.mxu0 %v1571
        %1685 = vmatprep.subr.mxu0 0.0
        %1686 = vmatpush2.msra.mxu0 0.0
        %1687 = vmatprep.subr.mxu0 0.0
        %1688 = vmatpush2.msra.mxu0 0.0
        %1689 = vmatprep.subr.mxu0 0.0
        %1690 = vmatpush2.msra.mxu0 0.0
        %1691 = vmatprep.subr.mxu0 0.0
        %1692 = vmatpush2.msra.mxu0 0.0
        %1693 = vmatprep.subr.mxu0 0.0
        %1694 = vmatpush2.msra.mxu0 0.0
        %1695 = vmatprep.subr.mxu0 0.0
        %1696 = vmatpush2.msra.mxu0 0.0
        %1697 = vmatprep.subr.mxu0 0.0
        %1698 = vmatpush2.msra.mxu0 0.0
        %1699 = vmatprep.subr.mxu0 0.0
        %1700 = vmatpush2.msra.mxu0 0.0
        %1701 = vmatprep.subr.mxu0 0.0
        %1702 = vmatpush2.msra.mxu0 0.0
        %1703 = vmatprep.subr.mxu0 0.0
        %1704 = vmatpush2.msra.mxu0 0.0
        %1705 = vmatprep.subr.mxu0 0.0
        %1706 = vmatpush2.msra.mxu0 0.0
        %1707 = vmatprep.subr.mxu0 0.0
        %1708 = vmatpush2.msra.mxu0 0.0
        %1709 = vmatprep.subr.mxu0 0.0
        %1710 = vmatpush2.msra.mxu0 0.0
        %1711 = vmatprep.subr.mxu0 0.0
        %1712 = vmatpush2.msra.mxu0 0.0
        %1713 = vmatprep.subr.mxu0 0.0
        %1714 = vmatpush2.msra.mxu0 0.0
        %1715 = vmatprep.subr.mxu0 0.0
        %1716 = vmatpush2.msra.mxu0 0.0
        %1717 = vmatprep.mubr.f32.mxu0 0.0
        %1718 = vmatmul.mubr.f32.gmra.mxu0 %v1621
        %v1719 = vpop.f32.mrf.mxu0
        %v1720 = vadd.f32 0.0, %v1719
        %v1721 = vpop.f32.mrf.mxu0
        %1722 = vmatprep.mubr.f32.mxu0 0.0
        %1723 = vmatmul.mubr.f32.gmra.mxu0 %v1623
        %v1724 = vpop.f32.mrf.mxu0
        %v1725 = vadd.f32 0.0, %v1724
        %v1726 = vpop.f32.mrf.mxu0
        %1727 = vmatprep.mubr.f32.mxu0 0.0
        %1728 = vmatmul.mubr.f32.gmra.mxu0 %v1625
        %v1729 = vpop.f32.mrf.mxu0
        %v1730 = vadd.f32 0.0, %v1729
        %v1731 = vpop.f32.mrf.mxu0
        %1732 = vmatprep.mubr.f32.mxu0 0.0
        %1733 = vmatmul.mubr.f32.gmra.mxu0 %v1627
        %v1734 = vpop.f32.mrf.mxu0
        %v1735 = vadd.f32 0.0, %v1734
        %v1736 = vpop.f32.mrf.mxu0
        %1737 = vmatprep.mubr.f32.mxu0 0.0
        %1738 = vmatmul.mubr.f32.gmra.mxu0 %v1629
        %v1739 = vpop.f32.mrf.mxu0
        %v1740 = vadd.f32 0.0, %v1739
        %v1741 = vpop.f32.mrf.mxu0
        %1742 = vmatprep.mubr.f32.mxu0 0.0
        %1743 = vmatmul.mubr.f32.gmra.mxu0 %v1631
        %v1744 = vpop.f32.mrf.mxu0
        %v1745 = vadd.f32 0.0, %v1744
        %v1746 = vpop.f32.mrf.mxu0
        %1747 = vmatprep.mubr.f32.mxu0 0.0
        %1748 = vmatmul.mubr.f32.gmra.mxu0 %v1633
        %v1749 = vpop.f32.mrf.mxu0
        %v1750 = vadd.f32 0.0, %v1749
        %v1751 = vpop.f32.mrf.mxu0
        %1752 = vmatprep.mubr.f32.mxu0 0.0
        %1753 = vmatmul.mubr.f32.gmra.mxu0 %v1635
        %v1754 = vpop.f32.mrf.mxu0
        %v1755 = vadd.f32 0.0, %v1754
        %v1756 = vpop.f32.mrf.mxu0
        %1757 = vmatprep.mubr.f32.mxu0 0.0
        %1758 = vmatmul.mubr.f32.gmra.mxu0 %v1637
        %v1759 = vpop.f32.mrf.mxu0
        %v1760 = vadd.f32 0.0, %v1759
        %v1761 = vpop.f32.mrf.mxu0
        %1762 = vmatprep.mubr.f32.mxu0 0.0
        %1763 = vmatmul.mubr.f32.gmra.mxu0 %v1639
        %v1764 = vpop.f32.mrf.mxu0
        %v1765 = vadd.f32 0.0, %v1764
        %v1766 = vpop.f32.mrf.mxu0
        %1767 = vmatprep.mubr.f32.mxu0 0.0
        %1768 = vmatmul.mubr.f32.gmra.mxu0 %v1641
        %v1769 = vpop.f32.mrf.mxu0
        %v1770 = vadd.f32 0.0, %v1769
        %v1771 = vpop.f32.mrf.mxu0
        %1772 = vmatprep.mubr.f32.mxu0 0.0
        %1773 = vmatmul.mubr.f32.gmra.mxu0 %v1643
        %v1774 = vpop.f32.mrf.mxu0
        %v1775 = vadd.f32 0.0, %v1774
        %v1776 = vpop.f32.mrf.mxu0
        %1777 = vmatprep.mubr.f32.mxu0 0.0
        %1778 = vmatmul.mubr.f32.gmra.mxu0 %v1645
        %v1779 = vpop.f32.mrf.mxu0
        %v1780 = vadd.f32 0.0, %v1779
        %v1781 = vpop.f32.mrf.mxu0
        %1782 = vmatprep.mubr.f32.mxu0 0.0
        %1783 = vmatmul.mubr.f32.gmra.mxu0 %v1647
        %v1784 = vpop.f32.mrf.mxu0
        %v1785 = vadd.f32 0.0, %v1784
        %v1786 = vpop.f32.mrf.mxu0
        %1787 = vmatprep.mubr.f32.mxu0 0.0
        %1788 = vmatmul.mubr.f32.gmra.mxu0 %v1649
        %v1789 = vpop.f32.mrf.mxu0
        %v1790 = vadd.f32 0.0, %v1789
        %v1791 = vpop.f32.mrf.mxu0
        %1792 = vmatprep.mubr.f32.mxu0 0.0
        %1793 = vmatmul.mubr.f32.gmra.mxu0 %v1651
        %v1794 = vpop.f32.mrf.mxu0
        %v1795 = vadd.f32 0.0, %v1794
        %v1796 = vpop.f32.mrf.mxu0
        %1797 = vdwg.mxu0
        %1798 = vmax.xlane.f32.xlu0 %v1720
        %v1799 = vpop.xlane.xlu0 %1798
        %1800 = vmax.xlane.f32.xlu0 %v1725
        %v1801 = vpop.xlane.xlu0 %1800
        %1802 = vmax.xlane.f32.xlu0 %v1730
        %v1803 = vpop.xlane.xlu0 %1802
        %1804 = vmax.xlane.f32.xlu0 %v1735
        %v1805 = vpop.xlane.xlu0 %1804
        %1806 = vmax.xlane.f32.xlu0 %v1740
        %v1807 = vpop.xlane.xlu0 %1806
        %1808 = vmax.xlane.f32.xlu0 %v1745
        %v1809 = vpop.xlane.xlu0 %1808
        %1810 = vmax.xlane.f32.xlu0 %v1750
        %v1811 = vpop.xlane.xlu0 %1810
        %1812 = vmax.xlane.f32.xlu0 %v1755
        %v1813 = vpop.xlane.xlu0 %1812
        %1814 = vmax.xlane.f32.xlu0 %v1760
        %v1815 = vpop.xlane.xlu0 %1814
        %1816 = vmax.xlane.f32.xlu0 %v1765
        %v1817 = vpop.xlane.xlu0 %1816
        %1818 = vmax.xlane.f32.xlu0 %v1770
        %v1819 = vpop.xlane.xlu0 %1818
        %1820 = vmax.xlane.f32.xlu0 %v1775
        %v1821 = vpop.xlane.xlu0 %1820
        %1822 = vmax.xlane.f32.xlu0 %v1780
        %v1823 = vpop.xlane.xlu0 %1822
        %1824 = vmax.xlane.f32.xlu0 %v1785
        %v1825 = vpop.xlane.xlu0 %1824
        %1826 = vmax.xlane.f32.xlu0 %v1790
        %v1827 = vpop.xlane.xlu0 %1826
        %1828 = vmax.xlane.f32.xlu0 %v1795
        %v1829 = vpop.xlane.xlu0 %1828
        %v1830 = vsub.f32 %v1720, %v1799
        %v1831 = vsub.f32 %v1725, %v1801
        %v1832 = vsub.f32 %v1730, %v1803
        %v1833 = vsub.f32 %v1735, %v1805
        %v1834 = vsub.f32 %v1740, %v1807
        %v1835 = vsub.f32 %v1745, %v1809
        %v1836 = vsub.f32 %v1750, %v1811
        %v1837 = vsub.f32 %v1755, %v1813
        %v1838 = vsub.f32 %v1760, %v1815
        %v1839 = vsub.f32 %v1765, %v1817
        %v1840 = vsub.f32 %v1770, %v1819
        %v1841 = vsub.f32 %v1775, %v1821
        %v1842 = vsub.f32 %v1780, %v1823
        %v1843 = vsub.f32 %v1785, %v1825
        %v1844 = vsub.f32 %v1790, %v1827
        %v1845 = vsub.f32 %v1795, %v1829
        %v1846 = vmul.f32 %v1830, 1.442695
        %v1847 = vpow.pop %v1846
        %v1848 = vmul.f32 %v1831, 1.442695
        %v1849 = vpow.pop %v1848
        %v1850 = vmul.f32 %v1832, 1.442695
        %v1851 = vpow.pop %v1850
        %v1852 = vmul.f32 %v1833, 1.442695
        %v1853 = vpow.pop %v1852
        %v1854 = vmul.f32 %v1834, 1.442695
        %v1855 = vpow.pop %v1854
        %v1856 = vmul.f32 %v1835, 1.442695
        %v1857 = vpow.pop %v1856
        %v1858 = vmul.f32 %v1836, 1.442695
        %v1859 = vpow.pop %v1858
        %v1860 = vmul.f32 %v1837, 1.442695
        %v1861 = vpow.pop %v1860
        %v1862 = vmul.f32 %v1838, 1.442695
        %v1863 = vpow.pop %v1862
        %v1864 = vmul.f32 %v1839, 1.442695
        %v1865 = vpow.pop %v1864
        %v1866 = vmul.f32 %v1840, 1.442695
        %v1867 = vpow.pop %v1866
        %v1868 = vmul.f32 %v1841, 1.442695
        %v1869 = vpow.pop %v1868
        %v1870 = vmul.f32 %v1842, 1.442695
        %v1871 = vpow.pop %v1870
        %v1872 = vmul.f32 %v1843, 1.442695
        %v1873 = vpow.pop %v1872
        %v1874 = vmul.f32 %v1844, 1.442695
        %v1875 = vpow.pop %v1874
        %v1876 = vmul.f32 %v1845, 1.442695
        %v1877 = vpow.pop %v1876
        %1878 = vadd.xlane.f32.xlu0 %v1847
        %v1879 = vpop.xlane.xlu0 %1878
        %1880 = vadd.xlane.f32.xlu0 %v1849
        %v1881 = vpop.xlane.xlu0 %1880
        %1882 = vadd.xlane.f32.xlu0 %v1851
        %v1883 = vpop.xlane.xlu0 %1882
        %1884 = vadd.xlane.f32.xlu0 %v1853
        %v1885 = vpop.xlane.xlu0 %1884
        %1886 = vadd.xlane.f32.xlu0 %v1855
        %v1887 = vpop.xlane.xlu0 %1886
        %1888 = vadd.xlane.f32.xlu0 %v1857
        %v1889 = vpop.xlane.xlu0 %1888
        %1890 = vadd.xlane.f32.xlu0 %v1859
        %v1891 = vpop.xlane.xlu0 %1890
        %1892 = vadd.xlane.f32.xlu0 %v1861
        %v1893 = vpop.xlane.xlu0 %1892
        %1894 = vadd.xlane.f32.xlu0 %v1863
        %v1895 = vpop.xlane.xlu0 %1894
        %1896 = vadd.xlane.f32.xlu0 %v1865
        %v1897 = vpop.xlane.xlu0 %1896
        %1898 = vadd.xlane.f32.xlu0 %v1867
        %v1899 = vpop.xlane.xlu0 %1898
        %1900 = vadd.xlane.f32.xlu0 %v1869
        %v1901 = vpop.xlane.xlu0 %1900
        %1902 = vadd.xlane.f32.xlu0 %v1871
        %v1903 = vpop.xlane.xlu0 %1902
        %1904 = vadd.xlane.f32.xlu0 %v1873
        %v1905 = vpop.xlane.xlu0 %1904
        %1906 = vadd.xlane.f32.xlu0 %v1875
        %v1907 = vpop.xlane.xlu0 %1906
        %1908 = vadd.xlane.f32.xlu0 %v1877
        %v1909 = vpop.xlane.xlu0 %1908
        %v1910 = vrcp.pop %v1879
        %v1911 = vrcp.pop %v1881
        %v1912 = vrcp.pop %v1883
        %v1913 = vrcp.pop %v1885
        %v1914 = vrcp.pop %v1887
        %v1915 = vrcp.pop %v1889
        %v1916 = vrcp.pop %v1891
        %v1917 = vrcp.pop %v1893
        %v1918 = vrcp.pop %v1895
        %v1919 = vrcp.pop %v1897
        %v1920 = vrcp.pop %v1899
        %v1921 = vrcp.pop %v1901
        %v1922 = vrcp.pop %v1903
        %v1923 = vrcp.pop %v1905
        %v1924 = vrcp.pop %v1907
        %v1925 = vrcp.pop %v1909
        %v1926 = vld [vmem:[#allocation3] sm:$0xff]
        %v1927 = vld [vmem:[#allocation3 + $0x8] sm:$0xff]
        %v1928 = vld [vmem:[#allocation3 + $0x10] sm:$0xff]
        %v1929 = vld [vmem:[#allocation3 + $0x18] sm:$0xff]
        %v1930 = vld [vmem:[#allocation3 + $0x20] sm:$0xff]
        %v1931 = vld [vmem:[#allocation3 + $0x28] sm:$0xff]
        %v1932 = vld [vmem:[#allocation3 + $0x30] sm:$0xff]
        %v1933 = vld [vmem:[#allocation3 + $0x38] sm:$0xff]
        %v1934 = vld [vmem:[#allocation3 + $0x40] sm:$0xff]
        %v1935 = vld [vmem:[#allocation3 + $0x48] sm:$0xff]
        %v1936 = vld [vmem:[#allocation3 + $0x50] sm:$0xff]
        %v1937 = vld [vmem:[#allocation3 + $0x58] sm:$0xff]
        %v1938 = vld [vmem:[#allocation3 + $0x60] sm:$0xff]
        %v1939 = vld [vmem:[#allocation3 + $0x68] sm:$0xff]
        %v1940 = vld [vmem:[#allocation3 + $0x70] sm:$0xff]
        %v1941 = vld [vmem:[#allocation3 + $0x78] sm:$0xff]
        %1958 = vrot.lane.b32.xlu0 %v1926, 112
        %v1959 = vpop.permute.xlu0 %1958
        %1960 = vrot.lane.b32.xlu0 %v1927, 112
        %v1961 = vpop.permute.xlu0 %1960
        %1962 = vrot.lane.b32.xlu0 %v1928, 112
        %v1963 = vpop.permute.xlu0 %1962
        %1964 = vrot.lane.b32.xlu0 %v1929, 112
        %v1965 = vpop.permute.xlu0 %1964
        %1966 = vrot.lane.b32.xlu0 %v1930, 112
        %v1967 = vpop.permute.xlu0 %1966
        %1968 = vrot.lane.b32.xlu0 %v1931, 112
        %v1969 = vpop.permute.xlu0 %1968
        %1970 = vrot.lane.b32.xlu0 %v1932, 112
        %v1971 = vpop.permute.xlu0 %1970
        %1972 = vrot.lane.b32.xlu0 %v1933, 112
        %v1973 = vpop.permute.xlu0 %1972
        %1974 = vrot.lane.b32.xlu0 %v1934, 112
        %v1975 = vpop.permute.xlu0 %1974
        %1976 = vrot.lane.b32.xlu0 %v1935, 112
        %v1977 = vpop.permute.xlu0 %1976
        %1978 = vrot.lane.b32.xlu0 %v1936, 112
        %v1979 = vpop.permute.xlu0 %1978
        %1980 = vrot.lane.b32.xlu0 %v1937, 112
        %v1981 = vpop.permute.xlu0 %1980
        %1982 = vrot.lane.b32.xlu0 %v1938, 112
        %v1983 = vpop.permute.xlu0 %1982
        %1984 = vrot.lane.b32.xlu0 %v1939, 112
        %v1985 = vpop.permute.xlu0 %1984
        %1986 = vrot.lane.b32.xlu0 %v1940, 112
        %v1987 = vpop.permute.xlu0 %1986
        %1988 = vrot.lane.b32.xlu0 %v1941, 112
        %v1989 = vpop.permute.xlu0 %1988
        %2006 = vmatprep.subr.mxu0 0.0
        %2007 = vmatpush1.msra.mxu0 %v1989
        %2008 = vmatprep.subr.mxu0 0.0
        %2009 = vmatpush1.msra.mxu0 %v1987
        %2010 = vmatprep.subr.mxu0 0.0
        %2011 = vmatpush1.msra.mxu0 %v1985
        %2012 = vmatprep.subr.mxu0 0.0
        %2013 = vmatpush1.msra.mxu0 %v1983
        %2014 = vmatprep.subr.mxu0 0.0
        %2015 = vmatpush1.msra.mxu0 %v1981
        %2016 = vmatprep.subr.mxu0 0.0
        %2017 = vmatpush1.msra.mxu0 %v1979
        %2018 = vmatprep.subr.mxu0 0.0
        %2019 = vmatpush1.msra.mxu0 %v1977
        %2020 = vmatprep.subr.mxu0 0.0
        %2021 = vmatpush1.msra.mxu0 %v1975
        %2022 = vmatprep.subr.mxu0 0.0
        %2023 = vmatpush1.msra.mxu0 %v1973
        %2024 = vmatprep.subr.mxu0 0.0
        %2025 = vmatpush1.msra.mxu0 %v1971
        %2026 = vmatprep.subr.mxu0 0.0
        %2027 = vmatpush1.msra.mxu0 %v1969
        %2028 = vmatprep.subr.mxu0 0.0
        %2029 = vmatpush1.msra.mxu0 %v1967
        %2030 = vmatprep.subr.mxu0 0.0
        %2031 = vmatpush1.msra.mxu0 %v1965
        %2032 = vmatprep.subr.mxu0 0.0
        %2033 = vmatpush1.msra.mxu0 %v1963
        %2034 = vmatprep.subr.mxu0 0.0
        %2035 = vmatpush1.msra.mxu0 %v1961
        %2036 = vmatprep.subr.mxu0 0.0
        %2037 = vmatpush1.msra.mxu0 %v1959
        %2038 = vmatprep.subr.mxu0 0.0
        %2039 = vmatpush2.msra.mxu0 0.0
        %2040 = vmatprep.subr.mxu0 0.0
        %2041 = vmatpush2.msra.mxu0 0.0
        %2042 = vmatprep.subr.mxu0 0.0
        %2043 = vmatpush2.msra.mxu0 0.0
        %2044 = vmatprep.subr.mxu0 0.0
        %2045 = vmatpush2.msra.mxu0 0.0
        %2046 = vmatprep.subr.mxu0 0.0
        %2047 = vmatpush2.msra.mxu0 0.0
        %2048 = vmatprep.subr.mxu0 0.0
        %2049 = vmatpush2.msra.mxu0 0.0
        %2050 = vmatprep.subr.mxu0 0.0
        %2051 = vmatpush2.msra.mxu0 0.0
        %2052 = vmatprep.subr.mxu0 0.0
        %2053 = vmatpush2.msra.mxu0 0.0
        %2054 = vmatprep.subr.mxu0 0.0
        %2055 = vmatpush2.msra.mxu0 0.0
        %2056 = vmatprep.subr.mxu0 0.0
        %2057 = vmatpush2.msra.mxu0 0.0
        %2058 = vmatprep.subr.mxu0 0.0
        %2059 = vmatpush2.msra.mxu0 0.0
        %2060 = vmatprep.subr.mxu0 0.0
        %2061 = vmatpush2.msra.mxu0 0.0
        %2062 = vmatprep.subr.mxu0 0.0
        %2063 = vmatpush2.msra.mxu0 0.0
        %2064 = vmatprep.subr.mxu0 0.0
        %2065 = vmatpush2.msra.mxu0 0.0
        %2066 = vmatprep.subr.mxu0 0.0
        %2067 = vmatpush2.msra.mxu0 0.0
        %2068 = vmatprep.subr.mxu0 0.0
        %2069 = vmatpush2.msra.mxu0 0.0
        %2070 = vmatprep.mubr.f32.mxu0 0.0
        %2071 = vmatmul.mubr.f32.gmra.mxu0 %v1847
        %v2072 = vpop.f32.mrf.mxu0
        %v2073 = vadd.f32 0.0, %v2072
        %v2074 = vpop.f32.mrf.mxu0
        %2075 = vmatprep.mubr.f32.mxu0 0.0
        %2076 = vmatmul.mubr.f32.gmra.mxu0 %v1849
        %v2077 = vpop.f32.mrf.mxu0
        %v2078 = vadd.f32 0.0, %v2077
        %v2079 = vpop.f32.mrf.mxu0
        %2080 = vmatprep.mubr.f32.mxu0 0.0
        %2081 = vmatmul.mubr.f32.gmra.mxu0 %v1851
        %v2082 = vpop.f32.mrf.mxu0
        %v2083 = vadd.f32 0.0, %v2082
        %v2084 = vpop.f32.mrf.mxu0
        %2085 = vmatprep.mubr.f32.mxu0 0.0
        %2086 = vmatmul.mubr.f32.gmra.mxu0 %v1853
        %v2087 = vpop.f32.mrf.mxu0
        %v2088 = vadd.f32 0.0, %v2087
        %v2089 = vpop.f32.mrf.mxu0
        %2090 = vmatprep.mubr.f32.mxu0 0.0
        %2091 = vmatmul.mubr.f32.gmra.mxu0 %v1855
        %v2092 = vpop.f32.mrf.mxu0
        %v2093 = vadd.f32 0.0, %v2092
        %v2094 = vpop.f32.mrf.mxu0
        %2095 = vmatprep.mubr.f32.mxu0 0.0
        %2096 = vmatmul.mubr.f32.gmra.mxu0 %v1857
        %v2097 = vpop.f32.mrf.mxu0
        %v2098 = vadd.f32 0.0, %v2097
        %v2099 = vpop.f32.mrf.mxu0
        %2100 = vmatprep.mubr.f32.mxu0 0.0
        %2101 = vmatmul.mubr.f32.gmra.mxu0 %v1859
        %v2102 = vpop.f32.mrf.mxu0
        %v2103 = vadd.f32 0.0, %v2102
        %v2104 = vpop.f32.mrf.mxu0
        %2105 = vmatprep.mubr.f32.mxu0 0.0
        %2106 = vmatmul.mubr.f32.gmra.mxu0 %v1861
        %v2107 = vpop.f32.mrf.mxu0
        %v2108 = vadd.f32 0.0, %v2107
        %v2109 = vpop.f32.mrf.mxu0
        %2110 = vmatprep.mubr.f32.mxu0 0.0
        %2111 = vmatmul.mubr.f32.gmra.mxu0 %v1863
        %v2112 = vpop.f32.mrf.mxu0
        %v2113 = vadd.f32 0.0, %v2112
        %v2114 = vpop.f32.mrf.mxu0
        %2115 = vmatprep.mubr.f32.mxu0 0.0
        %2116 = vmatmul.mubr.f32.gmra.mxu0 %v1865
        %v2117 = vpop.f32.mrf.mxu0
        %v2118 = vadd.f32 0.0, %v2117
        %v2119 = vpop.f32.mrf.mxu0
        %2120 = vmatprep.mubr.f32.mxu0 0.0
        %2121 = vmatmul.mubr.f32.gmra.mxu0 %v1867
        %v2122 = vpop.f32.mrf.mxu0
        %v2123 = vadd.f32 0.0, %v2122
        %v2124 = vpop.f32.mrf.mxu0
        %2125 = vmatprep.mubr.f32.mxu0 0.0
        %2126 = vmatmul.mubr.f32.gmra.mxu0 %v1869
        %v2127 = vpop.f32.mrf.mxu0
        %v2128 = vadd.f32 0.0, %v2127
        %v2129 = vpop.f32.mrf.mxu0
        %2130 = vmatprep.mubr.f32.mxu0 0.0
        %2131 = vmatmul.mubr.f32.gmra.mxu0 %v1871
        %v2132 = vpop.f32.mrf.mxu0
        %v2133 = vadd.f32 0.0, %v2132
        %v2134 = vpop.f32.mrf.mxu0
        %2135 = vmatprep.mubr.f32.mxu0 0.0
        %2136 = vmatmul.mubr.f32.gmra.mxu0 %v1873
        %v2137 = vpop.f32.mrf.mxu0
        %v2138 = vadd.f32 0.0, %v2137
        %v2139 = vpop.f32.mrf.mxu0
        %2140 = vmatprep.mubr.f32.mxu0 0.0
        %2141 = vmatmul.mubr.f32.gmra.mxu0 %v1875
        %v2142 = vpop.f32.mrf.mxu0
        %v2143 = vadd.f32 0.0, %v2142
        %v2144 = vpop.f32.mrf.mxu0
        %2145 = vmatprep.mubr.f32.mxu0 0.0
        %2146 = vmatmul.mubr.f32.gmra.mxu0 %v1877
        %v2147 = vpop.f32.mrf.mxu0
        %v2148 = vadd.f32 0.0, %v2147
        %v2149 = vpop.f32.mrf.mxu0
        %2150 = vdwg.mxu0
        %v2151 = vmul.f32 %v2073, %v1910
        %v2152 = vmul.f32 %v2078, %v1911
        %v2153 = vmul.f32 %v2083, %v1912
        %v2154 = vmul.f32 %v2088, %v1913
        %v2155 = vmul.f32 %v2093, %v1914
        %v2156 = vmul.f32 %v2098, %v1915
        %v2157 = vmul.f32 %v2103, %v1916
        %v2158 = vmul.f32 %v2108, %v1917
        %v2159 = vmul.f32 %v2113, %v1918
        %v2160 = vmul.f32 %v2118, %v1919
        %v2161 = vmul.f32 %v2123, %v1920
        %v2162 = vmul.f32 %v2128, %v1921
        %v2163 = vmul.f32 %v2133, %v1922
        %v2164 = vmul.f32 %v2138, %v1923
        %v2165 = vmul.f32 %v2143, %v1924
        %v2166 = vmul.f32 %v2148, %v1925
        %2183 = vrot.lane.b32.xlu0 %v2151, 16
        %v2184 = vpop.permute.xlu0 %2183
        %2185 = vrot.lane.b32.xlu0 %v2152, 16
        %v2186 = vpop.permute.xlu0 %2185
        %2187 = vrot.lane.b32.xlu0 %v2153, 16
        %v2188 = vpop.permute.xlu0 %2187
        %2189 = vrot.lane.b32.xlu0 %v2154, 16
        %v2190 = vpop.permute.xlu0 %2189
        %2191 = vrot.lane.b32.xlu0 %v2155, 16
        %v2192 = vpop.permute.xlu0 %2191
        %2193 = vrot.lane.b32.xlu0 %v2156, 16
        %v2194 = vpop.permute.xlu0 %2193
        %2195 = vrot.lane.b32.xlu0 %v2157, 16
        %v2196 = vpop.permute.xlu0 %2195
        %2197 = vrot.lane.b32.xlu0 %v2158, 16
        %v2198 = vpop.permute.xlu0 %2197
        %2199 = vrot.lane.b32.xlu0 %v2159, 16
        %v2200 = vpop.permute.xlu0 %2199
        %2201 = vrot.lane.b32.xlu0 %v2160, 16
        %v2202 = vpop.permute.xlu0 %2201
        %2203 = vrot.lane.b32.xlu0 %v2161, 16
        %v2204 = vpop.permute.xlu0 %2203
        %2205 = vrot.lane.b32.xlu0 %v2162, 16
        %v2206 = vpop.permute.xlu0 %2205
        %2207 = vrot.lane.b32.xlu0 %v2163, 16
        %v2208 = vpop.permute.xlu0 %2207
        %2209 = vrot.lane.b32.xlu0 %v2164, 16
        %v2210 = vpop.permute.xlu0 %2209
        %2211 = vrot.lane.b32.xlu0 %v2165, 16
        %v2212 = vpop.permute.xlu0 %2211
        %2213 = vrot.lane.b32.xlu0 %v2166, 16
        %v2214 = vpop.permute.xlu0 %2213
        %vm2231 = vcmask 261248
        %2232 = vst.msk [vmem:[#allocation5] sm:$0xff] %vm2231, %v2184
        %2233 = vst.msk [vmem:[#allocation5 + $0x8] sm:$0xff] %vm2231, %v2186
        %2234 = vst.msk [vmem:[#allocation5 + $0x10] sm:$0xff] %vm2231, %v2188
        %2235 = vst.msk [vmem:[#allocation5 + $0x18] sm:$0xff] %vm2231, %v2190
        %2236 = vst.msk [vmem:[#allocation5 + $0x20] sm:$0xff] %vm2231, %v2192
        %2237 = vst.msk [vmem:[#allocation5 + $0x28] sm:$0xff] %vm2231, %v2194
        %2238 = vst.msk [vmem:[#allocation5 + $0x30] sm:$0xff] %vm2231, %v2196
        %2239 = vst.msk [vmem:[#allocation5 + $0x38] sm:$0xff] %vm2231, %v2198
        %2240 = vst.msk [vmem:[#allocation5 + $0x40] sm:$0xff] %vm2231, %v2200
        %2241 = vst.msk [vmem:[#allocation5 + $0x48] sm:$0xff] %vm2231, %v2202
        %2242 = vst.msk [vmem:[#allocation5 + $0x50] sm:$0xff] %vm2231, %v2204
        %2243 = vst.msk [vmem:[#allocation5 + $0x58] sm:$0xff] %vm2231, %v2206
        %2244 = vst.msk [vmem:[#allocation5 + $0x60] sm:$0xff] %vm2231, %v2208
        %2245 = vst.msk [vmem:[#allocation5 + $0x68] sm:$0xff] %vm2231, %v2210
        %2246 = vst.msk [vmem:[#allocation5 + $0x70] sm:$0xff] %vm2231, %v2212
        %2247 = vst.msk [vmem:[#allocation5 + $0x78] sm:$0xff] %vm2231, %v2214
        %v2248 = vld [vmem:[#allocation4] sm:$0xff]
        %v2249 = vld [vmem:[#allocation4 + $0x8] sm:$0xff]
        %v2250 = vld [vmem:[#allocation4 + $0x10] sm:$0xff]
        %v2251 = vld [vmem:[#allocation4 + $0x18] sm:$0xff]
        %v2252 = vld [vmem:[#allocation4 + $0x20] sm:$0xff]
        %v2253 = vld [vmem:[#allocation4 + $0x28] sm:$0xff]
        %v2254 = vld [vmem:[#allocation4 + $0x30] sm:$0xff]
        %v2255 = vld [vmem:[#allocation4 + $0x38] sm:$0xff]
        %v2256 = vld [vmem:[#allocation4 + $0x40] sm:$0xff]
        %v2257 = vld [vmem:[#allocation4 + $0x48] sm:$0xff]
        %v2258 = vld [vmem:[#allocation4 + $0x50] sm:$0xff]
        %v2259 = vld [vmem:[#allocation4 + $0x58] sm:$0xff]
        %v2260 = vld [vmem:[#allocation4 + $0x60] sm:$0xff]
        %v2261 = vld [vmem:[#allocation4 + $0x68] sm:$0xff]
        %v2262 = vld [vmem:[#allocation4 + $0x70] sm:$0xff]
        %v2263 = vld [vmem:[#allocation4 + $0x78] sm:$0xff]
        %s2264 = scalar_lea.vmem [#allocation2], 32
        %v2265 = vld [vmem:[%s2264] sm:$0xff]
        %v2266 = vld [vmem:[%s2264 + $0x8] sm:$0xff]
        %2283 = vrot.lane.b32.xlu0 %v2248, 96
        %v2284 = vpop.permute.xlu0 %2283
        %2285 = vrot.lane.b32.xlu0 %v2249, 96
        %v2286 = vpop.permute.xlu0 %2285
        %2287 = vrot.lane.b32.xlu0 %v2250, 96
        %v2288 = vpop.permute.xlu0 %2287
        %2289 = vrot.lane.b32.xlu0 %v2251, 96
        %v2290 = vpop.permute.xlu0 %2289
        %2291 = vrot.lane.b32.xlu0 %v2252, 96
        %v2292 = vpop.permute.xlu0 %2291
        %2293 = vrot.lane.b32.xlu0 %v2253, 96
        %v2294 = vpop.permute.xlu0 %2293
        %2295 = vrot.lane.b32.xlu0 %v2254, 96
        %v2296 = vpop.permute.xlu0 %2295
        %2297 = vrot.lane.b32.xlu0 %v2255, 96
        %v2298 = vpop.permute.xlu0 %2297
        %2299 = vrot.lane.b32.xlu0 %v2256, 96
        %v2300 = vpop.permute.xlu0 %2299
        %2301 = vrot.lane.b32.xlu0 %v2257, 96
        %v2302 = vpop.permute.xlu0 %2301
        %2303 = vrot.lane.b32.xlu0 %v2258, 96
        %v2304 = vpop.permute.xlu0 %2303
        %2305 = vrot.lane.b32.xlu0 %v2259, 96
        %v2306 = vpop.permute.xlu0 %2305
        %2307 = vrot.lane.b32.xlu0 %v2260, 96
        %v2308 = vpop.permute.xlu0 %2307
        %2309 = vrot.lane.b32.xlu0 %v2261, 96
        %v2310 = vpop.permute.xlu0 %2309
        %2311 = vrot.lane.b32.xlu0 %v2262, 96
        %v2312 = vpop.permute.xlu0 %2311
        %2313 = vrot.lane.b32.xlu0 %v2263, 96
        %v2314 = vpop.permute.xlu0 %2313
        %v2315 = vsel %vm1039, %v2284, 0
        %v2317 = vsel %vm1039, %v2286, 0
        %v2319 = vsel %vm1039, %v2288, 0
        %v2321 = vsel %vm1039, %v2290, 0
        %v2323 = vsel %vm1039, %v2292, 0
        %v2325 = vsel %vm1039, %v2294, 0
        %v2327 = vsel %vm1039, %v2296, 0
        %v2329 = vsel %vm1039, %v2298, 0
        %v2331 = vsel %vm1039, %v2300, 0
        %v2333 = vsel %vm1039, %v2302, 0
        %v2335 = vsel %vm1039, %v2304, 0
        %v2337 = vsel %vm1039, %v2306, 0
        %v2339 = vsel %vm1039, %v2308, 0
        %v2341 = vsel %vm1039, %v2310, 0
        %v2343 = vsel %vm1039, %v2312, 0
        %v2345 = vsel %vm1039, %v2314, 0
        %2347 = vmatprep.subr.mxu0 0.0
        %2348 = vmatpush1.msra.mxu0 0.0
        %2349 = vmatprep.subr.mxu0 0.0
        %2350 = vmatpush1.msra.mxu0 0.0
        %2351 = vmatprep.subr.mxu0 0.0
        %2352 = vmatpush1.msra.mxu0 0.0
        %2353 = vmatprep.subr.mxu0 0.0
        %2354 = vmatpush1.msra.mxu0 0.0
        %2355 = vmatprep.subr.mxu0 0.0
        %2356 = vmatpush1.msra.mxu0 0.0
        %2357 = vmatprep.subr.mxu0 0.0
        %2358 = vmatpush1.msra.mxu0 0.0
        %2359 = vmatprep.subr.mxu0 0.0
        %2360 = vmatpush1.msra.mxu0 0.0
        %2361 = vmatprep.subr.mxu0 0.0
        %2362 = vmatpush1.msra.mxu0 0.0
        %2363 = vmatprep.subr.mxu0 0.0
        %2364 = vmatpush1.msra.mxu0 0.0
        %2365 = vmatprep.subr.mxu0 0.0
        %2366 = vmatpush1.msra.mxu0 0.0
        %2367 = vmatprep.subr.mxu0 0.0
        %2368 = vmatpush1.msra.mxu0 0.0
        %2369 = vmatprep.subr.mxu0 0.0
        %2370 = vmatpush1.msra.mxu0 0.0
        %2371 = vmatprep.subr.mxu0 0.0
        %2372 = vmatpush1.msra.mxu0 0.0
        %2373 = vmatprep.subr.mxu0 0.0
        %2374 = vmatpush1.msra.mxu0 0.0
        %2375 = vmatprep.subr.mxu0 0.0
        %2376 = vmatpush1.msra.mxu0 %v2266
        %2377 = vmatprep.subr.mxu0 0.0
        %2378 = vmatpush1.msra.mxu0 %v2265
        %2379 = vmatprep.subr.mxu0 0.0
        %2380 = vmatpush2.msra.mxu0 0.0
        %2381 = vmatprep.subr.mxu0 0.0
        %2382 = vmatpush2.msra.mxu0 0.0
        %2383 = vmatprep.subr.mxu0 0.0
        %2384 = vmatpush2.msra.mxu0 0.0
        %2385 = vmatprep.subr.mxu0 0.0
        %2386 = vmatpush2.msra.mxu0 0.0
        %2387 = vmatprep.subr.mxu0 0.0
        %2388 = vmatpush2.msra.mxu0 0.0
        %2389 = vmatprep.subr.mxu0 0.0
        %2390 = vmatpush2.msra.mxu0 0.0
        %2391 = vmatprep.subr.mxu0 0.0
        %2392 = vmatpush2.msra.mxu0 0.0
        %2393 = vmatprep.subr.mxu0 0.0
        %2394 = vmatpush2.msra.mxu0 0.0
        %2395 = vmatprep.subr.mxu0 0.0
        %2396 = vmatpush2.msra.mxu0 0.0
        %2397 = vmatprep.subr.mxu0 0.0
        %2398 = vmatpush2.msra.mxu0 0.0
        %2399 = vmatprep.subr.mxu0 0.0
        %2400 = vmatpush2.msra.mxu0 0.0
        %2401 = vmatprep.subr.mxu0 0.0
        %2402 = vmatpush2.msra.mxu0 0.0
        %2403 = vmatprep.subr.mxu0 0.0
        %2404 = vmatpush2.msra.mxu0 0.0
        %2405 = vmatprep.subr.mxu0 0.0
        %2406 = vmatpush2.msra.mxu0 0.0
        %2407 = vmatprep.subr.mxu0 0.0
        %2408 = vmatpush2.msra.mxu0 0.0
        %2409 = vmatprep.subr.mxu0 0.0
        %2410 = vmatpush2.msra.mxu0 0.0
        %2411 = vmatprep.mubr.f32.mxu0 0.0
        %2412 = vmatmul.mubr.f32.gmra.mxu0 %v2315
        %v2413 = vpop.f32.mrf.mxu0
        %v2414 = vadd.f32 0.0, %v2413
        %v2415 = vpop.f32.mrf.mxu0
        %2416 = vmatprep.mubr.f32.mxu0 0.0
        %2417 = vmatmul.mubr.f32.gmra.mxu0 %v2317
        %v2418 = vpop.f32.mrf.mxu0
        %v2419 = vadd.f32 0.0, %v2418
        %v2420 = vpop.f32.mrf.mxu0
        %2421 = vmatprep.mubr.f32.mxu0 0.0
        %2422 = vmatmul.mubr.f32.gmra.mxu0 %v2319
        %v2423 = vpop.f32.mrf.mxu0
        %v2424 = vadd.f32 0.0, %v2423
        %v2425 = vpop.f32.mrf.mxu0
        %2426 = vmatprep.mubr.f32.mxu0 0.0
        %2427 = vmatmul.mubr.f32.gmra.mxu0 %v2321
        %v2428 = vpop.f32.mrf.mxu0
        %v2429 = vadd.f32 0.0, %v2428
        %v2430 = vpop.f32.mrf.mxu0
        %2431 = vmatprep.mubr.f32.mxu0 0.0
        %2432 = vmatmul.mubr.f32.gmra.mxu0 %v2323
        %v2433 = vpop.f32.mrf.mxu0
        %v2434 = vadd.f32 0.0, %v2433
        %v2435 = vpop.f32.mrf.mxu0
        %2436 = vmatprep.mubr.f32.mxu0 0.0
        %2437 = vmatmul.mubr.f32.gmra.mxu0 %v2325
        %v2438 = vpop.f32.mrf.mxu0
        %v2439 = vadd.f32 0.0, %v2438
        %v2440 = vpop.f32.mrf.mxu0
        %2441 = vmatprep.mubr.f32.mxu0 0.0
        %2442 = vmatmul.mubr.f32.gmra.mxu0 %v2327
        %v2443 = vpop.f32.mrf.mxu0
        %v2444 = vadd.f32 0.0, %v2443
        %v2445 = vpop.f32.mrf.mxu0
        %2446 = vmatprep.mubr.f32.mxu0 0.0
        %2447 = vmatmul.mubr.f32.gmra.mxu0 %v2329
        %v2448 = vpop.f32.mrf.mxu0
        %v2449 = vadd.f32 0.0, %v2448
        %v2450 = vpop.f32.mrf.mxu0
        %2451 = vmatprep.mubr.f32.mxu0 0.0
        %2452 = vmatmul.mubr.f32.gmra.mxu0 %v2331
        %v2453 = vpop.f32.mrf.mxu0
        %v2454 = vadd.f32 0.0, %v2453
        %v2455 = vpop.f32.mrf.mxu0
        %2456 = vmatprep.mubr.f32.mxu0 0.0
        %2457 = vmatmul.mubr.f32.gmra.mxu0 %v2333
        %v2458 = vpop.f32.mrf.mxu0
        %v2459 = vadd.f32 0.0, %v2458
        %v2460 = vpop.f32.mrf.mxu0
        %2461 = vmatprep.mubr.f32.mxu0 0.0
        %2462 = vmatmul.mubr.f32.gmra.mxu0 %v2335
        %v2463 = vpop.f32.mrf.mxu0
        %v2464 = vadd.f32 0.0, %v2463
        %v2465 = vpop.f32.mrf.mxu0
        %2466 = vmatprep.mubr.f32.mxu0 0.0
        %2467 = vmatmul.mubr.f32.gmra.mxu0 %v2337
        %v2468 = vpop.f32.mrf.mxu0
        %v2469 = vadd.f32 0.0, %v2468
        %v2470 = vpop.f32.mrf.mxu0
        %2471 = vmatprep.mubr.f32.mxu0 0.0
        %2472 = vmatmul.mubr.f32.gmra.mxu0 %v2339
        %v2473 = vpop.f32.mrf.mxu0
        %v2474 = vadd.f32 0.0, %v2473
        %v2475 = vpop.f32.mrf.mxu0
        %2476 = vmatprep.mubr.f32.mxu0 0.0
        %2477 = vmatmul.mubr.f32.gmra.mxu0 %v2341
        %v2478 = vpop.f32.mrf.mxu0
        %v2479 = vadd.f32 0.0, %v2478
        %v2480 = vpop.f32.mrf.mxu0
        %2481 = vmatprep.mubr.f32.mxu0 0.0
        %2482 = vmatmul.mubr.f32.gmra.mxu0 %v2343
        %v2483 = vpop.f32.mrf.mxu0
        %v2484 = vadd.f32 0.0, %v2483
        %v2485 = vpop.f32.mrf.mxu0
        %2486 = vmatprep.mubr.f32.mxu0 0.0
        %2487 = vmatmul.mubr.f32.gmra.mxu0 %v2345
        %v2488 = vpop.f32.mrf.mxu0
        %v2489 = vadd.f32 0.0, %v2488
        %v2490 = vpop.f32.mrf.mxu0
        %2491 = vdwg.mxu0
        %2492 = vmax.xlane.f32.xlu0 %v2414
        %v2493 = vpop.xlane.xlu0 %2492
        %2494 = vmax.xlane.f32.xlu0 %v2419
        %v2495 = vpop.xlane.xlu0 %2494
        %2496 = vmax.xlane.f32.xlu0 %v2424
        %v2497 = vpop.xlane.xlu0 %2496
        %2498 = vmax.xlane.f32.xlu0 %v2429
        %v2499 = vpop.xlane.xlu0 %2498
        %2500 = vmax.xlane.f32.xlu0 %v2434
        %v2501 = vpop.xlane.xlu0 %2500
        %2502 = vmax.xlane.f32.xlu0 %v2439
        %v2503 = vpop.xlane.xlu0 %2502
        %2504 = vmax.xlane.f32.xlu0 %v2444
        %v2505 = vpop.xlane.xlu0 %2504
        %2506 = vmax.xlane.f32.xlu0 %v2449
        %v2507 = vpop.xlane.xlu0 %2506
        %2508 = vmax.xlane.f32.xlu0 %v2454
        %v2509 = vpop.xlane.xlu0 %2508
        %2510 = vmax.xlane.f32.xlu0 %v2459
        %v2511 = vpop.xlane.xlu0 %2510
        %2512 = vmax.xlane.f32.xlu0 %v2464
        %v2513 = vpop.xlane.xlu0 %2512
        %2514 = vmax.xlane.f32.xlu0 %v2469
        %v2515 = vpop.xlane.xlu0 %2514
        %2516 = vmax.xlane.f32.xlu0 %v2474
        %v2517 = vpop.xlane.xlu0 %2516
        %2518 = vmax.xlane.f32.xlu0 %v2479
        %v2519 = vpop.xlane.xlu0 %2518
        %2520 = vmax.xlane.f32.xlu0 %v2484
        %v2521 = vpop.xlane.xlu0 %2520
        %2522 = vmax.xlane.f32.xlu0 %v2489
        %v2523 = vpop.xlane.xlu0 %2522
        %v2524 = vsub.f32 %v2414, %v2493
        %v2525 = vsub.f32 %v2419, %v2495
        %v2526 = vsub.f32 %v2424, %v2497
        %v2527 = vsub.f32 %v2429, %v2499
        %v2528 = vsub.f32 %v2434, %v2501
        %v2529 = vsub.f32 %v2439, %v2503
        %v2530 = vsub.f32 %v2444, %v2505
        %v2531 = vsub.f32 %v2449, %v2507
        %v2532 = vsub.f32 %v2454, %v2509
        %v2533 = vsub.f32 %v2459, %v2511
        %v2534 = vsub.f32 %v2464, %v2513
        %v2535 = vsub.f32 %v2469, %v2515
        %v2536 = vsub.f32 %v2474, %v2517
        %v2537 = vsub.f32 %v2479, %v2519
        %v2538 = vsub.f32 %v2484, %v2521
        %v2539 = vsub.f32 %v2489, %v2523
        %v2540 = vmul.f32 %v2524, 1.442695
        %v2541 = vpow.pop %v2540
        %v2542 = vmul.f32 %v2525, 1.442695
        %v2543 = vpow.pop %v2542
        %v2544 = vmul.f32 %v2526, 1.442695
        %v2545 = vpow.pop %v2544
        %v2546 = vmul.f32 %v2527, 1.442695
        %v2547 = vpow.pop %v2546
        %v2548 = vmul.f32 %v2528, 1.442695
        %v2549 = vpow.pop %v2548
        %v2550 = vmul.f32 %v2529, 1.442695
        %v2551 = vpow.pop %v2550
        %v2552 = vmul.f32 %v2530, 1.442695
        %v2553 = vpow.pop %v2552
        %v2554 = vmul.f32 %v2531, 1.442695
        %v2555 = vpow.pop %v2554
        %v2556 = vmul.f32 %v2532, 1.442695
        %v2557 = vpow.pop %v2556
        %v2558 = vmul.f32 %v2533, 1.442695
        %v2559 = vpow.pop %v2558
        %v2560 = vmul.f32 %v2534, 1.442695
        %v2561 = vpow.pop %v2560
        %v2562 = vmul.f32 %v2535, 1.442695
        %v2563 = vpow.pop %v2562
        %v2564 = vmul.f32 %v2536, 1.442695
        %v2565 = vpow.pop %v2564
        %v2566 = vmul.f32 %v2537, 1.442695
        %v2567 = vpow.pop %v2566
        %v2568 = vmul.f32 %v2538, 1.442695
        %v2569 = vpow.pop %v2568
        %v2570 = vmul.f32 %v2539, 1.442695
        %v2571 = vpow.pop %v2570
        %2572 = vadd.xlane.f32.xlu0 %v2541
        %v2573 = vpop.xlane.xlu0 %2572
        %2574 = vadd.xlane.f32.xlu0 %v2543
        %v2575 = vpop.xlane.xlu0 %2574
        %2576 = vadd.xlane.f32.xlu0 %v2545
        %v2577 = vpop.xlane.xlu0 %2576
        %2578 = vadd.xlane.f32.xlu0 %v2547
        %v2579 = vpop.xlane.xlu0 %2578
        %2580 = vadd.xlane.f32.xlu0 %v2549
        %v2581 = vpop.xlane.xlu0 %2580
        %2582 = vadd.xlane.f32.xlu0 %v2551
        %v2583 = vpop.xlane.xlu0 %2582
        %2584 = vadd.xlane.f32.xlu0 %v2553
        %v2585 = vpop.xlane.xlu0 %2584
        %2586 = vadd.xlane.f32.xlu0 %v2555
        %v2587 = vpop.xlane.xlu0 %2586
        %2588 = vadd.xlane.f32.xlu0 %v2557
        %v2589 = vpop.xlane.xlu0 %2588
        %2590 = vadd.xlane.f32.xlu0 %v2559
        %v2591 = vpop.xlane.xlu0 %2590
        %2592 = vadd.xlane.f32.xlu0 %v2561
        %v2593 = vpop.xlane.xlu0 %2592
        %2594 = vadd.xlane.f32.xlu0 %v2563
        %v2595 = vpop.xlane.xlu0 %2594
        %2596 = vadd.xlane.f32.xlu0 %v2565
        %v2597 = vpop.xlane.xlu0 %2596
        %2598 = vadd.xlane.f32.xlu0 %v2567
        %v2599 = vpop.xlane.xlu0 %2598
        %2600 = vadd.xlane.f32.xlu0 %v2569
        %v2601 = vpop.xlane.xlu0 %2600
        %2602 = vadd.xlane.f32.xlu0 %v2571
        %v2603 = vpop.xlane.xlu0 %2602
        %v2604 = vrcp.pop %v2573
        %v2605 = vrcp.pop %v2575
        %v2606 = vrcp.pop %v2577
        %v2607 = vrcp.pop %v2579
        %v2608 = vrcp.pop %v2581
        %v2609 = vrcp.pop %v2583
        %v2610 = vrcp.pop %v2585
        %v2611 = vrcp.pop %v2587
        %v2612 = vrcp.pop %v2589
        %v2613 = vrcp.pop %v2591
        %v2614 = vrcp.pop %v2593
        %v2615 = vrcp.pop %v2595
        %v2616 = vrcp.pop %v2597
        %v2617 = vrcp.pop %v2599
        %v2618 = vrcp.pop %v2601
        %v2619 = vrcp.pop %v2603
        %v2620 = vld [vmem:[#allocation3] sm:$0xff]
        %v2621 = vld [vmem:[#allocation3 + $0x8] sm:$0xff]
        %v2622 = vld [vmem:[#allocation3 + $0x10] sm:$0xff]
        %v2623 = vld [vmem:[#allocation3 + $0x18] sm:$0xff]
        %v2624 = vld [vmem:[#allocation3 + $0x20] sm:$0xff]
        %v2625 = vld [vmem:[#allocation3 + $0x28] sm:$0xff]
        %v2626 = vld [vmem:[#allocation3 + $0x30] sm:$0xff]
        %v2627 = vld [vmem:[#allocation3 + $0x38] sm:$0xff]
        %v2628 = vld [vmem:[#allocation3 + $0x40] sm:$0xff]
        %v2629 = vld [vmem:[#allocation3 + $0x48] sm:$0xff]
        %v2630 = vld [vmem:[#allocation3 + $0x50] sm:$0xff]
        %v2631 = vld [vmem:[#allocation3 + $0x58] sm:$0xff]
        %v2632 = vld [vmem:[#allocation3 + $0x60] sm:$0xff]
        %v2633 = vld [vmem:[#allocation3 + $0x68] sm:$0xff]
        %v2634 = vld [vmem:[#allocation3 + $0x70] sm:$0xff]
        %v2635 = vld [vmem:[#allocation3 + $0x78] sm:$0xff]
        %2652 = vrot.lane.b32.xlu0 %v2620, 96
        %v2653 = vpop.permute.xlu0 %2652
        %2654 = vrot.lane.b32.xlu0 %v2621, 96
        %v2655 = vpop.permute.xlu0 %2654
        %2656 = vrot.lane.b32.xlu0 %v2622, 96
        %v2657 = vpop.permute.xlu0 %2656
        %2658 = vrot.lane.b32.xlu0 %v2623, 96
        %v2659 = vpop.permute.xlu0 %2658
        %2660 = vrot.lane.b32.xlu0 %v2624, 96
        %v2661 = vpop.permute.xlu0 %2660
        %2662 = vrot.lane.b32.xlu0 %v2625, 96
        %v2663 = vpop.permute.xlu0 %2662
        %2664 = vrot.lane.b32.xlu0 %v2626, 96
        %v2665 = vpop.permute.xlu0 %2664
        %2666 = vrot.lane.b32.xlu0 %v2627, 96
        %v2667 = vpop.permute.xlu0 %2666
        %2668 = vrot.lane.b32.xlu0 %v2628, 96
        %v2669 = vpop.permute.xlu0 %2668
        %2670 = vrot.lane.b32.xlu0 %v2629, 96
        %v2671 = vpop.permute.xlu0 %2670
        %2672 = vrot.lane.b32.xlu0 %v2630, 96
        %v2673 = vpop.permute.xlu0 %2672
        %2674 = vrot.lane.b32.xlu0 %v2631, 96
        %v2675 = vpop.permute.xlu0 %2674
        %2676 = vrot.lane.b32.xlu0 %v2632, 96
        %v2677 = vpop.permute.xlu0 %2676
        %2678 = vrot.lane.b32.xlu0 %v2633, 96
        %v2679 = vpop.permute.xlu0 %2678
        %2680 = vrot.lane.b32.xlu0 %v2634, 96
        %v2681 = vpop.permute.xlu0 %2680
        %2682 = vrot.lane.b32.xlu0 %v2635, 96
        %v2683 = vpop.permute.xlu0 %2682
        %2700 = vmatprep.subr.mxu0 0.0
        %2701 = vmatpush1.msra.mxu0 %v2683
        %2702 = vmatprep.subr.mxu0 0.0
        %2703 = vmatpush1.msra.mxu0 %v2681
        %2704 = vmatprep.subr.mxu0 0.0
        %2705 = vmatpush1.msra.mxu0 %v2679
        %2706 = vmatprep.subr.mxu0 0.0
        %2707 = vmatpush1.msra.mxu0 %v2677
        %2708 = vmatprep.subr.mxu0 0.0
        %2709 = vmatpush1.msra.mxu0 %v2675
        %2710 = vmatprep.subr.mxu0 0.0
        %2711 = vmatpush1.msra.mxu0 %v2673
        %2712 = vmatprep.subr.mxu0 0.0
        %2713 = vmatpush1.msra.mxu0 %v2671
        %2714 = vmatprep.subr.mxu0 0.0
        %2715 = vmatpush1.msra.mxu0 %v2669
        %2716 = vmatprep.subr.mxu0 0.0
        %2717 = vmatpush1.msra.mxu0 %v2667
        %2718 = vmatprep.subr.mxu0 0.0
        %2719 = vmatpush1.msra.mxu0 %v2665
        %2720 = vmatprep.subr.mxu0 0.0
        %2721 = vmatpush1.msra.mxu0 %v2663
        %2722 = vmatprep.subr.mxu0 0.0
        %2723 = vmatpush1.msra.mxu0 %v2661
        %2724 = vmatprep.subr.mxu0 0.0
        %2725 = vmatpush1.msra.mxu0 %v2659
        %2726 = vmatprep.subr.mxu0 0.0
        %2727 = vmatpush1.msra.mxu0 %v2657
        %2728 = vmatprep.subr.mxu0 0.0
        %2729 = vmatpush1.msra.mxu0 %v2655
        %2730 = vmatprep.subr.mxu0 0.0
        %2731 = vmatpush1.msra.mxu0 %v2653
        %2732 = vmatprep.subr.mxu0 0.0
        %2733 = vmatpush2.msra.mxu0 0.0
        %2734 = vmatprep.subr.mxu0 0.0
        %2735 = vmatpush2.msra.mxu0 0.0
        %2736 = vmatprep.subr.mxu0 0.0
        %2737 = vmatpush2.msra.mxu0 0.0
        %2738 = vmatprep.subr.mxu0 0.0
        %2739 = vmatpush2.msra.mxu0 0.0
        %2740 = vmatprep.subr.mxu0 0.0
        %2741 = vmatpush2.msra.mxu0 0.0
        %2742 = vmatprep.subr.mxu0 0.0
        %2743 = vmatpush2.msra.mxu0 0.0
        %2744 = vmatprep.subr.mxu0 0.0
        %2745 = vmatpush2.msra.mxu0 0.0
        %2746 = vmatprep.subr.mxu0 0.0
        %2747 = vmatpush2.msra.mxu0 0.0
        %2748 = vmatprep.subr.mxu0 0.0
        %2749 = vmatpush2.msra.mxu0 0.0
        %2750 = vmatprep.subr.mxu0 0.0
        %2751 = vmatpush2.msra.mxu0 0.0
        %2752 = vmatprep.subr.mxu0 0.0
        %2753 = vmatpush2.msra.mxu0 0.0
        %2754 = vmatprep.subr.mxu0 0.0
        %2755 = vmatpush2.msra.mxu0 0.0
        %2756 = vmatprep.subr.mxu0 0.0
        %2757 = vmatpush2.msra.mxu0 0.0
        %2758 = vmatprep.subr.mxu0 0.0
        %2759 = vmatpush2.msra.mxu0 0.0
        %2760 = vmatprep.subr.mxu0 0.0
        %2761 = vmatpush2.msra.mxu0 0.0
        %2762 = vmatprep.subr.mxu0 0.0
        %2763 = vmatpush2.msra.mxu0 0.0
        %2764 = vmatprep.mubr.f32.mxu0 0.0
        %2765 = vmatmul.mubr.f32.gmra.mxu0 %v2541
        %v2766 = vpop.f32.mrf.mxu0
        %v2767 = vadd.f32 0.0, %v2766
        %v2768 = vpop.f32.mrf.mxu0
        %2769 = vmatprep.mubr.f32.mxu0 0.0
        %2770 = vmatmul.mubr.f32.gmra.mxu0 %v2543
        %v2771 = vpop.f32.mrf.mxu0
        %v2772 = vadd.f32 0.0, %v2771
        %v2773 = vpop.f32.mrf.mxu0
        %2774 = vmatprep.mubr.f32.mxu0 0.0
        %2775 = vmatmul.mubr.f32.gmra.mxu0 %v2545
        %v2776 = vpop.f32.mrf.mxu0
        %v2777 = vadd.f32 0.0, %v2776
        %v2778 = vpop.f32.mrf.mxu0
        %2779 = vmatprep.mubr.f32.mxu0 0.0
        %2780 = vmatmul.mubr.f32.gmra.mxu0 %v2547
        %v2781 = vpop.f32.mrf.mxu0
        %v2782 = vadd.f32 0.0, %v2781
        %v2783 = vpop.f32.mrf.mxu0
        %2784 = vmatprep.mubr.f32.mxu0 0.0
        %2785 = vmatmul.mubr.f32.gmra.mxu0 %v2549
        %v2786 = vpop.f32.mrf.mxu0
        %v2787 = vadd.f32 0.0, %v2786
        %v2788 = vpop.f32.mrf.mxu0
        %2789 = vmatprep.mubr.f32.mxu0 0.0
        %2790 = vmatmul.mubr.f32.gmra.mxu0 %v2551
        %v2791 = vpop.f32.mrf.mxu0
        %v2792 = vadd.f32 0.0, %v2791
        %v2793 = vpop.f32.mrf.mxu0
        %2794 = vmatprep.mubr.f32.mxu0 0.0
        %2795 = vmatmul.mubr.f32.gmra.mxu0 %v2553
        %v2796 = vpop.f32.mrf.mxu0
        %v2797 = vadd.f32 0.0, %v2796
        %v2798 = vpop.f32.mrf.mxu0
        %2799 = vmatprep.mubr.f32.mxu0 0.0
        %2800 = vmatmul.mubr.f32.gmra.mxu0 %v2555
        %v2801 = vpop.f32.mrf.mxu0
        %v2802 = vadd.f32 0.0, %v2801
        %v2803 = vpop.f32.mrf.mxu0
        %2804 = vmatprep.mubr.f32.mxu0 0.0
        %2805 = vmatmul.mubr.f32.gmra.mxu0 %v2557
        %v2806 = vpop.f32.mrf.mxu0
        %v2807 = vadd.f32 0.0, %v2806
        %v2808 = vpop.f32.mrf.mxu0
        %2809 = vmatprep.mubr.f32.mxu0 0.0
        %2810 = vmatmul.mubr.f32.gmra.mxu0 %v2559
        %v2811 = vpop.f32.mrf.mxu0
        %v2812 = vadd.f32 0.0, %v2811
        %v2813 = vpop.f32.mrf.mxu0
        %2814 = vmatprep.mubr.f32.mxu0 0.0
        %2815 = vmatmul.mubr.f32.gmra.mxu0 %v2561
        %v2816 = vpop.f32.mrf.mxu0
        %v2817 = vadd.f32 0.0, %v2816
        %v2818 = vpop.f32.mrf.mxu0
        %2819 = vmatprep.mubr.f32.mxu0 0.0
        %2820 = vmatmul.mubr.f32.gmra.mxu0 %v2563
        %v2821 = vpop.f32.mrf.mxu0
        %v2822 = vadd.f32 0.0, %v2821
        %v2823 = vpop.f32.mrf.mxu0
        %2824 = vmatprep.mubr.f32.mxu0 0.0
        %2825 = vmatmul.mubr.f32.gmra.mxu0 %v2565
        %v2826 = vpop.f32.mrf.mxu0
        %v2827 = vadd.f32 0.0, %v2826
        %v2828 = vpop.f32.mrf.mxu0
        %2829 = vmatprep.mubr.f32.mxu0 0.0
        %2830 = vmatmul.mubr.f32.gmra.mxu0 %v2567
        %v2831 = vpop.f32.mrf.mxu0
        %v2832 = vadd.f32 0.0, %v2831
        %v2833 = vpop.f32.mrf.mxu0
        %2834 = vmatprep.mubr.f32.mxu0 0.0
        %2835 = vmatmul.mubr.f32.gmra.mxu0 %v2569
        %v2836 = vpop.f32.mrf.mxu0
        %v2837 = vadd.f32 0.0, %v2836
        %v2838 = vpop.f32.mrf.mxu0
        %2839 = vmatprep.mubr.f32.mxu0 0.0
        %2840 = vmatmul.mubr.f32.gmra.mxu0 %v2571
        %v2841 = vpop.f32.mrf.mxu0
        %v2842 = vadd.f32 0.0, %v2841
        %v2843 = vpop.f32.mrf.mxu0
        %2844 = vdwg.mxu0
        %v2845 = vmul.f32 %v2767, %v2604
        %v2846 = vmul.f32 %v2772, %v2605
        %v2847 = vmul.f32 %v2777, %v2606
        %v2848 = vmul.f32 %v2782, %v2607
        %v2849 = vmul.f32 %v2787, %v2608
        %v2850 = vmul.f32 %v2792, %v2609
        %v2851 = vmul.f32 %v2797, %v2610
        %v2852 = vmul.f32 %v2802, %v2611
        %v2853 = vmul.f32 %v2807, %v2612
        %v2854 = vmul.f32 %v2812, %v2613
        %v2855 = vmul.f32 %v2817, %v2614
        %v2856 = vmul.f32 %v2822, %v2615
        %v2857 = vmul.f32 %v2827, %v2616
        %v2858 = vmul.f32 %v2832, %v2617
        %v2859 = vmul.f32 %v2837, %v2618
        %v2860 = vmul.f32 %v2842, %v2619
        %2877 = vrot.lane.b32.xlu0 %v2845, 32
        %v2878 = vpop.permute.xlu0 %2877
        %2879 = vrot.lane.b32.xlu0 %v2846, 32
        %v2880 = vpop.permute.xlu0 %2879
        %2881 = vrot.lane.b32.xlu0 %v2847, 32
        %v2882 = vpop.permute.xlu0 %2881
        %2883 = vrot.lane.b32.xlu0 %v2848, 32
        %v2884 = vpop.permute.xlu0 %2883
        %2885 = vrot.lane.b32.xlu0 %v2849, 32
        %v2886 = vpop.permute.xlu0 %2885
        %2887 = vrot.lane.b32.xlu0 %v2850, 32
        %v2888 = vpop.permute.xlu0 %2887
        %2889 = vrot.lane.b32.xlu0 %v2851, 32
        %v2890 = vpop.permute.xlu0 %2889
        %2891 = vrot.lane.b32.xlu0 %v2852, 32
        %v2892 = vpop.permute.xlu0 %2891
        %2893 = vrot.lane.b32.xlu0 %v2853, 32
        %v2894 = vpop.permute.xlu0 %2893
        %2895 = vrot.lane.b32.xlu0 %v2854, 32
        %v2896 = vpop.permute.xlu0 %2895
        %2897 = vrot.lane.b32.xlu0 %v2855, 32
        %v2898 = vpop.permute.xlu0 %2897
        %2899 = vrot.lane.b32.xlu0 %v2856, 32
        %v2900 = vpop.permute.xlu0 %2899
        %2901 = vrot.lane.b32.xlu0 %v2857, 32
        %v2902 = vpop.permute.xlu0 %2901
        %2903 = vrot.lane.b32.xlu0 %v2858, 32
        %v2904 = vpop.permute.xlu0 %2903
        %2905 = vrot.lane.b32.xlu0 %v2859, 32
        %v2906 = vpop.permute.xlu0 %2905
        %2907 = vrot.lane.b32.xlu0 %v2860, 32
        %v2908 = vpop.permute.xlu0 %2907
        %vm2925 = vcmask 392448
        %2926 = vst.msk [vmem:[#allocation5] sm:$0xff] %vm2925, %v2878
        %2927 = vst.msk [vmem:[#allocation5 + $0x8] sm:$0xff] %vm2925, %v2880
        %2928 = vst.msk [vmem:[#allocation5 + $0x10] sm:$0xff] %vm2925, %v2882
        %2929 = vst.msk [vmem:[#allocation5 + $0x18] sm:$0xff] %vm2925, %v2884
        %2930 = vst.msk [vmem:[#allocation5 + $0x20] sm:$0xff] %vm2925, %v2886
        %2931 = vst.msk [vmem:[#allocation5 + $0x28] sm:$0xff] %vm2925, %v2888
        %2932 = vst.msk [vmem:[#allocation5 + $0x30] sm:$0xff] %vm2925, %v2890
        %2933 = vst.msk [vmem:[#allocation5 + $0x38] sm:$0xff] %vm2925, %v2892
        %2934 = vst.msk [vmem:[#allocation5 + $0x40] sm:$0xff] %vm2925, %v2894
        %2935 = vst.msk [vmem:[#allocation5 + $0x48] sm:$0xff] %vm2925, %v2896
        %2936 = vst.msk [vmem:[#allocation5 + $0x50] sm:$0xff] %vm2925, %v2898
        %2937 = vst.msk [vmem:[#allocation5 + $0x58] sm:$0xff] %vm2925, %v2900
        %2938 = vst.msk [vmem:[#allocation5 + $0x60] sm:$0xff] %vm2925, %v2902
        %2939 = vst.msk [vmem:[#allocation5 + $0x68] sm:$0xff] %vm2925, %v2904
        %2940 = vst.msk [vmem:[#allocation5 + $0x70] sm:$0xff] %vm2925, %v2906
        %2941 = vst.msk [vmem:[#allocation5 + $0x78] sm:$0xff] %vm2925, %v2908
        %v2942 = vld [vmem:[#allocation4] sm:$0xff]
        %v2943 = vld [vmem:[#allocation4 + $0x8] sm:$0xff]
        %v2944 = vld [vmem:[#allocation4 + $0x10] sm:$0xff]
        %v2945 = vld [vmem:[#allocation4 + $0x18] sm:$0xff]
        %v2946 = vld [vmem:[#allocation4 + $0x20] sm:$0xff]
        %v2947 = vld [vmem:[#allocation4 + $0x28] sm:$0xff]
        %v2948 = vld [vmem:[#allocation4 + $0x30] sm:$0xff]
        %v2949 = vld [vmem:[#allocation4 + $0x38] sm:$0xff]
        %v2950 = vld [vmem:[#allocation4 + $0x40] sm:$0xff]
        %v2951 = vld [vmem:[#allocation4 + $0x48] sm:$0xff]
        %v2952 = vld [vmem:[#allocation4 + $0x50] sm:$0xff]
        %v2953 = vld [vmem:[#allocation4 + $0x58] sm:$0xff]
        %v2954 = vld [vmem:[#allocation4 + $0x60] sm:$0xff]
        %v2955 = vld [vmem:[#allocation4 + $0x68] sm:$0xff]
        %v2956 = vld [vmem:[#allocation4 + $0x70] sm:$0xff]
        %v2957 = vld [vmem:[#allocation4 + $0x78] sm:$0xff]
        %s2958 = scalar_lea.vmem [#allocation2], 48
        %v2959 = vld [vmem:[%s2958] sm:$0xff]
        %v2960 = vld [vmem:[%s2958 + $0x8] sm:$0xff]
        %2977 = vrot.lane.b32.xlu0 %v2942, 80
        %v2978 = vpop.permute.xlu0 %2977
        %2979 = vrot.lane.b32.xlu0 %v2943, 80
        %v2980 = vpop.permute.xlu0 %2979
        %2981 = vrot.lane.b32.xlu0 %v2944, 80
        %v2982 = vpop.permute.xlu0 %2981
        %2983 = vrot.lane.b32.xlu0 %v2945, 80
        %v2984 = vpop.permute.xlu0 %2983
        %2985 = vrot.lane.b32.xlu0 %v2946, 80
        %v2986 = vpop.permute.xlu0 %2985
        %2987 = vrot.lane.b32.xlu0 %v2947, 80
        %v2988 = vpop.permute.xlu0 %2987
        %2989 = vrot.lane.b32.xlu0 %v2948, 80
        %v2990 = vpop.permute.xlu0 %2989
        %2991 = vrot.lane.b32.xlu0 %v2949, 80
        %v2992 = vpop.permute.xlu0 %2991
        %2993 = vrot.lane.b32.xlu0 %v2950, 80
        %v2994 = vpop.permute.xlu0 %2993
        %2995 = vrot.lane.b32.xlu0 %v2951, 80
        %v2996 = vpop.permute.xlu0 %2995
        %2997 = vrot.lane.b32.xlu0 %v2952, 80
        %v2998 = vpop.permute.xlu0 %2997
        %2999 = vrot.lane.b32.xlu0 %v2953, 80
        %v3000 = vpop.permute.xlu0 %2999
        %3001 = vrot.lane.b32.xlu0 %v2954, 80
        %v3002 = vpop.permute.xlu0 %3001
        %3003 = vrot.lane.b32.xlu0 %v2955, 80
        %v3004 = vpop.permute.xlu0 %3003
        %3005 = vrot.lane.b32.xlu0 %v2956, 80
        %v3006 = vpop.permute.xlu0 %3005
        %3007 = vrot.lane.b32.xlu0 %v2957, 80
        %v3008 = vpop.permute.xlu0 %3007
        %v3009 = vsel %vm1039, %v2978, 0
        %v3011 = vsel %vm1039, %v2980, 0
        %v3013 = vsel %vm1039, %v2982, 0
        %v3015 = vsel %vm1039, %v2984, 0
        %v3017 = vsel %vm1039, %v2986, 0
        %v3019 = vsel %vm1039, %v2988, 0
        %v3021 = vsel %vm1039, %v2990, 0
        %v3023 = vsel %vm1039, %v2992, 0
        %v3025 = vsel %vm1039, %v2994, 0
        %v3027 = vsel %vm1039, %v2996, 0
        %v3029 = vsel %vm1039, %v2998, 0
        %v3031 = vsel %vm1039, %v3000, 0
        %v3033 = vsel %vm1039, %v3002, 0
        %v3035 = vsel %vm1039, %v3004, 0
        %v3037 = vsel %vm1039, %v3006, 0
        %v3039 = vsel %vm1039, %v3008, 0
        %3041 = vmatprep.subr.mxu0 0.0
        %3042 = vmatpush1.msra.mxu0 0.0
        %3043 = vmatprep.subr.mxu0 0.0
        %3044 = vmatpush1.msra.mxu0 0.0
        %3045 = vmatprep.subr.mxu0 0.0
        %3046 = vmatpush1.msra.mxu0 0.0
        %3047 = vmatprep.subr.mxu0 0.0
        %3048 = vmatpush1.msra.mxu0 0.0
        %3049 = vmatprep.subr.mxu0 0.0
        %3050 = vmatpush1.msra.mxu0 0.0
        %3051 = vmatprep.subr.mxu0 0.0
        %3052 = vmatpush1.msra.mxu0 0.0
        %3053 = vmatprep.subr.mxu0 0.0
        %3054 = vmatpush1.msra.mxu0 0.0
        %3055 = vmatprep.subr.mxu0 0.0
        %3056 = vmatpush1.msra.mxu0 0.0
        %3057 = vmatprep.subr.mxu0 0.0
        %3058 = vmatpush1.msra.mxu0 0.0
        %3059 = vmatprep.subr.mxu0 0.0
        %3060 = vmatpush1.msra.mxu0 0.0
        %3061 = vmatprep.subr.mxu0 0.0
        %3062 = vmatpush1.msra.mxu0 0.0
        %3063 = vmatprep.subr.mxu0 0.0
        %3064 = vmatpush1.msra.mxu0 0.0
        %3065 = vmatprep.subr.mxu0 0.0
        %3066 = vmatpush1.msra.mxu0 0.0
        %3067 = vmatprep.subr.mxu0 0.0
        %3068 = vmatpush1.msra.mxu0 0.0
        %3069 = vmatprep.subr.mxu0 0.0
        %3070 = vmatpush1.msra.mxu0 %v2960
        %3071 = vmatprep.subr.mxu0 0.0
        %3072 = vmatpush1.msra.mxu0 %v2959
        %3073 = vmatprep.subr.mxu0 0.0
        %3074 = vmatpush2.msra.mxu0 0.0
        %3075 = vmatprep.subr.mxu0 0.0
        %3076 = vmatpush2.msra.mxu0 0.0
        %3077 = vmatprep.subr.mxu0 0.0
        %3078 = vmatpush2.msra.mxu0 0.0
        %3079 = vmatprep.subr.mxu0 0.0
        %3080 = vmatpush2.msra.mxu0 0.0
        %3081 = vmatprep.subr.mxu0 0.0
        %3082 = vmatpush2.msra.mxu0 0.0
        %3083 = vmatprep.subr.mxu0 0.0
        %3084 = vmatpush2.msra.mxu0 0.0
        %3085 = vmatprep.subr.mxu0 0.0
        %3086 = vmatpush2.msra.mxu0 0.0
        %3087 = vmatprep.subr.mxu0 0.0
        %3088 = vmatpush2.msra.mxu0 0.0
        %3089 = vmatprep.subr.mxu0 0.0
        %3090 = vmatpush2.msra.mxu0 0.0
        %3091 = vmatprep.subr.mxu0 0.0
        %3092 = vmatpush2.msra.mxu0 0.0
        %3093 = vmatprep.subr.mxu0 0.0
        %3094 = vmatpush2.msra.mxu0 0.0
        %3095 = vmatprep.subr.mxu0 0.0
        %3096 = vmatpush2.msra.mxu0 0.0
        %3097 = vmatprep.subr.mxu0 0.0
        %3098 = vmatpush2.msra.mxu0 0.0
        %3099 = vmatprep.subr.mxu0 0.0
        %3100 = vmatpush2.msra.mxu0 0.0
        %3101 = vmatprep.subr.mxu0 0.0
        %3102 = vmatpush2.msra.mxu0 0.0
        %3103 = vmatprep.subr.mxu0 0.0
        %3104 = vmatpush2.msra.mxu0 0.0
        %3105 = vmatprep.mubr.f32.mxu0 0.0
        %3106 = vmatmul.mubr.f32.gmra.mxu0 %v3009
        %v3107 = vpop.f32.mrf.mxu0
        %v3108 = vadd.f32 0.0, %v3107
        %v3109 = vpop.f32.mrf.mxu0
        %3110 = vmatprep.mubr.f32.mxu0 0.0
        %3111 = vmatmul.mubr.f32.gmra.mxu0 %v3011
        %v3112 = vpop.f32.mrf.mxu0
        %v3113 = vadd.f32 0.0, %v3112
        %v3114 = vpop.f32.mrf.mxu0
        %3115 = vmatprep.mubr.f32.mxu0 0.0
        %3116 = vmatmul.mubr.f32.gmra.mxu0 %v3013
        %v3117 = vpop.f32.mrf.mxu0
        %v3118 = vadd.f32 0.0, %v3117
        %v3119 = vpop.f32.mrf.mxu0
        %3120 = vmatprep.mubr.f32.mxu0 0.0
        %3121 = vmatmul.mubr.f32.gmra.mxu0 %v3015
        %v3122 = vpop.f32.mrf.mxu0
        %v3123 = vadd.f32 0.0, %v3122
        %v3124 = vpop.f32.mrf.mxu0
        %3125 = vmatprep.mubr.f32.mxu0 0.0
        %3126 = vmatmul.mubr.f32.gmra.mxu0 %v3017
        %v3127 = vpop.f32.mrf.mxu0
        %v3128 = vadd.f32 0.0, %v3127
        %v3129 = vpop.f32.mrf.mxu0
        %3130 = vmatprep.mubr.f32.mxu0 0.0
        %3131 = vmatmul.mubr.f32.gmra.mxu0 %v3019
        %v3132 = vpop.f32.mrf.mxu0
        %v3133 = vadd.f32 0.0, %v3132
        %v3134 = vpop.f32.mrf.mxu0
        %3135 = vmatprep.mubr.f32.mxu0 0.0
        %3136 = vmatmul.mubr.f32.gmra.mxu0 %v3021
        %v3137 = vpop.f32.mrf.mxu0
        %v3138 = vadd.f32 0.0, %v3137
        %v3139 = vpop.f32.mrf.mxu0
        %3140 = vmatprep.mubr.f32.mxu0 0.0
        %3141 = vmatmul.mubr.f32.gmra.mxu0 %v3023
        %v3142 = vpop.f32.mrf.mxu0
        %v3143 = vadd.f32 0.0, %v3142
        %v3144 = vpop.f32.mrf.mxu0
        %3145 = vmatprep.mubr.f32.mxu0 0.0
        %3146 = vmatmul.mubr.f32.gmra.mxu0 %v3025
        %v3147 = vpop.f32.mrf.mxu0
        %v3148 = vadd.f32 0.0, %v3147
        %v3149 = vpop.f32.mrf.mxu0
        %3150 = vmatprep.mubr.f32.mxu0 0.0
        %3151 = vmatmul.mubr.f32.gmra.mxu0 %v3027
        %v3152 = vpop.f32.mrf.mxu0
        %v3153 = vadd.f32 0.0, %v3152
        %v3154 = vpop.f32.mrf.mxu0
        %3155 = vmatprep.mubr.f32.mxu0 0.0
        %3156 = vmatmul.mubr.f32.gmra.mxu0 %v3029
        %v3157 = vpop.f32.mrf.mxu0
        %v3158 = vadd.f32 0.0, %v3157
        %v3159 = vpop.f32.mrf.mxu0
        %3160 = vmatprep.mubr.f32.mxu0 0.0
        %3161 = vmatmul.mubr.f32.gmra.mxu0 %v3031
        %v3162 = vpop.f32.mrf.mxu0
        %v3163 = vadd.f32 0.0, %v3162
        %v3164 = vpop.f32.mrf.mxu0
        %3165 = vmatprep.mubr.f32.mxu0 0.0
        %3166 = vmatmul.mubr.f32.gmra.mxu0 %v3033
        %v3167 = vpop.f32.mrf.mxu0
        %v3168 = vadd.f32 0.0, %v3167
        %v3169 = vpop.f32.mrf.mxu0
        %3170 = vmatprep.mubr.f32.mxu0 0.0
        %3171 = vmatmul.mubr.f32.gmra.mxu0 %v3035
        %v3172 = vpop.f32.mrf.mxu0
        %v3173 = vadd.f32 0.0, %v3172
        %v3174 = vpop.f32.mrf.mxu0
        %3175 = vmatprep.mubr.f32.mxu0 0.0
        %3176 = vmatmul.mubr.f32.gmra.mxu0 %v3037
        %v3177 = vpop.f32.mrf.mxu0
        %v3178 = vadd.f32 0.0, %v3177
        %v3179 = vpop.f32.mrf.mxu0
        %3180 = vmatprep.mubr.f32.mxu0 0.0
        %3181 = vmatmul.mubr.f32.gmra.mxu0 %v3039
        %v3182 = vpop.f32.mrf.mxu0
        %v3183 = vadd.f32 0.0, %v3182
        %v3184 = vpop.f32.mrf.mxu0
        %3185 = vdwg.mxu0
        %3186 = vmax.xlane.f32.xlu0 %v3108
        %v3187 = vpop.xlane.xlu0 %3186
        %3188 = vmax.xlane.f32.xlu0 %v3113
        %v3189 = vpop.xlane.xlu0 %3188
        %3190 = vmax.xlane.f32.xlu0 %v3118
        %v3191 = vpop.xlane.xlu0 %3190
        %3192 = vmax.xlane.f32.xlu0 %v3123
        %v3193 = vpop.xlane.xlu0 %3192
        %3194 = vmax.xlane.f32.xlu0 %v3128
        %v3195 = vpop.xlane.xlu0 %3194
        %3196 = vmax.xlane.f32.xlu0 %v3133
        %v3197 = vpop.xlane.xlu0 %3196
        %3198 = vmax.xlane.f32.xlu0 %v3138
        %v3199 = vpop.xlane.xlu0 %3198
        %3200 = vmax.xlane.f32.xlu0 %v3143
        %v3201 = vpop.xlane.xlu0 %3200
        %3202 = vmax.xlane.f32.xlu0 %v3148
        %v3203 = vpop.xlane.xlu0 %3202
        %3204 = vmax.xlane.f32.xlu0 %v3153
        %v3205 = vpop.xlane.xlu0 %3204
        %3206 = vmax.xlane.f32.xlu0 %v3158
        %v3207 = vpop.xlane.xlu0 %3206
        %3208 = vmax.xlane.f32.xlu0 %v3163
        %v3209 = vpop.xlane.xlu0 %3208
        %3210 = vmax.xlane.f32.xlu0 %v3168
        %v3211 = vpop.xlane.xlu0 %3210
        %3212 = vmax.xlane.f32.xlu0 %v3173
        %v3213 = vpop.xlane.xlu0 %3212
        %3214 = vmax.xlane.f32.xlu0 %v3178
        %v3215 = vpop.xlane.xlu0 %3214
        %3216 = vmax.xlane.f32.xlu0 %v3183
        %v3217 = vpop.xlane.xlu0 %3216
        %v3218 = vsub.f32 %v3108, %v3187
        %v3219 = vsub.f32 %v3113, %v3189
        %v3220 = vsub.f32 %v3118, %v3191
        %v3221 = vsub.f32 %v3123, %v3193
        %v3222 = vsub.f32 %v3128, %v3195
        %v3223 = vsub.f32 %v3133, %v3197
        %v3224 = vsub.f32 %v3138, %v3199
        %v3225 = vsub.f32 %v3143, %v3201
        %v3226 = vsub.f32 %v3148, %v3203
        %v3227 = vsub.f32 %v3153, %v3205
        %v3228 = vsub.f32 %v3158, %v3207
        %v3229 = vsub.f32 %v3163, %v3209
        %v3230 = vsub.f32 %v3168, %v3211
        %v3231 = vsub.f32 %v3173, %v3213
        %v3232 = vsub.f32 %v3178, %v3215
        %v3233 = vsub.f32 %v3183, %v3217
        %v3234 = vmul.f32 %v3218, 1.442695
        %v3235 = vpow.pop %v3234
        %v3236 = vmul.f32 %v3219, 1.442695
        %v3237 = vpow.pop %v3236
        %v3238 = vmul.f32 %v3220, 1.442695
        %v3239 = vpow.pop %v3238
        %v3240 = vmul.f32 %v3221, 1.442695
        %v3241 = vpow.pop %v3240
        %v3242 = vmul.f32 %v3222, 1.442695
        %v3243 = vpow.pop %v3242
        %v3244 = vmul.f32 %v3223, 1.442695
        %v3245 = vpow.pop %v3244
        %v3246 = vmul.f32 %v3224, 1.442695
        %v3247 = vpow.pop %v3246
        %v3248 = vmul.f32 %v3225, 1.442695
        %v3249 = vpow.pop %v3248
        %v3250 = vmul.f32 %v3226, 1.442695
        %v3251 = vpow.pop %v3250
        %v3252 = vmul.f32 %v3227, 1.442695
        %v3253 = vpow.pop %v3252
        %v3254 = vmul.f32 %v3228, 1.442695
        %v3255 = vpow.pop %v3254
        %v3256 = vmul.f32 %v3229, 1.442695
        %v3257 = vpow.pop %v3256
        %v3258 = vmul.f32 %v3230, 1.442695
        %v3259 = vpow.pop %v3258
        %v3260 = vmul.f32 %v3231, 1.442695
        %v3261 = vpow.pop %v3260
        %v3262 = vmul.f32 %v3232, 1.442695
        %v3263 = vpow.pop %v3262
        %v3264 = vmul.f32 %v3233, 1.442695
        %v3265 = vpow.pop %v3264
        %3266 = vadd.xlane.f32.xlu0 %v3235
        %v3267 = vpop.xlane.xlu0 %3266
        %3268 = vadd.xlane.f32.xlu0 %v3237
        %v3269 = vpop.xlane.xlu0 %3268
        %3270 = vadd.xlane.f32.xlu0 %v3239
        %v3271 = vpop.xlane.xlu0 %3270
        %3272 = vadd.xlane.f32.xlu0 %v3241
        %v3273 = vpop.xlane.xlu0 %3272
        %3274 = vadd.xlane.f32.xlu0 %v3243
        %v3275 = vpop.xlane.xlu0 %3274
        %3276 = vadd.xlane.f32.xlu0 %v3245
        %v3277 = vpop.xlane.xlu0 %3276
        %3278 = vadd.xlane.f32.xlu0 %v3247
        %v3279 = vpop.xlane.xlu0 %3278
        %3280 = vadd.xlane.f32.xlu0 %v3249
        %v3281 = vpop.xlane.xlu0 %3280
        %3282 = vadd.xlane.f32.xlu0 %v3251
        %v3283 = vpop.xlane.xlu0 %3282
        %3284 = vadd.xlane.f32.xlu0 %v3253
        %v3285 = vpop.xlane.xlu0 %3284
        %3286 = vadd.xlane.f32.xlu0 %v3255
        %v3287 = vpop.xlane.xlu0 %3286
        %3288 = vadd.xlane.f32.xlu0 %v3257
        %v3289 = vpop.xlane.xlu0 %3288
        %3290 = vadd.xlane.f32.xlu0 %v3259
        %v3291 = vpop.xlane.xlu0 %3290
        %3292 = vadd.xlane.f32.xlu0 %v3261
        %v3293 = vpop.xlane.xlu0 %3292
        %3294 = vadd.xlane.f32.xlu0 %v3263
        %v3295 = vpop.xlane.xlu0 %3294
        %3296 = vadd.xlane.f32.xlu0 %v3265
        %v3297 = vpop.xlane.xlu0 %3296
        %v3298 = vrcp.pop %v3267
        %v3299 = vrcp.pop %v3269
        %v3300 = vrcp.pop %v3271
        %v3301 = vrcp.pop %v3273
        %v3302 = vrcp.pop %v3275
        %v3303 = vrcp.pop %v3277
        %v3304 = vrcp.pop %v3279
        %v3305 = vrcp.pop %v3281
        %v3306 = vrcp.pop %v3283
        %v3307 = vrcp.pop %v3285
        %v3308 = vrcp.pop %v3287
        %v3309 = vrcp.pop %v3289
        %v3310 = vrcp.pop %v3291
        %v3311 = vrcp.pop %v3293
        %v3312 = vrcp.pop %v3295
        %v3313 = vrcp.pop %v3297
        %v3314 = vld [vmem:[#allocation3] sm:$0xff]
        %v3315 = vld [vmem:[#allocation3 + $0x8] sm:$0xff]
        %v3316 = vld [vmem:[#allocation3 + $0x10] sm:$0xff]
        %v3317 = vld [vmem:[#allocation3 + $0x18] sm:$0xff]
        %v3318 = vld [vmem:[#allocation3 + $0x20] sm:$0xff]
        %v3319 = vld [vmem:[#allocation3 + $0x28] sm:$0xff]
        %v3320 = vld [vmem:[#allocation3 + $0x30] sm:$0xff]
        %v3321 = vld [vmem:[#allocation3 + $0x38] sm:$0xff]
        %v3322 = vld [vmem:[#allocation3 + $0x40] sm:$0xff]
        %v3323 = vld [vmem:[#allocation3 + $0x48] sm:$0xff]
        %v3324 = vld [vmem:[#allocation3 + $0x50] sm:$0xff]
        %v3325 = vld [vmem:[#allocation3 + $0x58] sm:$0xff]
        %v3326 = vld [vmem:[#allocation3 + $0x60] sm:$0xff]
        %v3327 = vld [vmem:[#allocation3 + $0x68] sm:$0xff]
        %v3328 = vld [vmem:[#allocation3 + $0x70] sm:$0xff]
        %v3329 = vld [vmem:[#allocation3 + $0x78] sm:$0xff]
        %3346 = vrot.lane.b32.xlu0 %v3314, 80
        %v3347 = vpop.permute.xlu0 %3346
        %3348 = vrot.lane.b32.xlu0 %v3315, 80
        %v3349 = vpop.permute.xlu0 %3348
        %3350 = vrot.lane.b32.xlu0 %v3316, 80
        %v3351 = vpop.permute.xlu0 %3350
        %3352 = vrot.lane.b32.xlu0 %v3317, 80
        %v3353 = vpop.permute.xlu0 %3352
        %3354 = vrot.lane.b32.xlu0 %v3318, 80
        %v3355 = vpop.permute.xlu0 %3354
        %3356 = vrot.lane.b32.xlu0 %v3319, 80
        %v3357 = vpop.permute.xlu0 %3356
        %3358 = vrot.lane.b32.xlu0 %v3320, 80
        %v3359 = vpop.permute.xlu0 %3358
        %3360 = vrot.lane.b32.xlu0 %v3321, 80
        %v3361 = vpop.permute.xlu0 %3360
        %3362 = vrot.lane.b32.xlu0 %v3322, 80
        %v3363 = vpop.permute.xlu0 %3362
        %3364 = vrot.lane.b32.xlu0 %v3323, 80
        %v3365 = vpop.permute.xlu0 %3364
        %3366 = vrot.lane.b32.xlu0 %v3324, 80
        %v3367 = vpop.permute.xlu0 %3366
        %3368 = vrot.lane.b32.xlu0 %v3325, 80
        %v3369 = vpop.permute.xlu0 %3368
        %3370 = vrot.lane.b32.xlu0 %v3326, 80
        %v3371 = vpop.permute.xlu0 %3370
        %3372 = vrot.lane.b32.xlu0 %v3327, 80
        %v3373 = vpop.permute.xlu0 %3372
        %3374 = vrot.lane.b32.xlu0 %v3328, 80
        %v3375 = vpop.permute.xlu0 %3374
        %3376 = vrot.lane.b32.xlu0 %v3329, 80
        %v3377 = vpop.permute.xlu0 %3376
        %3394 = vmatprep.subr.mxu0 0.0
        %3395 = vmatpush1.msra.mxu0 %v3377
        %3396 = vmatprep.subr.mxu0 0.0
        %3397 = vmatpush1.msra.mxu0 %v3375
        %3398 = vmatprep.subr.mxu0 0.0
        %3399 = vmatpush1.msra.mxu0 %v3373
        %3400 = vmatprep.subr.mxu0 0.0
        %3401 = vmatpush1.msra.mxu0 %v3371
        %3402 = vmatprep.subr.mxu0 0.0
        %3403 = vmatpush1.msra.mxu0 %v3369
        %3404 = vmatprep.subr.mxu0 0.0
        %3405 = vmatpush1.msra.mxu0 %v3367
        %3406 = vmatprep.subr.mxu0 0.0
        %3407 = vmatpush1.msra.mxu0 %v3365
        %3408 = vmatprep.subr.mxu0 0.0
        %3409 = vmatpush1.msra.mxu0 %v3363
        %3410 = vmatprep.subr.mxu0 0.0
        %3411 = vmatpush1.msra.mxu0 %v3361
        %3412 = vmatprep.subr.mxu0 0.0
        %3413 = vmatpush1.msra.mxu0 %v3359
        %3414 = vmatprep.subr.mxu0 0.0
        %3415 = vmatpush1.msra.mxu0 %v3357
        %3416 = vmatprep.subr.mxu0 0.0
        %3417 = vmatpush1.msra.mxu0 %v3355
        %3418 = vmatprep.subr.mxu0 0.0
        %3419 = vmatpush1.msra.mxu0 %v3353
        %3420 = vmatprep.subr.mxu0 0.0
        %3421 = vmatpush1.msra.mxu0 %v3351
        %3422 = vmatprep.subr.mxu0 0.0
        %3423 = vmatpush1.msra.mxu0 %v3349
        %3424 = vmatprep.subr.mxu0 0.0
        %3425 = vmatpush1.msra.mxu0 %v3347
        %3426 = vmatprep.subr.mxu0 0.0
        %3427 = vmatpush2.msra.mxu0 0.0
        %3428 = vmatprep.subr.mxu0 0.0
        %3429 = vmatpush2.msra.mxu0 0.0
        %3430 = vmatprep.subr.mxu0 0.0
        %3431 = vmatpush2.msra.mxu0 0.0
        %3432 = vmatprep.subr.mxu0 0.0
        %3433 = vmatpush2.msra.mxu0 0.0
        %3434 = vmatprep.subr.mxu0 0.0
        %3435 = vmatpush2.msra.mxu0 0.0
        %3436 = vmatprep.subr.mxu0 0.0
        %3437 = vmatpush2.msra.mxu0 0.0
        %3438 = vmatprep.subr.mxu0 0.0
        %3439 = vmatpush2.msra.mxu0 0.0
        %3440 = vmatprep.subr.mxu0 0.0
        %3441 = vmatpush2.msra.mxu0 0.0
        %3442 = vmatprep.subr.mxu0 0.0
        %3443 = vmatpush2.msra.mxu0 0.0
        %3444 = vmatprep.subr.mxu0 0.0
        %3445 = vmatpush2.msra.mxu0 0.0
        %3446 = vmatprep.subr.mxu0 0.0
        %3447 = vmatpush2.msra.mxu0 0.0
        %3448 = vmatprep.subr.mxu0 0.0
        %3449 = vmatpush2.msra.mxu0 0.0
        %3450 = vmatprep.subr.mxu0 0.0
        %3451 = vmatpush2.msra.mxu0 0.0
        %3452 = vmatprep.subr.mxu0 0.0
        %3453 = vmatpush2.msra.mxu0 0.0
        %3454 = vmatprep.subr.mxu0 0.0
        %3455 = vmatpush2.msra.mxu0 0.0
        %3456 = vmatprep.subr.mxu0 0.0
        %3457 = vmatpush2.msra.mxu0 0.0
        %3458 = vmatprep.mubr.f32.mxu0 0.0
        %3459 = vmatmul.mubr.f32.gmra.mxu0 %v3235
        %v3460 = vpop.f32.mrf.mxu0
        %v3461 = vadd.f32 0.0, %v3460
        %v3462 = vpop.f32.mrf.mxu0
        %3463 = vmatprep.mubr.f32.mxu0 0.0
        %3464 = vmatmul.mubr.f32.gmra.mxu0 %v3237
        %v3465 = vpop.f32.mrf.mxu0
        %v3466 = vadd.f32 0.0, %v3465
        %v3467 = vpop.f32.mrf.mxu0
        %3468 = vmatprep.mubr.f32.mxu0 0.0
        %3469 = vmatmul.mubr.f32.gmra.mxu0 %v3239
        %v3470 = vpop.f32.mrf.mxu0
        %v3471 = vadd.f32 0.0, %v3470
        %v3472 = vpop.f32.mrf.mxu0
        %3473 = vmatprep.mubr.f32.mxu0 0.0
        %3474 = vmatmul.mubr.f32.gmra.mxu0 %v3241
        %v3475 = vpop.f32.mrf.mxu0
        %v3476 = vadd.f32 0.0, %v3475
        %v3477 = vpop.f32.mrf.mxu0
        %3478 = vmatprep.mubr.f32.mxu0 0.0
        %3479 = vmatmul.mubr.f32.gmra.mxu0 %v3243
        %v3480 = vpop.f32.mrf.mxu0
        %v3481 = vadd.f32 0.0, %v3480
        %v3482 = vpop.f32.mrf.mxu0
        %3483 = vmatprep.mubr.f32.mxu0 0.0
        %3484 = vmatmul.mubr.f32.gmra.mxu0 %v3245
        %v3485 = vpop.f32.mrf.mxu0
        %v3486 = vadd.f32 0.0, %v3485
        %v3487 = vpop.f32.mrf.mxu0
        %3488 = vmatprep.mubr.f32.mxu0 0.0
        %3489 = vmatmul.mubr.f32.gmra.mxu0 %v3247
        %v3490 = vpop.f32.mrf.mxu0
        %v3491 = vadd.f32 0.0, %v3490
        %v3492 = vpop.f32.mrf.mxu0
        %3493 = vmatprep.mubr.f32.mxu0 0.0
        %3494 = vmatmul.mubr.f32.gmra.mxu0 %v3249
        %v3495 = vpop.f32.mrf.mxu0
        %v3496 = vadd.f32 0.0, %v3495
        %v3497 = vpop.f32.mrf.mxu0
        %3498 = vmatprep.mubr.f32.mxu0 0.0
        %3499 = vmatmul.mubr.f32.gmra.mxu0 %v3251
        %v3500 = vpop.f32.mrf.mxu0
        %v3501 = vadd.f32 0.0, %v3500
        %v3502 = vpop.f32.mrf.mxu0
        %3503 = vmatprep.mubr.f32.mxu0 0.0
        %3504 = vmatmul.mubr.f32.gmra.mxu0 %v3253
        %v3505 = vpop.f32.mrf.mxu0
        %v3506 = vadd.f32 0.0, %v3505
        %v3507 = vpop.f32.mrf.mxu0
        %3508 = vmatprep.mubr.f32.mxu0 0.0
        %3509 = vmatmul.mubr.f32.gmra.mxu0 %v3255
        %v3510 = vpop.f32.mrf.mxu0
        %v3511 = vadd.f32 0.0, %v3510
        %v3512 = vpop.f32.mrf.mxu0
        %3513 = vmatprep.mubr.f32.mxu0 0.0
        %3514 = vmatmul.mubr.f32.gmra.mxu0 %v3257
        %v3515 = vpop.f32.mrf.mxu0
        %v3516 = vadd.f32 0.0, %v3515
        %v3517 = vpop.f32.mrf.mxu0
        %3518 = vmatprep.mubr.f32.mxu0 0.0
        %3519 = vmatmul.mubr.f32.gmra.mxu0 %v3259
        %v3520 = vpop.f32.mrf.mxu0
        %v3521 = vadd.f32 0.0, %v3520
        %v3522 = vpop.f32.mrf.mxu0
        %3523 = vmatprep.mubr.f32.mxu0 0.0
        %3524 = vmatmul.mubr.f32.gmra.mxu0 %v3261
        %v3525 = vpop.f32.mrf.mxu0
        %v3526 = vadd.f32 0.0, %v3525
        %v3527 = vpop.f32.mrf.mxu0
        %3528 = vmatprep.mubr.f32.mxu0 0.0
        %3529 = vmatmul.mubr.f32.gmra.mxu0 %v3263
        %v3530 = vpop.f32.mrf.mxu0
        %v3531 = vadd.f32 0.0, %v3530
        %v3532 = vpop.f32.mrf.mxu0
        %3533 = vmatprep.mubr.f32.mxu0 0.0
        %3534 = vmatmul.mubr.f32.gmra.mxu0 %v3265
        %v3535 = vpop.f32.mrf.mxu0
        %v3536 = vadd.f32 0.0, %v3535
        %v3537 = vpop.f32.mrf.mxu0
        %3538 = vdwg.mxu0
        %v3539 = vmul.f32 %v3461, %v3298
        %v3540 = vmul.f32 %v3466, %v3299
        %v3541 = vmul.f32 %v3471, %v3300
        %v3542 = vmul.f32 %v3476, %v3301
        %v3543 = vmul.f32 %v3481, %v3302
        %v3544 = vmul.f32 %v3486, %v3303
        %v3545 = vmul.f32 %v3491, %v3304
        %v3546 = vmul.f32 %v3496, %v3305
        %v3547 = vmul.f32 %v3501, %v3306
        %v3548 = vmul.f32 %v3506, %v3307
        %v3549 = vmul.f32 %v3511, %v3308
        %v3550 = vmul.f32 %v3516, %v3309
        %v3551 = vmul.f32 %v3521, %v3310
        %v3552 = vmul.f32 %v3526, %v3311
        %v3553 = vmul.f32 %v3531, %v3312
        %v3554 = vmul.f32 %v3536, %v3313
        %3571 = vrot.lane.b32.xlu0 %v3539, 48
        %v3572 = vpop.permute.xlu0 %3571
        %3573 = vrot.lane.b32.xlu0 %v3540, 48
        %v3574 = vpop.permute.xlu0 %3573
        %3575 = vrot.lane.b32.xlu0 %v3541, 48
        %v3576 = vpop.permute.xlu0 %3575
        %3577 = vrot.lane.b32.xlu0 %v3542, 48
        %v3578 = vpop.permute.xlu0 %3577
        %3579 = vrot.lane.b32.xlu0 %v3543, 48
        %v3580 = vpop.permute.xlu0 %3579
        %3581 = vrot.lane.b32.xlu0 %v3544, 48
        %v3582 = vpop.permute.xlu0 %3581
        %3583 = vrot.lane.b32.xlu0 %v3545, 48
        %v3584 = vpop.permute.xlu0 %3583
        %3585 = vrot.lane.b32.xlu0 %v3546, 48
        %v3586 = vpop.permute.xlu0 %3585
        %3587 = vrot.lane.b32.xlu0 %v3547, 48
        %v3588 = vpop.permute.xlu0 %3587
        %3589 = vrot.lane.b32.xlu0 %v3548, 48
        %v3590 = vpop.permute.xlu0 %3589
        %3591 = vrot.lane.b32.xlu0 %v3549, 48
        %v3592 = vpop.permute.xlu0 %3591
        %3593 = vrot.lane.b32.xlu0 %v3550, 48
        %v3594 = vpop.permute.xlu0 %3593
        %3595 = vrot.lane.b32.xlu0 %v3551, 48
        %v3596 = vpop.permute.xlu0 %3595
        %3597 = vrot.lane.b32.xlu0 %v3552, 48
        %v3598 = vpop.permute.xlu0 %3597
        %3599 = vrot.lane.b32.xlu0 %v3553, 48
        %v3600 = vpop.permute.xlu0 %3599
        %3601 = vrot.lane.b32.xlu0 %v3554, 48
        %v3602 = vpop.permute.xlu0 %3601
        %vm3619 = vcmask 523648
        %3620 = vst.msk [vmem:[#allocation5] sm:$0xff] %vm3619, %v3572
        %3621 = vst.msk [vmem:[#allocation5 + $0x8] sm:$0xff] %vm3619, %v3574
        %3622 = vst.msk [vmem:[#allocation5 + $0x10] sm:$0xff] %vm3619, %v3576
        %3623 = vst.msk [vmem:[#allocation5 + $0x18] sm:$0xff] %vm3619, %v3578
        %3624 = vst.msk [vmem:[#allocation5 + $0x20] sm:$0xff] %vm3619, %v3580
        %3625 = vst.msk [vmem:[#allocation5 + $0x28] sm:$0xff] %vm3619, %v3582
        %3626 = vst.msk [vmem:[#allocation5 + $0x30] sm:$0xff] %vm3619, %v3584
        %3627 = vst.msk [vmem:[#allocation5 + $0x38] sm:$0xff] %vm3619, %v3586
        %3628 = vst.msk [vmem:[#allocation5 + $0x40] sm:$0xff] %vm3619, %v3588
        %3629 = vst.msk [vmem:[#allocation5 + $0x48] sm:$0xff] %vm3619, %v3590
        %3630 = vst.msk [vmem:[#allocation5 + $0x50] sm:$0xff] %vm3619, %v3592
        %3631 = vst.msk [vmem:[#allocation5 + $0x58] sm:$0xff] %vm3619, %v3594
        %3632 = vst.msk [vmem:[#allocation5 + $0x60] sm:$0xff] %vm3619, %v3596
        %3633 = vst.msk [vmem:[#allocation5 + $0x68] sm:$0xff] %vm3619, %v3598
        %3634 = vst.msk [vmem:[#allocation5 + $0x70] sm:$0xff] %vm3619, %v3600
        %3635 = vst.msk [vmem:[#allocation5 + $0x78] sm:$0xff] %vm3619, %v3602
        %v3636 = vld [vmem:[#allocation4] sm:$0xff]
        %v3637 = vld [vmem:[#allocation4 + $0x8] sm:$0xff]
        %v3638 = vld [vmem:[#allocation4 + $0x10] sm:$0xff]
        %v3639 = vld [vmem:[#allocation4 + $0x18] sm:$0xff]
        %v3640 = vld [vmem:[#allocation4 + $0x20] sm:$0xff]
        %v3641 = vld [vmem:[#allocation4 + $0x28] sm:$0xff]
        %v3642 = vld [vmem:[#allocation4 + $0x30] sm:$0xff]
        %v3643 = vld [vmem:[#allocation4 + $0x38] sm:$0xff]
        %v3644 = vld [vmem:[#allocation4 + $0x40] sm:$0xff]
        %v3645 = vld [vmem:[#allocation4 + $0x48] sm:$0xff]
        %v3646 = vld [vmem:[#allocation4 + $0x50] sm:$0xff]
        %v3647 = vld [vmem:[#allocation4 + $0x58] sm:$0xff]
        %v3648 = vld [vmem:[#allocation4 + $0x60] sm:$0xff]
        %v3649 = vld [vmem:[#allocation4 + $0x68] sm:$0xff]
        %v3650 = vld [vmem:[#allocation4 + $0x70] sm:$0xff]
        %v3651 = vld [vmem:[#allocation4 + $0x78] sm:$0xff]
        %s3652 = scalar_lea.vmem [#allocation2], 64
        %v3653 = vld [vmem:[%s3652] sm:$0xff]
        %v3654 = vld [vmem:[%s3652 + $0x8] sm:$0xff]
        %3671 = vrot.lane.b32.xlu0 %v3636, 64
        %v3672 = vpop.permute.xlu0 %3671
        %3673 = vrot.lane.b32.xlu0 %v3637, 64
        %v3674 = vpop.permute.xlu0 %3673
        %3675 = vrot.lane.b32.xlu0 %v3638, 64
        %v3676 = vpop.permute.xlu0 %3675
        %3677 = vrot.lane.b32.xlu0 %v3639, 64
        %v3678 = vpop.permute.xlu0 %3677
        %3679 = vrot.lane.b32.xlu0 %v3640, 64
        %v3680 = vpop.permute.xlu0 %3679
        %3681 = vrot.lane.b32.xlu0 %v3641, 64
        %v3682 = vpop.permute.xlu0 %3681
        %3683 = vrot.lane.b32.xlu0 %v3642, 64
        %v3684 = vpop.permute.xlu0 %3683
        %3685 = vrot.lane.b32.xlu0 %v3643, 64
        %v3686 = vpop.permute.xlu0 %3685
        %3687 = vrot.lane.b32.xlu0 %v3644, 64
        %v3688 = vpop.permute.xlu0 %3687
        %3689 = vrot.lane.b32.xlu0 %v3645, 64
        %v3690 = vpop.permute.xlu0 %3689
        %3691 = vrot.lane.b32.xlu0 %v3646, 64
        %v3692 = vpop.permute.xlu0 %3691
        %3693 = vrot.lane.b32.xlu0 %v3647, 64
        %v3694 = vpop.permute.xlu0 %3693
        %3695 = vrot.lane.b32.xlu0 %v3648, 64
        %v3696 = vpop.permute.xlu0 %3695
        %3697 = vrot.lane.b32.xlu0 %v3649, 64
        %v3698 = vpop.permute.xlu0 %3697
        %3699 = vrot.lane.b32.xlu0 %v3650, 64
        %v3700 = vpop.permute.xlu0 %3699
        %3701 = vrot.lane.b32.xlu0 %v3651, 64
        %v3702 = vpop.permute.xlu0 %3701
        %v3703 = vsel %vm1039, %v3672, 0
        %v3705 = vsel %vm1039, %v3674, 0
        %v3707 = vsel %vm1039, %v3676, 0
        %v3709 = vsel %vm1039, %v3678, 0
        %v3711 = vsel %vm1039, %v3680, 0
        %v3713 = vsel %vm1039, %v3682, 0
        %v3715 = vsel %vm1039, %v3684, 0
        %v3717 = vsel %vm1039, %v3686, 0
        %v3719 = vsel %vm1039, %v3688, 0
        %v3721 = vsel %vm1039, %v3690, 0
        %v3723 = vsel %vm1039, %v3692, 0
        %v3725 = vsel %vm1039, %v3694, 0
        %v3727 = vsel %vm1039, %v3696, 0
        %v3729 = vsel %vm1039, %v3698, 0
        %v3731 = vsel %vm1039, %v3700, 0
        %v3733 = vsel %vm1039, %v3702, 0
        %3735 = vmatprep.subr.mxu0 0.0
        %3736 = vmatpush1.msra.mxu0 0.0
        %3737 = vmatprep.subr.mxu0 0.0
        %3738 = vmatpush1.msra.mxu0 0.0
        %3739 = vmatprep.subr.mxu0 0.0
        %3740 = vmatpush1.msra.mxu0 0.0
        %3741 = vmatprep.subr.mxu0 0.0
        %3742 = vmatpush1.msra.mxu0 0.0
        %3743 = vmatprep.subr.mxu0 0.0
        %3744 = vmatpush1.msra.mxu0 0.0
        %3745 = vmatprep.subr.mxu0 0.0
        %3746 = vmatpush1.msra.mxu0 0.0
        %3747 = vmatprep.subr.mxu0 0.0
        %3748 = vmatpush1.msra.mxu0 0.0
        %3749 = vmatprep.subr.mxu0 0.0
        %3750 = vmatpush1.msra.mxu0 0.0
        %3751 = vmatprep.subr.mxu0 0.0
        %3752 = vmatpush1.msra.mxu0 0.0
        %3753 = vmatprep.subr.mxu0 0.0
        %3754 = vmatpush1.msra.mxu0 0.0
        %3755 = vmatprep.subr.mxu0 0.0
        %3756 = vmatpush1.msra.mxu0 0.0
        %3757 = vmatprep.subr.mxu0 0.0
        %3758 = vmatpush1.msra.mxu0 0.0
        %3759 = vmatprep.subr.mxu0 0.0
        %3760 = vmatpush1.msra.mxu0 0.0
        %3761 = vmatprep.subr.mxu0 0.0
        %3762 = vmatpush1.msra.mxu0 0.0
        %3763 = vmatprep.subr.mxu0 0.0
        %3764 = vmatpush1.msra.mxu0 %v3654
        %3765 = vmatprep.subr.mxu0 0.0
        %3766 = vmatpush1.msra.mxu0 %v3653
        %3767 = vmatprep.subr.mxu0 0.0
        %3768 = vmatpush2.msra.mxu0 0.0
        %3769 = vmatprep.subr.mxu0 0.0
        %3770 = vmatpush2.msra.mxu0 0.0
        %3771 = vmatprep.subr.mxu0 0.0
        %3772 = vmatpush2.msra.mxu0 0.0
        %3773 = vmatprep.subr.mxu0 0.0
        %3774 = vmatpush2.msra.mxu0 0.0
        %3775 = vmatprep.subr.mxu0 0.0
        %3776 = vmatpush2.msra.mxu0 0.0
        %3777 = vmatprep.subr.mxu0 0.0
        %3778 = vmatpush2.msra.mxu0 0.0
        %3779 = vmatprep.subr.mxu0 0.0
        %3780 = vmatpush2.msra.mxu0 0.0
        %3781 = vmatprep.subr.mxu0 0.0
        %3782 = vmatpush2.msra.mxu0 0.0
        %3783 = vmatprep.subr.mxu0 0.0
        %3784 = vmatpush2.msra.mxu0 0.0
        %3785 = vmatprep.subr.mxu0 0.0
        %3786 = vmatpush2.msra.mxu0 0.0
        %3787 = vmatprep.subr.mxu0 0.0
        %3788 = vmatpush2.msra.mxu0 0.0
        %3789 = vmatprep.subr.mxu0 0.0
        %3790 = vmatpush2.msra.mxu0 0.0
        %3791 = vmatprep.subr.mxu0 0.0
        %3792 = vmatpush2.msra.mxu0 0.0
        %3793 = vmatprep.subr.mxu0 0.0
        %3794 = vmatpush2.msra.mxu0 0.0
        %3795 = vmatprep.subr.mxu0 0.0
        %3796 = vmatpush2.msra.mxu0 0.0
        %3797 = vmatprep.subr.mxu0 0.0
        %3798 = vmatpush2.msra.mxu0 0.0
        %3799 = vmatprep.mubr.f32.mxu0 0.0
        %3800 = vmatmul.mubr.f32.gmra.mxu0 %v3703
        %v3801 = vpop.f32.mrf.mxu0
        %v3802 = vadd.f32 0.0, %v3801
        %v3803 = vpop.f32.mrf.mxu0
        %3804 = vmatprep.mubr.f32.mxu0 0.0
        %3805 = vmatmul.mubr.f32.gmra.mxu0 %v3705
        %v3806 = vpop.f32.mrf.mxu0
        %v3807 = vadd.f32 0.0, %v3806
        %v3808 = vpop.f32.mrf.mxu0
        %3809 = vmatprep.mubr.f32.mxu0 0.0
        %3810 = vmatmul.mubr.f32.gmra.mxu0 %v3707
        %v3811 = vpop.f32.mrf.mxu0
        %v3812 = vadd.f32 0.0, %v3811
        %v3813 = vpop.f32.mrf.mxu0
        %3814 = vmatprep.mubr.f32.mxu0 0.0
        %3815 = vmatmul.mubr.f32.gmra.mxu0 %v3709
        %v3816 = vpop.f32.mrf.mxu0
        %v3817 = vadd.f32 0.0, %v3816
        %v3818 = vpop.f32.mrf.mxu0
        %3819 = vmatprep.mubr.f32.mxu0 0.0
        %3820 = vmatmul.mubr.f32.gmra.mxu0 %v3711
        %v3821 = vpop.f32.mrf.mxu0
        %v3822 = vadd.f32 0.0, %v3821
        %v3823 = vpop.f32.mrf.mxu0
        %3824 = vmatprep.mubr.f32.mxu0 0.0
        %3825 = vmatmul.mubr.f32.gmra.mxu0 %v3713
        %v3826 = vpop.f32.mrf.mxu0
        %v3827 = vadd.f32 0.0, %v3826
        %v3828 = vpop.f32.mrf.mxu0
        %3829 = vmatprep.mubr.f32.mxu0 0.0
        %3830 = vmatmul.mubr.f32.gmra.mxu0 %v3715
        %v3831 = vpop.f32.mrf.mxu0
        %v3832 = vadd.f32 0.0, %v3831
        %v3833 = vpop.f32.mrf.mxu0
        %3834 = vmatprep.mubr.f32.mxu0 0.0
        %3835 = vmatmul.mubr.f32.gmra.mxu0 %v3717
        %v3836 = vpop.f32.mrf.mxu0
        %v3837 = vadd.f32 0.0, %v3836
        %v3838 = vpop.f32.mrf.mxu0
        %3839 = vmatprep.mubr.f32.mxu0 0.0
        %3840 = vmatmul.mubr.f32.gmra.mxu0 %v3719
        %v3841 = vpop.f32.mrf.mxu0
        %v3842 = vadd.f32 0.0, %v3841
        %v3843 = vpop.f32.mrf.mxu0
        %3844 = vmatprep.mubr.f32.mxu0 0.0
        %3845 = vmatmul.mubr.f32.gmra.mxu0 %v3721
        %v3846 = vpop.f32.mrf.mxu0
        %v3847 = vadd.f32 0.0, %v3846
        %v3848 = vpop.f32.mrf.mxu0
        %3849 = vmatprep.mubr.f32.mxu0 0.0
        %3850 = vmatmul.mubr.f32.gmra.mxu0 %v3723
        %v3851 = vpop.f32.mrf.mxu0
        %v3852 = vadd.f32 0.0, %v3851
        %v3853 = vpop.f32.mrf.mxu0
        %3854 = vmatprep.mubr.f32.mxu0 0.0
        %3855 = vmatmul.mubr.f32.gmra.mxu0 %v3725
        %v3856 = vpop.f32.mrf.mxu0
        %v3857 = vadd.f32 0.0, %v3856
        %v3858 = vpop.f32.mrf.mxu0
        %3859 = vmatprep.mubr.f32.mxu0 0.0
        %3860 = vmatmul.mubr.f32.gmra.mxu0 %v3727
        %v3861 = vpop.f32.mrf.mxu0
        %v3862 = vadd.f32 0.0, %v3861
        %v3863 = vpop.f32.mrf.mxu0
        %3864 = vmatprep.mubr.f32.mxu0 0.0
        %3865 = vmatmul.mubr.f32.gmra.mxu0 %v3729
        %v3866 = vpop.f32.mrf.mxu0
        %v3867 = vadd.f32 0.0, %v3866
        %v3868 = vpop.f32.mrf.mxu0
        %3869 = vmatprep.mubr.f32.mxu0 0.0
        %3870 = vmatmul.mubr.f32.gmra.mxu0 %v3731
        %v3871 = vpop.f32.mrf.mxu0
        %v3872 = vadd.f32 0.0, %v3871
        %v3873 = vpop.f32.mrf.mxu0
        %3874 = vmatprep.mubr.f32.mxu0 0.0
        %3875 = vmatmul.mubr.f32.gmra.mxu0 %v3733
        %v3876 = vpop.f32.mrf.mxu0
        %v3877 = vadd.f32 0.0, %v3876
        %v3878 = vpop.f32.mrf.mxu0
        %3879 = vdwg.mxu0
        %3880 = vmax.xlane.f32.xlu0 %v3802
        %v3881 = vpop.xlane.xlu0 %3880
        %3882 = vmax.xlane.f32.xlu0 %v3807
        %v3883 = vpop.xlane.xlu0 %3882
        %3884 = vmax.xlane.f32.xlu0 %v3812
        %v3885 = vpop.xlane.xlu0 %3884
        %3886 = vmax.xlane.f32.xlu0 %v3817
        %v3887 = vpop.xlane.xlu0 %3886
        %3888 = vmax.xlane.f32.xlu0 %v3822
        %v3889 = vpop.xlane.xlu0 %3888
        %3890 = vmax.xlane.f32.xlu0 %v3827
        %v3891 = vpop.xlane.xlu0 %3890
        %3892 = vmax.xlane.f32.xlu0 %v3832
        %v3893 = vpop.xlane.xlu0 %3892
        %3894 = vmax.xlane.f32.xlu0 %v3837
        %v3895 = vpop.xlane.xlu0 %3894
        %3896 = vmax.xlane.f32.xlu0 %v3842
        %v3897 = vpop.xlane.xlu0 %3896
        %3898 = vmax.xlane.f32.xlu0 %v3847
        %v3899 = vpop.xlane.xlu0 %3898
        %3900 = vmax.xlane.f32.xlu0 %v3852
        %v3901 = vpop.xlane.xlu0 %3900
        %3902 = vmax.xlane.f32.xlu0 %v3857
        %v3903 = vpop.xlane.xlu0 %3902
        %3904 = vmax.xlane.f32.xlu0 %v3862
        %v3905 = vpop.xlane.xlu0 %3904
        %3906 = vmax.xlane.f32.xlu0 %v3867
        %v3907 = vpop.xlane.xlu0 %3906
        %3908 = vmax.xlane.f32.xlu0 %v3872
        %v3909 = vpop.xlane.xlu0 %3908
        %3910 = vmax.xlane.f32.xlu0 %v3877
        %v3911 = vpop.xlane.xlu0 %3910
        %v3912 = vsub.f32 %v3802, %v3881
        %v3913 = vsub.f32 %v3807, %v3883
        %v3914 = vsub.f32 %v3812, %v3885
        %v3915 = vsub.f32 %v3817, %v3887
        %v3916 = vsub.f32 %v3822, %v3889
        %v3917 = vsub.f32 %v3827, %v3891
        %v3918 = vsub.f32 %v3832, %v3893
        %v3919 = vsub.f32 %v3837, %v3895
        %v3920 = vsub.f32 %v3842, %v3897
        %v3921 = vsub.f32 %v3847, %v3899
        %v3922 = vsub.f32 %v3852, %v3901
        %v3923 = vsub.f32 %v3857, %v3903
        %v3924 = vsub.f32 %v3862, %v3905
        %v3925 = vsub.f32 %v3867, %v3907
        %v3926 = vsub.f32 %v3872, %v3909
        %v3927 = vsub.f32 %v3877, %v3911
        %v3928 = vmul.f32 %v3912, 1.442695
        %v3929 = vpow.pop %v3928
        %v3930 = vmul.f32 %v3913, 1.442695
        %v3931 = vpow.pop %v3930
        %v3932 = vmul.f32 %v3914, 1.442695
        %v3933 = vpow.pop %v3932
        %v3934 = vmul.f32 %v3915, 1.442695
        %v3935 = vpow.pop %v3934
        %v3936 = vmul.f32 %v3916, 1.442695
        %v3937 = vpow.pop %v3936
        %v3938 = vmul.f32 %v3917, 1.442695
        %v3939 = vpow.pop %v3938
        %v3940 = vmul.f32 %v3918, 1.442695
        %v3941 = vpow.pop %v3940
        %v3942 = vmul.f32 %v3919, 1.442695
        %v3943 = vpow.pop %v3942
        %v3944 = vmul.f32 %v3920, 1.442695
        %v3945 = vpow.pop %v3944
        %v3946 = vmul.f32 %v3921, 1.442695
        %v3947 = vpow.pop %v3946
        %v3948 = vmul.f32 %v3922, 1.442695
        %v3949 = vpow.pop %v3948
        %v3950 = vmul.f32 %v3923, 1.442695
        %v3951 = vpow.pop %v3950
        %v3952 = vmul.f32 %v3924, 1.442695
        %v3953 = vpow.pop %v3952
        %v3954 = vmul.f32 %v3925, 1.442695
        %v3955 = vpow.pop %v3954
        %v3956 = vmul.f32 %v3926, 1.442695
        %v3957 = vpow.pop %v3956
        %v3958 = vmul.f32 %v3927, 1.442695
        %v3959 = vpow.pop %v3958
        %3960 = vadd.xlane.f32.xlu0 %v3929
        %v3961 = vpop.xlane.xlu0 %3960
        %3962 = vadd.xlane.f32.xlu0 %v3931
        %v3963 = vpop.xlane.xlu0 %3962
        %3964 = vadd.xlane.f32.xlu0 %v3933
        %v3965 = vpop.xlane.xlu0 %3964
        %3966 = vadd.xlane.f32.xlu0 %v3935
        %v3967 = vpop.xlane.xlu0 %3966
        %3968 = vadd.xlane.f32.xlu0 %v3937
        %v3969 = vpop.xlane.xlu0 %3968
        %3970 = vadd.xlane.f32.xlu0 %v3939
        %v3971 = vpop.xlane.xlu0 %3970
        %3972 = vadd.xlane.f32.xlu0 %v3941
        %v3973 = vpop.xlane.xlu0 %3972
        %3974 = vadd.xlane.f32.xlu0 %v3943
        %v3975 = vpop.xlane.xlu0 %3974
        %3976 = vadd.xlane.f32.xlu0 %v3945
        %v3977 = vpop.xlane.xlu0 %3976
        %3978 = vadd.xlane.f32.xlu0 %v3947
        %v3979 = vpop.xlane.xlu0 %3978
        %3980 = vadd.xlane.f32.xlu0 %v3949
        %v3981 = vpop.xlane.xlu0 %3980
        %3982 = vadd.xlane.f32.xlu0 %v3951
        %v3983 = vpop.xlane.xlu0 %3982
        %3984 = vadd.xlane.f32.xlu0 %v3953
        %v3985 = vpop.xlane.xlu0 %3984
        %3986 = vadd.xlane.f32.xlu0 %v3955
        %v3987 = vpop.xlane.xlu0 %3986
        %3988 = vadd.xlane.f32.xlu0 %v3957
        %v3989 = vpop.xlane.xlu0 %3988
        %3990 = vadd.xlane.f32.xlu0 %v3959
        %v3991 = vpop.xlane.xlu0 %3990
        %v3992 = vrcp.pop %v3961
        %v3993 = vrcp.pop %v3963
        %v3994 = vrcp.pop %v3965
        %v3995 = vrcp.pop %v3967
        %v3996 = vrcp.pop %v3969
        %v3997 = vrcp.pop %v3971
        %v3998 = vrcp.pop %v3973
        %v3999 = vrcp.pop %v3975
        %v4000 = vrcp.pop %v3977
        %v4001 = vrcp.pop %v3979
        %v4002 = vrcp.pop %v3981
        %v4003 = vrcp.pop %v3983
        %v4004 = vrcp.pop %v3985
        %v4005 = vrcp.pop %v3987
        %v4006 = vrcp.pop %v3989
        %v4007 = vrcp.pop %v3991
        %v4008 = vld [vmem:[#allocation3] sm:$0xff]
        %v4009 = vld [vmem:[#allocation3 + $0x8] sm:$0xff]
        %v4010 = vld [vmem:[#allocation3 + $0x10] sm:$0xff]
        %v4011 = vld [vmem:[#allocation3 + $0x18] sm:$0xff]
        %v4012 = vld [vmem:[#allocation3 + $0x20] sm:$0xff]
        %v4013 = vld [vmem:[#allocation3 + $0x28] sm:$0xff]
        %v4014 = vld [vmem:[#allocation3 + $0x30] sm:$0xff]
        %v4015 = vld [vmem:[#allocation3 + $0x38] sm:$0xff]
        %v4016 = vld [vmem:[#allocation3 + $0x40] sm:$0xff]
        %v4017 = vld [vmem:[#allocation3 + $0x48] sm:$0xff]
        %v4018 = vld [vmem:[#allocation3 + $0x50] sm:$0xff]
        %v4019 = vld [vmem:[#allocation3 + $0x58] sm:$0xff]
        %v4020 = vld [vmem:[#allocation3 + $0x60] sm:$0xff]
        %v4021 = vld [vmem:[#allocation3 + $0x68] sm:$0xff]
        %v4022 = vld [vmem:[#allocation3 + $0x70] sm:$0xff]
        %v4023 = vld [vmem:[#allocation3 + $0x78] sm:$0xff]
        %4040 = vrot.lane.b32.xlu0 %v4008, 64
        %v4041 = vpop.permute.xlu0 %4040
        %4042 = vrot.lane.b32.xlu0 %v4009, 64
        %v4043 = vpop.permute.xlu0 %4042
        %4044 = vrot.lane.b32.xlu0 %v4010, 64
        %v4045 = vpop.permute.xlu0 %4044
        %4046 = vrot.lane.b32.xlu0 %v4011, 64
        %v4047 = vpop.permute.xlu0 %4046
        %4048 = vrot.lane.b32.xlu0 %v4012, 64
        %v4049 = vpop.permute.xlu0 %4048
        %4050 = vrot.lane.b32.xlu0 %v4013, 64
        %v4051 = vpop.permute.xlu0 %4050
        %4052 = vrot.lane.b32.xlu0 %v4014, 64
        %v4053 = vpop.permute.xlu0 %4052
        %4054 = vrot.lane.b32.xlu0 %v4015, 64
        %v4055 = vpop.permute.xlu0 %4054
        %4056 = vrot.lane.b32.xlu0 %v4016, 64
        %v4057 = vpop.permute.xlu0 %4056
        %4058 = vrot.lane.b32.xlu0 %v4017, 64
        %v4059 = vpop.permute.xlu0 %4058
        %4060 = vrot.lane.b32.xlu0 %v4018, 64
        %v4061 = vpop.permute.xlu0 %4060
        %4062 = vrot.lane.b32.xlu0 %v4019, 64
        %v4063 = vpop.permute.xlu0 %4062
        %4064 = vrot.lane.b32.xlu0 %v4020, 64
        %v4065 = vpop.permute.xlu0 %4064
        %4066 = vrot.lane.b32.xlu0 %v4021, 64
        %v4067 = vpop.permute.xlu0 %4066
        %4068 = vrot.lane.b32.xlu0 %v4022, 64
        %v4069 = vpop.permute.xlu0 %4068
        %4070 = vrot.lane.b32.xlu0 %v4023, 64
        %v4071 = vpop.permute.xlu0 %4070
        %4088 = vmatprep.subr.mxu0 0.0
        %4089 = vmatpush1.msra.mxu0 %v4071
        %4090 = vmatprep.subr.mxu0 0.0
        %4091 = vmatpush1.msra.mxu0 %v4069
        %4092 = vmatprep.subr.mxu0 0.0
        %4093 = vmatpush1.msra.mxu0 %v4067
        %4094 = vmatprep.subr.mxu0 0.0
        %4095 = vmatpush1.msra.mxu0 %v4065
        %4096 = vmatprep.subr.mxu0 0.0
        %4097 = vmatpush1.msra.mxu0 %v4063
        %4098 = vmatprep.subr.mxu0 0.0
        %4099 = vmatpush1.msra.mxu0 %v4061
        %4100 = vmatprep.subr.mxu0 0.0
        %4101 = vmatpush1.msra.mxu0 %v4059
        %4102 = vmatprep.subr.mxu0 0.0
        %4103 = vmatpush1.msra.mxu0 %v4057
        %4104 = vmatprep.subr.mxu0 0.0
        %4105 = vmatpush1.msra.mxu0 %v4055
        %4106 = vmatprep.subr.mxu0 0.0
        %4107 = vmatpush1.msra.mxu0 %v4053
        %4108 = vmatprep.subr.mxu0 0.0
        %4109 = vmatpush1.msra.mxu0 %v4051
        %4110 = vmatprep.subr.mxu0 0.0
        %4111 = vmatpush1.msra.mxu0 %v4049
        %4112 = vmatprep.subr.mxu0 0.0
        %4113 = vmatpush1.msra.mxu0 %v4047
        %4114 = vmatprep.subr.mxu0 0.0
        %4115 = vmatpush1.msra.mxu0 %v4045
        %4116 = vmatprep.subr.mxu0 0.0
        %4117 = vmatpush1.msra.mxu0 %v4043
        %4118 = vmatprep.subr.mxu0 0.0
        %4119 = vmatpush1.msra.mxu0 %v4041
        %4120 = vmatprep.subr.mxu0 0.0
        %4121 = vmatpush2.msra.mxu0 0.0
        %4122 = vmatprep.subr.mxu0 0.0
        %4123 = vmatpush2.msra.mxu0 0.0
        %4124 = vmatprep.subr.mxu0 0.0
        %4125 = vmatpush2.msra.mxu0 0.0
        %4126 = vmatprep.subr.mxu0 0.0
        %4127 = vmatpush2.msra.mxu0 0.0
        %4128 = vmatprep.subr.mxu0 0.0
        %4129 = vmatpush2.msra.mxu0 0.0
        %4130 = vmatprep.subr.mxu0 0.0
        %4131 = vmatpush2.msra.mxu0 0.0
        %4132 = vmatprep.subr.mxu0 0.0
        %4133 = vmatpush2.msra.mxu0 0.0
        %4134 = vmatprep.subr.mxu0 0.0
        %4135 = vmatpush2.msra.mxu0 0.0
        %4136 = vmatprep.subr.mxu0 0.0
        %4137 = vmatpush2.msra.mxu0 0.0
        %4138 = vmatprep.subr.mxu0 0.0
        %4139 = vmatpush2.msra.mxu0 0.0
        %4140 = vmatprep.subr.mxu0 0.0
        %4141 = vmatpush2.msra.mxu0 0.0
        %4142 = vmatprep.subr.mxu0 0.0
        %4143 = vmatpush2.msra.mxu0 0.0
        %4144 = vmatprep.subr.mxu0 0.0
        %4145 = vmatpush2.msra.mxu0 0.0
        %4146 = vmatprep.subr.mxu0 0.0
        %4147 = vmatpush2.msra.mxu0 0.0
        %4148 = vmatprep.subr.mxu0 0.0
        %4149 = vmatpush2.msra.mxu0 0.0
        %4150 = vmatprep.subr.mxu0 0.0
        %4151 = vmatpush2.msra.mxu0 0.0
        %4152 = vmatprep.mubr.f32.mxu0 0.0
        %4153 = vmatmul.mubr.f32.gmra.mxu0 %v3929
        %v4154 = vpop.f32.mrf.mxu0
        %v4155 = vadd.f32 0.0, %v4154
        %v4156 = vpop.f32.mrf.mxu0
        %4157 = vmatprep.mubr.f32.mxu0 0.0
        %4158 = vmatmul.mubr.f32.gmra.mxu0 %v3931
        %v4159 = vpop.f32.mrf.mxu0
        %v4160 = vadd.f32 0.0, %v4159
        %v4161 = vpop.f32.mrf.mxu0
        %4162 = vmatprep.mubr.f32.mxu0 0.0
        %4163 = vmatmul.mubr.f32.gmra.mxu0 %v3933
        %v4164 = vpop.f32.mrf.mxu0
        %v4165 = vadd.f32 0.0, %v4164
        %v4166 = vpop.f32.mrf.mxu0
        %4167 = vmatprep.mubr.f32.mxu0 0.0
        %4168 = vmatmul.mubr.f32.gmra.mxu0 %v3935
        %v4169 = vpop.f32.mrf.mxu0
        %v4170 = vadd.f32 0.0, %v4169
        %v4171 = vpop.f32.mrf.mxu0
        %4172 = vmatprep.mubr.f32.mxu0 0.0
        %4173 = vmatmul.mubr.f32.gmra.mxu0 %v3937
        %v4174 = vpop.f32.mrf.mxu0
        %v4175 = vadd.f32 0.0, %v4174
        %v4176 = vpop.f32.mrf.mxu0
        %4177 = vmatprep.mubr.f32.mxu0 0.0
        %4178 = vmatmul.mubr.f32.gmra.mxu0 %v3939
        %v4179 = vpop.f32.mrf.mxu0
        %v4180 = vadd.f32 0.0, %v4179
        %v4181 = vpop.f32.mrf.mxu0
        %4182 = vmatprep.mubr.f32.mxu0 0.0
        %4183 = vmatmul.mubr.f32.gmra.mxu0 %v3941
        %v4184 = vpop.f32.mrf.mxu0
        %v4185 = vadd.f32 0.0, %v4184
        %v4186 = vpop.f32.mrf.mxu0
        %4187 = vmatprep.mubr.f32.mxu0 0.0
        %4188 = vmatmul.mubr.f32.gmra.mxu0 %v3943
        %v4189 = vpop.f32.mrf.mxu0
        %v4190 = vadd.f32 0.0, %v4189
        %v4191 = vpop.f32.mrf.mxu0
        %4192 = vmatprep.mubr.f32.mxu0 0.0
        %4193 = vmatmul.mubr.f32.gmra.mxu0 %v3945
        %v4194 = vpop.f32.mrf.mxu0
        %v4195 = vadd.f32 0.0, %v4194
        %v4196 = vpop.f32.mrf.mxu0
        %4197 = vmatprep.mubr.f32.mxu0 0.0
        %4198 = vmatmul.mubr.f32.gmra.mxu0 %v3947
        %v4199 = vpop.f32.mrf.mxu0
        %v4200 = vadd.f32 0.0, %v4199
        %v4201 = vpop.f32.mrf.mxu0
        %4202 = vmatprep.mubr.f32.mxu0 0.0
        %4203 = vmatmul.mubr.f32.gmra.mxu0 %v3949
        %v4204 = vpop.f32.mrf.mxu0
        %v4205 = vadd.f32 0.0, %v4204
        %v4206 = vpop.f32.mrf.mxu0
        %4207 = vmatprep.mubr.f32.mxu0 0.0
        %4208 = vmatmul.mubr.f32.gmra.mxu0 %v3951
        %v4209 = vpop.f32.mrf.mxu0
        %v4210 = vadd.f32 0.0, %v4209
        %v4211 = vpop.f32.mrf.mxu0
        %4212 = vmatprep.mubr.f32.mxu0 0.0
        %4213 = vmatmul.mubr.f32.gmra.mxu0 %v3953
        %v4214 = vpop.f32.mrf.mxu0
        %v4215 = vadd.f32 0.0, %v4214
        %v4216 = vpop.f32.mrf.mxu0
        %4217 = vmatprep.mubr.f32.mxu0 0.0
        %4218 = vmatmul.mubr.f32.gmra.mxu0 %v3955
        %v4219 = vpop.f32.mrf.mxu0
        %v4220 = vadd.f32 0.0, %v4219
        %v4221 = vpop.f32.mrf.mxu0
        %4222 = vmatprep.mubr.f32.mxu0 0.0
        %4223 = vmatmul.mubr.f32.gmra.mxu0 %v3957
        %v4224 = vpop.f32.mrf.mxu0
        %v4225 = vadd.f32 0.0, %v4224
        %v4226 = vpop.f32.mrf.mxu0
        %4227 = vmatprep.mubr.f32.mxu0 0.0
        %4228 = vmatmul.mubr.f32.gmra.mxu0 %v3959
        %v4229 = vpop.f32.mrf.mxu0
        %v4230 = vadd.f32 0.0, %v4229
        %v4231 = vpop.f32.mrf.mxu0
        %4232 = vdwg.mxu0
        %v4233 = vmul.f32 %v4155, %v3992
        %v4234 = vmul.f32 %v4160, %v3993
        %v4235 = vmul.f32 %v4165, %v3994
        %v4236 = vmul.f32 %v4170, %v3995
        %v4237 = vmul.f32 %v4175, %v3996
        %v4238 = vmul.f32 %v4180, %v3997
        %v4239 = vmul.f32 %v4185, %v3998
        %v4240 = vmul.f32 %v4190, %v3999
        %v4241 = vmul.f32 %v4195, %v4000
        %v4242 = vmul.f32 %v4200, %v4001
        %v4243 = vmul.f32 %v4205, %v4002
        %v4244 = vmul.f32 %v4210, %v4003
        %v4245 = vmul.f32 %v4215, %v4004
        %v4246 = vmul.f32 %v4220, %v4005
        %v4247 = vmul.f32 %v4225, %v4006
        %v4248 = vmul.f32 %v4230, %v4007
        %4265 = vrot.lane.b32.xlu0 %v4233, 64
        %v4266 = vpop.permute.xlu0 %4265
        %4267 = vrot.lane.b32.xlu0 %v4234, 64
        %v4268 = vpop.permute.xlu0 %4267
        %4269 = vrot.lane.b32.xlu0 %v4235, 64
        %v4270 = vpop.permute.xlu0 %4269
        %4271 = vrot.lane.b32.xlu0 %v4236, 64
        %v4272 = vpop.permute.xlu0 %4271
        %4273 = vrot.lane.b32.xlu0 %v4237, 64
        %v4274 = vpop.permute.xlu0 %4273
        %4275 = vrot.lane.b32.xlu0 %v4238, 64
        %v4276 = vpop.permute.xlu0 %4275
        %4277 = vrot.lane.b32.xlu0 %v4239, 64
        %v4278 = vpop.permute.xlu0 %4277
        %4279 = vrot.lane.b32.xlu0 %v4240, 64
        %v4280 = vpop.permute.xlu0 %4279
        %4281 = vrot.lane.b32.xlu0 %v4241, 64
        %v4282 = vpop.permute.xlu0 %4281
        %4283 = vrot.lane.b32.xlu0 %v4242, 64
        %v4284 = vpop.permute.xlu0 %4283
        %4285 = vrot.lane.b32.xlu0 %v4243, 64
        %v4286 = vpop.permute.xlu0 %4285
        %4287 = vrot.lane.b32.xlu0 %v4244, 64
        %v4288 = vpop.permute.xlu0 %4287
        %4289 = vrot.lane.b32.xlu0 %v4245, 64
        %v4290 = vpop.permute.xlu0 %4289
        %4291 = vrot.lane.b32.xlu0 %v4246, 64
        %v4292 = vpop.permute.xlu0 %4291
        %4293 = vrot.lane.b32.xlu0 %v4247, 64
        %v4294 = vpop.permute.xlu0 %4293
        %4295 = vrot.lane.b32.xlu0 %v4248, 64
        %v4296 = vpop.permute.xlu0 %4295
        %vm4313 = vcmask 654848
        %4314 = vst.msk [vmem:[#allocation5] sm:$0xff] %vm4313, %v4266
        %4315 = vst.msk [vmem:[#allocation5 + $0x8] sm:$0xff] %vm4313, %v4268
        %4316 = vst.msk [vmem:[#allocation5 + $0x10] sm:$0xff] %vm4313, %v4270
        %4317 = vst.msk [vmem:[#allocation5 + $0x18] sm:$0xff] %vm4313, %v4272
        %4318 = vst.msk [vmem:[#allocation5 + $0x20] sm:$0xff] %vm4313, %v4274
        %4319 = vst.msk [vmem:[#allocation5 + $0x28] sm:$0xff] %vm4313, %v4276
        %4320 = vst.msk [vmem:[#allocation5 + $0x30] sm:$0xff] %vm4313, %v4278
        %4321 = vst.msk [vmem:[#allocation5 + $0x38] sm:$0xff] %vm4313, %v4280
        %4322 = vst.msk [vmem:[#allocation5 + $0x40] sm:$0xff] %vm4313, %v4282
        %4323 = vst.msk [vmem:[#allocation5 + $0x48] sm:$0xff] %vm4313, %v4284
        %4324 = vst.msk [vmem:[#allocation5 + $0x50] sm:$0xff] %vm4313, %v4286
        %4325 = vst.msk [vmem:[#allocation5 + $0x58] sm:$0xff] %vm4313, %v4288
        %4326 = vst.msk [vmem:[#allocation5 + $0x60] sm:$0xff] %vm4313, %v4290
        %4327 = vst.msk [vmem:[#allocation5 + $0x68] sm:$0xff] %vm4313, %v4292
        %4328 = vst.msk [vmem:[#allocation5 + $0x70] sm:$0xff] %vm4313, %v4294
        %4329 = vst.msk [vmem:[#allocation5 + $0x78] sm:$0xff] %vm4313, %v4296
        %v4330 = vld [vmem:[#allocation4] sm:$0xff]
        %v4331 = vld [vmem:[#allocation4 + $0x8] sm:$0xff]
        %v4332 = vld [vmem:[#allocation4 + $0x10] sm:$0xff]
        %v4333 = vld [vmem:[#allocation4 + $0x18] sm:$0xff]
        %v4334 = vld [vmem:[#allocation4 + $0x20] sm:$0xff]
        %v4335 = vld [vmem:[#allocation4 + $0x28] sm:$0xff]
        %v4336 = vld [vmem:[#allocation4 + $0x30] sm:$0xff]
        %v4337 = vld [vmem:[#allocation4 + $0x38] sm:$0xff]
        %v4338 = vld [vmem:[#allocation4 + $0x40] sm:$0xff]
        %v4339 = vld [vmem:[#allocation4 + $0x48] sm:$0xff]
        %v4340 = vld [vmem:[#allocation4 + $0x50] sm:$0xff]
        %v4341 = vld [vmem:[#allocation4 + $0x58] sm:$0xff]
        %v4342 = vld [vmem:[#allocation4 + $0x60] sm:$0xff]
        %v4343 = vld [vmem:[#allocation4 + $0x68] sm:$0xff]
        %v4344 = vld [vmem:[#allocation4 + $0x70] sm:$0xff]
        %v4345 = vld [vmem:[#allocation4 + $0x78] sm:$0xff]
        %s4346 = scalar_lea.vmem [#allocation2], 80
        %v4347 = vld [vmem:[%s4346] sm:$0xff]
        %v4348 = vld [vmem:[%s4346 + $0x8] sm:$0xff]
        %4365 = vrot.lane.b32.xlu0 %v4330, 48
        %v4366 = vpop.permute.xlu0 %4365
        %4367 = vrot.lane.b32.xlu0 %v4331, 48
        %v4368 = vpop.permute.xlu0 %4367
        %4369 = vrot.lane.b32.xlu0 %v4332, 48
        %v4370 = vpop.permute.xlu0 %4369
        %4371 = vrot.lane.b32.xlu0 %v4333, 48
        %v4372 = vpop.permute.xlu0 %4371
        %4373 = vrot.lane.b32.xlu0 %v4334, 48
        %v4374 = vpop.permute.xlu0 %4373
        %4375 = vrot.lane.b32.xlu0 %v4335, 48
        %v4376 = vpop.permute.xlu0 %4375
        %4377 = vrot.lane.b32.xlu0 %v4336, 48
        %v4378 = vpop.permute.xlu0 %4377
        %4379 = vrot.lane.b32.xlu0 %v4337, 48
        %v4380 = vpop.permute.xlu0 %4379
        %4381 = vrot.lane.b32.xlu0 %v4338, 48
        %v4382 = vpop.permute.xlu0 %4381
        %4383 = vrot.lane.b32.xlu0 %v4339, 48
        %v4384 = vpop.permute.xlu0 %4383
        %4385 = vrot.lane.b32.xlu0 %v4340, 48
        %v4386 = vpop.permute.xlu0 %4385
        %4387 = vrot.lane.b32.xlu0 %v4341, 48
        %v4388 = vpop.permute.xlu0 %4387
        %4389 = vrot.lane.b32.xlu0 %v4342, 48
        %v4390 = vpop.permute.xlu0 %4389
        %4391 = vrot.lane.b32.xlu0 %v4343, 48
        %v4392 = vpop.permute.xlu0 %4391
        %4393 = vrot.lane.b32.xlu0 %v4344, 48
        %v4394 = vpop.permute.xlu0 %4393
        %4395 = vrot.lane.b32.xlu0 %v4345, 48
        %v4396 = vpop.permute.xlu0 %4395
        %v4397 = vsel %vm1039, %v4366, 0
        %v4399 = vsel %vm1039, %v4368, 0
        %v4401 = vsel %vm1039, %v4370, 0
        %v4403 = vsel %vm1039, %v4372, 0
        %v4405 = vsel %vm1039, %v4374, 0
        %v4407 = vsel %vm1039, %v4376, 0
        %v4409 = vsel %vm1039, %v4378, 0
        %v4411 = vsel %vm1039, %v4380, 0
        %v4413 = vsel %vm1039, %v4382, 0
        %v4415 = vsel %vm1039, %v4384, 0
        %v4417 = vsel %vm1039, %v4386, 0
        %v4419 = vsel %vm1039, %v4388, 0
        %v4421 = vsel %vm1039, %v4390, 0
        %v4423 = vsel %vm1039, %v4392, 0
        %v4425 = vsel %vm1039, %v4394, 0
        %v4427 = vsel %vm1039, %v4396, 0
        %4429 = vmatprep.subr.mxu0 0.0
        %4430 = vmatpush1.msra.mxu0 0.0
        %4431 = vmatprep.subr.mxu0 0.0
        %4432 = vmatpush1.msra.mxu0 0.0
        %4433 = vmatprep.subr.mxu0 0.0
        %4434 = vmatpush1.msra.mxu0 0.0
        %4435 = vmatprep.subr.mxu0 0.0
        %4436 = vmatpush1.msra.mxu0 0.0
        %4437 = vmatprep.subr.mxu0 0.0
        %4438 = vmatpush1.msra.mxu0 0.0
        %4439 = vmatprep.subr.mxu0 0.0
        %4440 = vmatpush1.msra.mxu0 0.0
        %4441 = vmatprep.subr.mxu0 0.0
        %4442 = vmatpush1.msra.mxu0 0.0
        %4443 = vmatprep.subr.mxu0 0.0
        %4444 = vmatpush1.msra.mxu0 0.0
        %4445 = vmatprep.subr.mxu0 0.0
        %4446 = vmatpush1.msra.mxu0 0.0
        %4447 = vmatprep.subr.mxu0 0.0
        %4448 = vmatpush1.msra.mxu0 0.0
        %4449 = vmatprep.subr.mxu0 0.0
        %4450 = vmatpush1.msra.mxu0 0.0
        %4451 = vmatprep.subr.mxu0 0.0
        %4452 = vmatpush1.msra.mxu0 0.0
        %4453 = vmatprep.subr.mxu0 0.0
        %4454 = vmatpush1.msra.mxu0 0.0
        %4455 = vmatprep.subr.mxu0 0.0
        %4456 = vmatpush1.msra.mxu0 0.0
        %4457 = vmatprep.subr.mxu0 0.0
        %4458 = vmatpush1.msra.mxu0 %v4348
        %4459 = vmatprep.subr.mxu0 0.0
        %4460 = vmatpush1.msra.mxu0 %v4347
        %4461 = vmatprep.subr.mxu0 0.0
        %4462 = vmatpush2.msra.mxu0 0.0
        %4463 = vmatprep.subr.mxu0 0.0
        %4464 = vmatpush2.msra.mxu0 0.0
        %4465 = vmatprep.subr.mxu0 0.0
        %4466 = vmatpush2.msra.mxu0 0.0
        %4467 = vmatprep.subr.mxu0 0.0
        %4468 = vmatpush2.msra.mxu0 0.0
        %4469 = vmatprep.subr.mxu0 0.0
        %4470 = vmatpush2.msra.mxu0 0.0
        %4471 = vmatprep.subr.mxu0 0.0
        %4472 = vmatpush2.msra.mxu0 0.0
        %4473 = vmatprep.subr.mxu0 0.0
        %4474 = vmatpush2.msra.mxu0 0.0
        %4475 = vmatprep.subr.mxu0 0.0
        %4476 = vmatpush2.msra.mxu0 0.0
        %4477 = vmatprep.subr.mxu0 0.0
        %4478 = vmatpush2.msra.mxu0 0.0
        %4479 = vmatprep.subr.mxu0 0.0
        %4480 = vmatpush2.msra.mxu0 0.0
        %4481 = vmatprep.subr.mxu0 0.0
        %4482 = vmatpush2.msra.mxu0 0.0
        %4483 = vmatprep.subr.mxu0 0.0
        %4484 = vmatpush2.msra.mxu0 0.0
        %4485 = vmatprep.subr.mxu0 0.0
        %4486 = vmatpush2.msra.mxu0 0.0
        %4487 = vmatprep.subr.mxu0 0.0
        %4488 = vmatpush2.msra.mxu0 0.0
        %4489 = vmatprep.subr.mxu0 0.0
        %4490 = vmatpush2.msra.mxu0 0.0
        %4491 = vmatprep.subr.mxu0 0.0
        %4492 = vmatpush2.msra.mxu0 0.0
        %4493 = vmatprep.mubr.f32.mxu0 0.0
        %4494 = vmatmul.mubr.f32.gmra.mxu0 %v4397
        %v4495 = vpop.f32.mrf.mxu0
        %v4496 = vadd.f32 0.0, %v4495
        %v4497 = vpop.f32.mrf.mxu0
        %4498 = vmatprep.mubr.f32.mxu0 0.0
        %4499 = vmatmul.mubr.f32.gmra.mxu0 %v4399
        %v4500 = vpop.f32.mrf.mxu0
        %v4501 = vadd.f32 0.0, %v4500
        %v4502 = vpop.f32.mrf.mxu0
        %4503 = vmatprep.mubr.f32.mxu0 0.0
        %4504 = vmatmul.mubr.f32.gmra.mxu0 %v4401
        %v4505 = vpop.f32.mrf.mxu0
        %v4506 = vadd.f32 0.0, %v4505
        %v4507 = vpop.f32.mrf.mxu0
        %4508 = vmatprep.mubr.f32.mxu0 0.0
        %4509 = vmatmul.mubr.f32.gmra.mxu0 %v4403
        %v4510 = vpop.f32.mrf.mxu0
        %v4511 = vadd.f32 0.0, %v4510
        %v4512 = vpop.f32.mrf.mxu0
        %4513 = vmatprep.mubr.f32.mxu0 0.0
        %4514 = vmatmul.mubr.f32.gmra.mxu0 %v4405
        %v4515 = vpop.f32.mrf.mxu0
        %v4516 = vadd.f32 0.0, %v4515
        %v4517 = vpop.f32.mrf.mxu0
        %4518 = vmatprep.mubr.f32.mxu0 0.0
        %4519 = vmatmul.mubr.f32.gmra.mxu0 %v4407
        %v4520 = vpop.f32.mrf.mxu0
        %v4521 = vadd.f32 0.0, %v4520
        %v4522 = vpop.f32.mrf.mxu0
        %4523 = vmatprep.mubr.f32.mxu0 0.0
        %4524 = vmatmul.mubr.f32.gmra.mxu0 %v4409
        %v4525 = vpop.f32.mrf.mxu0
        %v4526 = vadd.f32 0.0, %v4525
        %v4527 = vpop.f32.mrf.mxu0
        %4528 = vmatprep.mubr.f32.mxu0 0.0
        %4529 = vmatmul.mubr.f32.gmra.mxu0 %v4411
        %v4530 = vpop.f32.mrf.mxu0
        %v4531 = vadd.f32 0.0, %v4530
        %v4532 = vpop.f32.mrf.mxu0
        %4533 = vmatprep.mubr.f32.mxu0 0.0
        %4534 = vmatmul.mubr.f32.gmra.mxu0 %v4413
        %v4535 = vpop.f32.mrf.mxu0
        %v4536 = vadd.f32 0.0, %v4535
        %v4537 = vpop.f32.mrf.mxu0
        %4538 = vmatprep.mubr.f32.mxu0 0.0
        %4539 = vmatmul.mubr.f32.gmra.mxu0 %v4415
        %v4540 = vpop.f32.mrf.mxu0
        %v4541 = vadd.f32 0.0, %v4540
        %v4542 = vpop.f32.mrf.mxu0
        %4543 = vmatprep.mubr.f32.mxu0 0.0
        %4544 = vmatmul.mubr.f32.gmra.mxu0 %v4417
        %v4545 = vpop.f32.mrf.mxu0
        %v4546 = vadd.f32 0.0, %v4545
        %v4547 = vpop.f32.mrf.mxu0
        %4548 = vmatprep.mubr.f32.mxu0 0.0
        %4549 = vmatmul.mubr.f32.gmra.mxu0 %v4419
        %v4550 = vpop.f32.mrf.mxu0
        %v4551 = vadd.f32 0.0, %v4550
        %v4552 = vpop.f32.mrf.mxu0
        %4553 = vmatprep.mubr.f32.mxu0 0.0
        %4554 = vmatmul.mubr.f32.gmra.mxu0 %v4421
        %v4555 = vpop.f32.mrf.mxu0
        %v4556 = vadd.f32 0.0, %v4555
        %v4557 = vpop.f32.mrf.mxu0
        %4558 = vmatprep.mubr.f32.mxu0 0.0
        %4559 = vmatmul.mubr.f32.gmra.mxu0 %v4423
        %v4560 = vpop.f32.mrf.mxu0
        %v4561 = vadd.f32 0.0, %v4560
        %v4562 = vpop.f32.mrf.mxu0
        %4563 = vmatprep.mubr.f32.mxu0 0.0
        %4564 = vmatmul.mubr.f32.gmra.mxu0 %v4425
        %v4565 = vpop.f32.mrf.mxu0
        %v4566 = vadd.f32 0.0, %v4565
        %v4567 = vpop.f32.mrf.mxu0
        %4568 = vmatprep.mubr.f32.mxu0 0.0
        %4569 = vmatmul.mubr.f32.gmra.mxu0 %v4427
        %v4570 = vpop.f32.mrf.mxu0
        %v4571 = vadd.f32 0.0, %v4570
        %v4572 = vpop.f32.mrf.mxu0
        %4573 = vdwg.mxu0
        %4574 = vmax.xlane.f32.xlu0 %v4496
        %v4575 = vpop.xlane.xlu0 %4574
        %4576 = vmax.xlane.f32.xlu0 %v4501
        %v4577 = vpop.xlane.xlu0 %4576
        %4578 = vmax.xlane.f32.xlu0 %v4506
        %v4579 = vpop.xlane.xlu0 %4578
        %4580 = vmax.xlane.f32.xlu0 %v4511
        %v4581 = vpop.xlane.xlu0 %4580
        %4582 = vmax.xlane.f32.xlu0 %v4516
        %v4583 = vpop.xlane.xlu0 %4582
        %4584 = vmax.xlane.f32.xlu0 %v4521
        %v4585 = vpop.xlane.xlu0 %4584
        %4586 = vmax.xlane.f32.xlu0 %v4526
        %v4587 = vpop.xlane.xlu0 %4586
        %4588 = vmax.xlane.f32.xlu0 %v4531
        %v4589 = vpop.xlane.xlu0 %4588
        %4590 = vmax.xlane.f32.xlu0 %v4536
        %v4591 = vpop.xlane.xlu0 %4590
        %4592 = vmax.xlane.f32.xlu0 %v4541
        %v4593 = vpop.xlane.xlu0 %4592
        %4594 = vmax.xlane.f32.xlu0 %v4546
        %v4595 = vpop.xlane.xlu0 %4594
        %4596 = vmax.xlane.f32.xlu0 %v4551
        %v4597 = vpop.xlane.xlu0 %4596
        %4598 = vmax.xlane.f32.xlu0 %v4556
        %v4599 = vpop.xlane.xlu0 %4598
        %4600 = vmax.xlane.f32.xlu0 %v4561
        %v4601 = vpop.xlane.xlu0 %4600
        %4602 = vmax.xlane.f32.xlu0 %v4566
        %v4603 = vpop.xlane.xlu0 %4602
        %4604 = vmax.xlane.f32.xlu0 %v4571
        %v4605 = vpop.xlane.xlu0 %4604
        %v4606 = vsub.f32 %v4496, %v4575
        %v4607 = vsub.f32 %v4501, %v4577
        %v4608 = vsub.f32 %v4506, %v4579
        %v4609 = vsub.f32 %v4511, %v4581
        %v4610 = vsub.f32 %v4516, %v4583
        %v4611 = vsub.f32 %v4521, %v4585
        %v4612 = vsub.f32 %v4526, %v4587
        %v4613 = vsub.f32 %v4531, %v4589
        %v4614 = vsub.f32 %v4536, %v4591
        %v4615 = vsub.f32 %v4541, %v4593
        %v4616 = vsub.f32 %v4546, %v4595
        %v4617 = vsub.f32 %v4551, %v4597
        %v4618 = vsub.f32 %v4556, %v4599
        %v4619 = vsub.f32 %v4561, %v4601
        %v4620 = vsub.f32 %v4566, %v4603
        %v4621 = vsub.f32 %v4571, %v4605
        %v4622 = vmul.f32 %v4606, 1.442695
        %v4623 = vpow.pop %v4622
        %v4624 = vmul.f32 %v4607, 1.442695
        %v4625 = vpow.pop %v4624
        %v4626 = vmul.f32 %v4608, 1.442695
        %v4627 = vpow.pop %v4626
        %v4628 = vmul.f32 %v4609, 1.442695
        %v4629 = vpow.pop %v4628
        %v4630 = vmul.f32 %v4610, 1.442695
        %v4631 = vpow.pop %v4630
        %v4632 = vmul.f32 %v4611, 1.442695
        %v4633 = vpow.pop %v4632
        %v4634 = vmul.f32 %v4612, 1.442695
        %v4635 = vpow.pop %v4634
        %v4636 = vmul.f32 %v4613, 1.442695
        %v4637 = vpow.pop %v4636
        %v4638 = vmul.f32 %v4614, 1.442695
        %v4639 = vpow.pop %v4638
        %v4640 = vmul.f32 %v4615, 1.442695
        %v4641 = vpow.pop %v4640
        %v4642 = vmul.f32 %v4616, 1.442695
        %v4643 = vpow.pop %v4642
        %v4644 = vmul.f32 %v4617, 1.442695
        %v4645 = vpow.pop %v4644
        %v4646 = vmul.f32 %v4618, 1.442695
        %v4647 = vpow.pop %v4646
        %v4648 = vmul.f32 %v4619, 1.442695
        %v4649 = vpow.pop %v4648
        %v4650 = vmul.f32 %v4620, 1.442695
        %v4651 = vpow.pop %v4650
        %v4652 = vmul.f32 %v4621, 1.442695
        %v4653 = vpow.pop %v4652
        %4654 = vadd.xlane.f32.xlu0 %v4623
        %v4655 = vpop.xlane.xlu0 %4654
        %4656 = vadd.xlane.f32.xlu0 %v4625
        %v4657 = vpop.xlane.xlu0 %4656
        %4658 = vadd.xlane.f32.xlu0 %v4627
        %v4659 = vpop.xlane.xlu0 %4658
        %4660 = vadd.xlane.f32.xlu0 %v4629
        %v4661 = vpop.xlane.xlu0 %4660
        %4662 = vadd.xlane.f32.xlu0 %v4631
        %v4663 = vpop.xlane.xlu0 %4662
        %4664 = vadd.xlane.f32.xlu0 %v4633
        %v4665 = vpop.xlane.xlu0 %4664
        %4666 = vadd.xlane.f32.xlu0 %v4635
        %v4667 = vpop.xlane.xlu0 %4666
        %4668 = vadd.xlane.f32.xlu0 %v4637
        %v4669 = vpop.xlane.xlu0 %4668
        %4670 = vadd.xlane.f32.xlu0 %v4639
        %v4671 = vpop.xlane.xlu0 %4670
        %4672 = vadd.xlane.f32.xlu0 %v4641
        %v4673 = vpop.xlane.xlu0 %4672
        %4674 = vadd.xlane.f32.xlu0 %v4643
        %v4675 = vpop.xlane.xlu0 %4674
        %4676 = vadd.xlane.f32.xlu0 %v4645
        %v4677 = vpop.xlane.xlu0 %4676
        %4678 = vadd.xlane.f32.xlu0 %v4647
        %v4679 = vpop.xlane.xlu0 %4678
        %4680 = vadd.xlane.f32.xlu0 %v4649
        %v4681 = vpop.xlane.xlu0 %4680
        %4682 = vadd.xlane.f32.xlu0 %v4651
        %v4683 = vpop.xlane.xlu0 %4682
        %4684 = vadd.xlane.f32.xlu0 %v4653
        %v4685 = vpop.xlane.xlu0 %4684
        %v4686 = vrcp.pop %v4655
        %v4687 = vrcp.pop %v4657
        %v4688 = vrcp.pop %v4659
        %v4689 = vrcp.pop %v4661
        %v4690 = vrcp.pop %v4663
        %v4691 = vrcp.pop %v4665
        %v4692 = vrcp.pop %v4667
        %v4693 = vrcp.pop %v4669
        %v4694 = vrcp.pop %v4671
        %v4695 = vrcp.pop %v4673
        %v4696 = vrcp.pop %v4675
        %v4697 = vrcp.pop %v4677
        %v4698 = vrcp.pop %v4679
        %v4699 = vrcp.pop %v4681
        %v4700 = vrcp.pop %v4683
        %v4701 = vrcp.pop %v4685
        %v4702 = vld [vmem:[#allocation3] sm:$0xff]
        %v4703 = vld [vmem:[#allocation3 + $0x8] sm:$0xff]
        %v4704 = vld [vmem:[#allocation3 + $0x10] sm:$0xff]
        %v4705 = vld [vmem:[#allocation3 + $0x18] sm:$0xff]
        %v4706 = vld [vmem:[#allocation3 + $0x20] sm:$0xff]
        %v4707 = vld [vmem:[#allocation3 + $0x28] sm:$0xff]
        %v4708 = vld [vmem:[#allocation3 + $0x30] sm:$0xff]
        %v4709 = vld [vmem:[#allocation3 + $0x38] sm:$0xff]
        %v4710 = vld [vmem:[#allocation3 + $0x40] sm:$0xff]
        %v4711 = vld [vmem:[#allocation3 + $0x48] sm:$0xff]
        %v4712 = vld [vmem:[#allocation3 + $0x50] sm:$0xff]
        %v4713 = vld [vmem:[#allocation3 + $0x58] sm:$0xff]
        %v4714 = vld [vmem:[#allocation3 + $0x60] sm:$0xff]
        %v4715 = vld [vmem:[#allocation3 + $0x68] sm:$0xff]
        %v4716 = vld [vmem:[#allocation3 + $0x70] sm:$0xff]
        %v4717 = vld [vmem:[#allocation3 + $0x78] sm:$0xff]
        %4734 = vrot.lane.b32.xlu0 %v4702, 48
        %v4735 = vpop.permute.xlu0 %4734
        %4736 = vrot.lane.b32.xlu0 %v4703, 48
        %v4737 = vpop.permute.xlu0 %4736
        %4738 = vrot.lane.b32.xlu0 %v4704, 48
        %v4739 = vpop.permute.xlu0 %4738
        %4740 = vrot.lane.b32.xlu0 %v4705, 48
        %v4741 = vpop.permute.xlu0 %4740
        %4742 = vrot.lane.b32.xlu0 %v4706, 48
        %v4743 = vpop.permute.xlu0 %4742
        %4744 = vrot.lane.b32.xlu0 %v4707, 48
        %v4745 = vpop.permute.xlu0 %4744
        %4746 = vrot.lane.b32.xlu0 %v4708, 48
        %v4747 = vpop.permute.xlu0 %4746
        %4748 = vrot.lane.b32.xlu0 %v4709, 48
        %v4749 = vpop.permute.xlu0 %4748
        %4750 = vrot.lane.b32.xlu0 %v4710, 48
        %v4751 = vpop.permute.xlu0 %4750
        %4752 = vrot.lane.b32.xlu0 %v4711, 48
        %v4753 = vpop.permute.xlu0 %4752
        %4754 = vrot.lane.b32.xlu0 %v4712, 48
        %v4755 = vpop.permute.xlu0 %4754
        %4756 = vrot.lane.b32.xlu0 %v4713, 48
        %v4757 = vpop.permute.xlu0 %4756
        %4758 = vrot.lane.b32.xlu0 %v4714, 48
        %v4759 = vpop.permute.xlu0 %4758
        %4760 = vrot.lane.b32.xlu0 %v4715, 48
        %v4761 = vpop.permute.xlu0 %4760
        %4762 = vrot.lane.b32.xlu0 %v4716, 48
        %v4763 = vpop.permute.xlu0 %4762
        %4764 = vrot.lane.b32.xlu0 %v4717, 48
        %v4765 = vpop.permute.xlu0 %4764
        %4782 = vmatprep.subr.mxu0 0.0
        %4783 = vmatpush1.msra.mxu0 %v4765
        %4784 = vmatprep.subr.mxu0 0.0
        %4785 = vmatpush1.msra.mxu0 %v4763
        %4786 = vmatprep.subr.mxu0 0.0
        %4787 = vmatpush1.msra.mxu0 %v4761
        %4788 = vmatprep.subr.mxu0 0.0
        %4789 = vmatpush1.msra.mxu0 %v4759
        %4790 = vmatprep.subr.mxu0 0.0
        %4791 = vmatpush1.msra.mxu0 %v4757
        %4792 = vmatprep.subr.mxu0 0.0
        %4793 = vmatpush1.msra.mxu0 %v4755
        %4794 = vmatprep.subr.mxu0 0.0
        %4795 = vmatpush1.msra.mxu0 %v4753
        %4796 = vmatprep.subr.mxu0 0.0
        %4797 = vmatpush1.msra.mxu0 %v4751
        %4798 = vmatprep.subr.mxu0 0.0
        %4799 = vmatpush1.msra.mxu0 %v4749
        %4800 = vmatprep.subr.mxu0 0.0
        %4801 = vmatpush1.msra.mxu0 %v4747
        %4802 = vmatprep.subr.mxu0 0.0
        %4803 = vmatpush1.msra.mxu0 %v4745
        %4804 = vmatprep.subr.mxu0 0.0
        %4805 = vmatpush1.msra.mxu0 %v4743
        %4806 = vmatprep.subr.mxu0 0.0
        %4807 = vmatpush1.msra.mxu0 %v4741
        %4808 = vmatprep.subr.mxu0 0.0
        %4809 = vmatpush1.msra.mxu0 %v4739
        %4810 = vmatprep.subr.mxu0 0.0
        %4811 = vmatpush1.msra.mxu0 %v4737
        %4812 = vmatprep.subr.mxu0 0.0
        %4813 = vmatpush1.msra.mxu0 %v4735
        %4814 = vmatprep.subr.mxu0 0.0
        %4815 = vmatpush2.msra.mxu0 0.0
        %4816 = vmatprep.subr.mxu0 0.0
        %4817 = vmatpush2.msra.mxu0 0.0
        %4818 = vmatprep.subr.mxu0 0.0
        %4819 = vmatpush2.msra.mxu0 0.0
        %4820 = vmatprep.subr.mxu0 0.0
        %4821 = vmatpush2.msra.mxu0 0.0
        %4822 = vmatprep.subr.mxu0 0.0
        %4823 = vmatpush2.msra.mxu0 0.0
        %4824 = vmatprep.subr.mxu0 0.0
        %4825 = vmatpush2.msra.mxu0 0.0
        %4826 = vmatprep.subr.mxu0 0.0
        %4827 = vmatpush2.msra.mxu0 0.0
        %4828 = vmatprep.subr.mxu0 0.0
        %4829 = vmatpush2.msra.mxu0 0.0
        %4830 = vmatprep.subr.mxu0 0.0
        %4831 = vmatpush2.msra.mxu0 0.0
        %4832 = vmatprep.subr.mxu0 0.0
        %4833 = vmatpush2.msra.mxu0 0.0
        %4834 = vmatprep.subr.mxu0 0.0
        %4835 = vmatpush2.msra.mxu0 0.0
        %4836 = vmatprep.subr.mxu0 0.0
        %4837 = vmatpush2.msra.mxu0 0.0
        %4838 = vmatprep.subr.mxu0 0.0
        %4839 = vmatpush2.msra.mxu0 0.0
        %4840 = vmatprep.subr.mxu0 0.0
        %4841 = vmatpush2.msra.mxu0 0.0
        %4842 = vmatprep.subr.mxu0 0.0
        %4843 = vmatpush2.msra.mxu0 0.0
        %4844 = vmatprep.subr.mxu0 0.0
        %4845 = vmatpush2.msra.mxu0 0.0
        %4846 = vmatprep.mubr.f32.mxu0 0.0
        %4847 = vmatmul.mubr.f32.gmra.mxu0 %v4623
        %v4848 = vpop.f32.mrf.mxu0
        %v4849 = vadd.f32 0.0, %v4848
        %v4850 = vpop.f32.mrf.mxu0
        %4851 = vmatprep.mubr.f32.mxu0 0.0
        %4852 = vmatmul.mubr.f32.gmra.mxu0 %v4625
        %v4853 = vpop.f32.mrf.mxu0
        %v4854 = vadd.f32 0.0, %v4853
        %v4855 = vpop.f32.mrf.mxu0
        %4856 = vmatprep.mubr.f32.mxu0 0.0
        %4857 = vmatmul.mubr.f32.gmra.mxu0 %v4627
        %v4858 = vpop.f32.mrf.mxu0
        %v4859 = vadd.f32 0.0, %v4858
        %v4860 = vpop.f32.mrf.mxu0
        %4861 = vmatprep.mubr.f32.mxu0 0.0
        %4862 = vmatmul.mubr.f32.gmra.mxu0 %v4629
        %v4863 = vpop.f32.mrf.mxu0
        %v4864 = vadd.f32 0.0, %v4863
        %v4865 = vpop.f32.mrf.mxu0
        %4866 = vmatprep.mubr.f32.mxu0 0.0
        %4867 = vmatmul.mubr.f32.gmra.mxu0 %v4631
        %v4868 = vpop.f32.mrf.mxu0
        %v4869 = vadd.f32 0.0, %v4868
        %v4870 = vpop.f32.mrf.mxu0
        %4871 = vmatprep.mubr.f32.mxu0 0.0
        %4872 = vmatmul.mubr.f32.gmra.mxu0 %v4633
        %v4873 = vpop.f32.mrf.mxu0
        %v4874 = vadd.f32 0.0, %v4873
        %v4875 = vpop.f32.mrf.mxu0
        %4876 = vmatprep.mubr.f32.mxu0 0.0
        %4877 = vmatmul.mubr.f32.gmra.mxu0 %v4635
        %v4878 = vpop.f32.mrf.mxu0
        %v4879 = vadd.f32 0.0, %v4878
        %v4880 = vpop.f32.mrf.mxu0
        %4881 = vmatprep.mubr.f32.mxu0 0.0
        %4882 = vmatmul.mubr.f32.gmra.mxu0 %v4637
        %v4883 = vpop.f32.mrf.mxu0
        %v4884 = vadd.f32 0.0, %v4883
        %v4885 = vpop.f32.mrf.mxu0
        %4886 = vmatprep.mubr.f32.mxu0 0.0
        %4887 = vmatmul.mubr.f32.gmra.mxu0 %v4639
        %v4888 = vpop.f32.mrf.mxu0
        %v4889 = vadd.f32 0.0, %v4888
        %v4890 = vpop.f32.mrf.mxu0
        %4891 = vmatprep.mubr.f32.mxu0 0.0
        %4892 = vmatmul.mubr.f32.gmra.mxu0 %v4641
        %v4893 = vpop.f32.mrf.mxu0
        %v4894 = vadd.f32 0.0, %v4893
        %v4895 = vpop.f32.mrf.mxu0
        %4896 = vmatprep.mubr.f32.mxu0 0.0
        %4897 = vmatmul.mubr.f32.gmra.mxu0 %v4643
        %v4898 = vpop.f32.mrf.mxu0
        %v4899 = vadd.f32 0.0, %v4898
        %v4900 = vpop.f32.mrf.mxu0
        %4901 = vmatprep.mubr.f32.mxu0 0.0
        %4902 = vmatmul.mubr.f32.gmra.mxu0 %v4645
        %v4903 = vpop.f32.mrf.mxu0
        %v4904 = vadd.f32 0.0, %v4903
        %v4905 = vpop.f32.mrf.mxu0
        %4906 = vmatprep.mubr.f32.mxu0 0.0
        %4907 = vmatmul.mubr.f32.gmra.mxu0 %v4647
        %v4908 = vpop.f32.mrf.mxu0
        %v4909 = vadd.f32 0.0, %v4908
        %v4910 = vpop.f32.mrf.mxu0
        %4911 = vmatprep.mubr.f32.mxu0 0.0
        %4912 = vmatmul.mubr.f32.gmra.mxu0 %v4649
        %v4913 = vpop.f32.mrf.mxu0
        %v4914 = vadd.f32 0.0, %v4913
        %v4915 = vpop.f32.mrf.mxu0
        %4916 = vmatprep.mubr.f32.mxu0 0.0
        %4917 = vmatmul.mubr.f32.gmra.mxu0 %v4651
        %v4918 = vpop.f32.mrf.mxu0
        %v4919 = vadd.f32 0.0, %v4918
        %v4920 = vpop.f32.mrf.mxu0
        %4921 = vmatprep.mubr.f32.mxu0 0.0
        %4922 = vmatmul.mubr.f32.gmra.mxu0 %v4653
        %v4923 = vpop.f32.mrf.mxu0
        %v4924 = vadd.f32 0.0, %v4923
        %v4925 = vpop.f32.mrf.mxu0
        %4926 = vdwg.mxu0
        %v4927 = vmul.f32 %v4849, %v4686
        %v4928 = vmul.f32 %v4854, %v4687
        %v4929 = vmul.f32 %v4859, %v4688
        %v4930 = vmul.f32 %v4864, %v4689
        %v4931 = vmul.f32 %v4869, %v4690
        %v4932 = vmul.f32 %v4874, %v4691
        %v4933 = vmul.f32 %v4879, %v4692
        %v4934 = vmul.f32 %v4884, %v4693
        %v4935 = vmul.f32 %v4889, %v4694
        %v4936 = vmul.f32 %v4894, %v4695
        %v4937 = vmul.f32 %v4899, %v4696
        %v4938 = vmul.f32 %v4904, %v4697
        %v4939 = vmul.f32 %v4909, %v4698
        %v4940 = vmul.f32 %v4914, %v4699
        %v4941 = vmul.f32 %v4919, %v4700
        %v4942 = vmul.f32 %v4924, %v4701
        %4959 = vrot.lane.b32.xlu0 %v4927, 80
        %v4960 = vpop.permute.xlu0 %4959
        %4961 = vrot.lane.b32.xlu0 %v4928, 80
        %v4962 = vpop.permute.xlu0 %4961
        %4963 = vrot.lane.b32.xlu0 %v4929, 80
        %v4964 = vpop.permute.xlu0 %4963
        %4965 = vrot.lane.b32.xlu0 %v4930, 80
        %v4966 = vpop.permute.xlu0 %4965
        %4967 = vrot.lane.b32.xlu0 %v4931, 80
        %v4968 = vpop.permute.xlu0 %4967
        %4969 = vrot.lane.b32.xlu0 %v4932, 80
        %v4970 = vpop.permute.xlu0 %4969
        %4971 = vrot.lane.b32.xlu0 %v4933, 80
        %v4972 = vpop.permute.xlu0 %4971
        %4973 = vrot.lane.b32.xlu0 %v4934, 80
        %v4974 = vpop.permute.xlu0 %4973
        %4975 = vrot.lane.b32.xlu0 %v4935, 80
        %v4976 = vpop.permute.xlu0 %4975
        %4977 = vrot.lane.b32.xlu0 %v4936, 80
        %v4978 = vpop.permute.xlu0 %4977
        %4979 = vrot.lane.b32.xlu0 %v4937, 80
        %v4980 = vpop.permute.xlu0 %4979
        %4981 = vrot.lane.b32.xlu0 %v4938, 80
        %v4982 = vpop.permute.xlu0 %4981
        %4983 = vrot.lane.b32.xlu0 %v4939, 80
        %v4984 = vpop.permute.xlu0 %4983
        %4985 = vrot.lane.b32.xlu0 %v4940, 80
        %v4986 = vpop.permute.xlu0 %4985
        %4987 = vrot.lane.b32.xlu0 %v4941, 80
        %v4988 = vpop.permute.xlu0 %4987
        %4989 = vrot.lane.b32.xlu0 %v4942, 80
        %v4990 = vpop.permute.xlu0 %4989
        %vm5007 = vcmask 786048
        %5008 = vst.msk [vmem:[#allocation5] sm:$0xff] %vm5007, %v4960
        %5009 = vst.msk [vmem:[#allocation5 + $0x8] sm:$0xff] %vm5007, %v4962
        %5010 = vst.msk [vmem:[#allocation5 + $0x10] sm:$0xff] %vm5007, %v4964
        %5011 = vst.msk [vmem:[#allocation5 + $0x18] sm:$0xff] %vm5007, %v4966
        %5012 = vst.msk [vmem:[#allocation5 + $0x20] sm:$0xff] %vm5007, %v4968
        %5013 = vst.msk [vmem:[#allocation5 + $0x28] sm:$0xff] %vm5007, %v4970
        %5014 = vst.msk [vmem:[#allocation5 + $0x30] sm:$0xff] %vm5007, %v4972
        %5015 = vst.msk [vmem:[#allocation5 + $0x38] sm:$0xff] %vm5007, %v4974
        %5016 = vst.msk [vmem:[#allocation5 + $0x40] sm:$0xff] %vm5007, %v4976
        %5017 = vst.msk [vmem:[#allocation5 + $0x48] sm:$0xff] %vm5007, %v4978
        %5018 = vst.msk [vmem:[#allocation5 + $0x50] sm:$0xff] %vm5007, %v4980
        %5019 = vst.msk [vmem:[#allocation5 + $0x58] sm:$0xff] %vm5007, %v4982
        %5020 = vst.msk [vmem:[#allocation5 + $0x60] sm:$0xff] %vm5007, %v4984
        %5021 = vst.msk [vmem:[#allocation5 + $0x68] sm:$0xff] %vm5007, %v4986
        %5022 = vst.msk [vmem:[#allocation5 + $0x70] sm:$0xff] %vm5007, %v4988
        %5023 = vst.msk [vmem:[#allocation5 + $0x78] sm:$0xff] %vm5007, %v4990
        %v5024 = vld [vmem:[#allocation4] sm:$0xff]
        %v5025 = vld [vmem:[#allocation4 + $0x8] sm:$0xff]
        %v5026 = vld [vmem:[#allocation4 + $0x10] sm:$0xff]
        %v5027 = vld [vmem:[#allocation4 + $0x18] sm:$0xff]
        %v5028 = vld [vmem:[#allocation4 + $0x20] sm:$0xff]
        %v5029 = vld [vmem:[#allocation4 + $0x28] sm:$0xff]
        %v5030 = vld [vmem:[#allocation4 + $0x30] sm:$0xff]
        %v5031 = vld [vmem:[#allocation4 + $0x38] sm:$0xff]
        %v5032 = vld [vmem:[#allocation4 + $0x40] sm:$0xff]
        %v5033 = vld [vmem:[#allocation4 + $0x48] sm:$0xff]
        %v5034 = vld [vmem:[#allocation4 + $0x50] sm:$0xff]
        %v5035 = vld [vmem:[#allocation4 + $0x58] sm:$0xff]
        %v5036 = vld [vmem:[#allocation4 + $0x60] sm:$0xff]
        %v5037 = vld [vmem:[#allocation4 + $0x68] sm:$0xff]
        %v5038 = vld [vmem:[#allocation4 + $0x70] sm:$0xff]
        %v5039 = vld [vmem:[#allocation4 + $0x78] sm:$0xff]
        %s5040 = scalar_lea.vmem [#allocation2], 96
        %v5041 = vld [vmem:[%s5040] sm:$0xff]
        %v5042 = vld [vmem:[%s5040 + $0x8] sm:$0xff]
        %5059 = vrot.lane.b32.xlu0 %v5024, 32
        %v5060 = vpop.permute.xlu0 %5059
        %5061 = vrot.lane.b32.xlu0 %v5025, 32
        %v5062 = vpop.permute.xlu0 %5061
        %5063 = vrot.lane.b32.xlu0 %v5026, 32
        %v5064 = vpop.permute.xlu0 %5063
        %5065 = vrot.lane.b32.xlu0 %v5027, 32
        %v5066 = vpop.permute.xlu0 %5065
        %5067 = vrot.lane.b32.xlu0 %v5028, 32
        %v5068 = vpop.permute.xlu0 %5067
        %5069 = vrot.lane.b32.xlu0 %v5029, 32
        %v5070 = vpop.permute.xlu0 %5069
        %5071 = vrot.lane.b32.xlu0 %v5030, 32
        %v5072 = vpop.permute.xlu0 %5071
        %5073 = vrot.lane.b32.xlu0 %v5031, 32
        %v5074 = vpop.permute.xlu0 %5073
        %5075 = vrot.lane.b32.xlu0 %v5032, 32
        %v5076 = vpop.permute.xlu0 %5075
        %5077 = vrot.lane.b32.xlu0 %v5033, 32
        %v5078 = vpop.permute.xlu0 %5077
        %5079 = vrot.lane.b32.xlu0 %v5034, 32
        %v5080 = vpop.permute.xlu0 %5079
        %5081 = vrot.lane.b32.xlu0 %v5035, 32
        %v5082 = vpop.permute.xlu0 %5081
        %5083 = vrot.lane.b32.xlu0 %v5036, 32
        %v5084 = vpop.permute.xlu0 %5083
        %5085 = vrot.lane.b32.xlu0 %v5037, 32
        %v5086 = vpop.permute.xlu0 %5085
        %5087 = vrot.lane.b32.xlu0 %v5038, 32
        %v5088 = vpop.permute.xlu0 %5087
        %5089 = vrot.lane.b32.xlu0 %v5039, 32
        %v5090 = vpop.permute.xlu0 %5089
        %v5091 = vsel %vm1039, %v5060, 0
        %v5093 = vsel %vm1039, %v5062, 0
        %v5095 = vsel %vm1039, %v5064, 0
        %v5097 = vsel %vm1039, %v5066, 0
        %v5099 = vsel %vm1039, %v5068, 0
        %v5101 = vsel %vm1039, %v5070, 0
        %v5103 = vsel %vm1039, %v5072, 0
        %v5105 = vsel %vm1039, %v5074, 0
        %v5107 = vsel %vm1039, %v5076, 0
        %v5109 = vsel %vm1039, %v5078, 0
        %v5111 = vsel %vm1039, %v5080, 0
        %v5113 = vsel %vm1039, %v5082, 0
        %v5115 = vsel %vm1039, %v5084, 0
        %v5117 = vsel %vm1039, %v5086, 0
        %v5119 = vsel %vm1039, %v5088, 0
        %v5121 = vsel %vm1039, %v5090, 0
        %5123 = vmatprep.subr.mxu0 0.0
        %5124 = vmatpush1.msra.mxu0 0.0
        %5125 = vmatprep.subr.mxu0 0.0
        %5126 = vmatpush1.msra.mxu0 0.0
        %5127 = vmatprep.subr.mxu0 0.0
        %5128 = vmatpush1.msra.mxu0 0.0
        %5129 = vmatprep.subr.mxu0 0.0
        %5130 = vmatpush1.msra.mxu0 0.0
        %5131 = vmatprep.subr.mxu0 0.0
        %5132 = vmatpush1.msra.mxu0 0.0
        %5133 = vmatprep.subr.mxu0 0.0
        %5134 = vmatpush1.msra.mxu0 0.0
        %5135 = vmatprep.subr.mxu0 0.0
        %5136 = vmatpush1.msra.mxu0 0.0
        %5137 = vmatprep.subr.mxu0 0.0
        %5138 = vmatpush1.msra.mxu0 0.0
        %5139 = vmatprep.subr.mxu0 0.0
        %5140 = vmatpush1.msra.mxu0 0.0
        %5141 = vmatprep.subr.mxu0 0.0
        %5142 = vmatpush1.msra.mxu0 0.0
        %5143 = vmatprep.subr.mxu0 0.0
        %5144 = vmatpush1.msra.mxu0 0.0
        %5145 = vmatprep.subr.mxu0 0.0
        %5146 = vmatpush1.msra.mxu0 0.0
        %5147 = vmatprep.subr.mxu0 0.0
        %5148 = vmatpush1.msra.mxu0 0.0
        %5149 = vmatprep.subr.mxu0 0.0
        %5150 = vmatpush1.msra.mxu0 0.0
        %5151 = vmatprep.subr.mxu0 0.0
        %5152 = vmatpush1.msra.mxu0 %v5042
        %5153 = vmatprep.subr.mxu0 0.0
        %5154 = vmatpush1.msra.mxu0 %v5041
        %5155 = vmatprep.subr.mxu0 0.0
        %5156 = vmatpush2.msra.mxu0 0.0
        %5157 = vmatprep.subr.mxu0 0.0
        %5158 = vmatpush2.msra.mxu0 0.0
        %5159 = vmatprep.subr.mxu0 0.0
        %5160 = vmatpush2.msra.mxu0 0.0
        %5161 = vmatprep.subr.mxu0 0.0
        %5162 = vmatpush2.msra.mxu0 0.0
        %5163 = vmatprep.subr.mxu0 0.0
        %5164 = vmatpush2.msra.mxu0 0.0
        %5165 = vmatprep.subr.mxu0 0.0
        %5166 = vmatpush2.msra.mxu0 0.0
        %5167 = vmatprep.subr.mxu0 0.0
        %5168 = vmatpush2.msra.mxu0 0.0
        %5169 = vmatprep.subr.mxu0 0.0
        %5170 = vmatpush2.msra.mxu0 0.0
        %5171 = vmatprep.subr.mxu0 0.0
        %5172 = vmatpush2.msra.mxu0 0.0
        %5173 = vmatprep.subr.mxu0 0.0
        %5174 = vmatpush2.msra.mxu0 0.0
        %5175 = vmatprep.subr.mxu0 0.0
        %5176 = vmatpush2.msra.mxu0 0.0
        %5177 = vmatprep.subr.mxu0 0.0
        %5178 = vmatpush2.msra.mxu0 0.0
        %5179 = vmatprep.subr.mxu0 0.0
        %5180 = vmatpush2.msra.mxu0 0.0
        %5181 = vmatprep.subr.mxu0 0.0
        %5182 = vmatpush2.msra.mxu0 0.0
        %5183 = vmatprep.subr.mxu0 0.0
        %5184 = vmatpush2.msra.mxu0 0.0
        %5185 = vmatprep.subr.mxu0 0.0
        %5186 = vmatpush2.msra.mxu0 0.0
        %5187 = vmatprep.mubr.f32.mxu0 0.0
        %5188 = vmatmul.mubr.f32.gmra.mxu0 %v5091
        %v5189 = vpop.f32.mrf.mxu0
        %v5190 = vadd.f32 0.0, %v5189
        %v5191 = vpop.f32.mrf.mxu0
        %5192 = vmatprep.mubr.f32.mxu0 0.0
        %5193 = vmatmul.mubr.f32.gmra.mxu0 %v5093
        %v5194 = vpop.f32.mrf.mxu0
        %v5195 = vadd.f32 0.0, %v5194
        %v5196 = vpop.f32.mrf.mxu0
        %5197 = vmatprep.mubr.f32.mxu0 0.0
        %5198 = vmatmul.mubr.f32.gmra.mxu0 %v5095
        %v5199 = vpop.f32.mrf.mxu0
        %v5200 = vadd.f32 0.0, %v5199
        %v5201 = vpop.f32.mrf.mxu0
        %5202 = vmatprep.mubr.f32.mxu0 0.0
        %5203 = vmatmul.mubr.f32.gmra.mxu0 %v5097
        %v5204 = vpop.f32.mrf.mxu0
        %v5205 = vadd.f32 0.0, %v5204
        %v5206 = vpop.f32.mrf.mxu0
        %5207 = vmatprep.mubr.f32.mxu0 0.0
        %5208 = vmatmul.mubr.f32.gmra.mxu0 %v5099
        %v5209 = vpop.f32.mrf.mxu0
        %v5210 = vadd.f32 0.0, %v5209
        %v5211 = vpop.f32.mrf.mxu0
        %5212 = vmatprep.mubr.f32.mxu0 0.0
        %5213 = vmatmul.mubr.f32.gmra.mxu0 %v5101
        %v5214 = vpop.f32.mrf.mxu0
        %v5215 = vadd.f32 0.0, %v5214
        %v5216 = vpop.f32.mrf.mxu0
        %5217 = vmatprep.mubr.f32.mxu0 0.0
        %5218 = vmatmul.mubr.f32.gmra.mxu0 %v5103
        %v5219 = vpop.f32.mrf.mxu0
        %v5220 = vadd.f32 0.0, %v5219
        %v5221 = vpop.f32.mrf.mxu0
        %5222 = vmatprep.mubr.f32.mxu0 0.0
        %5223 = vmatmul.mubr.f32.gmra.mxu0 %v5105
        %v5224 = vpop.f32.mrf.mxu0
        %v5225 = vadd.f32 0.0, %v5224
        %v5226 = vpop.f32.mrf.mxu0
        %5227 = vmatprep.mubr.f32.mxu0 0.0
        %5228 = vmatmul.mubr.f32.gmra.mxu0 %v5107
        %v5229 = vpop.f32.mrf.mxu0
        %v5230 = vadd.f32 0.0, %v5229
        %v5231 = vpop.f32.mrf.mxu0
        %5232 = vmatprep.mubr.f32.mxu0 0.0
        %5233 = vmatmul.mubr.f32.gmra.mxu0 %v5109
        %v5234 = vpop.f32.mrf.mxu0
        %v5235 = vadd.f32 0.0, %v5234
        %v5236 = vpop.f32.mrf.mxu0
        %5237 = vmatprep.mubr.f32.mxu0 0.0
        %5238 = vmatmul.mubr.f32.gmra.mxu0 %v5111
        %v5239 = vpop.f32.mrf.mxu0
        %v5240 = vadd.f32 0.0, %v5239
        %v5241 = vpop.f32.mrf.mxu0
        %5242 = vmatprep.mubr.f32.mxu0 0.0
        %5243 = vmatmul.mubr.f32.gmra.mxu0 %v5113
        %v5244 = vpop.f32.mrf.mxu0
        %v5245 = vadd.f32 0.0, %v5244
        %v5246 = vpop.f32.mrf.mxu0
        %5247 = vmatprep.mubr.f32.mxu0 0.0
        %5248 = vmatmul.mubr.f32.gmra.mxu0 %v5115
        %v5249 = vpop.f32.mrf.mxu0
        %v5250 = vadd.f32 0.0, %v5249
        %v5251 = vpop.f32.mrf.mxu0
        %5252 = vmatprep.mubr.f32.mxu0 0.0
        %5253 = vmatmul.mubr.f32.gmra.mxu0 %v5117
        %v5254 = vpop.f32.mrf.mxu0
        %v5255 = vadd.f32 0.0, %v5254
        %v5256 = vpop.f32.mrf.mxu0
        %5257 = vmatprep.mubr.f32.mxu0 0.0
        %5258 = vmatmul.mubr.f32.gmra.mxu0 %v5119
        %v5259 = vpop.f32.mrf.mxu0
        %v5260 = vadd.f32 0.0, %v5259
        %v5261 = vpop.f32.mrf.mxu0
        %5262 = vmatprep.mubr.f32.mxu0 0.0
        %5263 = vmatmul.mubr.f32.gmra.mxu0 %v5121
        %v5264 = vpop.f32.mrf.mxu0
        %v5265 = vadd.f32 0.0, %v5264
        %v5266 = vpop.f32.mrf.mxu0
        %5267 = vdwg.mxu0
        %5268 = vmax.xlane.f32.xlu0 %v5190
        %v5269 = vpop.xlane.xlu0 %5268
        %5270 = vmax.xlane.f32.xlu0 %v5195
        %v5271 = vpop.xlane.xlu0 %5270
        %5272 = vmax.xlane.f32.xlu0 %v5200
        %v5273 = vpop.xlane.xlu0 %5272
        %5274 = vmax.xlane.f32.xlu0 %v5205
        %v5275 = vpop.xlane.xlu0 %5274
        %5276 = vmax.xlane.f32.xlu0 %v5210
        %v5277 = vpop.xlane.xlu0 %5276
        %5278 = vmax.xlane.f32.xlu0 %v5215
        %v5279 = vpop.xlane.xlu0 %5278
        %5280 = vmax.xlane.f32.xlu0 %v5220
        %v5281 = vpop.xlane.xlu0 %5280
        %5282 = vmax.xlane.f32.xlu0 %v5225
        %v5283 = vpop.xlane.xlu0 %5282
        %5284 = vmax.xlane.f32.xlu0 %v5230
        %v5285 = vpop.xlane.xlu0 %5284
        %5286 = vmax.xlane.f32.xlu0 %v5235
        %v5287 = vpop.xlane.xlu0 %5286
        %5288 = vmax.xlane.f32.xlu0 %v5240
        %v5289 = vpop.xlane.xlu0 %5288
        %5290 = vmax.xlane.f32.xlu0 %v5245
        %v5291 = vpop.xlane.xlu0 %5290
        %5292 = vmax.xlane.f32.xlu0 %v5250
        %v5293 = vpop.xlane.xlu0 %5292
        %5294 = vmax.xlane.f32.xlu0 %v5255
        %v5295 = vpop.xlane.xlu0 %5294
        %5296 = vmax.xlane.f32.xlu0 %v5260
        %v5297 = vpop.xlane.xlu0 %5296
        %5298 = vmax.xlane.f32.xlu0 %v5265
        %v5299 = vpop.xlane.xlu0 %5298
        %v5300 = vsub.f32 %v5190, %v5269
        %v5301 = vsub.f32 %v5195, %v5271
        %v5302 = vsub.f32 %v5200, %v5273
        %v5303 = vsub.f32 %v5205, %v5275
        %v5304 = vsub.f32 %v5210, %v5277
        %v5305 = vsub.f32 %v5215, %v5279
        %v5306 = vsub.f32 %v5220, %v5281
        %v5307 = vsub.f32 %v5225, %v5283
        %v5308 = vsub.f32 %v5230, %v5285
        %v5309 = vsub.f32 %v5235, %v5287
        %v5310 = vsub.f32 %v5240, %v5289
        %v5311 = vsub.f32 %v5245, %v5291
        %v5312 = vsub.f32 %v5250, %v5293
        %v5313 = vsub.f32 %v5255, %v5295
        %v5314 = vsub.f32 %v5260, %v5297
        %v5315 = vsub.f32 %v5265, %v5299
        %v5316 = vmul.f32 %v5300, 1.442695
        %v5317 = vpow.pop %v5316
        %v5318 = vmul.f32 %v5301, 1.442695
        %v5319 = vpow.pop %v5318
        %v5320 = vmul.f32 %v5302, 1.442695
        %v5321 = vpow.pop %v5320
        %v5322 = vmul.f32 %v5303, 1.442695
        %v5323 = vpow.pop %v5322
        %v5324 = vmul.f32 %v5304, 1.442695
        %v5325 = vpow.pop %v5324
        %v5326 = vmul.f32 %v5305, 1.442695
        %v5327 = vpow.pop %v5326
        %v5328 = vmul.f32 %v5306, 1.442695
        %v5329 = vpow.pop %v5328
        %v5330 = vmul.f32 %v5307, 1.442695
        %v5331 = vpow.pop %v5330
        %v5332 = vmul.f32 %v5308, 1.442695
        %v5333 = vpow.pop %v5332
        %v5334 = vmul.f32 %v5309, 1.442695
        %v5335 = vpow.pop %v5334
        %v5336 = vmul.f32 %v5310, 1.442695
        %v5337 = vpow.pop %v5336
        %v5338 = vmul.f32 %v5311, 1.442695
        %v5339 = vpow.pop %v5338
        %v5340 = vmul.f32 %v5312, 1.442695
        %v5341 = vpow.pop %v5340
        %v5342 = vmul.f32 %v5313, 1.442695
        %v5343 = vpow.pop %v5342
        %v5344 = vmul.f32 %v5314, 1.442695
        %v5345 = vpow.pop %v5344
        %v5346 = vmul.f32 %v5315, 1.442695
        %v5347 = vpow.pop %v5346
        %5348 = vadd.xlane.f32.xlu0 %v5317
        %v5349 = vpop.xlane.xlu0 %5348
        %5350 = vadd.xlane.f32.xlu0 %v5319
        %v5351 = vpop.xlane.xlu0 %5350
        %5352 = vadd.xlane.f32.xlu0 %v5321
        %v5353 = vpop.xlane.xlu0 %5352
        %5354 = vadd.xlane.f32.xlu0 %v5323
        %v5355 = vpop.xlane.xlu0 %5354
        %5356 = vadd.xlane.f32.xlu0 %v5325
        %v5357 = vpop.xlane.xlu0 %5356
        %5358 = vadd.xlane.f32.xlu0 %v5327
        %v5359 = vpop.xlane.xlu0 %5358
        %5360 = vadd.xlane.f32.xlu0 %v5329
        %v5361 = vpop.xlane.xlu0 %5360
        %5362 = vadd.xlane.f32.xlu0 %v5331
        %v5363 = vpop.xlane.xlu0 %5362
        %5364 = vadd.xlane.f32.xlu0 %v5333
        %v5365 = vpop.xlane.xlu0 %5364
        %5366 = vadd.xlane.f32.xlu0 %v5335
        %v5367 = vpop.xlane.xlu0 %5366
        %5368 = vadd.xlane.f32.xlu0 %v5337
        %v5369 = vpop.xlane.xlu0 %5368
        %5370 = vadd.xlane.f32.xlu0 %v5339
        %v5371 = vpop.xlane.xlu0 %5370
        %5372 = vadd.xlane.f32.xlu0 %v5341
        %v5373 = vpop.xlane.xlu0 %5372
        %5374 = vadd.xlane.f32.xlu0 %v5343
        %v5375 = vpop.xlane.xlu0 %5374
        %5376 = vadd.xlane.f32.xlu0 %v5345
        %v5377 = vpop.xlane.xlu0 %5376
        %5378 = vadd.xlane.f32.xlu0 %v5347
        %v5379 = vpop.xlane.xlu0 %5378
        %v5380 = vrcp.pop %v5349
        %v5381 = vrcp.pop %v5351
        %v5382 = vrcp.pop %v5353
        %v5383 = vrcp.pop %v5355
        %v5384 = vrcp.pop %v5357
        %v5385 = vrcp.pop %v5359
        %v5386 = vrcp.pop %v5361
        %v5387 = vrcp.pop %v5363
        %v5388 = vrcp.pop %v5365
        %v5389 = vrcp.pop %v5367
        %v5390 = vrcp.pop %v5369
        %v5391 = vrcp.pop %v5371
        %v5392 = vrcp.pop %v5373
        %v5393 = vrcp.pop %v5375
        %v5394 = vrcp.pop %v5377
        %v5395 = vrcp.pop %v5379
        %v5396 = vld [vmem:[#allocation3] sm:$0xff]
        %v5397 = vld [vmem:[#allocation3 + $0x8] sm:$0xff]
        %v5398 = vld [vmem:[#allocation3 + $0x10] sm:$0xff]
        %v5399 = vld [vmem:[#allocation3 + $0x18] sm:$0xff]
        %v5400 = vld [vmem:[#allocation3 + $0x20] sm:$0xff]
        %v5401 = vld [vmem:[#allocation3 + $0x28] sm:$0xff]
        %v5402 = vld [vmem:[#allocation3 + $0x30] sm:$0xff]
        %v5403 = vld [vmem:[#allocation3 + $0x38] sm:$0xff]
        %v5404 = vld [vmem:[#allocation3 + $0x40] sm:$0xff]
        %v5405 = vld [vmem:[#allocation3 + $0x48] sm:$0xff]
        %v5406 = vld [vmem:[#allocation3 + $0x50] sm:$0xff]
        %v5407 = vld [vmem:[#allocation3 + $0x58] sm:$0xff]
        %v5408 = vld [vmem:[#allocation3 + $0x60] sm:$0xff]
        %v5409 = vld [vmem:[#allocation3 + $0x68] sm:$0xff]
        %v5410 = vld [vmem:[#allocation3 + $0x70] sm:$0xff]
        %v5411 = vld [vmem:[#allocation3 + $0x78] sm:$0xff]
        %5428 = vrot.lane.b32.xlu0 %v5396, 32
        %v5429 = vpop.permute.xlu0 %5428
        %5430 = vrot.lane.b32.xlu0 %v5397, 32
        %v5431 = vpop.permute.xlu0 %5430
        %5432 = vrot.lane.b32.xlu0 %v5398, 32
        %v5433 = vpop.permute.xlu0 %5432
        %5434 = vrot.lane.b32.xlu0 %v5399, 32
        %v5435 = vpop.permute.xlu0 %5434
        %5436 = vrot.lane.b32.xlu0 %v5400, 32
        %v5437 = vpop.permute.xlu0 %5436
        %5438 = vrot.lane.b32.xlu0 %v5401, 32
        %v5439 = vpop.permute.xlu0 %5438
        %5440 = vrot.lane.b32.xlu0 %v5402, 32
        %v5441 = vpop.permute.xlu0 %5440
        %5442 = vrot.lane.b32.xlu0 %v5403, 32
        %v5443 = vpop.permute.xlu0 %5442
        %5444 = vrot.lane.b32.xlu0 %v5404, 32
        %v5445 = vpop.permute.xlu0 %5444
        %5446 = vrot.lane.b32.xlu0 %v5405, 32
        %v5447 = vpop.permute.xlu0 %5446
        %5448 = vrot.lane.b32.xlu0 %v5406, 32
        %v5449 = vpop.permute.xlu0 %5448
        %5450 = vrot.lane.b32.xlu0 %v5407, 32
        %v5451 = vpop.permute.xlu0 %5450
        %5452 = vrot.lane.b32.xlu0 %v5408, 32
        %v5453 = vpop.permute.xlu0 %5452
        %5454 = vrot.lane.b32.xlu0 %v5409, 32
        %v5455 = vpop.permute.xlu0 %5454
        %5456 = vrot.lane.b32.xlu0 %v5410, 32
        %v5457 = vpop.permute.xlu0 %5456
        %5458 = vrot.lane.b32.xlu0 %v5411, 32
        %v5459 = vpop.permute.xlu0 %5458
        %5476 = vmatprep.subr.mxu0 0.0
        %5477 = vmatpush1.msra.mxu0 %v5459
        %5478 = vmatprep.subr.mxu0 0.0
        %5479 = vmatpush1.msra.mxu0 %v5457
        %5480 = vmatprep.subr.mxu0 0.0
        %5481 = vmatpush1.msra.mxu0 %v5455
        %5482 = vmatprep.subr.mxu0 0.0
        %5483 = vmatpush1.msra.mxu0 %v5453
        %5484 = vmatprep.subr.mxu0 0.0
        %5485 = vmatpush1.msra.mxu0 %v5451
        %5486 = vmatprep.subr.mxu0 0.0
        %5487 = vmatpush1.msra.mxu0 %v5449
        %5488 = vmatprep.subr.mxu0 0.0
        %5489 = vmatpush1.msra.mxu0 %v5447
        %5490 = vmatprep.subr.mxu0 0.0
        %5491 = vmatpush1.msra.mxu0 %v5445
        %5492 = vmatprep.subr.mxu0 0.0
        %5493 = vmatpush1.msra.mxu0 %v5443
        %5494 = vmatprep.subr.mxu0 0.0
        %5495 = vmatpush1.msra.mxu0 %v5441
        %5496 = vmatprep.subr.mxu0 0.0
        %5497 = vmatpush1.msra.mxu0 %v5439
        %5498 = vmatprep.subr.mxu0 0.0
        %5499 = vmatpush1.msra.mxu0 %v5437
        %5500 = vmatprep.subr.mxu0 0.0
        %5501 = vmatpush1.msra.mxu0 %v5435
        %5502 = vmatprep.subr.mxu0 0.0
        %5503 = vmatpush1.msra.mxu0 %v5433
        %5504 = vmatprep.subr.mxu0 0.0
        %5505 = vmatpush1.msra.mxu0 %v5431
        %5506 = vmatprep.subr.mxu0 0.0
        %5507 = vmatpush1.msra.mxu0 %v5429
        %5508 = vmatprep.subr.mxu0 0.0
        %5509 = vmatpush2.msra.mxu0 0.0
        %5510 = vmatprep.subr.mxu0 0.0
        %5511 = vmatpush2.msra.mxu0 0.0
        %5512 = vmatprep.subr.mxu0 0.0
        %5513 = vmatpush2.msra.mxu0 0.0
        %5514 = vmatprep.subr.mxu0 0.0
        %5515 = vmatpush2.msra.mxu0 0.0
        %5516 = vmatprep.subr.mxu0 0.0
        %5517 = vmatpush2.msra.mxu0 0.0
        %5518 = vmatprep.subr.mxu0 0.0
        %5519 = vmatpush2.msra.mxu0 0.0
        %5520 = vmatprep.subr.mxu0 0.0
        %5521 = vmatpush2.msra.mxu0 0.0
        %5522 = vmatprep.subr.mxu0 0.0
        %5523 = vmatpush2.msra.mxu0 0.0
        %5524 = vmatprep.subr.mxu0 0.0
        %5525 = vmatpush2.msra.mxu0 0.0
        %5526 = vmatprep.subr.mxu0 0.0
        %5527 = vmatpush2.msra.mxu0 0.0
        %5528 = vmatprep.subr.mxu0 0.0
        %5529 = vmatpush2.msra.mxu0 0.0
        %5530 = vmatprep.subr.mxu0 0.0
        %5531 = vmatpush2.msra.mxu0 0.0
        %5532 = vmatprep.subr.mxu0 0.0
        %5533 = vmatpush2.msra.mxu0 0.0
        %5534 = vmatprep.subr.mxu0 0.0
        %5535 = vmatpush2.msra.mxu0 0.0
        %5536 = vmatprep.subr.mxu0 0.0
        %5537 = vmatpush2.msra.mxu0 0.0
        %5538 = vmatprep.subr.mxu0 0.0
        %5539 = vmatpush2.msra.mxu0 0.0
        %5540 = vmatprep.mubr.f32.mxu0 0.0
        %5541 = vmatmul.mubr.f32.gmra.mxu0 %v5317
        %v5542 = vpop.f32.mrf.mxu0
        %v5543 = vadd.f32 0.0, %v5542
        %v5544 = vpop.f32.mrf.mxu0
        %5545 = vmatprep.mubr.f32.mxu0 0.0
        %5546 = vmatmul.mubr.f32.gmra.mxu0 %v5319
        %v5547 = vpop.f32.mrf.mxu0
        %v5548 = vadd.f32 0.0, %v5547
        %v5549 = vpop.f32.mrf.mxu0
        %5550 = vmatprep.mubr.f32.mxu0 0.0
        %5551 = vmatmul.mubr.f32.gmra.mxu0 %v5321
        %v5552 = vpop.f32.mrf.mxu0
        %v5553 = vadd.f32 0.0, %v5552
        %v5554 = vpop.f32.mrf.mxu0
        %5555 = vmatprep.mubr.f32.mxu0 0.0
        %5556 = vmatmul.mubr.f32.gmra.mxu0 %v5323
        %v5557 = vpop.f32.mrf.mxu0
        %v5558 = vadd.f32 0.0, %v5557
        %v5559 = vpop.f32.mrf.mxu0
        %5560 = vmatprep.mubr.f32.mxu0 0.0
        %5561 = vmatmul.mubr.f32.gmra.mxu0 %v5325
        %v5562 = vpop.f32.mrf.mxu0
        %v5563 = vadd.f32 0.0, %v5562
        %v5564 = vpop.f32.mrf.mxu0
        %5565 = vmatprep.mubr.f32.mxu0 0.0
        %5566 = vmatmul.mubr.f32.gmra.mxu0 %v5327
        %v5567 = vpop.f32.mrf.mxu0
        %v5568 = vadd.f32 0.0, %v5567
        %v5569 = vpop.f32.mrf.mxu0
        %5570 = vmatprep.mubr.f32.mxu0 0.0
        %5571 = vmatmul.mubr.f32.gmra.mxu0 %v5329
        %v5572 = vpop.f32.mrf.mxu0
        %v5573 = vadd.f32 0.0, %v5572
        %v5574 = vpop.f32.mrf.mxu0
        %5575 = vmatprep.mubr.f32.mxu0 0.0
        %5576 = vmatmul.mubr.f32.gmra.mxu0 %v5331
        %v5577 = vpop.f32.mrf.mxu0
        %v5578 = vadd.f32 0.0, %v5577
        %v5579 = vpop.f32.mrf.mxu0
        %5580 = vmatprep.mubr.f32.mxu0 0.0
        %5581 = vmatmul.mubr.f32.gmra.mxu0 %v5333
        %v5582 = vpop.f32.mrf.mxu0
        %v5583 = vadd.f32 0.0, %v5582
        %v5584 = vpop.f32.mrf.mxu0
        %5585 = vmatprep.mubr.f32.mxu0 0.0
        %5586 = vmatmul.mubr.f32.gmra.mxu0 %v5335
        %v5587 = vpop.f32.mrf.mxu0
        %v5588 = vadd.f32 0.0, %v5587
        %v5589 = vpop.f32.mrf.mxu0
        %5590 = vmatprep.mubr.f32.mxu0 0.0
        %5591 = vmatmul.mubr.f32.gmra.mxu0 %v5337
        %v5592 = vpop.f32.mrf.mxu0
        %v5593 = vadd.f32 0.0, %v5592
        %v5594 = vpop.f32.mrf.mxu0
        %5595 = vmatprep.mubr.f32.mxu0 0.0
        %5596 = vmatmul.mubr.f32.gmra.mxu0 %v5339
        %v5597 = vpop.f32.mrf.mxu0
        %v5598 = vadd.f32 0.0, %v5597
        %v5599 = vpop.f32.mrf.mxu0
        %5600 = vmatprep.mubr.f32.mxu0 0.0
        %5601 = vmatmul.mubr.f32.gmra.mxu0 %v5341
        %v5602 = vpop.f32.mrf.mxu0
        %v5603 = vadd.f32 0.0, %v5602
        %v5604 = vpop.f32.mrf.mxu0
        %5605 = vmatprep.mubr.f32.mxu0 0.0
        %5606 = vmatmul.mubr.f32.gmra.mxu0 %v5343
        %v5607 = vpop.f32.mrf.mxu0
        %v5608 = vadd.f32 0.0, %v5607
        %v5609 = vpop.f32.mrf.mxu0
        %5610 = vmatprep.mubr.f32.mxu0 0.0
        %5611 = vmatmul.mubr.f32.gmra.mxu0 %v5345
        %v5612 = vpop.f32.mrf.mxu0
        %v5613 = vadd.f32 0.0, %v5612
        %v5614 = vpop.f32.mrf.mxu0
        %5615 = vmatprep.mubr.f32.mxu0 0.0
        %5616 = vmatmul.mubr.f32.gmra.mxu0 %v5347
        %v5617 = vpop.f32.mrf.mxu0
        %v5618 = vadd.f32 0.0, %v5617
        %v5619 = vpop.f32.mrf.mxu0
        %5620 = vdwg.mxu0
        %v5621 = vmul.f32 %v5543, %v5380
        %v5622 = vmul.f32 %v5548, %v5381
        %v5623 = vmul.f32 %v5553, %v5382
        %v5624 = vmul.f32 %v5558, %v5383
        %v5625 = vmul.f32 %v5563, %v5384
        %v5626 = vmul.f32 %v5568, %v5385
        %v5627 = vmul.f32 %v5573, %v5386
        %v5628 = vmul.f32 %v5578, %v5387
        %v5629 = vmul.f32 %v5583, %v5388
        %v5630 = vmul.f32 %v5588, %v5389
        %v5631 = vmul.f32 %v5593, %v5390
        %v5632 = vmul.f32 %v5598, %v5391
        %v5633 = vmul.f32 %v5603, %v5392
        %v5634 = vmul.f32 %v5608, %v5393
        %v5635 = vmul.f32 %v5613, %v5394
        %v5636 = vmul.f32 %v5618, %v5395
        %5653 = vrot.lane.b32.xlu0 %v5621, 96
        %v5654 = vpop.permute.xlu0 %5653
        %5655 = vrot.lane.b32.xlu0 %v5622, 96
        %v5656 = vpop.permute.xlu0 %5655
        %5657 = vrot.lane.b32.xlu0 %v5623, 96
        %v5658 = vpop.permute.xlu0 %5657
        %5659 = vrot.lane.b32.xlu0 %v5624, 96
        %v5660 = vpop.permute.xlu0 %5659
        %5661 = vrot.lane.b32.xlu0 %v5625, 96
        %v5662 = vpop.permute.xlu0 %5661
        %5663 = vrot.lane.b32.xlu0 %v5626, 96
        %v5664 = vpop.permute.xlu0 %5663
        %5665 = vrot.lane.b32.xlu0 %v5627, 96
        %v5666 = vpop.permute.xlu0 %5665
        %5667 = vrot.lane.b32.xlu0 %v5628, 96
        %v5668 = vpop.permute.xlu0 %5667
        %5669 = vrot.lane.b32.xlu0 %v5629, 96
        %v5670 = vpop.permute.xlu0 %5669
        %5671 = vrot.lane.b32.xlu0 %v5630, 96
        %v5672 = vpop.permute.xlu0 %5671
        %5673 = vrot.lane.b32.xlu0 %v5631, 96
        %v5674 = vpop.permute.xlu0 %5673
        %5675 = vrot.lane.b32.xlu0 %v5632, 96
        %v5676 = vpop.permute.xlu0 %5675
        %5677 = vrot.lane.b32.xlu0 %v5633, 96
        %v5678 = vpop.permute.xlu0 %5677
        %5679 = vrot.lane.b32.xlu0 %v5634, 96
        %v5680 = vpop.permute.xlu0 %5679
        %5681 = vrot.lane.b32.xlu0 %v5635, 96
        %v5682 = vpop.permute.xlu0 %5681
        %5683 = vrot.lane.b32.xlu0 %v5636, 96
        %v5684 = vpop.permute.xlu0 %5683
        %vm5701 = vcmask 917248
        %5702 = vst.msk [vmem:[#allocation5] sm:$0xff] %vm5701, %v5654
        %5703 = vst.msk [vmem:[#allocation5 + $0x8] sm:$0xff] %vm5701, %v5656
        %5704 = vst.msk [vmem:[#allocation5 + $0x10] sm:$0xff] %vm5701, %v5658
        %5705 = vst.msk [vmem:[#allocation5 + $0x18] sm:$0xff] %vm5701, %v5660
        %5706 = vst.msk [vmem:[#allocation5 + $0x20] sm:$0xff] %vm5701, %v5662
        %5707 = vst.msk [vmem:[#allocation5 + $0x28] sm:$0xff] %vm5701, %v5664
        %5708 = vst.msk [vmem:[#allocation5 + $0x30] sm:$0xff] %vm5701, %v5666
        %5709 = vst.msk [vmem:[#allocation5 + $0x38] sm:$0xff] %vm5701, %v5668
        %5710 = vst.msk [vmem:[#allocation5 + $0x40] sm:$0xff] %vm5701, %v5670
        %5711 = vst.msk [vmem:[#allocation5 + $0x48] sm:$0xff] %vm5701, %v5672
        %5712 = vst.msk [vmem:[#allocation5 + $0x50] sm:$0xff] %vm5701, %v5674
        %5713 = vst.msk [vmem:[#allocation5 + $0x58] sm:$0xff] %vm5701, %v5676
        %5714 = vst.msk [vmem:[#allocation5 + $0x60] sm:$0xff] %vm5701, %v5678
        %5715 = vst.msk [vmem:[#allocation5 + $0x68] sm:$0xff] %vm5701, %v5680
        %5716 = vst.msk [vmem:[#allocation5 + $0x70] sm:$0xff] %vm5701, %v5682
        %5717 = vst.msk [vmem:[#allocation5 + $0x78] sm:$0xff] %vm5701, %v5684
        %v5718 = vld [vmem:[#allocation4] sm:$0xff]
        %v5719 = vld [vmem:[#allocation4 + $0x8] sm:$0xff]
        %v5720 = vld [vmem:[#allocation4 + $0x10] sm:$0xff]
        %v5721 = vld [vmem:[#allocation4 + $0x18] sm:$0xff]
        %v5722 = vld [vmem:[#allocation4 + $0x20] sm:$0xff]
        %v5723 = vld [vmem:[#allocation4 + $0x28] sm:$0xff]
        %v5724 = vld [vmem:[#allocation4 + $0x30] sm:$0xff]
        %v5725 = vld [vmem:[#allocation4 + $0x38] sm:$0xff]
        %v5726 = vld [vmem:[#allocation4 + $0x40] sm:$0xff]
        %v5727 = vld [vmem:[#allocation4 + $0x48] sm:$0xff]
        %v5728 = vld [vmem:[#allocation4 + $0x50] sm:$0xff]
        %v5729 = vld [vmem:[#allocation4 + $0x58] sm:$0xff]
        %v5730 = vld [vmem:[#allocation4 + $0x60] sm:$0xff]
        %v5731 = vld [vmem:[#allocation4 + $0x68] sm:$0xff]
        %v5732 = vld [vmem:[#allocation4 + $0x70] sm:$0xff]
        %v5733 = vld [vmem:[#allocation4 + $0x78] sm:$0xff]
        %s5734 = scalar_lea.vmem [#allocation2], 112
        %v5735 = vld [vmem:[%s5734] sm:$0xff]
        %v5736 = vld [vmem:[%s5734 + $0x8] sm:$0xff]
        %5753 = vrot.lane.b32.xlu0 %v5718, 16
        %v5754 = vpop.permute.xlu0 %5753
        %5755 = vrot.lane.b32.xlu0 %v5719, 16
        %v5756 = vpop.permute.xlu0 %5755
        %5757 = vrot.lane.b32.xlu0 %v5720, 16
        %v5758 = vpop.permute.xlu0 %5757
        %5759 = vrot.lane.b32.xlu0 %v5721, 16
        %v5760 = vpop.permute.xlu0 %5759
        %5761 = vrot.lane.b32.xlu0 %v5722, 16
        %v5762 = vpop.permute.xlu0 %5761
        %5763 = vrot.lane.b32.xlu0 %v5723, 16
        %v5764 = vpop.permute.xlu0 %5763
        %5765 = vrot.lane.b32.xlu0 %v5724, 16
        %v5766 = vpop.permute.xlu0 %5765
        %5767 = vrot.lane.b32.xlu0 %v5725, 16
        %v5768 = vpop.permute.xlu0 %5767
        %5769 = vrot.lane.b32.xlu0 %v5726, 16
        %v5770 = vpop.permute.xlu0 %5769
        %5771 = vrot.lane.b32.xlu0 %v5727, 16
        %v5772 = vpop.permute.xlu0 %5771
        %5773 = vrot.lane.b32.xlu0 %v5728, 16
        %v5774 = vpop.permute.xlu0 %5773
        %5775 = vrot.lane.b32.xlu0 %v5729, 16
        %v5776 = vpop.permute.xlu0 %5775
        %5777 = vrot.lane.b32.xlu0 %v5730, 16
        %v5778 = vpop.permute.xlu0 %5777
        %5779 = vrot.lane.b32.xlu0 %v5731, 16
        %v5780 = vpop.permute.xlu0 %5779
        %5781 = vrot.lane.b32.xlu0 %v5732, 16
        %v5782 = vpop.permute.xlu0 %5781
        %5783 = vrot.lane.b32.xlu0 %v5733, 16
        %v5784 = vpop.permute.xlu0 %5783
        %v5785 = vsel %vm1039, %v5754, 0
        %v5787 = vsel %vm1039, %v5756, 0
        %v5789 = vsel %vm1039, %v5758, 0
        %v5791 = vsel %vm1039, %v5760, 0
        %v5793 = vsel %vm1039, %v5762, 0
        %v5795 = vsel %vm1039, %v5764, 0
        %v5797 = vsel %vm1039, %v5766, 0
        %v5799 = vsel %vm1039, %v5768, 0
        %v5801 = vsel %vm1039, %v5770, 0
        %v5803 = vsel %vm1039, %v5772, 0
        %v5805 = vsel %vm1039, %v5774, 0
        %v5807 = vsel %vm1039, %v5776, 0
        %v5809 = vsel %vm1039, %v5778, 0
        %v5811 = vsel %vm1039, %v5780, 0
        %v5813 = vsel %vm1039, %v5782, 0
        %v5815 = vsel %vm1039, %v5784, 0
        %5817 = vmatprep.subr.mxu0 0.0
        %5818 = vmatpush1.msra.mxu0 0.0
        %5819 = vmatprep.subr.mxu0 0.0
        %5820 = vmatpush1.msra.mxu0 0.0
        %5821 = vmatprep.subr.mxu0 0.0
        %5822 = vmatpush1.msra.mxu0 0.0
        %5823 = vmatprep.subr.mxu0 0.0
        %5824 = vmatpush1.msra.mxu0 0.0
        %5825 = vmatprep.subr.mxu0 0.0
        %5826 = vmatpush1.msra.mxu0 0.0
        %5827 = vmatprep.subr.mxu0 0.0
        %5828 = vmatpush1.msra.mxu0 0.0
        %5829 = vmatprep.subr.mxu0 0.0
        %5830 = vmatpush1.msra.mxu0 0.0
        %5831 = vmatprep.subr.mxu0 0.0
        %5832 = vmatpush1.msra.mxu0 0.0
        %5833 = vmatprep.subr.mxu0 0.0
        %5834 = vmatpush1.msra.mxu0 0.0
        %5835 = vmatprep.subr.mxu0 0.0
        %5836 = vmatpush1.msra.mxu0 0.0
        %5837 = vmatprep.subr.mxu0 0.0
        %5838 = vmatpush1.msra.mxu0 0.0
        %5839 = vmatprep.subr.mxu0 0.0
        %5840 = vmatpush1.msra.mxu0 0.0
        %5841 = vmatprep.subr.mxu0 0.0
        %5842 = vmatpush1.msra.mxu0 0.0
        %5843 = vmatprep.subr.mxu0 0.0
        %5844 = vmatpush1.msra.mxu0 0.0
        %5845 = vmatprep.subr.mxu0 0.0
        %5846 = vmatpush1.msra.mxu0 %v5736
        %5847 = vmatprep.subr.mxu0 0.0
        %5848 = vmatpush1.msra.mxu0 %v5735
        %5849 = vmatprep.subr.mxu0 0.0
        %5850 = vmatpush2.msra.mxu0 0.0
        %5851 = vmatprep.subr.mxu0 0.0
        %5852 = vmatpush2.msra.mxu0 0.0
        %5853 = vmatprep.subr.mxu0 0.0
        %5854 = vmatpush2.msra.mxu0 0.0
        %5855 = vmatprep.subr.mxu0 0.0
        %5856 = vmatpush2.msra.mxu0 0.0
        %5857 = vmatprep.subr.mxu0 0.0
        %5858 = vmatpush2.msra.mxu0 0.0
        %5859 = vmatprep.subr.mxu0 0.0
        %5860 = vmatpush2.msra.mxu0 0.0
        %5861 = vmatprep.subr.mxu0 0.0
        %5862 = vmatpush2.msra.mxu0 0.0
        %5863 = vmatprep.subr.mxu0 0.0
        %5864 = vmatpush2.msra.mxu0 0.0
        %5865 = vmatprep.subr.mxu0 0.0
        %5866 = vmatpush2.msra.mxu0 0.0
        %5867 = vmatprep.subr.mxu0 0.0
        %5868 = vmatpush2.msra.mxu0 0.0
        %5869 = vmatprep.subr.mxu0 0.0
        %5870 = vmatpush2.msra.mxu0 0.0
        %5871 = vmatprep.subr.mxu0 0.0
        %5872 = vmatpush2.msra.mxu0 0.0
        %5873 = vmatprep.subr.mxu0 0.0
        %5874 = vmatpush2.msra.mxu0 0.0
        %5875 = vmatprep.subr.mxu0 0.0
        %5876 = vmatpush2.msra.mxu0 0.0
        %5877 = vmatprep.subr.mxu0 0.0
        %5878 = vmatpush2.msra.mxu0 0.0
        %5879 = vmatprep.subr.mxu0 0.0
        %5880 = vmatpush2.msra.mxu0 0.0
        %5881 = vmatprep.mubr.f32.mxu0 0.0
        %5882 = vmatmul.mubr.f32.gmra.mxu0 %v5785
        %v5883 = vpop.f32.mrf.mxu0
        %v5884 = vadd.f32 0.0, %v5883
        %v5885 = vpop.f32.mrf.mxu0
        %5886 = vmatprep.mubr.f32.mxu0 0.0
        %5887 = vmatmul.mubr.f32.gmra.mxu0 %v5787
        %v5888 = vpop.f32.mrf.mxu0
        %v5889 = vadd.f32 0.0, %v5888
        %v5890 = vpop.f32.mrf.mxu0
        %5891 = vmatprep.mubr.f32.mxu0 0.0
        %5892 = vmatmul.mubr.f32.gmra.mxu0 %v5789
        %v5893 = vpop.f32.mrf.mxu0
        %v5894 = vadd.f32 0.0, %v5893
        %v5895 = vpop.f32.mrf.mxu0
        %5896 = vmatprep.mubr.f32.mxu0 0.0
        %5897 = vmatmul.mubr.f32.gmra.mxu0 %v5791
        %v5898 = vpop.f32.mrf.mxu0
        %v5899 = vadd.f32 0.0, %v5898
        %v5900 = vpop.f32.mrf.mxu0
        %5901 = vmatprep.mubr.f32.mxu0 0.0
        %5902 = vmatmul.mubr.f32.gmra.mxu0 %v5793
        %v5903 = vpop.f32.mrf.mxu0
        %v5904 = vadd.f32 0.0, %v5903
        %v5905 = vpop.f32.mrf.mxu0
        %5906 = vmatprep.mubr.f32.mxu0 0.0
        %5907 = vmatmul.mubr.f32.gmra.mxu0 %v5795
        %v5908 = vpop.f32.mrf.mxu0
        %v5909 = vadd.f32 0.0, %v5908
        %v5910 = vpop.f32.mrf.mxu0
        %5911 = vmatprep.mubr.f32.mxu0 0.0
        %5912 = vmatmul.mubr.f32.gmra.mxu0 %v5797
        %v5913 = vpop.f32.mrf.mxu0
        %v5914 = vadd.f32 0.0, %v5913
        %v5915 = vpop.f32.mrf.mxu0
        %5916 = vmatprep.mubr.f32.mxu0 0.0
        %5917 = vmatmul.mubr.f32.gmra.mxu0 %v5799
        %v5918 = vpop.f32.mrf.mxu0
        %v5919 = vadd.f32 0.0, %v5918
        %v5920 = vpop.f32.mrf.mxu0
        %5921 = vmatprep.mubr.f32.mxu0 0.0
        %5922 = vmatmul.mubr.f32.gmra.mxu0 %v5801
        %v5923 = vpop.f32.mrf.mxu0
        %v5924 = vadd.f32 0.0, %v5923
        %v5925 = vpop.f32.mrf.mxu0
        %5926 = vmatprep.mubr.f32.mxu0 0.0
        %5927 = vmatmul.mubr.f32.gmra.mxu0 %v5803
        %v5928 = vpop.f32.mrf.mxu0
        %v5929 = vadd.f32 0.0, %v5928
        %v5930 = vpop.f32.mrf.mxu0
        %5931 = vmatprep.mubr.f32.mxu0 0.0
        %5932 = vmatmul.mubr.f32.gmra.mxu0 %v5805
        %v5933 = vpop.f32.mrf.mxu0
        %v5934 = vadd.f32 0.0, %v5933
        %v5935 = vpop.f32.mrf.mxu0
        %5936 = vmatprep.mubr.f32.mxu0 0.0
        %5937 = vmatmul.mubr.f32.gmra.mxu0 %v5807
        %v5938 = vpop.f32.mrf.mxu0
        %v5939 = vadd.f32 0.0, %v5938
        %v5940 = vpop.f32.mrf.mxu0
        %5941 = vmatprep.mubr.f32.mxu0 0.0
        %5942 = vmatmul.mubr.f32.gmra.mxu0 %v5809
        %v5943 = vpop.f32.mrf.mxu0
        %v5944 = vadd.f32 0.0, %v5943
        %v5945 = vpop.f32.mrf.mxu0
        %5946 = vmatprep.mubr.f32.mxu0 0.0
        %5947 = vmatmul.mubr.f32.gmra.mxu0 %v5811
        %v5948 = vpop.f32.mrf.mxu0
        %v5949 = vadd.f32 0.0, %v5948
        %v5950 = vpop.f32.mrf.mxu0
        %5951 = vmatprep.mubr.f32.mxu0 0.0
        %5952 = vmatmul.mubr.f32.gmra.mxu0 %v5813
        %v5953 = vpop.f32.mrf.mxu0
        %v5954 = vadd.f32 0.0, %v5953
        %v5955 = vpop.f32.mrf.mxu0
        %5956 = vmatprep.mubr.f32.mxu0 0.0
        %5957 = vmatmul.mubr.f32.gmra.mxu0 %v5815
        %v5958 = vpop.f32.mrf.mxu0
        %v5959 = vadd.f32 0.0, %v5958
        %v5960 = vpop.f32.mrf.mxu0
        %5961 = vdwg.mxu0
        %5962 = vmax.xlane.f32.xlu0 %v5884
        %v5963 = vpop.xlane.xlu0 %5962
        %5964 = vmax.xlane.f32.xlu0 %v5889
        %v5965 = vpop.xlane.xlu0 %5964
        %5966 = vmax.xlane.f32.xlu0 %v5894
        %v5967 = vpop.xlane.xlu0 %5966
        %5968 = vmax.xlane.f32.xlu0 %v5899
        %v5969 = vpop.xlane.xlu0 %5968
        %5970 = vmax.xlane.f32.xlu0 %v5904
        %v5971 = vpop.xlane.xlu0 %5970
        %5972 = vmax.xlane.f32.xlu0 %v5909
        %v5973 = vpop.xlane.xlu0 %5972
        %5974 = vmax.xlane.f32.xlu0 %v5914
        %v5975 = vpop.xlane.xlu0 %5974
        %5976 = vmax.xlane.f32.xlu0 %v5919
        %v5977 = vpop.xlane.xlu0 %5976
        %5978 = vmax.xlane.f32.xlu0 %v5924
        %v5979 = vpop.xlane.xlu0 %5978
        %5980 = vmax.xlane.f32.xlu0 %v5929
        %v5981 = vpop.xlane.xlu0 %5980
        %5982 = vmax.xlane.f32.xlu0 %v5934
        %v5983 = vpop.xlane.xlu0 %5982
        %5984 = vmax.xlane.f32.xlu0 %v5939
        %v5985 = vpop.xlane.xlu0 %5984
        %5986 = vmax.xlane.f32.xlu0 %v5944
        %v5987 = vpop.xlane.xlu0 %5986
        %5988 = vmax.xlane.f32.xlu0 %v5949
        %v5989 = vpop.xlane.xlu0 %5988
        %5990 = vmax.xlane.f32.xlu0 %v5954
        %v5991 = vpop.xlane.xlu0 %5990
        %5992 = vmax.xlane.f32.xlu0 %v5959
        %v5993 = vpop.xlane.xlu0 %5992
        %v5994 = vsub.f32 %v5884, %v5963
        %v5995 = vsub.f32 %v5889, %v5965
        %v5996 = vsub.f32 %v5894, %v5967
        %v5997 = vsub.f32 %v5899, %v5969
        %v5998 = vsub.f32 %v5904, %v5971
        %v5999 = vsub.f32 %v5909, %v5973
        %v6000 = vsub.f32 %v5914, %v5975
        %v6001 = vsub.f32 %v5919, %v5977
        %v6002 = vsub.f32 %v5924, %v5979
        %v6003 = vsub.f32 %v5929, %v5981
        %v6004 = vsub.f32 %v5934, %v5983
        %v6005 = vsub.f32 %v5939, %v5985
        %v6006 = vsub.f32 %v5944, %v5987
        %v6007 = vsub.f32 %v5949, %v5989
        %v6008 = vsub.f32 %v5954, %v5991
        %v6009 = vsub.f32 %v5959, %v5993
        %v6010 = vmul.f32 %v5994, 1.442695
        %v6011 = vpow.pop %v6010
        %v6012 = vmul.f32 %v5995, 1.442695
        %v6013 = vpow.pop %v6012
        %v6014 = vmul.f32 %v5996, 1.442695
        %v6015 = vpow.pop %v6014
        %v6016 = vmul.f32 %v5997, 1.442695
        %v6017 = vpow.pop %v6016
        %v6018 = vmul.f32 %v5998, 1.442695
        %v6019 = vpow.pop %v6018
        %v6020 = vmul.f32 %v5999, 1.442695
        %v6021 = vpow.pop %v6020
        %v6022 = vmul.f32 %v6000, 1.442695
        %v6023 = vpow.pop %v6022
        %v6024 = vmul.f32 %v6001, 1.442695
        %v6025 = vpow.pop %v6024
        %v6026 = vmul.f32 %v6002, 1.442695
        %v6027 = vpow.pop %v6026
        %v6028 = vmul.f32 %v6003, 1.442695
        %v6029 = vpow.pop %v6028
        %v6030 = vmul.f32 %v6004, 1.442695
        %v6031 = vpow.pop %v6030
        %v6032 = vmul.f32 %v6005, 1.442695
        %v6033 = vpow.pop %v6032
        %v6034 = vmul.f32 %v6006, 1.442695
        %v6035 = vpow.pop %v6034
        %v6036 = vmul.f32 %v6007, 1.442695
        %v6037 = vpow.pop %v6036
        %v6038 = vmul.f32 %v6008, 1.442695
        %v6039 = vpow.pop %v6038
        %v6040 = vmul.f32 %v6009, 1.442695
        %v6041 = vpow.pop %v6040
        %6042 = vadd.xlane.f32.xlu0 %v6011
        %v6043 = vpop.xlane.xlu0 %6042
        %6044 = vadd.xlane.f32.xlu0 %v6013
        %v6045 = vpop.xlane.xlu0 %6044
        %6046 = vadd.xlane.f32.xlu0 %v6015
        %v6047 = vpop.xlane.xlu0 %6046
        %6048 = vadd.xlane.f32.xlu0 %v6017
        %v6049 = vpop.xlane.xlu0 %6048
        %6050 = vadd.xlane.f32.xlu0 %v6019
        %v6051 = vpop.xlane.xlu0 %6050
        %6052 = vadd.xlane.f32.xlu0 %v6021
        %v6053 = vpop.xlane.xlu0 %6052
        %6054 = vadd.xlane.f32.xlu0 %v6023
        %v6055 = vpop.xlane.xlu0 %6054
        %6056 = vadd.xlane.f32.xlu0 %v6025
        %v6057 = vpop.xlane.xlu0 %6056
        %6058 = vadd.xlane.f32.xlu0 %v6027
        %v6059 = vpop.xlane.xlu0 %6058
        %6060 = vadd.xlane.f32.xlu0 %v6029
        %v6061 = vpop.xlane.xlu0 %6060
        %6062 = vadd.xlane.f32.xlu0 %v6031
        %v6063 = vpop.xlane.xlu0 %6062
        %6064 = vadd.xlane.f32.xlu0 %v6033
        %v6065 = vpop.xlane.xlu0 %6064
        %6066 = vadd.xlane.f32.xlu0 %v6035
        %v6067 = vpop.xlane.xlu0 %6066
        %6068 = vadd.xlane.f32.xlu0 %v6037
        %v6069 = vpop.xlane.xlu0 %6068
        %6070 = vadd.xlane.f32.xlu0 %v6039
        %v6071 = vpop.xlane.xlu0 %6070
        %6072 = vadd.xlane.f32.xlu0 %v6041
        %v6073 = vpop.xlane.xlu0 %6072
        %v6074 = vrcp.pop %v6043
        %v6075 = vrcp.pop %v6045
        %v6076 = vrcp.pop %v6047
        %v6077 = vrcp.pop %v6049
        %v6078 = vrcp.pop %v6051
        %v6079 = vrcp.pop %v6053
        %v6080 = vrcp.pop %v6055
        %v6081 = vrcp.pop %v6057
        %v6082 = vrcp.pop %v6059
        %v6083 = vrcp.pop %v6061
        %v6084 = vrcp.pop %v6063
        %v6085 = vrcp.pop %v6065
        %v6086 = vrcp.pop %v6067
        %v6087 = vrcp.pop %v6069
        %v6088 = vrcp.pop %v6071
        %v6089 = vrcp.pop %v6073
        %v6090 = vld [vmem:[#allocation3] sm:$0xff]
        %v6091 = vld [vmem:[#allocation3 + $0x8] sm:$0xff]
        %v6092 = vld [vmem:[#allocation3 + $0x10] sm:$0xff]
        %v6093 = vld [vmem:[#allocation3 + $0x18] sm:$0xff]
        %v6094 = vld [vmem:[#allocation3 + $0x20] sm:$0xff]
        %v6095 = vld [vmem:[#allocation3 + $0x28] sm:$0xff]
        %v6096 = vld [vmem:[#allocation3 + $0x30] sm:$0xff]
        %v6097 = vld [vmem:[#allocation3 + $0x38] sm:$0xff]
        %v6098 = vld [vmem:[#allocation3 + $0x40] sm:$0xff]
        %v6099 = vld [vmem:[#allocation3 + $0x48] sm:$0xff]
        %v6100 = vld [vmem:[#allocation3 + $0x50] sm:$0xff]
        %v6101 = vld [vmem:[#allocation3 + $0x58] sm:$0xff]
        %v6102 = vld [vmem:[#allocation3 + $0x60] sm:$0xff]
        %v6103 = vld [vmem:[#allocation3 + $0x68] sm:$0xff]
        %v6104 = vld [vmem:[#allocation3 + $0x70] sm:$0xff]
        %v6105 = vld [vmem:[#allocation3 + $0x78] sm:$0xff]
        %6122 = vrot.lane.b32.xlu0 %v6090, 16
        %v6123 = vpop.permute.xlu0 %6122
        %6124 = vrot.lane.b32.xlu0 %v6091, 16
        %v6125 = vpop.permute.xlu0 %6124
        %6126 = vrot.lane.b32.xlu0 %v6092, 16
        %v6127 = vpop.permute.xlu0 %6126
        %6128 = vrot.lane.b32.xlu0 %v6093, 16
        %v6129 = vpop.permute.xlu0 %6128
        %6130 = vrot.lane.b32.xlu0 %v6094, 16
        %v6131 = vpop.permute.xlu0 %6130
        %6132 = vrot.lane.b32.xlu0 %v6095, 16
        %v6133 = vpop.permute.xlu0 %6132
        %6134 = vrot.lane.b32.xlu0 %v6096, 16
        %v6135 = vpop.permute.xlu0 %6134
        %6136 = vrot.lane.b32.xlu0 %v6097, 16
        %v6137 = vpop.permute.xlu0 %6136
        %6138 = vrot.lane.b32.xlu0 %v6098, 16
        %v6139 = vpop.permute.xlu0 %6138
        %6140 = vrot.lane.b32.xlu0 %v6099, 16
        %v6141 = vpop.permute.xlu0 %6140
        %6142 = vrot.lane.b32.xlu0 %v6100, 16
        %v6143 = vpop.permute.xlu0 %6142
        %6144 = vrot.lane.b32.xlu0 %v6101, 16
        %v6145 = vpop.permute.xlu0 %6144
        %6146 = vrot.lane.b32.xlu0 %v6102, 16
        %v6147 = vpop.permute.xlu0 %6146
        %6148 = vrot.lane.b32.xlu0 %v6103, 16
        %v6149 = vpop.permute.xlu0 %6148
        %6150 = vrot.lane.b32.xlu0 %v6104, 16
        %v6151 = vpop.permute.xlu0 %6150
        %6152 = vrot.lane.b32.xlu0 %v6105, 16
        %v6153 = vpop.permute.xlu0 %6152
        %6170 = vmatprep.subr.mxu0 0.0
        %6171 = vmatpush1.msra.mxu0 %v6153
        %6172 = vmatprep.subr.mxu0 0.0
        %6173 = vmatpush1.msra.mxu0 %v6151
        %6174 = vmatprep.subr.mxu0 0.0
        %6175 = vmatpush1.msra.mxu0 %v6149
        %6176 = vmatprep.subr.mxu0 0.0
        %6177 = vmatpush1.msra.mxu0 %v6147
        %6178 = vmatprep.subr.mxu0 0.0
        %6179 = vmatpush1.msra.mxu0 %v6145
        %6180 = vmatprep.subr.mxu0 0.0
        %6181 = vmatpush1.msra.mxu0 %v6143
        %6182 = vmatprep.subr.mxu0 0.0
        %6183 = vmatpush1.msra.mxu0 %v6141
        %6184 = vmatprep.subr.mxu0 0.0
        %6185 = vmatpush1.msra.mxu0 %v6139
        %6186 = vmatprep.subr.mxu0 0.0
        %6187 = vmatpush1.msra.mxu0 %v6137
        %6188 = vmatprep.subr.mxu0 0.0
        %6189 = vmatpush1.msra.mxu0 %v6135
        %6190 = vmatprep.subr.mxu0 0.0
        %6191 = vmatpush1.msra.mxu0 %v6133
        %6192 = vmatprep.subr.mxu0 0.0
        %6193 = vmatpush1.msra.mxu0 %v6131
        %6194 = vmatprep.subr.mxu0 0.0
        %6195 = vmatpush1.msra.mxu0 %v6129
        %6196 = vmatprep.subr.mxu0 0.0
        %6197 = vmatpush1.msra.mxu0 %v6127
        %6198 = vmatprep.subr.mxu0 0.0
        %6199 = vmatpush1.msra.mxu0 %v6125
        %6200 = vmatprep.subr.mxu0 0.0
        %6201 = vmatpush1.msra.mxu0 %v6123
        %6202 = vmatprep.subr.mxu0 0.0
        %6203 = vmatpush2.msra.mxu0 0.0
        %6204 = vmatprep.subr.mxu0 0.0
        %6205 = vmatpush2.msra.mxu0 0.0
        %6206 = vmatprep.subr.mxu0 0.0
        %6207 = vmatpush2.msra.mxu0 0.0
        %6208 = vmatprep.subr.mxu0 0.0
        %6209 = vmatpush2.msra.mxu0 0.0
        %6210 = vmatprep.subr.mxu0 0.0
        %6211 = vmatpush2.msra.mxu0 0.0
        %6212 = vmatprep.subr.mxu0 0.0
        %6213 = vmatpush2.msra.mxu0 0.0
        %6214 = vmatprep.subr.mxu0 0.0
        %6215 = vmatpush2.msra.mxu0 0.0
        %6216 = vmatprep.subr.mxu0 0.0
        %6217 = vmatpush2.msra.mxu0 0.0
        %6218 = vmatprep.subr.mxu0 0.0
        %6219 = vmatpush2.msra.mxu0 0.0
        %6220 = vmatprep.subr.mxu0 0.0
        %6221 = vmatpush2.msra.mxu0 0.0
        %6222 = vmatprep.subr.mxu0 0.0
        %6223 = vmatpush2.msra.mxu0 0.0
        %6224 = vmatprep.subr.mxu0 0.0
        %6225 = vmatpush2.msra.mxu0 0.0
        %6226 = vmatprep.subr.mxu0 0.0
        %6227 = vmatpush2.msra.mxu0 0.0
        %6228 = vmatprep.subr.mxu0 0.0
        %6229 = vmatpush2.msra.mxu0 0.0
        %6230 = vmatprep.subr.mxu0 0.0
        %6231 = vmatpush2.msra.mxu0 0.0
        %6232 = vmatprep.subr.mxu0 0.0
        %6233 = vmatpush2.msra.mxu0 0.0
        %6234 = vmatprep.mubr.f32.mxu0 0.0
        %6235 = vmatmul.mubr.f32.gmra.mxu0 %v6011
        %v6236 = vpop.f32.mrf.mxu0
        %v6237 = vadd.f32 0.0, %v6236
        %v6238 = vpop.f32.mrf.mxu0
        %6239 = vmatprep.mubr.f32.mxu0 0.0
        %6240 = vmatmul.mubr.f32.gmra.mxu0 %v6013
        %v6241 = vpop.f32.mrf.mxu0
        %v6242 = vadd.f32 0.0, %v6241
        %v6243 = vpop.f32.mrf.mxu0
        %6244 = vmatprep.mubr.f32.mxu0 0.0
        %6245 = vmatmul.mubr.f32.gmra.mxu0 %v6015
        %v6246 = vpop.f32.mrf.mxu0
        %v6247 = vadd.f32 0.0, %v6246
        %v6248 = vpop.f32.mrf.mxu0
        %6249 = vmatprep.mubr.f32.mxu0 0.0
        %6250 = vmatmul.mubr.f32.gmra.mxu0 %v6017
        %v6251 = vpop.f32.mrf.mxu0
        %v6252 = vadd.f32 0.0, %v6251
        %v6253 = vpop.f32.mrf.mxu0
        %6254 = vmatprep.mubr.f32.mxu0 0.0
        %6255 = vmatmul.mubr.f32.gmra.mxu0 %v6019
        %v6256 = vpop.f32.mrf.mxu0
        %v6257 = vadd.f32 0.0, %v6256
        %v6258 = vpop.f32.mrf.mxu0
        %6259 = vmatprep.mubr.f32.mxu0 0.0
        %6260 = vmatmul.mubr.f32.gmra.mxu0 %v6021
        %v6261 = vpop.f32.mrf.mxu0
        %v6262 = vadd.f32 0.0, %v6261
        %v6263 = vpop.f32.mrf.mxu0
        %6264 = vmatprep.mubr.f32.mxu0 0.0
        %6265 = vmatmul.mubr.f32.gmra.mxu0 %v6023
        %v6266 = vpop.f32.mrf.mxu0
        %v6267 = vadd.f32 0.0, %v6266
        %v6268 = vpop.f32.mrf.mxu0
        %6269 = vmatprep.mubr.f32.mxu0 0.0
        %6270 = vmatmul.mubr.f32.gmra.mxu0 %v6025
        %v6271 = vpop.f32.mrf.mxu0
        %v6272 = vadd.f32 0.0, %v6271
        %v6273 = vpop.f32.mrf.mxu0
        %6274 = vmatprep.mubr.f32.mxu0 0.0
        %6275 = vmatmul.mubr.f32.gmra.mxu0 %v6027
        %v6276 = vpop.f32.mrf.mxu0
        %v6277 = vadd.f32 0.0, %v6276
        %v6278 = vpop.f32.mrf.mxu0
        %6279 = vmatprep.mubr.f32.mxu0 0.0
        %6280 = vmatmul.mubr.f32.gmra.mxu0 %v6029
        %v6281 = vpop.f32.mrf.mxu0
        %v6282 = vadd.f32 0.0, %v6281
        %v6283 = vpop.f32.mrf.mxu0
        %6284 = vmatprep.mubr.f32.mxu0 0.0
        %6285 = vmatmul.mubr.f32.gmra.mxu0 %v6031
        %v6286 = vpop.f32.mrf.mxu0
        %v6287 = vadd.f32 0.0, %v6286
        %v6288 = vpop.f32.mrf.mxu0
        %6289 = vmatprep.mubr.f32.mxu0 0.0
        %6290 = vmatmul.mubr.f32.gmra.mxu0 %v6033
        %v6291 = vpop.f32.mrf.mxu0
        %v6292 = vadd.f32 0.0, %v6291
        %v6293 = vpop.f32.mrf.mxu0
        %6294 = vmatprep.mubr.f32.mxu0 0.0
        %6295 = vmatmul.mubr.f32.gmra.mxu0 %v6035
        %v6296 = vpop.f32.mrf.mxu0
        %v6297 = vadd.f32 0.0, %v6296
        %v6298 = vpop.f32.mrf.mxu0
        %6299 = vmatprep.mubr.f32.mxu0 0.0
        %6300 = vmatmul.mubr.f32.gmra.mxu0 %v6037
        %v6301 = vpop.f32.mrf.mxu0
        %v6302 = vadd.f32 0.0, %v6301
        %v6303 = vpop.f32.mrf.mxu0
        %6304 = vmatprep.mubr.f32.mxu0 0.0
        %6305 = vmatmul.mubr.f32.gmra.mxu0 %v6039
        %v6306 = vpop.f32.mrf.mxu0
        %v6307 = vadd.f32 0.0, %v6306
        %v6308 = vpop.f32.mrf.mxu0
        %6309 = vmatprep.mubr.f32.mxu0 0.0
        %6310 = vmatmul.mubr.f32.gmra.mxu0 %v6041
        %v6311 = vpop.f32.mrf.mxu0
        %v6312 = vadd.f32 0.0, %v6311
        %v6313 = vpop.f32.mrf.mxu0
        %6314 = vdwg.mxu0
        %v6315 = vmul.f32 %v6237, %v6074
        %v6316 = vmul.f32 %v6242, %v6075
        %v6317 = vmul.f32 %v6247, %v6076
        %v6318 = vmul.f32 %v6252, %v6077
        %v6319 = vmul.f32 %v6257, %v6078
        %v6320 = vmul.f32 %v6262, %v6079
        %v6321 = vmul.f32 %v6267, %v6080
        %v6322 = vmul.f32 %v6272, %v6081
        %v6323 = vmul.f32 %v6277, %v6082
        %v6324 = vmul.f32 %v6282, %v6083
        %v6325 = vmul.f32 %v6287, %v6084
        %v6326 = vmul.f32 %v6292, %v6085
        %v6327 = vmul.f32 %v6297, %v6086
        %v6328 = vmul.f32 %v6302, %v6087
        %v6329 = vmul.f32 %v6307, %v6088
        %v6330 = vmul.f32 %v6312, %v6089
        %6347 = vrot.lane.b32.xlu0 %v6315, 112
        %v6348 = vpop.permute.xlu0 %6347
        %6349 = vrot.lane.b32.xlu0 %v6316, 112
        %v6350 = vpop.permute.xlu0 %6349
        %6351 = vrot.lane.b32.xlu0 %v6317, 112
        %v6352 = vpop.permute.xlu0 %6351
        %6353 = vrot.lane.b32.xlu0 %v6318, 112
        %v6354 = vpop.permute.xlu0 %6353
        %6355 = vrot.lane.b32.xlu0 %v6319, 112
        %v6356 = vpop.permute.xlu0 %6355
        %6357 = vrot.lane.b32.xlu0 %v6320, 112
        %v6358 = vpop.permute.xlu0 %6357
        %6359 = vrot.lane.b32.xlu0 %v6321, 112
        %v6360 = vpop.permute.xlu0 %6359
        %6361 = vrot.lane.b32.xlu0 %v6322, 112
        %v6362 = vpop.permute.xlu0 %6361
        %6363 = vrot.lane.b32.xlu0 %v6323, 112
        %v6364 = vpop.permute.xlu0 %6363
        %6365 = vrot.lane.b32.xlu0 %v6324, 112
        %v6366 = vpop.permute.xlu0 %6365
        %6367 = vrot.lane.b32.xlu0 %v6325, 112
        %v6368 = vpop.permute.xlu0 %6367
        %6369 = vrot.lane.b32.xlu0 %v6326, 112
        %v6370 = vpop.permute.xlu0 %6369
        %6371 = vrot.lane.b32.xlu0 %v6327, 112
        %v6372 = vpop.permute.xlu0 %6371
        %6373 = vrot.lane.b32.xlu0 %v6328, 112
        %v6374 = vpop.permute.xlu0 %6373
        %6375 = vrot.lane.b32.xlu0 %v6329, 112
        %v6376 = vpop.permute.xlu0 %6375
        %6377 = vrot.lane.b32.xlu0 %v6330, 112
        %v6378 = vpop.permute.xlu0 %6377
        %vm6395 = vcmask 1048448
        %6396 = vst.msk [vmem:[#allocation5] sm:$0xff] %vm6395, %v6348
        %6397 = vst.msk [vmem:[#allocation5 + $0x8] sm:$0xff] %vm6395, %v6350
        %6398 = vst.msk [vmem:[#allocation5 + $0x10] sm:$0xff] %vm6395, %v6352
        %6399 = vst.msk [vmem:[#allocation5 + $0x18] sm:$0xff] %vm6395, %v6354
        %6400 = vst.msk [vmem:[#allocation5 + $0x20] sm:$0xff] %vm6395, %v6356
        %6401 = vst.msk [vmem:[#allocation5 + $0x28] sm:$0xff] %vm6395, %v6358
        %6402 = vst.msk [vmem:[#allocation5 + $0x30] sm:$0xff] %vm6395, %v6360
        %6403 = vst.msk [vmem:[#allocation5 + $0x38] sm:$0xff] %vm6395, %v6362
        %6404 = vst.msk [vmem:[#allocation5 + $0x40] sm:$0xff] %vm6395, %v6364
        %6405 = vst.msk [vmem:[#allocation5 + $0x48] sm:$0xff] %vm6395, %v6366
        %6406 = vst.msk [vmem:[#allocation5 + $0x50] sm:$0xff] %vm6395, %v6368
        %6407 = vst.msk [vmem:[#allocation5 + $0x58] sm:$0xff] %vm6395, %v6370
        %6408 = vst.msk [vmem:[#allocation5 + $0x60] sm:$0xff] %vm6395, %v6372
        %6409 = vst.msk [vmem:[#allocation5 + $0x68] sm:$0xff] %vm6395, %v6374
        %6410 = vst.msk [vmem:[#allocation5 + $0x70] sm:$0xff] %vm6395, %v6376
        %6411 = vst.msk [vmem:[#allocation5 + $0x78] sm:$0xff] %vm6395, %v6378
        %v6412 = vld [vmem:[#allocation5] sm:$0xff]
        %v6413 = vld [vmem:[#allocation5 + $0x8] sm:$0xff]
        %v6414 = vld [vmem:[#allocation5 + $0x10] sm:$0xff]
        %v6415 = vld [vmem:[#allocation5 + $0x18] sm:$0xff]
        %v6416 = vld [vmem:[#allocation5 + $0x20] sm:$0xff]
        %v6417 = vld [vmem:[#allocation5 + $0x28] sm:$0xff]
        %v6418 = vld [vmem:[#allocation5 + $0x30] sm:$0xff]
        %v6419 = vld [vmem:[#allocation5 + $0x38] sm:$0xff]
        %v6420 = vld [vmem:[#allocation5 + $0x40] sm:$0xff]
        %v6421 = vld [vmem:[#allocation5 + $0x48] sm:$0xff]
        %v6422 = vld [vmem:[#allocation5 + $0x50] sm:$0xff]
        %v6423 = vld [vmem:[#allocation5 + $0x58] sm:$0xff]
        %v6424 = vld [vmem:[#allocation5 + $0x60] sm:$0xff]
        %v6425 = vld [vmem:[#allocation5 + $0x68] sm:$0xff]
        %v6426 = vld [vmem:[#allocation5 + $0x70] sm:$0xff]
        %v6427 = vld [vmem:[#allocation5 + $0x78] sm:$0xff]
        %v6428 = vld [vmem:[#allocation15] sm:$0xff]
        %v6429 = vld [vmem:[#allocation15 + $0x8] sm:$0xff]
        %v6430 = vld [vmem:[#allocation15 + $0x10] sm:$0xff]
        %v6431 = vld [vmem:[#allocation15 + $0x18] sm:$0xff]
        %v6432 = vld [vmem:[#allocation15 + $0x20] sm:$0xff]
        %v6433 = vld [vmem:[#allocation15 + $0x28] sm:$0xff]
        %v6434 = vld [vmem:[#allocation15 + $0x30] sm:$0xff]
        %v6435 = vld [vmem:[#allocation15 + $0x38] sm:$0xff]
        %v6436 = vld [vmem:[#allocation15 + $0x40] sm:$0xff]
        %v6437 = vld [vmem:[#allocation15 + $0x48] sm:$0xff]
        %v6438 = vld [vmem:[#allocation15 + $0x50] sm:$0xff]
        %v6439 = vld [vmem:[#allocation15 + $0x58] sm:$0xff]
        %v6440 = vld [vmem:[#allocation15 + $0x60] sm:$0xff]
        %v6441 = vld [vmem:[#allocation15 + $0x68] sm:$0xff]
        %v6442 = vld [vmem:[#allocation15 + $0x70] sm:$0xff]
        %v6443 = vld [vmem:[#allocation15 + $0x78] sm:$0xff]
        %v6444 = vld [vmem:[%s6] sm:$0x1]
        %v6446 = vlaneseq
        %v6447 = vshrl.u32 %v6446, 7
        %v6448 = vsub.s32 0, %v6447
        %v6449 = vrot.slane %v6444, %v6448
        %6451 = vmatprep.subr.mxu0 0.0
        %6452 = vmatpush1.msra.mxu0 %v6443
        %6453 = vmatprep.subr.mxu0 0.0
        %6454 = vmatpush1.msra.mxu0 %v6442
        %6455 = vmatprep.subr.mxu0 0.0
        %6456 = vmatpush1.msra.mxu0 %v6441
        %6457 = vmatprep.subr.mxu0 0.0
        %6458 = vmatpush1.msra.mxu0 %v6440
        %6459 = vmatprep.subr.mxu0 0.0
        %6460 = vmatpush1.msra.mxu0 %v6439
        %6461 = vmatprep.subr.mxu0 0.0
        %6462 = vmatpush1.msra.mxu0 %v6438
        %6463 = vmatprep.subr.mxu0 0.0
        %6464 = vmatpush1.msra.mxu0 %v6437
        %6465 = vmatprep.subr.mxu0 0.0
        %6466 = vmatpush1.msra.mxu0 %v6436
        %6467 = vmatprep.subr.mxu0 0.0
        %6468 = vmatpush1.msra.mxu0 %v6435
        %6469 = vmatprep.subr.mxu0 0.0
        %6470 = vmatpush1.msra.mxu0 %v6434
        %6471 = vmatprep.subr.mxu0 0.0
        %6472 = vmatpush1.msra.mxu0 %v6433
        %6473 = vmatprep.subr.mxu0 0.0
        %6474 = vmatpush1.msra.mxu0 %v6432
        %6475 = vmatprep.subr.mxu0 0.0
        %6476 = vmatpush1.msra.mxu0 %v6431
        %6477 = vmatprep.subr.mxu0 0.0
        %6478 = vmatpush1.msra.mxu0 %v6430
        %6479 = vmatprep.subr.mxu0 0.0
        %6480 = vmatpush1.msra.mxu0 %v6429
        %6481 = vmatprep.subr.mxu0 0.0
        %6482 = vmatpush1.msra.mxu0 %v6428
        %6483 = vmatprep.subr.mxu0 0.0
        %6484 = vmatpush2.msra.mxu0 0.0
        %6485 = vmatprep.subr.mxu0 0.0
        %6486 = vmatpush2.msra.mxu0 0.0
        %6487 = vmatprep.subr.mxu0 0.0
        %6488 = vmatpush2.msra.mxu0 0.0
        %6489 = vmatprep.subr.mxu0 0.0
        %6490 = vmatpush2.msra.mxu0 0.0
        %6491 = vmatprep.subr.mxu0 0.0
        %6492 = vmatpush2.msra.mxu0 0.0
        %6493 = vmatprep.subr.mxu0 0.0
        %6494 = vmatpush2.msra.mxu0 0.0
        %6495 = vmatprep.subr.mxu0 0.0
        %6496 = vmatpush2.msra.mxu0 0.0
        %6497 = vmatprep.subr.mxu0 0.0
        %6498 = vmatpush2.msra.mxu0 0.0
        %6499 = vmatprep.subr.mxu0 0.0
        %6500 = vmatpush2.msra.mxu0 0.0
        %6501 = vmatprep.subr.mxu0 0.0
        %6502 = vmatpush2.msra.mxu0 0.0
        %6503 = vmatprep.subr.mxu0 0.0
        %6504 = vmatpush2.msra.mxu0 0.0
        %6505 = vmatprep.subr.mxu0 0.0
        %6506 = vmatpush2.msra.mxu0 0.0
        %6507 = vmatprep.subr.mxu0 0.0
        %6508 = vmatpush2.msra.mxu0 0.0
        %6509 = vmatprep.subr.mxu0 0.0
        %6510 = vmatpush2.msra.mxu0 0.0
        %6511 = vmatprep.subr.mxu0 0.0
        %6512 = vmatpush2.msra.mxu0 0.0
        %6513 = vmatprep.subr.mxu0 0.0
        %6514 = vmatpush2.msra.mxu0 0.0
        %6515 = vmatprep.mubr.f32.mxu0 0.0
        %6516 = vmatmul.mubr.f32.gmra.mxu0 %v6412
        %v6517 = vpop.f32.mrf.mxu0
        %v6518 = vadd.f32 %v6449, %v6517
        %v6519 = vpop.f32.mrf.mxu0
        %6520 = vmatprep.mubr.f32.mxu0 0.0
        %6521 = vmatmul.mubr.f32.gmra.mxu0 %v6413
        %v6522 = vpop.f32.mrf.mxu0
        %v6523 = vadd.f32 %v6449, %v6522
        %v6524 = vpop.f32.mrf.mxu0
        %6525 = vmatprep.mubr.f32.mxu0 0.0
        %6526 = vmatmul.mubr.f32.gmra.mxu0 %v6414
        %v6527 = vpop.f32.mrf.mxu0
        %v6528 = vadd.f32 %v6449, %v6527
        %v6529 = vpop.f32.mrf.mxu0
        %6530 = vmatprep.mubr.f32.mxu0 0.0
        %6531 = vmatmul.mubr.f32.gmra.mxu0 %v6415
        %v6532 = vpop.f32.mrf.mxu0
        %v6533 = vadd.f32 %v6449, %v6532
        %v6534 = vpop.f32.mrf.mxu0
        %6535 = vmatprep.mubr.f32.mxu0 0.0
        %6536 = vmatmul.mubr.f32.gmra.mxu0 %v6416
        %v6537 = vpop.f32.mrf.mxu0
        %v6538 = vadd.f32 %v6449, %v6537
        %v6539 = vpop.f32.mrf.mxu0
        %6540 = vmatprep.mubr.f32.mxu0 0.0
        %6541 = vmatmul.mubr.f32.gmra.mxu0 %v6417
        %v6542 = vpop.f32.mrf.mxu0
        %v6543 = vadd.f32 %v6449, %v6542
        %v6544 = vpop.f32.mrf.mxu0
        %6545 = vmatprep.mubr.f32.mxu0 0.0
        %6546 = vmatmul.mubr.f32.gmra.mxu0 %v6418
        %v6547 = vpop.f32.mrf.mxu0
        %v6548 = vadd.f32 %v6449, %v6547
        %v6549 = vpop.f32.mrf.mxu0
        %6550 = vmatprep.mubr.f32.mxu0 0.0
        %6551 = vmatmul.mubr.f32.gmra.mxu0 %v6419
        %v6552 = vpop.f32.mrf.mxu0
        %v6553 = vadd.f32 %v6449, %v6552
        %v6554 = vpop.f32.mrf.mxu0
        %6555 = vmatprep.mubr.f32.mxu0 0.0
        %6556 = vmatmul.mubr.f32.gmra.mxu0 %v6420
        %v6557 = vpop.f32.mrf.mxu0
        %v6558 = vadd.f32 %v6449, %v6557
        %v6559 = vpop.f32.mrf.mxu0
        %6560 = vmatprep.mubr.f32.mxu0 0.0
        %6561 = vmatmul.mubr.f32.gmra.mxu0 %v6421
        %v6562 = vpop.f32.mrf.mxu0
        %v6563 = vadd.f32 %v6449, %v6562
        %v6564 = vpop.f32.mrf.mxu0
        %6565 = vmatprep.mubr.f32.mxu0 0.0
        %6566 = vmatmul.mubr.f32.gmra.mxu0 %v6422
        %v6567 = vpop.f32.mrf.mxu0
        %v6568 = vadd.f32 %v6449, %v6567
        %v6569 = vpop.f32.mrf.mxu0
        %6570 = vmatprep.mubr.f32.mxu0 0.0
        %6571 = vmatmul.mubr.f32.gmra.mxu0 %v6423
        %v6572 = vpop.f32.mrf.mxu0
        %v6573 = vadd.f32 %v6449, %v6572
        %v6574 = vpop.f32.mrf.mxu0
        %6575 = vmatprep.mubr.f32.mxu0 0.0
        %6576 = vmatmul.mubr.f32.gmra.mxu0 %v6424
        %v6577 = vpop.f32.mrf.mxu0
        %v6578 = vadd.f32 %v6449, %v6577
        %v6579 = vpop.f32.mrf.mxu0
        %6580 = vmatprep.mubr.f32.mxu0 0.0
        %6581 = vmatmul.mubr.f32.gmra.mxu0 %v6425
        %v6582 = vpop.f32.mrf.mxu0
        %v6583 = vadd.f32 %v6449, %v6582
        %v6584 = vpop.f32.mrf.mxu0
        %6585 = vmatprep.mubr.f32.mxu0 0.0
        %6586 = vmatmul.mubr.f32.gmra.mxu0 %v6426
        %v6587 = vpop.f32.mrf.mxu0
        %v6588 = vadd.f32 %v6449, %v6587
        %v6589 = vpop.f32.mrf.mxu0
        %6590 = vmatprep.mubr.f32.mxu0 0.0
        %6591 = vmatmul.mubr.f32.gmra.mxu0 %v6427
        %v6592 = vpop.f32.mrf.mxu0
        %v6593 = vadd.f32 %v6449, %v6592
        %v6594 = vpop.f32.mrf.mxu0
        %6595 = vdwg.mxu0
        %6596 = vst [vmem:[%s412] sm:$0xff] %v6518
        %6597 = vst [vmem:[%s412 + $0x8] sm:$0xff] %v6523
        %6598 = vst [vmem:[%s412 + $0x10] sm:$0xff] %v6528
        %6599 = vst [vmem:[%s412 + $0x18] sm:$0xff] %v6533
        %6600 = vst [vmem:[%s412 + $0x20] sm:$0xff] %v6538
        %6601 = vst [vmem:[%s412 + $0x28] sm:$0xff] %v6543
        %6602 = vst [vmem:[%s412 + $0x30] sm:$0xff] %v6548
        %6603 = vst [vmem:[%s412 + $0x38] sm:$0xff] %v6553
        %6604 = vst [vmem:[%s412 + $0x40] sm:$0xff] %v6558
        %6605 = vst [vmem:[%s412 + $0x48] sm:$0xff] %v6563
        %6606 = vst [vmem:[%s412 + $0x50] sm:$0xff] %v6568
        %6607 = vst [vmem:[%s412 + $0x58] sm:$0xff] %v6573
        %6608 = vst [vmem:[%s412 + $0x60] sm:$0xff] %v6578
        %6609 = vst [vmem:[%s412 + $0x68] sm:$0xff] %v6583
        %6610 = vst [vmem:[%s412 + $0x70] sm:$0xff] %v6588
        %6611 = vst [vmem:[%s412 + $0x78] sm:$0xff] %v6593
        %s6612 = sand.u32 %s210, 1
        %s6613 = scalar_lea.sflag [#allocation8], %s6612
        %s6614 = sand.u32 %s210, 1
        %s6615 = smul.addr %s6614, 128
        %s6616 = scalar_lea.vmem [#allocation17], %s6615
        // Predicated region
        $region77: #{tpu_custom_call.1} parent=47 // pred_check
          %p6617 = pneg %p220
        $region78: #{tpu_custom_call.1} parent=47 // pred_check_branch
          %6619 = sbr.rel (%p6617) target = $region80
        $region79: #{tpu_custom_call.1} parent=47 // pred_region
          %s6620 = smul.u32 16, %s34
          %s6622 = ssub.s32 2048, 2048
          %6623 = vsyncadd %s6613, %s6622
          %s6624 = smul.addr %s33, 16
          %s6625 = sadd.s32 %s6620, %s6624
          %s6626 = smul.addr %s6625, 128
          %s6627 = scalar_lea.hbm %s7, %s6626
          %s6628 = sshll.u32 %s6616, 4
          %s6629 = int_to_ptr.vmem [resolvable:$true] %s6628
          %6634 = dma.vmem_to_hbm [thread:$0]  %s6629, 2048, %s6627, %s6613, 128, 128, 8
        $region80: #{tpu_custom_call.1} parent=47 // pred_fallthru
          _
      $region48: #{tpu_custom_call.1} parent=5 // pred_fallthru
        _
      %p6635 = scmp.le.s32.totalorder 2, %s24
      // Predicated region
      $region81: #{tpu_custom_call.1} parent=5 // pred_check
        %p6636 = pneg %p6635
      $region82: #{tpu_custom_call.1} parent=5 // pred_check_branch
        %6638 = sbr.rel (%p6636) target = $region84
      $region83: #{tpu_custom_call.1} parent=5 // pred_region
        %s6639 = ssub.s32 %s24, 2
        // Predicated region
        $region85: #{tpu_custom_call.1} parent=83 // pred_check
          %p6640 = pneg %p226
        $region86: #{tpu_custom_call.1} parent=83 // pred_check_branch
          %6642 = sbr.rel (%p6640) target = $region88
        $region87: #{tpu_custom_call.1} parent=83 // pred_region
          %s6643 = sand.u32 %s211, 1
          %s6644 = scalar_lea.sflag [#allocation8], %s6643
          %s6645 = sand.u32 %s211, 1
          %s6646 = smul.addr %s6645, 128
          %s6647 = scalar_lea.vmem [#allocation17], %s6646
          %6648 = dma.done %s6644, 2048
        $region88: #{tpu_custom_call.1} parent=83 // pred_fallthru
          _
      $region84: #{tpu_custom_call.1} parent=5 // pred_fallthru
        _
    $region6: #{tpu_custom_call.1} parent=1 // loop_footer
      %s28 = sadd.s32 1, %s24
    $region7: #{tpu_custom_call.1} parent=1 // loop_footer_branch
      %23 = sbr.rel target = $region3
    $region8: #{tpu_custom_call.1} parent=1 // loop_exit
      _
    %6649 = vsyncpa [#allocation7], 1
    %s6650 = scalar_lea.sflag [#allocation7], 1
    %6651 = vsyncpa %s6650, 1
    %6652 = vsyncpa [#allocation10], 1
    %s6653 = scalar_lea.sflag [#allocation10], 1
    %6654 = vsyncpa %s6653, 1
    %6655 = vsyncpa [#allocation13], 1
    %6656 = vsyncpa [#allocation16], 1
    %6657 = vsyncpa [#allocation8], 1
    %s6658 = scalar_lea.sflag [#allocation8], 1
    %6659 = vsyncpa %s6658, 1

</llo_original>
